<compile_context>
chip_gen: v7x
topology: tpu7x:2x2x1
jax: 0.10.0
libtpu: 0.0.40
codegen_flags: <defaults>
</compile_context>

<pallas_src>
import functools
import math

import jax
import jax.numpy as jnp
from jax.experimental import pallas as pl
from jax.experimental.pallas import tpu as pltpu

F32 = jnp.float32
LN_EPS = 1e-5

# Weights are stored / DMA'd in bf16 and both MXU operands are cast to bf16
# (accumulation stays f32 via preferred_element_type).  Set both to
# jnp.float32 for a strict-f32 run.
WEIGHT_DTYPE = jnp.bfloat16
MATMUL_DTYPE = jnp.bfloat16


# ----------------------------- in-kernel helpers -----------------------------

def _mm(a, b):
    return jnp.dot(a.astype(MATMUL_DTYPE), b.astype(MATMUL_DTYPE),
                   preferred_element_type=jnp.float32)


def _mm_t(a, b):
    # a @ b.T without materializing the transpose (contract last dims).
    return jax.lax.dot_general(
        a.astype(MATMUL_DTYPE), b.astype(MATMUL_DTYPE),
        dimension_numbers=(((1,), (1,)), ((), ())),
        preferred_element_type=jnp.float32)


def _layernorm(x, gamma, beta, eps=LN_EPS):
    mean = jnp.mean(x, axis=-1, keepdims=True)
    var = jnp.mean((x - mean) ** 2, axis=-1, keepdims=True)
    return ((x - mean) * jax.lax.rsqrt(var + eps) * gamma.astype(jnp.float32)
            + beta.astype(jnp.float32))


def _gelu_exact(x):
    # exact GELU (erf), matching torch.nn.GELU(approximate='none')
    return 0.5 * x * (1.0 + jax.lax.erf(x * (1.0 / math.sqrt(2.0))))


def _softmax_lastdim(s):
    s = s - jnp.max(s, axis=-1, keepdims=True)
    p = jnp.exp(s)
    denom = jnp.sum(p, axis=-1, keepdims=True)
    r = pl.reciprocal(denom, approx=True)   # EUP slot
    r = r * (2.0 - denom * r)               # one Newton step -> ~f32 accuracy
    return p * r


# ----------------------------- fused branch kernel -----------------------------
# One grid step = (batch element, query tile).  Computes:
#   [optional chem gate on x and/or kv]
#   attn = MHA(query=x, key=kv, value=kv)
#   h1   = LN1(x + attn)
#   out  = LN2(h1 + FFN(h1) + x)
#   [optional fusion gate + output projection epilogue (last layer, s branch)]

def _branch_kernel(*refs, num_heads, dp, ffn_chunk, gate_q, gate_kv, fuse_out):
    refs = list(refs)
    o_ref = refs.pop()                      # single output, no scratch
    (x_ref, kv_ref,
     wq_ref, bq_ref, wkv_ref, bkv_ref, wo_ref, bo_ref,
     n1g_ref, n1b_ref,
     w1_ref, b1_ref, w2_ref, b2_ref,
     n2g_ref, n2b_ref) = refs[:16]
    extra = refs[16:]
    i = 0
    if gate_q or gate_kv:
        chem_w_ref, chem_b_ref = extra[i], extra[i + 1]
        i += 2
    if fuse_out:
        wg1_ref, wg2_ref, bg_ref, wout_ref, bout_ref = extra[i:i + 5]

    H = wo_ref.shape[1]
    Hp = wq_ref.shape[1]                    # num_heads * dp (lane-padded)
    d = H // num_heads                      # true head dim (used for scaling)
    scale = 1.0 / math.sqrt(d)
    lq = x_ref.shape[0]

    x = x_ref[...].astype(jnp.float32)          # (lq, H) query tile / residual
    kv_tok = kv_ref[...].astype(jnp.float32)    # (lk, H) key/value tokens

    # ---- fused chem gate (first layer only) ----
    if gate_q:
        cg = jax.nn.sigmoid(_mm(x, chem_w_ref[...])
                            + chem_b_ref[...].astype(jnp.float32))
        x = cg * x
    if gate_kv:
        cg = jax.nn.sigmoid(_mm(kv_tok, chem_w_ref[...])
                            + chem_b_ref[...].astype(jnp.float32))
        kv_tok = cg * kv_tok

    # ---- QKV projections (head-major, zero-padded to dp lanes per head) ----
    q = _mm(x, wq_ref[...]) + bq_ref[...].astype(jnp.float32)          # (lq, Hp)
    kvp = _mm(kv_tok, wkv_ref[...]) + bkv_ref[...].astype(jnp.float32)  # (lk, 2Hp)

    # ---- multi-head attention; every slice is 128-lane aligned ----
    o_parts = []
    for h in range(num_heads):
        lo = h * dp
        q_h = q[:, lo:lo + dp]
        k_h = kvp[:, lo:lo + dp]
        v_h = kvp[:, Hp + lo:Hp + lo + dp]
        s = _mm_t(q_h, k_h) * scale          # (lq, lk); padded lanes add 0
        p = _softmax_lastdim(s)
        o_parts.append(_mm(p, v_h))          # (lq, dp)
    o_all = jnp.concatenate(o_parts, axis=-1)                      # (lq, Hp)
    # single full-contraction-width Wo matmul (no per-head K=d matmuls)
    attn = _mm(o_all, wo_ref[...]) + bo_ref[...].astype(jnp.float32)

    h1 = _layernorm(x + attn, n1g_ref[...], n1b_ref[...])

    # ---- FFN with hidden-dim chunking (bounds the GELU intermediate) ----
    Hf = w1_ref.shape[1]
    f = jnp.zeros((lq, H), jnp.float32)
    for c in range(0, Hf, ffn_chunk):
        hid = (_mm(h1, w1_ref[:, c:c + ffn_chunk])
               + b1_ref[:, c:c + ffn_chunk].astype(jnp.float32))
        f = f + _mm(_gelu_exact(hid), w2_ref[c:c + ffn_chunk, :])
    f = f + b2_ref[...].astype(jnp.float32)

    # NB: the torch module intentionally adds the pre-attention input x again.
    out = _layernorm(h1 + f + x, n2g_ref[...], n2b_ref[...])

    # ---- fused fusion-gate + output projection (last layer's s-branch) ----
    if fuse_out:
        t = pl.program_id(1)
        start = pl.multiple_of(t * lq, lq)
        g_rows = kv_ref[pl.ds(start, lq), :].astype(jnp.float32)  # matching g tokens
        gate = jax.nn.sigmoid(_mm(g_rows, wg1_ref[...]) + _mm(out, wg2_ref[...])
                              + bg_ref[...].astype(jnp.float32))
        fused = gate * g_rows + (1.0 - gate) * out
        out = _mm(fused, wout_ref[...]) + bout_ref[...].astype(jnp.float32)

    o_ref[...] = out.astype(o_ref.dtype)


# ----------------------------- branch wrapper -----------------------------

def _pick_tile(n, cap=256):
    if n <= cap:
        return n
    for t in (256, 128):
        if n % t == 0:
            return t
    return n


def _pick_ffn_chunk(hf, cap=1024):
    if hf <= cap:
        return hf
    for c in (1024, 512, 256):
        if hf % c == 0:
            return c
    return hf


def cross_block(x, kv, attn_p, n1g, n1b, w1, b1, w2, b2, n2g, n2b, *,
                num_heads, batch, chem=None, gate_q=False, gate_kv=False,
                fuse=None):
    """One fused cross-attention branch (MHA + LN1 + FFN + LN2, residuals),
    optionally with the chem gate applied to x / kv (first layer) and the
    fusion gate + output projection applied in the epilogue (last layer)."""
    Nq, H = x.shape
    Nk = kv.shape[0]
    Lq, Lk = Nq // batch, Nk // batch
    assert Nq == batch * Lq and Nk == batch * Lk
    assert Lq % 8 == 0 and Lk % 8 == 0, (
        "sequence lengths must be sublane (8) aligned")  # TODO(synk): pad + mask for ragged lengths
    assert (chem is not None) == (gate_q or gate_kv)
    if fuse is not None:
        assert Lq == Lk, "fusion epilogue requires matching g/s lengths"

    d = H // num_heads
    assert d * num_heads == H
    dp = ((d + 127) // 128) * 128          # lane-aligned (padded) head dim
    Hp = num_heads * dp
    Hf = w1.shape[1]

    # --- head-major, lane-padded projection weights (zero pad => exact) ---
    def pad_cols(w):    # (H, H) -> (H, Hp)
        w3 = jnp.pad(w.reshape(H, num_heads, d), ((0, 0), (0, 0), (0, dp - d)))
        return w3.reshape(H, Hp)

    def pad_bias(b):    # (H,) -> (1, Hp)
        b2_ = jnp.pad(b.reshape(num_heads, d), ((0, 0), (0, dp - d)))
        return b2_.reshape(1, Hp)

    def pad_rows(w):    # (H, H) -> (Hp, H)
        w3 = jnp.pad(w.reshape(num_heads, d, H), ((0, 0), (0, dp - d), (0, 0)))
        return w3.reshape(Hp, H)

    wq_p = pad_cols(attn_p['wq'])
    bq_p = pad_bias(attn_p['bq'])
    wkv_p = jnp.concatenate([pad_cols(attn_p['wk']), pad_cols(attn_p['wv'])], axis=1)
    bkv_p = jnp.concatenate([pad_bias(attn_p['bk']), pad_bias(attn_p['bv'])], axis=1)
    wo_p = pad_rows(attn_p['wo'])

    tq = _pick_tile(Lq)
    nt = Lq // tq
    ffn_chunk = _pick_ffn_chunk(Hf)

    # Weights: constant index map -> DMA'd once, resident across the grid.
    # TODO(synk): single-buffer these resident weights (pl.Buffered(1) or a
    # whole-array VMEM memory_space spec) once verified on the target jax
    # version; bf16 storage already halves the footprint.
    def wspec(shape):
        return pl.BlockSpec(shape, lambda b, t: (0, 0))

    in_specs = [
        pl.BlockSpec((tq, H), lambda b, t: (b * nt + t, 0)),   # x query tile
        pl.BlockSpec((Lk, H), lambda b, t: (b, 0)),            # kv (per batch)
        wspec((H, Hp)), wspec((1, Hp)),                        # wq, bq
        wspec((H, 2 * Hp)), wspec((1, 2 * Hp)),                # wkv, bkv
        wspec((Hp, H)), wspec((1, H)),                         # wo, bo
        wspec((1, H)), wspec((1, H)),                          # norm1 g/b
        wspec((H, Hf)), wspec((1, Hf)),                        # ffn w1, b1
        wspec((Hf, H)), wspec((1, H)),                         # ffn w2, b2
        wspec((1, H)), wspec((1, H)),                          # norm2 g/b
    ]
    args = [x, kv,
            wq_p, bq_p, wkv_p, bkv_p, wo_p, attn_p['bo'].reshape(1, H),
            n1g.reshape(1, H), n1b.reshape(1, H),
            w1, b1.reshape(1, Hf), w2, b2.reshape(1, H),
            n2g.reshape(1, H), n2b.reshape(1, H)]
    if chem is not None:
        in_specs += [wspec((H, 1)), wspec((1, 1))]
        args += [chem[0], chem[1]]
    if fuse is not None:
        wg1, wg2, bg, wout, bout = fuse
        in_specs += [wspec((H, H)), wspec((H, H)), wspec((1, H)),
                     wspec((H, H)), wspec((1, H))]
        args += [wg1, wg2, bg.reshape(1, H), wout, bout.reshape(1, H)]

    kern = functools.partial(
        _branch_kernel, num_heads=num_heads, dp=dp, ffn_chunk=ffn_chunk,
        gate_q=gate_q, gate_kv=gate_kv, fuse_out=fuse is not None)

    return pl.pallas_call(
        kern,
        out_shape=jax.ShapeDtypeStruct((Nq, H), F32),
        grid=(batch, nt),
        in_specs=in_specs,
        out_specs=pl.BlockSpec((tq, H), lambda b, t: (b * nt + t, 0)),
        compiler_params=pltpu.CompilerParams(
            dimension_semantics=("parallel", "parallel"),
            vmem_limit_bytes=64 * 1024 * 1024),
    )(*args)


# ----------------------------- model wiring -----------------------------

def balanced_cross_transformer(params, graph_feat, seq_feat, num_heads):
    # graph_feat / seq_feat: (L, B, H) torch-style (batch_first=False)
    Lg, B, H = graph_feat.shape
    Ls = seq_feat.shape[0]
    assert seq_feat.shape[1] == B and seq_feat.shape[2] == H
    assert Lg == Ls, "fusion cat() requires equal graph / sequence lengths"

    # batch-major lane-dense token slabs (B*L, H); one transpose each way at
    # the model boundary only.
    g = graph_feat.transpose(1, 0, 2).reshape(B * Lg, H).astype(F32)
    s = seq_feat.transpose(1, 0, 2).reshape(B * Ls, H).astype(F32)

    chem = (params['chem_w'].reshape(H, 1), params['chem_b'].reshape(1, 1))
    fuse = (params['gate_w1'], params['gate_w2'], params['gate_b'],
            params['out_w'], params['out_b'])

    n_layers = len(params['layers'])
    for li, lp in enumerate(params['layers']):
        first = li == 0
        last = li == n_layers - 1
        # graph tokens attend to (chem-gated, first layer) sequence tokens
        g = cross_block(g, s, lp['g2s'],
                        lp['g_norm1_g'], lp['g_norm1_b'],
                        lp['g_ffn_w1'], lp['g_ffn_b1'],
                        lp['g_ffn_w2'], lp['g_ffn_b2'],
                        lp['g_norm2_g'], lp['g_norm2_b'],
                        num_heads=num_heads, batch=B,
                        chem=chem if first else None, gate_kv=first)
        # sequence tokens attend to graph tokens; the last layer fuses the
        # fusion gate + output projection into this kernel's epilogue.
        s = cross_block(s, g, lp['s2g'],
                        lp['s_norm1_g'], lp['s_norm1_b'],
                        lp['s_ffn_w1'], lp['s_ffn_b1'],
                        lp['s_ffn_w2'], lp['s_ffn_b2'],
                        lp['s_norm2_g'], lp['s_norm2_b'],
                        num_heads=num_heads, batch=B,
                        chem=chem if first else None, gate_q=first,
                        fuse=fuse if last else None)

    return s.reshape(B, Ls, H).transpose(1, 0, 2)


# ----------------------------- params -----------------------------

def init_params(key, H, num_heads=4, num_layers=1):
    n_keys = 24 * num_layers + 8
    keys = iter(jax.random.split(key, n_keys))

    def rnd(shape, scale=0.05):
        w = scale * jax.random.normal(next(keys), shape, dtype=jnp.float32)
        return w.astype(WEIGHT_DTYPE)

    def mha_p():
        return dict(wq=rnd((H, H)), bq=rnd((H,)),
                    wk=rnd((H, H)), bk=rnd((H,)),
                    wv=rnd((H, H)), bv=rnd((H,)),
                    wo=rnd((H, H)), bo=rnd((H,)))

    def ln_p():
        return jnp.ones((H,), WEIGHT_DTYPE), jnp.zeros((H,), WEIGHT_DTYPE)

    layers = []
    for _ in range(num_layers):
        g_n1g, g_n1b = ln_p()
        g_n2g, g_n2b = ln_p()
        s_n1g, s_n1b = ln_p()
        s_n2g, s_n2b = ln_p()
        layers.append(dict(
            g2s=mha_p(),
            g_norm1_g=g_n1g, g_norm1_b=g_n1b,
            g_ffn_w1=rnd((H, 4 * H)), g_ffn_b1=rnd((4 * H,)),
            g_ffn_w2=rnd((4 * H, H)), g_ffn_b2=rnd((H,)),
            g_norm2_g=g_n2g, g_norm2_b=g_n2b,
            s2g=mha_p(),
            s_norm1_g=s_n1g, s_norm1_b=s_n1b,
            s_ffn_w1=rnd((H, 4 * H)), s_ffn_b1=rnd((4 * H,)),
            s_ffn_w2=rnd((4 * H, H)), s_ffn_b2=rnd((H,)),
            s_norm2_g=s_n2g, s_norm2_b=s_n2b,
        ))

    gate_w_full = rnd((2 * H, H))   # transposed torch Linear(2H, H) weight
    return dict(
        layers=layers,
        gate_w1=gate_w_full[:H], gate_w2=gate_w_full[H:], gate_b=rnd((H,)),
        out_w=rnd((H, H)), out_b=rnd((H,)),
        chem_w=rnd((1, H)), chem_b=rnd((1,)),
    )


# ----------------------------- pure-JAX reference -----------------------------

def ref_forward(params, graph_feat, seq_feat, num_heads):
    def f32(a):
        return a.astype(jnp.float32)

    def lin(x, w, b):
        return x @ f32(w) + f32(b)

    def ln(x, g, b, eps=LN_EPS):
        m = jnp.mean(x, -1, keepdims=True)
        v = jnp.mean((x - m) ** 2, -1, keepdims=True)
        return (x - m) / jnp.sqrt(v + eps) * f32(g) + f32(b)

    def gelu(x):
        return 0.5 * x * (1.0 + jax.scipy.special.erf(x / math.sqrt(2.0)))

    def mha(qx, kx, vx, p):
        Lq, B, H = qx.shape
        Lk = kx.shape[0]
        d = H // num_heads
        q = lin(qx, p['wq'], p['bq']).reshape(Lq, B * num_heads, d).transpose(1, 0, 2)
        k = lin(kx, p['wk'], p['bk']).reshape(Lk, B * num_heads, d).transpose(1, 0, 2)
        v = lin(vx, p['wv'], p['bv']).reshape(Lk, B * num_heads, d).transpose(1, 0, 2)
        sc = jnp.einsum('bqd,bkd->bqk', q, k) / math.sqrt(d)
        a = jax.nn.softmax(sc, axis=-1)
        o = jnp.einsum('bqk,bkd->bqd', a, v).transpose(1, 0, 2).reshape(Lq, B, H)
        return lin(o, p['wo'], p['bo'])

    def ffn(x, w1, b1, w2, b2):
        return lin(gelu(lin(x, w1, b1)), w2, b2)

    gate = jax.nn.sigmoid(seq_feat @ f32(params['chem_w']).T + f32(params['chem_b']))
    s = gate * seq_feat
    g = graph_feat
    for lp in params['layers']:
        g_res = g
        g = ln(g + mha(g, s, s, lp['g2s']), lp['g_norm1_g'], lp['g_norm1_b'])
        g = ln(g + ffn(g, lp['g_ffn_w1'], lp['g_ffn_b1'],
                       lp['g_ffn_w2'], lp['g_ffn_b2']) + g_res,
               lp['g_norm2_g'], lp['g_norm2_b'])
        s_res = s
        s = ln(s + mha(s, g, g, lp['s2g']), lp['s_norm1_g'], lp['s_norm1_b'])
        s = ln(s + ffn(s, lp['s_ffn_w1'], lp['s_ffn_b1'],
                       lp['s_ffn_w2'], lp['s_ffn_b2']) + s_res,
               lp['s_norm2_g'], lp['s_norm2_b'])
    fuse_gate = jax.nn.sigmoid(g @ f32(params['gate_w1']) + s @ f32(params['gate_w2'])
                               + f32(params['gate_b']))
    fused = fuse_gate * g + (1 - fuse_gate) * s
    return fused @ f32(params['out_w']) + f32(params['out_b'])


# ----------------------------- main -----------------------------

if __name__ == "__main__":
    H, num_heads, num_layers = 32, 4, 1
    L, B = 8, 2   # graph and sequence lengths must match for the torch fusion cat()

    key = jax.random.PRNGKey(0)
    kp, kg, ks = jax.random.split(key, 3)
    params = init_params(kp, H, num_heads, num_layers)
    graph_feat = jax.random.normal(kg, (L, B, H), dtype=F32)
    seq_feat = jax.random.normal(ks, (L, B, H), dtype=F32)

    fwd = jax.jit(functools.partial(balanced_cross_transformer, num_heads=num_heads))
    out = jax.block_until_ready(fwd(params, graph_feat, seq_feat))

    ref = ref_forward(params, graph_feat, seq_feat, num_heads)
    assert out.shape == (L, B, H)
    err = float(jnp.max(jnp.abs(out - ref)))
    # bf16 MXU operands (f32 accumulation) vs. an f32 reference that uses the
    # same bf16-stored weights => tolerance reflects activation bf16 rounding.
    assert jnp.allclose(out, ref, atol=3e-2, rtol=3e-2), f"max abs err = {err}"

    print("KERNEL_OK")
</pallas_src>

<mosaic_0001>
module attributes {stable_mosaic.version = 11 : i64} {
  func.func @_branch_kernel(%arg0: i32, %arg1: i32, %arg2: memref<8x32xf32, #tpu.memory_space<vmem>>, %arg3: memref<8x32xf32, #tpu.memory_space<vmem>>, %arg4: memref<32x512xbf16, #tpu.memory_space<vmem>>, %arg5: memref<1x512xbf16, #tpu.memory_space<vmem>>, %arg6: memref<32x1024xbf16, #tpu.memory_space<vmem>>, %arg7: memref<1x1024xbf16, #tpu.memory_space<vmem>>, %arg8: memref<512x32xbf16, #tpu.memory_space<vmem>>, %arg9: memref<1x32xbf16, #tpu.memory_space<vmem>>, %arg10: memref<1x32xbf16, #tpu.memory_space<vmem>>, %arg11: memref<1x32xbf16, #tpu.memory_space<vmem>>, %arg12: memref<32x128xbf16, #tpu.memory_space<vmem>>, %arg13: memref<1x128xbf16, #tpu.memory_space<vmem>>, %arg14: memref<128x32xbf16, #tpu.memory_space<vmem>>, %arg15: memref<1x32xbf16, #tpu.memory_space<vmem>>, %arg16: memref<1x32xbf16, #tpu.memory_space<vmem>>, %arg17: memref<1x32xbf16, #tpu.memory_space<vmem>>, %arg18: memref<32x1xbf16, #tpu.memory_space<vmem>>, %arg19: memref<1x1xbf16, #tpu.memory_space<vmem>>, %arg20: memref<8x32xf32, #tpu.memory_space<vmem>>) attributes {dimension_semantics = [#tpu.dimension_semantics<parallel>, #tpu.dimension_semantics<parallel>], iteration_bounds = array<i64: 2, 1>, scalar_prefetch = 0 : i64, scratch_operands = 0 : i64, tpu.core_type = #tpu.core_type<tc>, window_params = [{transform_indices = @transform_0, window_bounds = array<i64: 8, 32>}, {transform_indices = @transform_1, window_bounds = array<i64: 8, 32>}, {pipeline_mode = #tpu.pipeline_mode<synchronous>, transform_indices = @transform_2, window_bounds = array<i64: 32, 512>}, {pipeline_mode = #tpu.pipeline_mode<synchronous>, transform_indices = @transform_3, window_bounds = array<i64: 1, 512>}, {pipeline_mode = #tpu.pipeline_mode<synchronous>, transform_indices = @transform_4, window_bounds = array<i64: 32, 1024>}, {pipeline_mode = #tpu.pipeline_mode<synchronous>, transform_indices = @transform_5, window_bounds = array<i64: 1, 1024>}, {pipeline_mode = #tpu.pipeline_mode<synchronous>, transform_indices = @transform_6, window_bounds = array<i64: 512, 32>}, {pipeline_mode = #tpu.pipeline_mode<synchronous>, transform_indices = @transform_7, window_bounds = array<i64: 1, 32>}, {pipeline_mode = #tpu.pipeline_mode<synchronous>, transform_indices = @transform_8, window_bounds = array<i64: 1, 32>}, {pipeline_mode = #tpu.pipeline_mode<synchronous>, transform_indices = @transform_9, window_bounds = array<i64: 1, 32>}, {pipeline_mode = #tpu.pipeline_mode<synchronous>, transform_indices = @transform_10, window_bounds = array<i64: 32, 128>}, {pipeline_mode = #tpu.pipeline_mode<synchronous>, transform_indices = @transform_11, window_bounds = array<i64: 1, 128>}, {pipeline_mode = #tpu.pipeline_mode<synchronous>, transform_indices = @transform_12, window_bounds = array<i64: 128, 32>}, {pipeline_mode = #tpu.pipeline_mode<synchronous>, transform_indices = @transform_13, window_bounds = array<i64: 1, 32>}, {pipeline_mode = #tpu.pipeline_mode<synchronous>, transform_indices = @transform_14, window_bounds = array<i64: 1, 32>}, {pipeline_mode = #tpu.pipeline_mode<synchronous>, transform_indices = @transform_15, window_bounds = array<i64: 1, 32>}, {pipeline_mode = #tpu.pipeline_mode<synchronous>, transform_indices = @transform_16, window_bounds = array<i64: 32, 1>}, {pipeline_mode = #tpu.pipeline_mode<synchronous>, transform_indices = @transform_17, window_bounds = array<i64: 1, 1>}, {transform_indices = @transform_18, window_bounds = array<i64: 8, 32>}]} {
    %c0 = arith.constant 0 : index
    %c0_0 = arith.constant 0 : index
    %0 = vector.load %arg2[%c0, %c0_0] : memref<8x32xf32, #tpu.memory_space<vmem>>, vector<8x32xf32>
    %c0_1 = arith.constant 0 : index
    %c0_2 = arith.constant 0 : index
    %1 = vector.load %arg3[%c0_1, %c0_2] : memref<8x32xf32, #tpu.memory_space<vmem>>, vector<8x32xf32>
    %c0_3 = arith.constant 0 : index
    %c0_4 = arith.constant 0 : index
    %2 = vector.load %arg18[%c0_3, %c0_4] : memref<32x1xbf16, #tpu.memory_space<vmem>>, vector<32x1xbf16>
    %3 = arith.truncf %1 : vector<8x32xf32> to vector<8x32xbf16>
    %cst = arith.constant dense<0.000000e+00> : vector<8x1xf32>
    %4 = tpu.matmul %3, %2, %cst {dimension_numbers = #tpu.dot_dimension_numbers<[1], [0], [0], [1], [0, 0, 1, 1], [], []>} : vector<8x32xbf16>, vector<32x1xbf16>, vector<8x1xf32> -> vector<8x1xf32>
    %c0_5 = arith.constant 0 : index
    %c0_6 = arith.constant 0 : index
    %5 = vector.load %arg19[%c0_5, %c0_6] : memref<1x1xbf16, #tpu.memory_space<vmem>>, vector<1x1xbf16>
    %6 = arith.extf %5 : vector<1x1xbf16> to vector<1x1xf32>
    %7 = vector.broadcast %6 : vector<1x1xf32> to vector<8x1xf32>
    %8 = arith.addf %4, %7 : vector<8x1xf32>
    %9 = arith.negf %8 : vector<8x1xf32>
    %10 = math.exp %9 : vector<8x1xf32>
    %cst_7 = arith.constant 1.000000e+00 : f32
    %11 = vector.broadcast %cst_7 : f32 to vector<8x1xf32>
    %12 = arith.addf %11, %10 : vector<8x1xf32>
    %13 = arith.divf %11, %12 : vector<8x1xf32>
    %14 = vector.broadcast %13 : vector<8x1xf32> to vector<8x32xf32>
    %15 = arith.mulf %14, %1 : vector<8x32xf32>
    %c0_8 = arith.constant 0 : index
    %c0_9 = arith.constant 0 : index
    %16 = vector.load %arg4[%c0_8, %c0_9] : memref<32x512xbf16, #tpu.memory_space<vmem>>, vector<32x512xbf16>
    %17 = arith.truncf %0 : vector<8x32xf32> to vector<8x32xbf16>
    %cst_10 = arith.constant dense<0.000000e+00> : vector<8x512xf32>
    %18 = tpu.matmul %17, %16, %cst_10 {dimension_numbers = #tpu.dot_dimension_numbers<[1], [0], [0], [1], [0, 0, 1, 1], [], []>} : vector<8x32xbf16>, vector<32x512xbf16>, vector<8x512xf32> -> vector<8x512xf32>
    %c0_11 = arith.constant 0 : index
    %c0_12 = arith.constant 0 : index
    %19 = vector.load %arg5[%c0_11, %c0_12] : memref<1x512xbf16, #tpu.memory_space<vmem>>, vector<1x512xbf16>
    %20 = arith.extf %19 : vector<1x512xbf16> to vector<1x512xf32>
    %21 = vector.broadcast %20 : vector<1x512xf32> to vector<8x512xf32>
    %22 = arith.addf %18, %21 : vector<8x512xf32>
    %c0_13 = arith.constant 0 : index
    %c0_14 = arith.constant 0 : index
    %23 = vector.load %arg6[%c0_13, %c0_14] : memref<32x1024xbf16, #tpu.memory_space<vmem>>, vector<32x1024xbf16>
    %24 = arith.truncf %15 : vector<8x32xf32> to vector<8x32xbf16>
    %cst_15 = arith.constant dense<0.000000e+00> : vector<8x1024xf32>
    %25 = tpu.matmul %24, %23, %cst_15 {dimension_numbers = #tpu.dot_dimension_numbers<[1], [0], [0], [1], [0, 0, 1, 1], [], []>} : vector<8x32xbf16>, vector<32x1024xbf16>, vector<8x1024xf32> -> vector<8x1024xf32>
    %c0_16 = arith.constant 0 : index
    %c0_17 = arith.constant 0 : index
    %26 = vector.load %arg7[%c0_16, %c0_17] : memref<1x1024xbf16, #tpu.memory_space<vmem>>, vector<1x1024xbf16>
    %27 = arith.extf %26 : vector<1x1024xbf16> to vector<1x1024xf32>
    %28 = vector.broadcast %27 : vector<1x1024xf32> to vector<8x1024xf32>
    %29 = arith.addf %25, %28 : vector<8x1024xf32>
    %30 = vector.extract_strided_slice %22 {offsets = [0, 0], sizes = [8, 128], strides = [1, 1]} : vector<8x512xf32> to vector<8x128xf32>
    %31 = vector.extract_strided_slice %29 {offsets = [0, 0], sizes = [8, 128], strides = [1, 1]} : vector<8x1024xf32> to vector<8x128xf32>
    %32 = vector.extract_strided_slice %29 {offsets = [0, 512], sizes = [8, 128], strides = [1, 1]} : vector<8x1024xf32> to vector<8x128xf32>
    %33 = arith.truncf %30 : vector<8x128xf32> to vector<8x128xbf16>
    %34 = arith.truncf %31 : vector<8x128xf32> to vector<8x128xbf16>
    %cst_18 = arith.constant dense<0.000000e+00> : vector<8x8xf32>
    %35 = tpu.matmul %33, %34, %cst_18 {dimension_numbers = #tpu.dot_dimension_numbers<[1], [1], [0], [0], [0, 0, 1, 0], [], []>} : vector<8x128xbf16>, vector<8x128xbf16>, vector<8x8xf32> -> vector<8x8xf32>
    %cst_19 = arith.constant 0.353553385 : f32
    %36 = vector.broadcast %cst_19 : f32 to vector<8x8xf32>
    %37 = arith.mulf %35, %36 : vector<8x8xf32>
    %cst_20 = arith.constant dense<0xFF800000> : vector<8xf32>
    %38 = vector.multi_reduction <maximumf>, %37, %cst_20 [1] : vector<8x8xf32> to vector<8xf32>
    %39 = vector.shape_cast %38 : vector<8xf32> to vector<8x1xf32>
    %40 = vector.broadcast %39 : vector<8x1xf32> to vector<8x8xf32>
    %41 = arith.subf %37, %40 : vector<8x8xf32>
    %42 = math.exp %41 : vector<8x8xf32>
    %cst_21 = arith.constant dense<0.000000e+00> : vector<8xf32>
    %43 = vector.multi_reduction <add>, %42, %cst_21 [1] : vector<8x8xf32> to vector<8xf32>
    %44 = vector.shape_cast %43 : vector<8xf32> to vector<8x1xf32>
    %45 = tpu.reciprocal %44 {approx = true} : vector<8x1xf32> -> vector<8x1xf32>
    %46 = arith.mulf %44, %45 : vector<8x1xf32>
    %cst_22 = arith.constant 2.000000e+00 : f32
    %47 = vector.broadcast %cst_22 : f32 to vector<8x1xf32>
    %48 = arith.subf %47, %46 : vector<8x1xf32>
    %49 = arith.mulf %45, %48 : vector<8x1xf32>
    %50 = vector.broadcast %49 : vector<8x1xf32> to vector<8x8xf32>
    %51 = arith.mulf %42, %50 : vector<8x8xf32>
    %52 = arith.truncf %51 : vector<8x8xf32> to vector<8x8xbf16>
    %53 = arith.truncf %32 : vector<8x128xf32> to vector<8x128xbf16>
    %cst_23 = arith.constant dense<0.000000e+00> : vector<8x128xf32>
    %54 = tpu.matmul %52, %53, %cst_23 {dimension_numbers = #tpu.dot_dimension_numbers<[1], [0], [0], [1], [0, 0, 1, 1], [], []>} : vector<8x8xbf16>, vector<8x128xbf16>, vector<8x128xf32> -> vector<8x128xf32>
    %55 = vector.extract_strided_slice %22 {offsets = [0, 128], sizes = [8, 128], strides = [1, 1]} : vector<8x512xf32> to vector<8x128xf32>
    %56 = vector.extract_strided_slice %29 {offsets = [0, 128], sizes = [8, 128], strides = [1, 1]} : vector<8x1024xf32> to vector<8x128xf32>
    %57 = vector.extract_strided_slice %29 {offsets = [0, 640], sizes = [8, 128], strides = [1, 1]} : vector<8x1024xf32> to vector<8x128xf32>
    %58 = arith.truncf %55 : vector<8x128xf32> to vector<8x128xbf16>
    %59 = arith.truncf %56 : vector<8x128xf32> to vector<8x128xbf16>
    %cst_24 = arith.constant dense<0.000000e+00> : vector<8x8xf32>
    %60 = tpu.matmul %58, %59, %cst_24 {dimension_numbers = #tpu.dot_dimension_numbers<[1], [1], [0], [0], [0, 0, 1, 0], [], []>} : vector<8x128xbf16>, vector<8x128xbf16>, vector<8x8xf32> -> vector<8x8xf32>
    %cst_25 = arith.constant 0.353553385 : f32
    %61 = vector.broadcast %cst_25 : f32 to vector<8x8xf32>
    %62 = arith.mulf %60, %61 : vector<8x8xf32>
    %cst_26 = arith.constant dense<0xFF800000> : vector<8xf32>
    %63 = vector.multi_reduction <maximumf>, %62, %cst_26 [1] : vector<8x8xf32> to vector<8xf32>
    %64 = vector.shape_cast %63 : vector<8xf32> to vector<8x1xf32>
    %65 = vector.broadcast %64 : vector<8x1xf32> to vector<8x8xf32>
    %66 = arith.subf %62, %65 : vector<8x8xf32>
    %67 = math.exp %66 : vector<8x8xf32>
    %cst_27 = arith.constant dense<0.000000e+00> : vector<8xf32>
    %68 = vector.multi_reduction <add>, %67, %cst_27 [1] : vector<8x8xf32> to vector<8xf32>
    %69 = vector.shape_cast %68 : vector<8xf32> to vector<8x1xf32>
    %70 = tpu.reciprocal %69 {approx = true} : vector<8x1xf32> -> vector<8x1xf32>
    %71 = arith.mulf %69, %70 : vector<8x1xf32>
    %cst_28 = arith.constant 2.000000e+00 : f32
    %72 = vector.broadcast %cst_28 : f32 to vector<8x1xf32>
    %73 = arith.subf %72, %71 : vector<8x1xf32>
    %74 = arith.mulf %70, %73 : vector<8x1xf32>
    %75 = vector.broadcast %74 : vector<8x1xf32> to vector<8x8xf32>
    %76 = arith.mulf %67, %75 : vector<8x8xf32>
    %77 = arith.truncf %76 : vector<8x8xf32> to vector<8x8xbf16>
    %78 = arith.truncf %57 : vector<8x128xf32> to vector<8x128xbf16>
    %cst_29 = arith.constant dense<0.000000e+00> : vector<8x128xf32>
    %79 = tpu.matmul %77, %78, %cst_29 {dimension_numbers = #tpu.dot_dimension_numbers<[1], [0], [0], [1], [0, 0, 1, 1], [], []>} : vector<8x8xbf16>, vector<8x128xbf16>, vector<8x128xf32> -> vector<8x128xf32>
    %80 = vector.extract_strided_slice %22 {offsets = [0, 256], sizes = [8, 128], strides = [1, 1]} : vector<8x512xf32> to vector<8x128xf32>
    %81 = vector.extract_strided_slice %29 {offsets = [0, 256], sizes = [8, 128], strides = [1, 1]} : vector<8x1024xf32> to vector<8x128xf32>
    %82 = vector.extract_strided_slice %29 {offsets = [0, 768], sizes = [8, 128], strides = [1, 1]} : vector<8x1024xf32> to vector<8x128xf32>
    %83 = arith.truncf %80 : vector<8x128xf32> to vector<8x128xbf16>
    %84 = arith.truncf %81 : vector<8x128xf32> to vector<8x128xbf16>
    %cst_30 = arith.constant dense<0.000000e+00> : vector<8x8xf32>
    %85 = tpu.matmul %83, %84, %cst_30 {dimension_numbers = #tpu.dot_dimension_numbers<[1], [1], [0], [0], [0, 0, 1, 0], [], []>} : vector<8x128xbf16>, vector<8x128xbf16>, vector<8x8xf32> -> vector<8x8xf32>
    %cst_31 = arith.constant 0.353553385 : f32
    %86 = vector.broadcast %cst_31 : f32 to vector<8x8xf32>
    %87 = arith.mulf %85, %86 : vector<8x8xf32>
    %cst_32 = arith.constant dense<0xFF800000> : vector<8xf32>
    %88 = vector.multi_reduction <maximumf>, %87, %cst_32 [1] : vector<8x8xf32> to vector<8xf32>
    %89 = vector.shape_cast %88 : vector<8xf32> to vector<8x1xf32>
    %90 = vector.broadcast %89 : vector<8x1xf32> to vector<8x8xf32>
    %91 = arith.subf %87, %90 : vector<8x8xf32>
    %92 = math.exp %91 : vector<8x8xf32>
    %cst_33 = arith.constant dense<0.000000e+00> : vector<8xf32>
    %93 = vector.multi_reduction <add>, %92, %cst_33 [1] : vector<8x8xf32> to vector<8xf32>
    %94 = vector.shape_cast %93 : vector<8xf32> to vector<8x1xf32>
    %95 = tpu.reciprocal %94 {approx = true} : vector<8x1xf32> -> vector<8x1xf32>
    %96 = arith.mulf %94, %95 : vector<8x1xf32>
    %cst_34 = arith.constant 2.000000e+00 : f32
    %97 = vector.broadcast %cst_34 : f32 to vector<8x1xf32>
    %98 = arith.subf %97, %96 : vector<8x1xf32>
    %99 = arith.mulf %95, %98 : vector<8x1xf32>
    %100 = vector.broadcast %99 : vector<8x1xf32> to vector<8x8xf32>
    %101 = arith.mulf %92, %100 : vector<8x8xf32>
    %102 = arith.truncf %101 : vector<8x8xf32> to vector<8x8xbf16>
    %103 = arith.truncf %82 : vector<8x128xf32> to vector<8x128xbf16>
    %cst_35 = arith.constant dense<0.000000e+00> : vector<8x128xf32>
    %104 = tpu.matmul %102, %103, %cst_35 {dimension_numbers = #tpu.dot_dimension_numbers<[1], [0], [0], [1], [0, 0, 1, 1], [], []>} : vector<8x8xbf16>, vector<8x128xbf16>, vector<8x128xf32> -> vector<8x128xf32>
    %105 = vector.extract_strided_slice %22 {offsets = [0, 384], sizes = [8, 128], strides = [1, 1]} : vector<8x512xf32> to vector<8x128xf32>
    %106 = vector.extract_strided_slice %29 {offsets = [0, 384], sizes = [8, 128], strides = [1, 1]} : vector<8x1024xf32> to vector<8x128xf32>
    %107 = vector.extract_strided_slice %29 {offsets = [0, 896], sizes = [8, 128], strides = [1, 1]} : vector<8x1024xf32> to vector<8x128xf32>
    %108 = arith.truncf %105 : vector<8x128xf32> to vector<8x128xbf16>
    %109 = arith.truncf %106 : vector<8x128xf32> to vector<8x128xbf16>
    %cst_36 = arith.constant dense<0.000000e+00> : vector<8x8xf32>
    %110 = tpu.matmul %108, %109, %cst_36 {dimension_numbers = #tpu.dot_dimension_numbers<[1], [1], [0], [0], [0, 0, 1, 0], [], []>} : vector<8x128xbf16>, vector<8x128xbf16>, vector<8x8xf32> -> vector<8x8xf32>
    %cst_37 = arith.constant 0.353553385 : f32
    %111 = vector.broadcast %cst_37 : f32 to vector<8x8xf32>
    %112 = arith.mulf %110, %111 : vector<8x8xf32>
    %cst_38 = arith.constant dense<0xFF800000> : vector<8xf32>
    %113 = vector.multi_reduction <maximumf>, %112, %cst_38 [1] : vector<8x8xf32> to vector<8xf32>
    %114 = vector.shape_cast %113 : vector<8xf32> to vector<8x1xf32>
    %115 = vector.broadcast %114 : vector<8x1xf32> to vector<8x8xf32>
    %116 = arith.subf %112, %115 : vector<8x8xf32>
    %117 = math.exp %116 : vector<8x8xf32>
    %cst_39 = arith.constant dense<0.000000e+00> : vector<8xf32>
    %118 = vector.multi_reduction <add>, %117, %cst_39 [1] : vector<8x8xf32> to vector<8xf32>
    %119 = vector.shape_cast %118 : vector<8xf32> to vector<8x1xf32>
    %120 = tpu.reciprocal %119 {approx = true} : vector<8x1xf32> -> vector<8x1xf32>
    %121 = arith.mulf %119, %120 : vector<8x1xf32>
    %cst_40 = arith.constant 2.000000e+00 : f32
    %122 = vector.broadcast %cst_40 : f32 to vector<8x1xf32>
    %123 = arith.subf %122, %121 : vector<8x1xf32>
    %124 = arith.mulf %120, %123 : vector<8x1xf32>
    %125 = vector.broadcast %124 : vector<8x1xf32> to vector<8x8xf32>
    %126 = arith.mulf %117, %125 : vector<8x8xf32>
    %127 = arith.truncf %126 : vector<8x8xf32> to vector<8x8xbf16>
    %128 = arith.truncf %107 : vector<8x128xf32> to vector<8x128xbf16>
    %cst_41 = arith.constant dense<0.000000e+00> : vector<8x128xf32>
    %129 = tpu.matmul %127, %128, %cst_41 {dimension_numbers = #tpu.dot_dimension_numbers<[1], [0], [0], [1], [0, 0, 1, 1], [], []>} : vector<8x8xbf16>, vector<8x128xbf16>, vector<8x128xf32> -> vector<8x128xf32>
    %130 = tpu.concatenate %54, %79, %104, %129 in 1 : vector<8x128xf32>, vector<8x128xf32>, vector<8x128xf32>, vector<8x128xf32> -> vector<8x512xf32>
    %c0_42 = arith.constant 0 : index
    %c0_43 = arith.constant 0 : index
    %131 = vector.load %arg8[%c0_42, %c0_43] : memref<512x32xbf16, #tpu.memory_space<vmem>>, vector<512x32xbf16>
    %132 = arith.truncf %130 : vector<8x512xf32> to vector<8x512xbf16>
    %cst_44 = arith.constant dense<0.000000e+00> : vector<8x32xf32>
    %133 = tpu.matmul %132, %131, %cst_44 {dimension_numbers = #tpu.dot_dimension_numbers<[1], [0], [0], [1], [0, 0, 1, 1], [], []>} : vector<8x512xbf16>, vector<512x32xbf16>, vector<8x32xf32> -> vector<8x32xf32>
    %c0_45 = arith.constant 0 : index
    %c0_46 = arith.constant 0 : index
    %134 = vector.load %arg9[%c0_45, %c0_46] : memref<1x32xbf16, #tpu.memory_space<vmem>>, vector<1x32xbf16>
    %135 = arith.extf %134 : vector<1x32xbf16> to vector<1x32xf32>
    %136 = vector.broadcast %135 : vector<1x32xf32> to vector<8x32xf32>
    %137 = arith.addf %133, %136 : vector<8x32xf32>
    %138 = arith.addf %0, %137 : vector<8x32xf32>
    %c0_47 = arith.constant 0 : index
    %c0_48 = arith.constant 0 : index
    %139 = vector.load %arg10[%c0_47, %c0_48] : memref<1x32xbf16, #tpu.memory_space<vmem>>, vector<1x32xbf16>
    %c0_49 = arith.constant 0 : index
    %c0_50 = arith.constant 0 : index
    %140 = vector.load %arg11[%c0_49, %c0_50] : memref<1x32xbf16, #tpu.memory_space<vmem>>, vector<1x32xbf16>
    %cst_51 = arith.constant dense<0.000000e+00> : vector<8xf32>
    %141 = vector.multi_reduction <add>, %138, %cst_51 [1] : vector<8x32xf32> to vector<8xf32>
    %142 = vector.shape_cast %141 : vector<8xf32> to vector<8x1xf32>
    %cst_52 = arith.constant 3.200000e+01 : f32
    %143 = vector.broadcast %cst_52 : f32 to vector<8x1xf32>
    %144 = arith.divf %142, %143 : vector<8x1xf32>
    %145 = vector.broadcast %144 : vector<8x1xf32> to vector<8x32xf32>
    %146 = arith.subf %138, %145 : vector<8x32xf32>
    %147 = arith.mulf %146, %146 : vector<8x32xf32>
    %cst_53 = arith.constant dense<0.000000e+00> : vector<8xf32>
    %148 = vector.multi_reduction <add>, %147, %cst_53 [1] : vector<8x32xf32> to vector<8xf32>
    %149 = vector.shape_cast %148 : vector<8xf32> to vector<8x1xf32>
    %cst_54 = arith.constant 3.200000e+01 : f32
    %150 = vector.broadcast %cst_54 : f32 to vector<8x1xf32>
    %151 = arith.divf %149, %150 : vector<8x1xf32>
    %152 = vector.broadcast %144 : vector<8x1xf32> to vector<8x32xf32>
    %153 = arith.subf %138, %152 : vector<8x32xf32>
    %cst_55 = arith.constant 9.99999974E-6 : f32
    %154 = vector.broadcast %cst_55 : f32 to vector<8x1xf32>
    %155 = arith.addf %151, %154 : vector<8x1xf32>
    %156 = math.rsqrt %155 : vector<8x1xf32>
    %157 = vector.broadcast %156 : vector<8x1xf32> to vector<8x32xf32>
    %158 = arith.mulf %153, %157 : vector<8x32xf32>
    %159 = arith.extf %139 : vector<1x32xbf16> to vector<1x32xf32>
    %160 = vector.broadcast %159 : vector<1x32xf32> to vector<8x32xf32>
    %161 = arith.mulf %158, %160 : vector<8x32xf32>
    %162 = arith.extf %140 : vector<1x32xbf16> to vector<1x32xf32>
    %163 = vector.broadcast %162 : vector<1x32xf32> to vector<8x32xf32>
    %164 = arith.addf %161, %163 : vector<8x32xf32>
    %cst_56 = arith.constant 0.000000e+00 : f32
    %165 = vector.broadcast %cst_56 : f32 to vector<8x32xf32>
    %c0_57 = arith.constant 0 : index
    %c0_58 = arith.constant 0 : index
    %166 = vector.load %arg12[%c0_57, %c0_58] : memref<32x128xbf16, #tpu.memory_space<vmem>>, vector<32x128xbf16>
    %167 = arith.truncf %164 : vector<8x32xf32> to vector<8x32xbf16>
    %cst_59 = arith.constant dense<0.000000e+00> : vector<8x128xf32>
    %168 = tpu.matmul %167, %166, %cst_59 {dimension_numbers = #tpu.dot_dimension_numbers<[1], [0], [0], [1], [0, 0, 1, 1], [], []>} : vector<8x32xbf16>, vector<32x128xbf16>, vector<8x128xf32> -> vector<8x128xf32>
    %c0_60 = arith.constant 0 : index
    %c0_61 = arith.constant 0 : index
    %169 = vector.load %arg13[%c0_60, %c0_61] : memref<1x128xbf16, #tpu.memory_space<vmem>>, vector<1x128xbf16>
    %170 = arith.extf %169 : vector<1x128xbf16> to vector<1x128xf32>
    %171 = vector.broadcast %170 : vector<1x128xf32> to vector<8x128xf32>
    %172 = arith.addf %168, %171 : vector<8x128xf32>
    %cst_62 = arith.constant 5.000000e-01 : f32
    %173 = vector.broadcast %cst_62 : f32 to vector<8x128xf32>
    %174 = arith.mulf %173, %172 : vector<8x128xf32>
    %cst_63 = arith.constant 0.707106769 : f32
    %175 = vector.broadcast %cst_63 : f32 to vector<8x128xf32>
    %176 = arith.mulf %172, %175 : vector<8x128xf32>
    %177 = math.erf %176 : vector<8x128xf32>
    %cst_64 = arith.constant 1.000000e+00 : f32
    %178 = vector.broadcast %cst_64 : f32 to vector<8x128xf32>
    %179 = arith.addf %178, %177 : vector<8x128xf32>
    %180 = arith.mulf %174, %179 : vector<8x128xf32>
    %c0_65 = arith.constant 0 : index
    %c0_66 = arith.constant 0 : index
    %181 = vector.load %arg14[%c0_65, %c0_66] : memref<128x32xbf16, #tpu.memory_space<vmem>>, vector<128x32xbf16>
    %182 = arith.truncf %180 : vector<8x128xf32> to vector<8x128xbf16>
    %cst_67 = arith.constant dense<0.000000e+00> : vector<8x32xf32>
    %183 = tpu.matmul %182, %181, %cst_67 {dimension_numbers = #tpu.dot_dimension_numbers<[1], [0], [0], [1], [0, 0, 1, 1], [], []>} : vector<8x128xbf16>, vector<128x32xbf16>, vector<8x32xf32> -> vector<8x32xf32>
    %184 = arith.addf %165, %183 : vector<8x32xf32>
    %c0_68 = arith.constant 0 : index
    %c0_69 = arith.constant 0 : index
    %185 = vector.load %arg15[%c0_68, %c0_69] : memref<1x32xbf16, #tpu.memory_space<vmem>>, vector<1x32xbf16>
    %186 = arith.extf %185 : vector<1x32xbf16> to vector<1x32xf32>
    %187 = vector.broadcast %186 : vector<1x32xf32> to vector<8x32xf32>
    %188 = arith.addf %184, %187 : vector<8x32xf32>
    %189 = arith.addf %164, %188 : vector<8x32xf32>
    %190 = arith.addf %189, %0 : vector<8x32xf32>
    %c0_70 = arith.constant 0 : index
    %c0_71 = arith.constant 0 : index
    %191 = vector.load %arg16[%c0_70, %c0_71] : memref<1x32xbf16, #tpu.memory_space<vmem>>, vector<1x32xbf16>
    %c0_72 = arith.constant 0 : index
    %c0_73 = arith.constant 0 : index
    %192 = vector.load %arg17[%c0_72, %c0_73] : memref<1x32xbf16, #tpu.memory_space<vmem>>, vector<1x32xbf16>
    %cst_74 = arith.constant dense<0.000000e+00> : vector<8xf32>
    %193 = vector.multi_reduction <add>, %190, %cst_74 [1] : vector<8x32xf32> to vector<8xf32>
    %194 = vector.shape_cast %193 : vector<8xf32> to vector<8x1xf32>
    %cst_75 = arith.constant 3.200000e+01 : f32
    %195 = vector.broadcast %cst_75 : f32 to vector<8x1xf32>
    %196 = arith.divf %194, %195 : vector<8x1xf32>
    %197 = vector.broadcast %196 : vector<8x1xf32> to vector<8x32xf32>
    %198 = arith.subf %190, %197 : vector<8x32xf32>
    %199 = arith.mulf %198, %198 : vector<8x32xf32>
    %cst_76 = arith.constant dense<0.000000e+00> : vector<8xf32>
    %200 = vector.multi_reduction <add>, %199, %cst_76 [1] : vector<8x32xf32> to vector<8xf32>
    %201 = vector.shape_cast %200 : vector<8xf32> to vector<8x1xf32>
    %cst_77 = arith.constant 3.200000e+01 : f32
    %202 = vector.broadcast %cst_77 : f32 to vector<8x1xf32>
    %203 = arith.divf %201, %202 : vector<8x1xf32>
    %204 = vector.broadcast %196 : vector<8x1xf32> to vector<8x32xf32>
    %205 = arith.subf %190, %204 : vector<8x32xf32>
    %cst_78 = arith.constant 9.99999974E-6 : f32
    %206 = vector.broadcast %cst_78 : f32 to vector<8x1xf32>
    %207 = arith.addf %203, %206 : vector<8x1xf32>
    %208 = math.rsqrt %207 : vector<8x1xf32>
    %209 = vector.broadcast %208 : vector<8x1xf32> to vector<8x32xf32>
    %210 = arith.mulf %205, %209 : vector<8x32xf32>
    %211 = arith.extf %191 : vector<1x32xbf16> to vector<1x32xf32>
    %212 = vector.broadcast %211 : vector<1x32xf32> to vector<8x32xf32>
    %213 = arith.mulf %210, %212 : vector<8x32xf32>
    %214 = arith.extf %192 : vector<1x32xbf16> to vector<1x32xf32>
    %215 = vector.broadcast %214 : vector<1x32xf32> to vector<8x32xf32>
    %216 = arith.addf %213, %215 : vector<8x32xf32>
    %c0_79 = arith.constant 0 : index
    %c0_80 = arith.constant 0 : index
    %217 = vector.load %arg20[%c0_79, %c0_80] : memref<8x32xf32, #tpu.memory_space<vmem>>, vector<8x32xf32>
    tpu.vector_store %arg20[%c0_79, %c0_80], %216 {strides = array<i32>} : memref<8x32xf32, #tpu.memory_space<vmem>>, vector<8x32xf32>,
    return
  }
  func.func @transform_0(%arg0: i32, %arg1: i32) -> (i32, i32) {
    %c1_i32 = arith.constant 1 : i32
    %0 = arith.muli %arg0, %c1_i32 : i32
    %1 = arith.addi %0, %arg1 : i32
    %c0_i32 = arith.constant 0 : i32
    %c0_i32_0 = arith.constant 0 : i32
    return %1, %c0_i32 : i32, i32
  }
  func.func @transform_1(%arg0: i32, %arg1: i32) -> (i32, i32) {
    %c0_i32 = arith.constant 0 : i32
    %c0_i32_0 = arith.constant 0 : i32
    return %arg0, %c0_i32 : i32, i32
  }
  func.func @transform_2(%arg0: i32, %arg1: i32) -> (i32, i32) {
    %c0_i32 = arith.constant 0 : i32
    %c0_i32_0 = arith.constant 0 : i32
    %c0_i32_1 = arith.constant 0 : i32
    return %c0_i32, %c0_i32_0 : i32, i32
  }
  func.func @transform_3(%arg0: i32, %arg1: i32) -> (i32, i32) {
    %c0_i32 = arith.constant 0 : i32
    %c0_i32_0 = arith.constant 0 : i32
    %c0_i32_1 = arith.constant 0 : i32
    return %c0_i32, %c0_i32_0 : i32, i32
  }
  func.func @transform_4(%arg0: i32, %arg1: i32) -> (i32, i32) {
    %c0_i32 = arith.constant 0 : i32
    %c0_i32_0 = arith.constant 0 : i32
    %c0_i32_1 = arith.constant 0 : i32
    return %c0_i32, %c0_i32_0 : i32, i32
  }
  func.func @transform_5(%arg0: i32, %arg1: i32) -> (i32, i32) {
    %c0_i32 = arith.constant 0 : i32
    %c0_i32_0 = arith.constant 0 : i32
    %c0_i32_1 = arith.constant 0 : i32
    return %c0_i32, %c0_i32_0 : i32, i32
  }
  func.func @transform_6(%arg0: i32, %arg1: i32) -> (i32, i32) {
    %c0_i32 = arith.constant 0 : i32
    %c0_i32_0 = arith.constant 0 : i32
    %c0_i32_1 = arith.constant 0 : i32
    return %c0_i32, %c0_i32_0 : i32, i32
  }
  func.func @transform_7(%arg0: i32, %arg1: i32) -> (i32, i32) {
    %c0_i32 = arith.constant 0 : i32
    %c0_i32_0 = arith.constant 0 : i32
    %c0_i32_1 = arith.constant 0 : i32
    return %c0_i32, %c0_i32_0 : i32, i32
  }
  func.func @transform_8(%arg0: i32, %arg1: i32) -> (i32, i32) {
    %c0_i32 = arith.constant 0 : i32
    %c0_i32_0 = arith.constant 0 : i32
    %c0_i32_1 = arith.constant 0 : i32
    return %c0_i32, %c0_i32_0 : i32, i32
  }
  func.func @transform_9(%arg0: i32, %arg1: i32) -> (i32, i32) {
    %c0_i32 = arith.constant 0 : i32
    %c0_i32_0 = arith.constant 0 : i32
    %c0_i32_1 = arith.constant 0 : i32
    return %c0_i32, %c0_i32_0 : i32, i32
  }
  func.func @transform_10(%arg0: i32, %arg1: i32) -> (i32, i32) {
    %c0_i32 = arith.constant 0 : i32
    %c0_i32_0 = arith.constant 0 : i32
    %c0_i32_1 = arith.constant 0 : i32
    return %c0_i32, %c0_i32_0 : i32, i32
  }
  func.func @transform_11(%arg0: i32, %arg1: i32) -> (i32, i32) {
    %c0_i32 = arith.constant 0 : i32
    %c0_i32_0 = arith.constant 0 : i32
    %c0_i32_1 = arith.constant 0 : i32
    return %c0_i32, %c0_i32_0 : i32, i32
  }
  func.func @transform_12(%arg0: i32, %arg1: i32) -> (i32, i32) {
    %c0_i32 = arith.constant 0 : i32
    %c0_i32_0 = arith.constant 0 : i32
    %c0_i32_1 = arith.constant 0 : i32
    return %c0_i32, %c0_i32_0 : i32, i32
  }
  func.func @transform_13(%arg0: i32, %arg1: i32) -> (i32, i32) {
    %c0_i32 = arith.constant 0 : i32
    %c0_i32_0 = arith.constant 0 : i32
    %c0_i32_1 = arith.constant 0 : i32
    return %c0_i32, %c0_i32_0 : i32, i32
  }
  func.func @transform_14(%arg0: i32, %arg1: i32) -> (i32, i32) {
    %c0_i32 = arith.constant 0 : i32
    %c0_i32_0 = arith.constant 0 : i32
    %c0_i32_1 = arith.constant 0 : i32
    return %c0_i32, %c0_i32_0 : i32, i32
  }
  func.func @transform_15(%arg0: i32, %arg1: i32) -> (i32, i32) {
    %c0_i32 = arith.constant 0 : i32
    %c0_i32_0 = arith.constant 0 : i32
    %c0_i32_1 = arith.constant 0 : i32
    return %c0_i32, %c0_i32_0 : i32, i32
  }
  func.func @transform_16(%arg0: i32, %arg1: i32) -> (i32, i32) {
    %c0_i32 = arith.constant 0 : i32
    %c0_i32_0 = arith.constant 0 : i32
    %c0_i32_1 = arith.constant 0 : i32
    return %c0_i32, %c0_i32_0 : i32, i32
  }
  func.func @transform_17(%arg0: i32, %arg1: i32) -> (i32, i32) {
    %c0_i32 = arith.constant 0 : i32
    %c0_i32_0 = arith.constant 0 : i32
    %c0_i32_1 = arith.constant 0 : i32
    return %c0_i32, %c0_i32_0 : i32, i32
  }
  func.func @transform_18(%arg0: i32, %arg1: i32) -> (i32, i32) {
    %c1_i32 = arith.constant 1 : i32
    %0 = arith.muli %arg0, %c1_i32 : i32
    %1 = arith.addi %0, %arg1 : i32
    %c0_i32 = arith.constant 0 : i32
    %c0_i32_0 = arith.constant 0 : i32
    return %1, %c0_i32 : i32, i32
  }
}

module attributes {stable_mosaic.version = 11 : i64} {
  func.func @_branch_kernel(%arg0: i32, %arg1: i32, %arg2: memref<8x32xf32, #tpu.memory_space<vmem>>, %arg3: memref<8x32xf32, #tpu.memory_space<vmem>>, %arg4: memref<32x512xbf16, #tpu.memory_space<vmem>>, %arg5: memref<1x512xbf16, #tpu.memory_space<vmem>>, %arg6: memref<32x1024xbf16, #tpu.memory_space<vmem>>, %arg7: memref<1x1024xbf16, #tpu.memory_space<vmem>>, %arg8: memref<512x32xbf16, #tpu.memory_space<vmem>>, %arg9: memref<1x32xbf16, #tpu.memory_space<vmem>>, %arg10: memref<1x32xbf16, #tpu.memory_space<vmem>>, %arg11: memref<1x32xbf16, #tpu.memory_space<vmem>>, %arg12: memref<32x128xbf16, #tpu.memory_space<vmem>>, %arg13: memref<1x128xbf16, #tpu.memory_space<vmem>>, %arg14: memref<128x32xbf16, #tpu.memory_space<vmem>>, %arg15: memref<1x32xbf16, #tpu.memory_space<vmem>>, %arg16: memref<1x32xbf16, #tpu.memory_space<vmem>>, %arg17: memref<1x32xbf16, #tpu.memory_space<vmem>>, %arg18: memref<32x1xbf16, #tpu.memory_space<vmem>>, %arg19: memref<1x1xbf16, #tpu.memory_space<vmem>>, %arg20: memref<32x32xbf16, #tpu.memory_space<vmem>>, %arg21: memref<32x32xbf16, #tpu.memory_space<vmem>>, %arg22: memref<1x32xbf16, #tpu.memory_space<vmem>>, %arg23: memref<32x32xbf16, #tpu.memory_space<vmem>>, %arg24: memref<1x32xbf16, #tpu.memory_space<vmem>>, %arg25: memref<8x32xf32, #tpu.memory_space<vmem>>) attributes {dimension_semantics = [#tpu.dimension_semantics<parallel>, #tpu.dimension_semantics<parallel>], iteration_bounds = array<i64: 2, 1>, scalar_prefetch = 0 : i64, scratch_operands = 0 : i64, tpu.core_type = #tpu.core_type<tc>, window_params = [{transform_indices = @transform_0, window_bounds = array<i64: 8, 32>}, {transform_indices = @transform_1, window_bounds = array<i64: 8, 32>}, {pipeline_mode = #tpu.pipeline_mode<synchronous>, transform_indices = @transform_2, window_bounds = array<i64: 32, 512>}, {pipeline_mode = #tpu.pipeline_mode<synchronous>, transform_indices = @transform_3, window_bounds = array<i64: 1, 512>}, {pipeline_mode = #tpu.pipeline_mode<synchronous>, transform_indices = @transform_4, window_bounds = array<i64: 32, 1024>}, {pipeline_mode = #tpu.pipeline_mode<synchronous>, transform_indices = @transform_5, window_bounds = array<i64: 1, 1024>}, {pipeline_mode = #tpu.pipeline_mode<synchronous>, transform_indices = @transform_6, window_bounds = array<i64: 512, 32>}, {pipeline_mode = #tpu.pipeline_mode<synchronous>, transform_indices = @transform_7, window_bounds = array<i64: 1, 32>}, {pipeline_mode = #tpu.pipeline_mode<synchronous>, transform_indices = @transform_8, window_bounds = array<i64: 1, 32>}, {pipeline_mode = #tpu.pipeline_mode<synchronous>, transform_indices = @transform_9, window_bounds = array<i64: 1, 32>}, {pipeline_mode = #tpu.pipeline_mode<synchronous>, transform_indices = @transform_10, window_bounds = array<i64: 32, 128>}, {pipeline_mode = #tpu.pipeline_mode<synchronous>, transform_indices = @transform_11, window_bounds = array<i64: 1, 128>}, {pipeline_mode = #tpu.pipeline_mode<synchronous>, transform_indices = @transform_12, window_bounds = array<i64: 128, 32>}, {pipeline_mode = #tpu.pipeline_mode<synchronous>, transform_indices = @transform_13, window_bounds = array<i64: 1, 32>}, {pipeline_mode = #tpu.pipeline_mode<synchronous>, transform_indices = @transform_14, window_bounds = array<i64: 1, 32>}, {pipeline_mode = #tpu.pipeline_mode<synchronous>, transform_indices = @transform_15, window_bounds = array<i64: 1, 32>}, {pipeline_mode = #tpu.pipeline_mode<synchronous>, transform_indices = @transform_16, window_bounds = array<i64: 32, 1>}, {pipeline_mode = #tpu.pipeline_mode<synchronous>, transform_indices = @transform_17, window_bounds = array<i64: 1, 1>}, {pipeline_mode = #tpu.pipeline_mode<synchronous>, transform_indices = @transform_18, window_bounds = array<i64: 32, 32>}, {pipeline_mode = #tpu.pipeline_mode<synchronous>, transform_indices = @transform_19, window_bounds = array<i64: 32, 32>}, {pipeline_mode = #tpu.pipeline_mode<synchronous>, transform_indices = @transform_20, window_bounds = array<i64: 1, 32>}, {pipeline_mode = #tpu.pipeline_mode<synchronous>, transform_indices = @transform_21, window_bounds = array<i64: 32, 32>}, {pipeline_mode = #tpu.pipeline_mode<synchronous>, transform_indices = @transform_22, window_bounds = array<i64: 1, 32>}, {transform_indices = @transform_23, window_bounds = array<i64: 8, 32>}]} {
    %c0 = arith.constant 0 : index
    %c0_0 = arith.constant 0 : index
    %0 = vector.load %arg2[%c0, %c0_0] : memref<8x32xf32, #tpu.memory_space<vmem>>, vector<8x32xf32>
    %c0_1 = arith.constant 0 : index
    %c0_2 = arith.constant 0 : index
    %1 = vector.load %arg3[%c0_1, %c0_2] : memref<8x32xf32, #tpu.memory_space<vmem>>, vector<8x32xf32>
    %c0_3 = arith.constant 0 : index
    %c0_4 = arith.constant 0 : index
    %2 = vector.load %arg18[%c0_3, %c0_4] : memref<32x1xbf16, #tpu.memory_space<vmem>>, vector<32x1xbf16>
    %3 = arith.truncf %0 : vector<8x32xf32> to vector<8x32xbf16>
    %cst = arith.constant dense<0.000000e+00> : vector<8x1xf32>
    %4 = tpu.matmul %3, %2, %cst {dimension_numbers = #tpu.dot_dimension_numbers<[1], [0], [0], [1], [0, 0, 1, 1], [], []>} : vector<8x32xbf16>, vector<32x1xbf16>, vector<8x1xf32> -> vector<8x1xf32>
    %c0_5 = arith.constant 0 : index
    %c0_6 = arith.constant 0 : index
    %5 = vector.load %arg19[%c0_5, %c0_6] : memref<1x1xbf16, #tpu.memory_space<vmem>>, vector<1x1xbf16>
    %6 = arith.extf %5 : vector<1x1xbf16> to vector<1x1xf32>
    %7 = vector.broadcast %6 : vector<1x1xf32> to vector<8x1xf32>
    %8 = arith.addf %4, %7 : vector<8x1xf32>
    %9 = arith.negf %8 : vector<8x1xf32>
    %10 = math.exp %9 : vector<8x1xf32>
    %cst_7 = arith.constant 1.000000e+00 : f32
    %11 = vector.broadcast %cst_7 : f32 to vector<8x1xf32>
    %12 = arith.addf %11, %10 : vector<8x1xf32>
    %13 = arith.divf %11, %12 : vector<8x1xf32>
    %14 = vector.broadcast %13 : vector<8x1xf32> to vector<8x32xf32>
    %15 = arith.mulf %14, %0 : vector<8x32xf32>
    %c0_8 = arith.constant 0 : index
    %c0_9 = arith.constant 0 : index
    %16 = vector.load %arg4[%c0_8, %c0_9] : memref<32x512xbf16, #tpu.memory_space<vmem>>, vector<32x512xbf16>
    %17 = arith.truncf %15 : vector<8x32xf32> to vector<8x32xbf16>
    %cst_10 = arith.constant dense<0.000000e+00> : vector<8x512xf32>
    %18 = tpu.matmul %17, %16, %cst_10 {dimension_numbers = #tpu.dot_dimension_numbers<[1], [0], [0], [1], [0, 0, 1, 1], [], []>} : vector<8x32xbf16>, vector<32x512xbf16>, vector<8x512xf32> -> vector<8x512xf32>
    %c0_11 = arith.constant 0 : index
    %c0_12 = arith.constant 0 : index
    %19 = vector.load %arg5[%c0_11, %c0_12] : memref<1x512xbf16, #tpu.memory_space<vmem>>, vector<1x512xbf16>
    %20 = arith.extf %19 : vector<1x512xbf16> to vector<1x512xf32>
    %21 = vector.broadcast %20 : vector<1x512xf32> to vector<8x512xf32>
    %22 = arith.addf %18, %21 : vector<8x512xf32>
    %c0_13 = arith.constant 0 : index
    %c0_14 = arith.constant 0 : index
    %23 = vector.load %arg6[%c0_13, %c0_14] : memref<32x1024xbf16, #tpu.memory_space<vmem>>, vector<32x1024xbf16>
    %24 = arith.truncf %1 : vector<8x32xf32> to vector<8x32xbf16>
    %cst_15 = arith.constant dense<0.000000e+00> : vector<8x1024xf32>
    %25 = tpu.matmul %24, %23, %cst_15 {dimension_numbers = #tpu.dot_dimension_numbers<[1], [0], [0], [1], [0, 0, 1, 1], [], []>} : vector<8x32xbf16>, vector<32x1024xbf16>, vector<8x1024xf32> -> vector<8x1024xf32>
    %c0_16 = arith.constant 0 : index
    %c0_17 = arith.constant 0 : index
    %26 = vector.load %arg7[%c0_16, %c0_17] : memref<1x1024xbf16, #tpu.memory_space<vmem>>, vector<1x1024xbf16>
    %27 = arith.extf %26 : vector<1x1024xbf16> to vector<1x1024xf32>
    %28 = vector.broadcast %27 : vector<1x1024xf32> to vector<8x1024xf32>
    %29 = arith.addf %25, %28 : vector<8x1024xf32>
    %30 = vector.extract_strided_slice %22 {offsets = [0, 0], sizes = [8, 128], strides = [1, 1]} : vector<8x512xf32> to vector<8x128xf32>
    %31 = vector.extract_strided_slice %29 {offsets = [0, 0], sizes = [8, 128], strides = [1, 1]} : vector<8x1024xf32> to vector<8x128xf32>
    %32 = vector.extract_strided_slice %29 {offsets = [0, 512], sizes = [8, 128], strides = [1, 1]} : vector<8x1024xf32> to vector<8x128xf32>
    %33 = arith.truncf %30 : vector<8x128xf32> to vector<8x128xbf16>
    %34 = arith.truncf %31 : vector<8x128xf32> to vector<8x128xbf16>
    %cst_18 = arith.constant dense<0.000000e+00> : vector<8x8xf32>
    %35 = tpu.matmul %33, %34, %cst_18 {dimension_numbers = #tpu.dot_dimension_numbers<[1], [1], [0], [0], [0, 0, 1, 0], [], []>} : vector<8x128xbf16>, vector<8x128xbf16>, vector<8x8xf32> -> vector<8x8xf32>
    %cst_19 = arith.constant 0.353553385 : f32
    %36 = vector.broadcast %cst_19 : f32 to vector<8x8xf32>
    %37 = arith.mulf %35, %36 : vector<8x8xf32>
    %cst_20 = arith.constant dense<0xFF800000> : vector<8xf32>
    %38 = vector.multi_reduction <maximumf>, %37, %cst_20 [1] : vector<8x8xf32> to vector<8xf32>
    %39 = vector.shape_cast %38 : vector<8xf32> to vector<8x1xf32>
    %40 = vector.broadcast %39 : vector<8x1xf32> to vector<8x8xf32>
    %41 = arith.subf %37, %40 : vector<8x8xf32>
    %42 = math.exp %41 : vector<8x8xf32>
    %cst_21 = arith.constant dense<0.000000e+00> : vector<8xf32>
    %43 = vector.multi_reduction <add>, %42, %cst_21 [1] : vector<8x8xf32> to vector<8xf32>
    %44 = vector.shape_cast %43 : vector<8xf32> to vector<8x1xf32>
    %45 = tpu.reciprocal %44 {approx = true} : vector<8x1xf32> -> vector<8x1xf32>
    %46 = arith.mulf %44, %45 : vector<8x1xf32>
    %cst_22 = arith.constant 2.000000e+00 : f32
    %47 = vector.broadcast %cst_22 : f32 to vector<8x1xf32>
    %48 = arith.subf %47, %46 : vector<8x1xf32>
    %49 = arith.mulf %45, %48 : vector<8x1xf32>
    %50 = vector.broadcast %49 : vector<8x1xf32> to vector<8x8xf32>
    %51 = arith.mulf %42, %50 : vector<8x8xf32>
    %52 = arith.truncf %51 : vector<8x8xf32> to vector<8x8xbf16>
    %53 = arith.truncf %32 : vector<8x128xf32> to vector<8x128xbf16>
    %cst_23 = arith.constant dense<0.000000e+00> : vector<8x128xf32>
    %54 = tpu.matmul %52, %53, %cst_23 {dimension_numbers = #tpu.dot_dimension_numbers<[1], [0], [0], [1], [0, 0, 1, 1], [], []>} : vector<8x8xbf16>, vector<8x128xbf16>, vector<8x128xf32> -> vector<8x128xf32>
    %55 = vector.extract_strided_slice %22 {offsets = [0, 128], sizes = [8, 128], strides = [1, 1]} : vector<8x512xf32> to vector<8x128xf32>
    %56 = vector.extract_strided_slice %29 {offsets = [0, 128], sizes = [8, 128], strides = [1, 1]} : vector<8x1024xf32> to vector<8x128xf32>
    %57 = vector.extract_strided_slice %29 {offsets = [0, 640], sizes = [8, 128], strides = [1, 1]} : vector<8x1024xf32> to vector<8x128xf32>
    %58 = arith.truncf %55 : vector<8x128xf32> to vector<8x128xbf16>
    %59 = arith.truncf %56 : vector<8x128xf32> to vector<8x128xbf16>
    %cst_24 = arith.constant dense<0.000000e+00> : vector<8x8xf32>
    %60 = tpu.matmul %58, %59, %cst_24 {dimension_numbers = #tpu.dot_dimension_numbers<[1], [1], [0], [0], [0, 0, 1, 0], [], []>} : vector<8x128xbf16>, vector<8x128xbf16>, vector<8x8xf32> -> vector<8x8xf32>
    %cst_25 = arith.constant 0.353553385 : f32
    %61 = vector.broadcast %cst_25 : f32 to vector<8x8xf32>
    %62 = arith.mulf %60, %61 : vector<8x8xf32>
    %cst_26 = arith.constant dense<0xFF800000> : vector<8xf32>
    %63 = vector.multi_reduction <maximumf>, %62, %cst_26 [1] : vector<8x8xf32> to vector<8xf32>
    %64 = vector.shape_cast %63 : vector<8xf32> to vector<8x1xf32>
    %65 = vector.broadcast %64 : vector<8x1xf32> to vector<8x8xf32>
    %66 = arith.subf %62, %65 : vector<8x8xf32>
    %67 = math.exp %66 : vector<8x8xf32>
    %cst_27 = arith.constant dense<0.000000e+00> : vector<8xf32>
    %68 = vector.multi_reduction <add>, %67, %cst_27 [1] : vector<8x8xf32> to vector<8xf32>
    %69 = vector.shape_cast %68 : vector<8xf32> to vector<8x1xf32>
    %70 = tpu.reciprocal %69 {approx = true} : vector<8x1xf32> -> vector<8x1xf32>
    %71 = arith.mulf %69, %70 : vector<8x1xf32>
    %cst_28 = arith.constant 2.000000e+00 : f32
    %72 = vector.broadcast %cst_28 : f32 to vector<8x1xf32>
    %73 = arith.subf %72, %71 : vector<8x1xf32>
    %74 = arith.mulf %70, %73 : vector<8x1xf32>
    %75 = vector.broadcast %74 : vector<8x1xf32> to vector<8x8xf32>
    %76 = arith.mulf %67, %75 : vector<8x8xf32>
    %77 = arith.truncf %76 : vector<8x8xf32> to vector<8x8xbf16>
    %78 = arith.truncf %57 : vector<8x128xf32> to vector<8x128xbf16>
    %cst_29 = arith.constant dense<0.000000e+00> : vector<8x128xf32>
    %79 = tpu.matmul %77, %78, %cst_29 {dimension_numbers = #tpu.dot_dimension_numbers<[1], [0], [0], [1], [0, 0, 1, 1], [], []>} : vector<8x8xbf16>, vector<8x128xbf16>, vector<8x128xf32> -> vector<8x128xf32>
    %80 = vector.extract_strided_slice %22 {offsets = [0, 256], sizes = [8, 128], strides = [1, 1]} : vector<8x512xf32> to vector<8x128xf32>
    %81 = vector.extract_strided_slice %29 {offsets = [0, 256], sizes = [8, 128], strides = [1, 1]} : vector<8x1024xf32> to vector<8x128xf32>
    %82 = vector.extract_strided_slice %29 {offsets = [0, 768], sizes = [8, 128], strides = [1, 1]} : vector<8x1024xf32> to vector<8x128xf32>
    %83 = arith.truncf %80 : vector<8x128xf32> to vector<8x128xbf16>
    %84 = arith.truncf %81 : vector<8x128xf32> to vector<8x128xbf16>
    %cst_30 = arith.constant dense<0.000000e+00> : vector<8x8xf32>
    %85 = tpu.matmul %83, %84, %cst_30 {dimension_numbers = #tpu.dot_dimension_numbers<[1], [1], [0], [0], [0, 0, 1, 0], [], []>} : vector<8x128xbf16>, vector<8x128xbf16>, vector<8x8xf32> -> vector<8x8xf32>
    %cst_31 = arith.constant 0.353553385 : f32
    %86 = vector.broadcast %cst_31 : f32 to vector<8x8xf32>
    %87 = arith.mulf %85, %86 : vector<8x8xf32>
    %cst_32 = arith.constant dense<0xFF800000> : vector<8xf32>
    %88 = vector.multi_reduction <maximumf>, %87, %cst_32 [1] : vector<8x8xf32> to vector<8xf32>
    %89 = vector.shape_cast %88 : vector<8xf32> to vector<8x1xf32>
    %90 = vector.broadcast %89 : vector<8x1xf32> to vector<8x8xf32>
    %91 = arith.subf %87, %90 : vector<8x8xf32>
    %92 = math.exp %91 : vector<8x8xf32>
    %cst_33 = arith.constant dense<0.000000e+00> : vector<8xf32>
    %93 = vector.multi_reduction <add>, %92, %cst_33 [1] : vector<8x8xf32> to vector<8xf32>
    %94 = vector.shape_cast %93 : vector<8xf32> to vector<8x1xf32>
    %95 = tpu.reciprocal %94 {approx = true} : vector<8x1xf32> -> vector<8x1xf32>
    %96 = arith.mulf %94, %95 : vector<8x1xf32>
    %cst_34 = arith.constant 2.000000e+00 : f32
    %97 = vector.broadcast %cst_34 : f32 to vector<8x1xf32>
    %98 = arith.subf %97, %96 : vector<8x1xf32>
    %99 = arith.mulf %95, %98 : vector<8x1xf32>
    %100 = vector.broadcast %99 : vector<8x1xf32> to vector<8x8xf32>
    %101 = arith.mulf %92, %100 : vector<8x8xf32>
    %102 = arith.truncf %101 : vector<8x8xf32> to vector<8x8xbf16>
    %103 = arith.truncf %82 : vector<8x128xf32> to vector<8x128xbf16>
    %cst_35 = arith.constant dense<0.000000e+00> : vector<8x128xf32>
    %104 = tpu.matmul %102, %103, %cst_35 {dimension_numbers = #tpu.dot_dimension_numbers<[1], [0], [0], [1], [0, 0, 1, 1], [], []>} : vector<8x8xbf16>, vector<8x128xbf16>, vector<8x128xf32> -> vector<8x128xf32>
    %105 = vector.extract_strided_slice %22 {offsets = [0, 384], sizes = [8, 128], strides = [1, 1]} : vector<8x512xf32> to vector<8x128xf32>
    %106 = vector.extract_strided_slice %29 {offsets = [0, 384], sizes = [8, 128], strides = [1, 1]} : vector<8x1024xf32> to vector<8x128xf32>
    %107 = vector.extract_strided_slice %29 {offsets = [0, 896], sizes = [8, 128], strides = [1, 1]} : vector<8x1024xf32> to vector<8x128xf32>
    %108 = arith.truncf %105 : vector<8x128xf32> to vector<8x128xbf16>
    %109 = arith.truncf %106 : vector<8x128xf32> to vector<8x128xbf16>
    %cst_36 = arith.constant dense<0.000000e+00> : vector<8x8xf32>
    %110 = tpu.matmul %108, %109, %cst_36 {dimension_numbers = #tpu.dot_dimension_numbers<[1], [1], [0], [0], [0, 0, 1, 0], [], []>} : vector<8x128xbf16>, vector<8x128xbf16>, vector<8x8xf32> -> vector<8x8xf32>
    %cst_37 = arith.constant 0.353553385 : f32
    %111 = vector.broadcast %cst_37 : f32 to vector<8x8xf32>
    %112 = arith.mulf %110, %111 : vector<8x8xf32>
    %cst_38 = arith.constant dense<0xFF800000> : vector<8xf32>
    %113 = vector.multi_reduction <maximumf>, %112, %cst_38 [1] : vector<8x8xf32> to vector<8xf32>
    %114 = vector.shape_cast %113 : vector<8xf32> to vector<8x1xf32>
    %115 = vector.broadcast %114 : vector<8x1xf32> to vector<8x8xf32>
    %116 = arith.subf %112, %115 : vector<8x8xf32>
    %117 = math.exp %116 : vector<8x8xf32>
    %cst_39 = arith.constant dense<0.000000e+00> : vector<8xf32>
    %118 = vector.multi_reduction <add>, %117, %cst_39 [1] : vector<8x8xf32> to vector<8xf32>
    %119 = vector.shape_cast %118 : vector<8xf32> to vector<8x1xf32>
    %120 = tpu.reciprocal %119 {approx = true} : vector<8x1xf32> -> vector<8x1xf32>
    %121 = arith.mulf %119, %120 : vector<8x1xf32>
    %cst_40 = arith.constant 2.000000e+00 : f32
    %122 = vector.broadcast %cst_40 : f32 to vector<8x1xf32>
    %123 = arith.subf %122, %121 : vector<8x1xf32>
    %124 = arith.mulf %120, %123 : vector<8x1xf32>
    %125 = vector.broadcast %124 : vector<8x1xf32> to vector<8x8xf32>
    %126 = arith.mulf %117, %125 : vector<8x8xf32>
    %127 = arith.truncf %126 : vector<8x8xf32> to vector<8x8xbf16>
    %128 = arith.truncf %107 : vector<8x128xf32> to vector<8x128xbf16>
    %cst_41 = arith.constant dense<0.000000e+00> : vector<8x128xf32>
    %129 = tpu.matmul %127, %128, %cst_41 {dimension_numbers = #tpu.dot_dimension_numbers<[1], [0], [0], [1], [0, 0, 1, 1], [], []>} : vector<8x8xbf16>, vector<8x128xbf16>, vector<8x128xf32> -> vector<8x128xf32>
    %130 = tpu.concatenate %54, %79, %104, %129 in 1 : vector<8x128xf32>, vector<8x128xf32>, vector<8x128xf32>, vector<8x128xf32> -> vector<8x512xf32>
    %c0_42 = arith.constant 0 : index
    %c0_43 = arith.constant 0 : index
    %131 = vector.load %arg8[%c0_42, %c0_43] : memref<512x32xbf16, #tpu.memory_space<vmem>>, vector<512x32xbf16>
    %132 = arith.truncf %130 : vector<8x512xf32> to vector<8x512xbf16>
    %cst_44 = arith.constant dense<0.000000e+00> : vector<8x32xf32>
    %133 = tpu.matmul %132, %131, %cst_44 {dimension_numbers = #tpu.dot_dimension_numbers<[1], [0], [0], [1], [0, 0, 1, 1], [], []>} : vector<8x512xbf16>, vector<512x32xbf16>, vector<8x32xf32> -> vector<8x32xf32>
    %c0_45 = arith.constant 0 : index
    %c0_46 = arith.constant 0 : index
    %134 = vector.load %arg9[%c0_45, %c0_46] : memref<1x32xbf16, #tpu.memory_space<vmem>>, vector<1x32xbf16>
    %135 = arith.extf %134 : vector<1x32xbf16> to vector<1x32xf32>
    %136 = vector.broadcast %135 : vector<1x32xf32> to vector<8x32xf32>
    %137 = arith.addf %133, %136 : vector<8x32xf32>
    %138 = arith.addf %15, %137 : vector<8x32xf32>
    %c0_47 = arith.constant 0 : index
    %c0_48 = arith.constant 0 : index
    %139 = vector.load %arg10[%c0_47, %c0_48] : memref<1x32xbf16, #tpu.memory_space<vmem>>, vector<1x32xbf16>
    %c0_49 = arith.constant 0 : index
    %c0_50 = arith.constant 0 : index
    %140 = vector.load %arg11[%c0_49, %c0_50] : memref<1x32xbf16, #tpu.memory_space<vmem>>, vector<1x32xbf16>
    %cst_51 = arith.constant dense<0.000000e+00> : vector<8xf32>
    %141 = vector.multi_reduction <add>, %138, %cst_51 [1] : vector<8x32xf32> to vector<8xf32>
    %142 = vector.shape_cast %141 : vector<8xf32> to vector<8x1xf32>
    %cst_52 = arith.constant 3.200000e+01 : f32
    %143 = vector.broadcast %cst_52 : f32 to vector<8x1xf32>
    %144 = arith.divf %142, %143 : vector<8x1xf32>
    %145 = vector.broadcast %144 : vector<8x1xf32> to vector<8x32xf32>
    %146 = arith.subf %138, %145 : vector<8x32xf32>
    %147 = arith.mulf %146, %146 : vector<8x32xf32>
    %cst_53 = arith.constant dense<0.000000e+00> : vector<8xf32>
    %148 = vector.multi_reduction <add>, %147, %cst_53 [1] : vector<8x32xf32> to vector<8xf32>
    %149 = vector.shape_cast %148 : vector<8xf32> to vector<8x1xf32>
    %cst_54 = arith.constant 3.200000e+01 : f32
    %150 = vector.broadcast %cst_54 : f32 to vector<8x1xf32>
    %151 = arith.divf %149, %150 : vector<8x1xf32>
    %152 = vector.broadcast %144 : vector<8x1xf32> to vector<8x32xf32>
    %153 = arith.subf %138, %152 : vector<8x32xf32>
    %cst_55 = arith.constant 9.99999974E-6 : f32
    %154 = vector.broadcast %cst_55 : f32 to vector<8x1xf32>
    %155 = arith.addf %151, %154 : vector<8x1xf32>
    %156 = math.rsqrt %155 : vector<8x1xf32>
    %157 = vector.broadcast %156 : vector<8x1xf32> to vector<8x32xf32>
    %158 = arith.mulf %153, %157 : vector<8x32xf32>
    %159 = arith.extf %139 : vector<1x32xbf16> to vector<1x32xf32>
    %160 = vector.broadcast %159 : vector<1x32xf32> to vector<8x32xf32>
    %161 = arith.mulf %158, %160 : vector<8x32xf32>
    %162 = arith.extf %140 : vector<1x32xbf16> to vector<1x32xf32>
    %163 = vector.broadcast %162 : vector<1x32xf32> to vector<8x32xf32>
    %164 = arith.addf %161, %163 : vector<8x32xf32>
    %cst_56 = arith.constant 0.000000e+00 : f32
    %165 = vector.broadcast %cst_56 : f32 to vector<8x32xf32>
    %c0_57 = arith.constant 0 : index
    %c0_58 = arith.constant 0 : index
    %166 = vector.load %arg12[%c0_57, %c0_58] : memref<32x128xbf16, #tpu.memory_space<vmem>>, vector<32x128xbf16>
    %167 = arith.truncf %164 : vector<8x32xf32> to vector<8x32xbf16>
    %cst_59 = arith.constant dense<0.000000e+00> : vector<8x128xf32>
    %168 = tpu.matmul %167, %166, %cst_59 {dimension_numbers = #tpu.dot_dimension_numbers<[1], [0], [0], [1], [0, 0, 1, 1], [], []>} : vector<8x32xbf16>, vector<32x128xbf16>, vector<8x128xf32> -> vector<8x128xf32>
    %c0_60 = arith.constant 0 : index
    %c0_61 = arith.constant 0 : index
    %169 = vector.load %arg13[%c0_60, %c0_61] : memref<1x128xbf16, #tpu.memory_space<vmem>>, vector<1x128xbf16>
    %170 = arith.extf %169 : vector<1x128xbf16> to vector<1x128xf32>
    %171 = vector.broadcast %170 : vector<1x128xf32> to vector<8x128xf32>
    %172 = arith.addf %168, %171 : vector<8x128xf32>
    %cst_62 = arith.constant 5.000000e-01 : f32
    %173 = vector.broadcast %cst_62 : f32 to vector<8x128xf32>
    %174 = arith.mulf %173, %172 : vector<8x128xf32>
    %cst_63 = arith.constant 0.707106769 : f32
    %175 = vector.broadcast %cst_63 : f32 to vector<8x128xf32>
    %176 = arith.mulf %172, %175 : vector<8x128xf32>
    %177 = math.erf %176 : vector<8x128xf32>
    %cst_64 = arith.constant 1.000000e+00 : f32
    %178 = vector.broadcast %cst_64 : f32 to vector<8x128xf32>
    %179 = arith.addf %178, %177 : vector<8x128xf32>
    %180 = arith.mulf %174, %179 : vector<8x128xf32>
    %c0_65 = arith.constant 0 : index
    %c0_66 = arith.constant 0 : index
    %181 = vector.load %arg14[%c0_65, %c0_66] : memref<128x32xbf16, #tpu.memory_space<vmem>>, vector<128x32xbf16>
    %182 = arith.truncf %180 : vector<8x128xf32> to vector<8x128xbf16>
    %cst_67 = arith.constant dense<0.000000e+00> : vector<8x32xf32>
    %183 = tpu.matmul %182, %181, %cst_67 {dimension_numbers = #tpu.dot_dimension_numbers<[1], [0], [0], [1], [0, 0, 1, 1], [], []>} : vector<8x128xbf16>, vector<128x32xbf16>, vector<8x32xf32> -> vector<8x32xf32>
    %184 = arith.addf %165, %183 : vector<8x32xf32>
    %c0_68 = arith.constant 0 : index
    %c0_69 = arith.constant 0 : index
    %185 = vector.load %arg15[%c0_68, %c0_69] : memref<1x32xbf16, #tpu.memory_space<vmem>>, vector<1x32xbf16>
    %186 = arith.extf %185 : vector<1x32xbf16> to vector<1x32xf32>
    %187 = vector.broadcast %186 : vector<1x32xf32> to vector<8x32xf32>
    %188 = arith.addf %184, %187 : vector<8x32xf32>
    %189 = arith.addf %164, %188 : vector<8x32xf32>
    %190 = arith.addf %189, %15 : vector<8x32xf32>
    %c0_70 = arith.constant 0 : index
    %c0_71 = arith.constant 0 : index
    %191 = vector.load %arg16[%c0_70, %c0_71] : memref<1x32xbf16, #tpu.memory_space<vmem>>, vector<1x32xbf16>
    %c0_72 = arith.constant 0 : index
    %c0_73 = arith.constant 0 : index
    %192 = vector.load %arg17[%c0_72, %c0_73] : memref<1x32xbf16, #tpu.memory_space<vmem>>, vector<1x32xbf16>
    %cst_74 = arith.constant dense<0.000000e+00> : vector<8xf32>
    %193 = vector.multi_reduction <add>, %190, %cst_74 [1] : vector<8x32xf32> to vector<8xf32>
    %194 = vector.shape_cast %193 : vector<8xf32> to vector<8x1xf32>
    %cst_75 = arith.constant 3.200000e+01 : f32
    %195 = vector.broadcast %cst_75 : f32 to vector<8x1xf32>
    %196 = arith.divf %194, %195 : vector<8x1xf32>
    %197 = vector.broadcast %196 : vector<8x1xf32> to vector<8x32xf32>
    %198 = arith.subf %190, %197 : vector<8x32xf32>
    %199 = arith.mulf %198, %198 : vector<8x32xf32>
    %cst_76 = arith.constant dense<0.000000e+00> : vector<8xf32>
    %200 = vector.multi_reduction <add>, %199, %cst_76 [1] : vector<8x32xf32> to vector<8xf32>
    %201 = vector.shape_cast %200 : vector<8xf32> to vector<8x1xf32>
    %cst_77 = arith.constant 3.200000e+01 : f32
    %202 = vector.broadcast %cst_77 : f32 to vector<8x1xf32>
    %203 = arith.divf %201, %202 : vector<8x1xf32>
    %204 = vector.broadcast %196 : vector<8x1xf32> to vector<8x32xf32>
    %205 = arith.subf %190, %204 : vector<8x32xf32>
    %cst_78 = arith.constant 9.99999974E-6 : f32
    %206 = vector.broadcast %cst_78 : f32 to vector<8x1xf32>
    %207 = arith.addf %203, %206 : vector<8x1xf32>
    %208 = math.rsqrt %207 : vector<8x1xf32>
    %209 = vector.broadcast %208 : vector<8x1xf32> to vector<8x32xf32>
    %210 = arith.mulf %205, %209 : vector<8x32xf32>
    %211 = arith.extf %191 : vector<1x32xbf16> to vector<1x32xf32>
    %212 = vector.broadcast %211 : vector<1x32xf32> to vector<8x32xf32>
    %213 = arith.mulf %210, %212 : vector<8x32xf32>
    %214 = arith.extf %192 : vector<1x32xbf16> to vector<1x32xf32>
    %215 = vector.broadcast %214 : vector<1x32xf32> to vector<8x32xf32>
    %216 = arith.addf %213, %215 : vector<8x32xf32>
    %c8_i32 = arith.constant 8 : i32
    %217 = arith.muli %arg1, %c8_i32 : i32
    %218 = tpu.assume_multiple %217, 8 : i32
    %219 = arith.index_cast %218 : i32 to index
    %c0_79 = arith.constant 0 : index
    %220 = vector.load %arg3[%219, %c0_79] : memref<8x32xf32, #tpu.memory_space<vmem>>, vector<8x32xf32>
    %c0_80 = arith.constant 0 : index
    %c0_81 = arith.constant 0 : index
    %221 = vector.load %arg20[%c0_80, %c0_81] : memref<32x32xbf16, #tpu.memory_space<vmem>>, vector<32x32xbf16>
    %222 = arith.truncf %220 : vector<8x32xf32> to vector<8x32xbf16>
    %cst_82 = arith.constant dense<0.000000e+00> : vector<8x32xf32>
    %223 = tpu.matmul %222, %221, %cst_82 {dimension_numbers = #tpu.dot_dimension_numbers<[1], [0], [0], [1], [0, 0, 1, 1], [], []>} : vector<8x32xbf16>, vector<32x32xbf16>, vector<8x32xf32> -> vector<8x32xf32>
    %c0_83 = arith.constant 0 : index
    %c0_84 = arith.constant 0 : index
    %224 = vector.load %arg21[%c0_83, %c0_84] : memref<32x32xbf16, #tpu.memory_space<vmem>>, vector<32x32xbf16>
    %225 = arith.truncf %216 : vector<8x32xf32> to vector<8x32xbf16>
    %cst_85 = arith.constant dense<0.000000e+00> : vector<8x32xf32>
    %226 = tpu.matmul %225, %224, %cst_85 {dimension_numbers = #tpu.dot_dimension_numbers<[1], [0], [0], [1], [0, 0, 1, 1], [], []>} : vector<8x32xbf16>, vector<32x32xbf16>, vector<8x32xf32> -> vector<8x32xf32>
    %227 = arith.addf %223, %226 : vector<8x32xf32>
    %c0_86 = arith.constant 0 : index
    %c0_87 = arith.constant 0 : index
    %228 = vector.load %arg22[%c0_86, %c0_87] : memref<1x32xbf16, #tpu.memory_space<vmem>>, vector<1x32xbf16>
    %229 = arith.extf %228 : vector<1x32xbf16> to vector<1x32xf32>
    %230 = vector.broadcast %229 : vector<1x32xf32> to vector<8x32xf32>
    %231 = arith.addf %227, %230 : vector<8x32xf32>
    %232 = arith.negf %231 : vector<8x32xf32>
    %233 = math.exp %232 : vector<8x32xf32>
    %cst_88 = arith.constant 1.000000e+00 : f32
    %234 = vector.broadcast %cst_88 : f32 to vector<8x32xf32>
    %235 = arith.addf %234, %233 : vector<8x32xf32>
    %236 = arith.divf %234, %235 : vector<8x32xf32>
    %237 = arith.mulf %236, %220 : vector<8x32xf32>
    %cst_89 = arith.constant 1.000000e+00 : f32
    %238 = vector.broadcast %cst_89 : f32 to vector<8x32xf32>
    %239 = arith.subf %238, %236 : vector<8x32xf32>
    %240 = arith.mulf %239, %216 : vector<8x32xf32>
    %241 = arith.addf %237, %240 : vector<8x32xf32>
    %c0_90 = arith.constant 0 : index
    %c0_91 = arith.constant 0 : index
    %242 = vector.load %arg23[%c0_90, %c0_91] : memref<32x32xbf16, #tpu.memory_space<vmem>>, vector<32x32xbf16>
    %243 = arith.truncf %241 : vector<8x32xf32> to vector<8x32xbf16>
    %cst_92 = arith.constant dense<0.000000e+00> : vector<8x32xf32>
    %244 = tpu.matmul %243, %242, %cst_92 {dimension_numbers = #tpu.dot_dimension_numbers<[1], [0], [0], [1], [0, 0, 1, 1], [], []>} : vector<8x32xbf16>, vector<32x32xbf16>, vector<8x32xf32> -> vector<8x32xf32>
    %c0_93 = arith.constant 0 : index
    %c0_94 = arith.constant 0 : index
    %245 = vector.load %arg24[%c0_93, %c0_94] : memref<1x32xbf16, #tpu.memory_space<vmem>>, vector<1x32xbf16>
    %246 = arith.extf %245 : vector<1x32xbf16> to vector<1x32xf32>
    %247 = vector.broadcast %246 : vector<1x32xf32> to vector<8x32xf32>
    %248 = arith.addf %244, %247 : vector<8x32xf32>
    %c0_95 = arith.constant 0 : index
    %c0_96 = arith.constant 0 : index
    %249 = vector.load %arg25[%c0_95, %c0_96] : memref<8x32xf32, #tpu.memory_space<vmem>>, vector<8x32xf32>
    tpu.vector_store %arg25[%c0_95, %c0_96], %248 {strides = array<i32>} : memref<8x32xf32, #tpu.memory_space<vmem>>, vector<8x32xf32>,
    return
  }
  func.func @transform_0(%arg0: i32, %arg1: i32) -> (i32, i32) {
    %c1_i32 = arith.constant 1 : i32
    %0 = arith.muli %arg0, %c1_i32 : i32
    %1 = arith.addi %0, %arg1 : i32
    %c0_i32 = arith.constant 0 : i32
    %c0_i32_0 = arith.constant 0 : i32
    return %1, %c0_i32 : i32, i32
  }
  func.func @transform_1(%arg0: i32, %arg1: i32) -> (i32, i32) {
    %c0_i32 = arith.constant 0 : i32
    %c0_i32_0 = arith.constant 0 : i32
    return %arg0, %c0_i32 : i32, i32
  }
  func.func @transform_2(%arg0: i32, %arg1: i32) -> (i32, i32) {
    %c0_i32 = arith.constant 0 : i32
    %c0_i32_0 = arith.constant 0 : i32
    %c0_i32_1 = arith.constant 0 : i32
    return %c0_i32, %c0_i32_0 : i32, i32
  }
  func.func @transform_3(%arg0: i32, %arg1: i32) -> (i32, i32) {
    %c0_i32 = arith.constant 0 : i32
    %c0_i32_0 = arith.constant 0 : i32
    %c0_i32_1 = arith.constant 0 : i32
    return %c0_i32, %c0_i32_0 : i32, i32
  }
  func.func @transform_4(%arg0: i32, %arg1: i32) -> (i32, i32) {
    %c0_i32 = arith.constant 0 : i32
    %c0_i32_0 = arith.constant 0 : i32
    %c0_i32_1 = arith.constant 0 : i32
    return %c0_i32, %c0_i32_0 : i32, i32
  }
  func.func @transform_5(%arg0: i32, %arg1: i32) -> (i32, i32) {
    %c0_i32 = arith.constant 0 : i32
    %c0_i32_0 = arith.constant 0 : i32
    %c0_i32_1 = arith.constant 0 : i32
    return %c0_i32, %c0_i32_0 : i32, i32
  }
  func.func @transform_6(%arg0: i32, %arg1: i32) -> (i32, i32) {
    %c0_i32 = arith.constant 0 : i32
    %c0_i32_0 = arith.constant 0 : i32
    %c0_i32_1 = arith.constant 0 : i32
    return %c0_i32, %c0_i32_0 : i32, i32
  }
  func.func @transform_7(%arg0: i32, %arg1: i32) -> (i32, i32) {
    %c0_i32 = arith.constant 0 : i32
    %c0_i32_0 = arith.constant 0 : i32
    %c0_i32_1 = arith.constant 0 : i32
    return %c0_i32, %c0_i32_0 : i32, i32
  }
  func.func @transform_8(%arg0: i32, %arg1: i32) -> (i32, i32) {
    %c0_i32 = arith.constant 0 : i32
    %c0_i32_0 = arith.constant 0 : i32
    %c0_i32_1 = arith.constant 0 : i32
    return %c0_i32, %c0_i32_0 : i32, i32
  }
  func.func @transform_9(%arg0: i32, %arg1: i32) -> (i32, i32) {
    %c0_i32 = arith.constant 0 : i32
    %c0_i32_0 = arith.constant 0 : i32
    %c0_i32_1 = arith.constant 0 : i32
    return %c0_i32, %c0_i32_0 : i32, i32
  }
  func.func @transform_10(%arg0: i32, %arg1: i32) -> (i32, i32) {
    %c0_i32 = arith.constant 0 : i32
    %c0_i32_0 = arith.constant 0 : i32
    %c0_i32_1 = arith.constant 0 : i32
    return %c0_i32, %c0_i32_0 : i32, i32
  }
  func.func @transform_11(%arg0: i32, %arg1: i32) -> (i32, i32) {
    %c0_i32 = arith.constant 0 : i32
    %c0_i32_0 = arith.constant 0 : i32
    %c0_i32_1 = arith.constant 0 : i32
    return %c0_i32, %c0_i32_0 : i32, i32
  }
  func.func @transform_12(%arg0: i32, %arg1: i32) -> (i32, i32) {
    %c0_i32 = arith.constant 0 : i32
    %c0_i32_0 = arith.constant 0 : i32
    %c0_i32_1 = arith.constant 0 : i32
    return %c0_i32, %c0_i32_0 : i32, i32
  }
  func.func @transform_13(%arg0: i32, %arg1: i32) -> (i32, i32) {
    %c0_i32 = arith.constant 0 : i32
    %c0_i32_0 = arith.constant 0 : i32
    %c0_i32_1 = arith.constant 0 : i32
    return %c0_i32, %c0_i32_0 : i32, i32
  }
  func.func @transform_14(%arg0: i32, %arg1: i32) -> (i32, i32) {
    %c0_i32 = arith.constant 0 : i32
    %c0_i32_0 = arith.constant 0 : i32
    %c0_i32_1 = arith.constant 0 : i32
    return %c0_i32, %c0_i32_0 : i32, i32
  }
  func.func @transform_15(%arg0: i32, %arg1: i32) -> (i32, i32) {
    %c0_i32 = arith.constant 0 : i32
    %c0_i32_0 = arith.constant 0 : i32
    %c0_i32_1 = arith.constant 0 : i32
    return %c0_i32, %c0_i32_0 : i32, i32
  }
  func.func @transform_16(%arg0: i32, %arg1: i32) -> (i32, i32) {
    %c0_i32 = arith.constant 0 : i32
    %c0_i32_0 = arith.constant 0 : i32
    %c0_i32_1 = arith.constant 0 : i32
    return %c0_i32, %c0_i32_0 : i32, i32
  }
  func.func @transform_17(%arg0: i32, %arg1: i32) -> (i32, i32) {
    %c0_i32 = arith.constant 0 : i32
    %c0_i32_0 = arith.constant 0 : i32
    %c0_i32_1 = arith.constant 0 : i32
    return %c0_i32, %c0_i32_0 : i32, i32
  }
  func.func @transform_18(%arg0: i32, %arg1: i32) -> (i32, i32) {
    %c0_i32 = arith.constant 0 : i32
    %c0_i32_0 = arith.constant 0 : i32
    %c0_i32_1 = arith.constant 0 : i32
    return %c0_i32, %c0_i32_0 : i32, i32
  }
  func.func @transform_19(%arg0: i32, %arg1: i32) -> (i32, i32) {
    %c0_i32 = arith.constant 0 : i32
    %c0_i32_0 = arith.constant 0 : i32
    %c0_i32_1 = arith.constant 0 : i32
    return %c0_i32, %c0_i32_0 : i32, i32
  }
  func.func @transform_20(%arg0: i32, %arg1: i32) -> (i32, i32) {
    %c0_i32 = arith.constant 0 : i32
    %c0_i32_0 = arith.constant 0 : i32
    %c0_i32_1 = arith.constant 0 : i32
    return %c0_i32, %c0_i32_0 : i32, i32
  }
  func.func @transform_21(%arg0: i32, %arg1: i32) -> (i32, i32) {
    %c0_i32 = arith.constant 0 : i32
    %c0_i32_0 = arith.constant 0 : i32
    %c0_i32_1 = arith.constant 0 : i32
    return %c0_i32, %c0_i32_0 : i32, i32
  }
  func.func @transform_22(%arg0: i32, %arg1: i32) -> (i32, i32) {
    %c0_i32 = arith.constant 0 : i32
    %c0_i32_0 = arith.constant 0 : i32
    %c0_i32_1 = arith.constant 0 : i32
    return %c0_i32, %c0_i32_0 : i32, i32
  }
  func.func @transform_23(%arg0: i32, %arg1: i32) -> (i32, i32) {
    %c1_i32 = arith.constant 1 : i32
    %0 = arith.muli %arg0, %c1_i32 : i32
    %1 = arith.addi %0, %arg1 : i32
    %c0_i32 = arith.constant 0 : i32
    %c0_i32_0 = arith.constant 0 : i32
    return %1, %c0_i32 : i32, i32
  }
}

</mosaic_0001>

<llo_original>
// kernel: balanced_cross_transformer.2
$region0: #{balanced_cross_transformer.2}
  #allocation0 [shape = 'u32[]', space=smem, size = 0x4, offset = 0x4, fixed_abs, tag = 'smem constant byte address 0x4 - core index']
  #allocation1 [shape = 'u32[144,128]{1,0:T(1,128)}', space=vmem, size = 0x12000, scoped, tag = 'internal scratch']
  #allocation2 [shape = 'bf16[1,1]{1,0:T(2,128)S(1)}', space=vmem, size = 0x200, scoped, tag = 'scoped memory for balanced_cross_transformer.2']
  %s0 = inlined_call_operand.hbm [shape: f32[16,32], index: 0, kind: input, shape index: {}]
  %s1 = inlined_call_operand.hbm [shape: f32[16,32], index: 1, kind: input, shape index: {}]
  %s2 = inlined_call_operand.hbm [shape: bf16[32,512], index: 2, kind: input, shape index: {}]
  %s3 = inlined_call_operand.hbm [shape: bf16[1,512], index: 3, kind: input, shape index: {}]
  %s4 = inlined_call_operand.hbm [shape: bf16[32,1024], index: 4, kind: input, shape index: {}]
  %s5 = inlined_call_operand.hbm [shape: bf16[1,1024], index: 5, kind: input, shape index: {}]
  %s6 = inlined_call_operand.hbm [shape: bf16[512,32], index: 6, kind: input, shape index: {}]
  %s7 = inlined_call_operand.hbm [shape: bf16[1,32], index: 7, kind: input, shape index: {}]
  %s8 = inlined_call_operand.hbm [shape: bf16[1,32], index: 8, kind: input, shape index: {}]
  %s9 = inlined_call_operand.hbm [shape: bf16[1,32], index: 9, kind: input, shape index: {}]
  %s10 = inlined_call_operand.hbm [shape: bf16[32,128], index: 10, kind: input, shape index: {}]
  %s11 = inlined_call_operand.hbm [shape: bf16[1,128], index: 11, kind: input, shape index: {}]
  %s12 = inlined_call_operand.hbm [shape: bf16[128,32], index: 12, kind: input, shape index: {}]
  %s13 = inlined_call_operand.hbm [shape: bf16[1,32], index: 13, kind: input, shape index: {}]
  %s14 = inlined_call_operand.hbm [shape: bf16[1,32], index: 14, kind: input, shape index: {}]
  %s15 = inlined_call_operand.hbm [shape: bf16[1,32], index: 15, kind: input, shape index: {}]
  %s16 = inlined_call_operand.hbm [shape: bf16[32,1], index: 16, kind: input, shape index: {}]
  %s17 = inlined_call_operand.<no memory space> [shape: bf16[1,1], index: 17, kind: input, shape index: {}]
  %s18 = inlined_call_operand.hbm [shape: f32[16,32], index: 18, kind: output, shape index: {}]
  %s19 = sld [smem:[#allocation0]]
  $region173: #{balanced_cross_transformer.2} parent=0
    _
  %s21 = ssub.s32 1, %s19
  %s22 = scalar_select 0, %s21, %s19
  %v23 = vstv %s17
  %24 = vst [vmem:[#allocation2] sm:$0x1] %v23
  $region1: #{balanced_cross_transformer.2} parent=0
    #allocation3 [shape = 'u8[8192]{0}', space=vmem, size = 0x2000, scoped, tag = 'input window, operand 0']
    #allocation4 [shape = 's32[2]{0}', space=sflag, size = 0x8, scoped, tag = 'scoped memory for balanced_cross_transformer.2']
    #allocation5 [shape = 's32[2]{0}', space=sflag, size = 0x8, scoped, tag = 'scoped memory for balanced_cross_transformer.2']
    #allocation6 [shape = 'u8[8192]{0}', space=vmem, size = 0x2000, scoped, tag = 'input window, operand 1']
    #allocation7 [shape = 's32[2]{0}', space=sflag, size = 0x8, scoped, tag = 'scoped memory for balanced_cross_transformer.2']
    #allocation8 [shape = 'u8[32768]{0}', space=vmem, size = 0x8000, scoped, tag = 'input window, operand 2, single buffered']
    #allocation9 [shape = 'u8[2048]{0}', space=vmem, size = 0x800, scoped, tag = 'input window, operand 3, single buffered']
    #allocation10 [shape = 's32[1]{0}', space=sflag, size = 0x4, scoped, tag = 'scoped memory for balanced_cross_transformer.2']
    #allocation11 [shape = 'u8[65536]{0}', space=vmem, size = 0x10000, scoped, tag = 'input window, operand 4, single buffered']
    #allocation12 [shape = 'u8[4096]{0}', space=vmem, size = 0x1000, scoped, tag = 'input window, operand 5, single buffered']
    #allocation13 [shape = 's32[1]{0}', space=sflag, size = 0x4, scoped, tag = 'scoped memory for balanced_cross_transformer.2']
    #allocation14 [shape = 'u8[131072]{0}', space=vmem, size = 0x20000, scoped, tag = 'input window, operand 6, single buffered']
    #allocation15 [shape = 'u8[512]{0}', space=vmem, size = 0x400, scoped, tag = 'input window, operand 7, single buffered']
    #allocation16 [shape = 's32[1]{0}', space=sflag, size = 0x4, scoped, tag = 'scoped memory for balanced_cross_transformer.2']
    #allocation17 [shape = 'u8[512]{0}', space=vmem, size = 0x400, scoped, tag = 'input window, operand 8, single buffered']
    #allocation18 [shape = 'u8[512]{0}', space=vmem, size = 0x400, scoped, tag = 'input window, operand 9, single buffered']
    #allocation19 [shape = 's32[1]{0}', space=sflag, size = 0x4, scoped, tag = 'scoped memory for balanced_cross_transformer.2']
    #allocation20 [shape = 'u8[8192]{0}', space=vmem, size = 0x2000, scoped, tag = 'input window, operand 10, single buffered']
    #allocation21 [shape = 'u8[512]{0}', space=vmem, size = 0x400, scoped, tag = 'input window, operand 11, single buffered']
    #allocation22 [shape = 's32[1]{0}', space=sflag, size = 0x4, scoped, tag = 'scoped memory for balanced_cross_transformer.2']
    #allocation23 [shape = 'u8[32768]{0}', space=vmem, size = 0x8000, scoped, tag = 'input window, operand 12, single buffered']
    #allocation24 [shape = 'u8[512]{0}', space=vmem, size = 0x400, scoped, tag = 'input window, operand 13, single buffered']
    #allocation25 [shape = 's32[1]{0}', space=sflag, size = 0x4, scoped, tag = 'scoped memory for balanced_cross_transformer.2']
    #allocation26 [shape = 'u8[512]{0}', space=vmem, size = 0x400, scoped, tag = 'input window, operand 14, single buffered']
    #allocation27 [shape = 'u8[512]{0}', space=vmem, size = 0x400, scoped, tag = 'input window, operand 15, single buffered']
    #allocation28 [shape = 's32[1]{0}', space=sflag, size = 0x4, scoped, tag = 'scoped memory for balanced_cross_transformer.2']
    #allocation29 [shape = 'u8[8192]{0}', space=vmem, size = 0x2000, scoped, tag = 'input window, operand 16, single buffered']
    #allocation30 [shape = 'u8[8192]{0}', space=vmem, size = 0x2000, scoped, tag = 'output window, operand 0']
    %25 = vsyncpa [#allocation4], 0
    %s26 = scalar_lea.sflag [#allocation4], 1
    %27 = vsyncpa %s26, 0
    %28 = vsyncpa [#allocation7], 0
    %s29 = scalar_lea.sflag [#allocation7], 1
    %30 = vsyncpa %s29, 0
    %31 = vsyncpa [#allocation10], 0
    %32 = vsyncpa [#allocation13], 0
    %33 = vsyncpa [#allocation16], 0
    %34 = vsyncpa [#allocation19], 0
    %35 = vsyncpa [#allocation22], 0
    %36 = vsyncpa [#allocation25], 0
    %37 = vsyncpa [#allocation28], 0
    %38 = vsyncpa [#allocation5], 0
    %s39 = scalar_lea.sflag [#allocation5], 1
    %40 = vsyncpa %s39, 0
    loop: start=0, step=1, limit=4
    $region2: #{balanced_cross_transformer.2} parent=1 // loop_pre_header
      _
    $region3: #{balanced_cross_transformer.2} parent=1 // loop_header
      %s42 = sphi 0, %s46
      %p43 = scmp.ge.s32.totalorder %s42, 4
      %s49 = sphi 0, %s61
      %s50 = sphi 0, %s57
      %s51 = sphi 0, %s49
      %s52 = sphi 0, %s50
      %s53 = sphi 0, %s51
      %s54 = sphi 0, %s52
      %s66 = sphi 0, %s68
      %s69 = sphi 0, %s66
      %s70 = sphi 0, %s69
      %s86 = sphi 0, %s70
      %s92 = sphi 0, %s94
      %s95 = sphi 0, %s92
      %s96 = sphi 0, %s95
      %s112 = sphi 0, %s96
      %s116 = sphi 0, %s116
      %s118 = sphi 0, %s116
      %s119 = sphi 0, %s118
      %s133 = sphi 0, %s119
      %s137 = sphi 0, %s137
      %s139 = sphi 0, %s137
      %s140 = sphi 0, %s139
      %s154 = sphi 0, %s140
      %s158 = sphi 0, %s158
      %s160 = sphi 0, %s158
      %s161 = sphi 0, %s160
      %s175 = sphi 0, %s161
      %s179 = sphi 0, %s179
      %s181 = sphi 0, %s179
      %s182 = sphi 0, %s181
      %s196 = sphi 0, %s182
      %s200 = sphi 0, %s200
      %s202 = sphi 0, %s200
      %s203 = sphi 0, %s202
      %s217 = sphi 0, %s203
      %s221 = sphi 0, %s221
      %s223 = sphi 0, %s221
      %s224 = sphi 0, %s223
      %s238 = sphi 0, %s224
      %s242 = sphi 0, %s242
      %s244 = sphi 0, %s242
      %s245 = sphi 0, %s244
      %s259 = sphi 0, %s245
      %s263 = sphi 0, %s263
      %s265 = sphi 0, %s263
      %s266 = sphi 0, %s265
      %s280 = sphi 0, %s266
      %s284 = sphi 0, %s284
      %s286 = sphi 0, %s284
      %s287 = sphi 0, %s286
      %s301 = sphi 0, %s287
      %s305 = sphi 0, %s305
      %s307 = sphi 0, %s305
      %s308 = sphi 0, %s307
      %s322 = sphi 0, %s308
      %s326 = sphi 0, %s326
      %s328 = sphi 0, %s326
      %s329 = sphi 0, %s328
      %s343 = sphi 0, %s329
      %s347 = sphi 0, %s347
      %s349 = sphi 0, %s347
      %s350 = sphi 0, %s349
      %s364 = sphi 0, %s350
      %s368 = sphi 0, %s368
      %s370 = sphi 0, %s368
      %s371 = sphi 0, %s370
      %s385 = sphi 0, %s371
      %s389 = sphi 0, %s389
      %s391 = sphi 0, %s389
      %s392 = sphi 0, %s391
      %s406 = sphi 0, %s392
      %s410 = sphi 0, %s410
      %s412 = sphi 0, %s410
      %s413 = sphi 0, %s412
      %s427 = sphi 0, %s413
      %s431 = sphi 0, %s431
      %s433 = sphi 0, %s431
      %s434 = sphi 0, %s433
      %s448 = sphi 0, %s434
      %s456 = sphi 0, %s458
      %s459 = sphi 0, %s456
      %s460 = sphi 0, %s459
      %s476 = sphi 0, %s460
    $region4: #{balanced_cross_transformer.2} parent=1 // loop_header_branch
      %45 = sbr.rel (%p43) target = $region8
    $region5: #{balanced_cross_transformer.2} parent=1 // loop_body
      %s47 = ssub.s32 %s42, 1
      %s48 = ssub.s32 %s42, 2
      %s55 = sadd.s32 1, %s50
      %p56 = scmp.ge.s32.totalorder %s55, 1
      %s57 = scalar_select %p56, 0, %s55
      %s58 = sadd.s32 1, %s49
      %s59 = scalar_select %p56, %s58, %s49
      %p60 = scmp.ge.s32.totalorder %s59, 2
      %s61 = scalar_select %p60, 0, %s59
      %s62 = sadd.s32 %s49, %s50
      %s63 = sadd.s32 %s61, %s57
      %s64 = ssub.s32 %s62, %s63
      %p65 = scmp.eq.s32.totalorder %s64, 0
      %s67 = sadd.s32 %s66, 1
      %s68 = scalar_select %p65, %s66, %s67
      %p71 = pneg %p65
      %p72 = scmp.eq.s32.totalorder %s42, 1
      %p73 = por %p71, %p72
      %p74 = scmp.ne.s32.totalorder %s66, %s69
      %p75 = scmp.eq.s32.totalorder %s42, 0
      %p76 = por %p74, %p75
      %p77 = scmp.ne.s32.totalorder %s66, %s69
      %p78 = scmp.eq.s32.totalorder %s47, 1
      %p79 = por %p77, %p78
      %p80 = scmp.ne.s32.totalorder %s69, %s70
      %p81 = scmp.eq.s32.totalorder %s47, 0
      %p82 = por %p80, %p81
      %p83 = scmp.ne.s32.totalorder %s69, %s70
      %p84 = scmp.eq.s32.totalorder %s48, 1
      %p85 = por %p83, %p84
      %p87 = scmp.ne.s32.totalorder %s70, %s86
      %p88 = scmp.eq.s32.totalorder %s48, 0
      %p89 = por %p87, %p88
      %s90 = ssub.s32 %s49, %s61
      %p91 = scmp.eq.s32.totalorder %s90, 0
      %s93 = sadd.s32 %s92, 1
      %s94 = scalar_select %p91, %s92, %s93
      %p97 = pneg %p91
      %p98 = scmp.eq.s32.totalorder %s42, 1
      %p99 = por %p97, %p98
      %p100 = scmp.ne.s32.totalorder %s92, %s95
      %p101 = scmp.eq.s32.totalorder %s42, 0
      %p102 = por %p100, %p101
      %p103 = scmp.ne.s32.totalorder %s92, %s95
      %p104 = scmp.eq.s32.totalorder %s47, 1
      %p105 = por %p103, %p104
      %p106 = scmp.ne.s32.totalorder %s95, %s96
      %p107 = scmp.eq.s32.totalorder %s47, 0
      %p108 = por %p106, %p107
      %p109 = scmp.ne.s32.totalorder %s95, %s96
      %p110 = scmp.eq.s32.totalorder %s48, 1
      %p111 = por %p109, %p110
      %p113 = scmp.ne.s32.totalorder %s96, %s112
      %p114 = scmp.eq.s32.totalorder %s48, 0
      %p115 = por %p113, %p114
      %s117 = sadd.s32 %s116, 1
      %p120 = scmp.eq.s32.totalorder %s42, 1
      %p121 = scmp.ne.s32.totalorder %s116, %s118
      %p122 = scmp.eq.s32.totalorder %s42, 0
      %p123 = por %p121, %p122
      %p124 = scmp.ne.s32.totalorder %s116, %s118
      %p125 = scmp.eq.s32.totalorder %s47, 1
      %p126 = por %p124, %p125
      %p127 = scmp.ne.s32.totalorder %s118, %s119
      %p128 = scmp.eq.s32.totalorder %s47, 0
      %p129 = por %p127, %p128
      %p130 = scmp.ne.s32.totalorder %s118, %s119
      %p131 = scmp.eq.s32.totalorder %s48, 1
      %p132 = por %p130, %p131
      %p134 = scmp.ne.s32.totalorder %s119, %s133
      %p135 = scmp.eq.s32.totalorder %s48, 0
      %p136 = por %p134, %p135
      %s138 = sadd.s32 %s137, 1
      %p141 = scmp.eq.s32.totalorder %s42, 1
      %p142 = scmp.ne.s32.totalorder %s137, %s139
      %p143 = scmp.eq.s32.totalorder %s42, 0
      %p144 = por %p142, %p143
      %p145 = scmp.ne.s32.totalorder %s137, %s139
      %p146 = scmp.eq.s32.totalorder %s47, 1
      %p147 = por %p145, %p146
      %p148 = scmp.ne.s32.totalorder %s139, %s140
      %p149 = scmp.eq.s32.totalorder %s47, 0
      %p150 = por %p148, %p149
      %p151 = scmp.ne.s32.totalorder %s139, %s140
      %p152 = scmp.eq.s32.totalorder %s48, 1
      %p153 = por %p151, %p152
      %p155 = scmp.ne.s32.totalorder %s140, %s154
      %p156 = scmp.eq.s32.totalorder %s48, 0
      %p157 = por %p155, %p156
      %s159 = sadd.s32 %s158, 1
      %p162 = scmp.eq.s32.totalorder %s42, 1
      %p163 = scmp.ne.s32.totalorder %s158, %s160
      %p164 = scmp.eq.s32.totalorder %s42, 0
      %p165 = por %p163, %p164
      %p166 = scmp.ne.s32.totalorder %s158, %s160
      %p167 = scmp.eq.s32.totalorder %s47, 1
      %p168 = por %p166, %p167
      %p169 = scmp.ne.s32.totalorder %s160, %s161
      %p170 = scmp.eq.s32.totalorder %s47, 0
      %p171 = por %p169, %p170
      %p172 = scmp.ne.s32.totalorder %s160, %s161
      %p173 = scmp.eq.s32.totalorder %s48, 1
      %p174 = por %p172, %p173
      %p176 = scmp.ne.s32.totalorder %s161, %s175
      %p177 = scmp.eq.s32.totalorder %s48, 0
      %p178 = por %p176, %p177
      %s180 = sadd.s32 %s179, 1
      %p183 = scmp.eq.s32.totalorder %s42, 1
      %p184 = scmp.ne.s32.totalorder %s179, %s181
      %p185 = scmp.eq.s32.totalorder %s42, 0
      %p186 = por %p184, %p185
      %p187 = scmp.ne.s32.totalorder %s179, %s181
      %p188 = scmp.eq.s32.totalorder %s47, 1
      %p189 = por %p187, %p188
      %p190 = scmp.ne.s32.totalorder %s181, %s182
      %p191 = scmp.eq.s32.totalorder %s47, 0
      %p192 = por %p190, %p191
      %p193 = scmp.ne.s32.totalorder %s181, %s182
      %p194 = scmp.eq.s32.totalorder %s48, 1
      %p195 = por %p193, %p194
      %p197 = scmp.ne.s32.totalorder %s182, %s196
      %p198 = scmp.eq.s32.totalorder %s48, 0
      %p199 = por %p197, %p198
      %s201 = sadd.s32 %s200, 1
      %p204 = scmp.eq.s32.totalorder %s42, 1
      %p205 = scmp.ne.s32.totalorder %s200, %s202
      %p206 = scmp.eq.s32.totalorder %s42, 0
      %p207 = por %p205, %p206
      %p208 = scmp.ne.s32.totalorder %s200, %s202
      %p209 = scmp.eq.s32.totalorder %s47, 1
      %p210 = por %p208, %p209
      %p211 = scmp.ne.s32.totalorder %s202, %s203
      %p212 = scmp.eq.s32.totalorder %s47, 0
      %p213 = por %p211, %p212
      %p214 = scmp.ne.s32.totalorder %s202, %s203
      %p215 = scmp.eq.s32.totalorder %s48, 1
      %p216 = por %p214, %p215
      %p218 = scmp.ne.s32.totalorder %s203, %s217
      %p219 = scmp.eq.s32.totalorder %s48, 0
      %p220 = por %p218, %p219
      %s222 = sadd.s32 %s221, 1
      %p225 = scmp.eq.s32.totalorder %s42, 1
      %p226 = scmp.ne.s32.totalorder %s221, %s223
      %p227 = scmp.eq.s32.totalorder %s42, 0
      %p228 = por %p226, %p227
      %p229 = scmp.ne.s32.totalorder %s221, %s223
      %p230 = scmp.eq.s32.totalorder %s47, 1
      %p231 = por %p229, %p230
      %p232 = scmp.ne.s32.totalorder %s223, %s224
      %p233 = scmp.eq.s32.totalorder %s47, 0
      %p234 = por %p232, %p233
      %p235 = scmp.ne.s32.totalorder %s223, %s224
      %p236 = scmp.eq.s32.totalorder %s48, 1
      %p237 = por %p235, %p236
      %p239 = scmp.ne.s32.totalorder %s224, %s238
      %p240 = scmp.eq.s32.totalorder %s48, 0
      %p241 = por %p239, %p240
      %s243 = sadd.s32 %s242, 1
      %p246 = scmp.eq.s32.totalorder %s42, 1
      %p247 = scmp.ne.s32.totalorder %s242, %s244
      %p248 = scmp.eq.s32.totalorder %s42, 0
      %p249 = por %p247, %p248
      %p250 = scmp.ne.s32.totalorder %s242, %s244
      %p251 = scmp.eq.s32.totalorder %s47, 1
      %p252 = por %p250, %p251
      %p253 = scmp.ne.s32.totalorder %s244, %s245
      %p254 = scmp.eq.s32.totalorder %s47, 0
      %p255 = por %p253, %p254
      %p256 = scmp.ne.s32.totalorder %s244, %s245
      %p257 = scmp.eq.s32.totalorder %s48, 1
      %p258 = por %p256, %p257
      %p260 = scmp.ne.s32.totalorder %s245, %s259
      %p261 = scmp.eq.s32.totalorder %s48, 0
      %p262 = por %p260, %p261
      %s264 = sadd.s32 %s263, 1
      %p267 = scmp.eq.s32.totalorder %s42, 1
      %p268 = scmp.ne.s32.totalorder %s263, %s265
      %p269 = scmp.eq.s32.totalorder %s42, 0
      %p270 = por %p268, %p269
      %p271 = scmp.ne.s32.totalorder %s263, %s265
      %p272 = scmp.eq.s32.totalorder %s47, 1
      %p273 = por %p271, %p272
      %p274 = scmp.ne.s32.totalorder %s265, %s266
      %p275 = scmp.eq.s32.totalorder %s47, 0
      %p276 = por %p274, %p275
      %p277 = scmp.ne.s32.totalorder %s265, %s266
      %p278 = scmp.eq.s32.totalorder %s48, 1
      %p279 = por %p277, %p278
      %p281 = scmp.ne.s32.totalorder %s266, %s280
      %p282 = scmp.eq.s32.totalorder %s48, 0
      %p283 = por %p281, %p282
      %s285 = sadd.s32 %s284, 1
      %p288 = scmp.eq.s32.totalorder %s42, 1
      %p289 = scmp.ne.s32.totalorder %s284, %s286
      %p290 = scmp.eq.s32.totalorder %s42, 0
      %p291 = por %p289, %p290
      %p292 = scmp.ne.s32.totalorder %s284, %s286
      %p293 = scmp.eq.s32.totalorder %s47, 1
      %p294 = por %p292, %p293
      %p295 = scmp.ne.s32.totalorder %s286, %s287
      %p296 = scmp.eq.s32.totalorder %s47, 0
      %p297 = por %p295, %p296
      %p298 = scmp.ne.s32.totalorder %s286, %s287
      %p299 = scmp.eq.s32.totalorder %s48, 1
      %p300 = por %p298, %p299
      %p302 = scmp.ne.s32.totalorder %s287, %s301
      %p303 = scmp.eq.s32.totalorder %s48, 0
      %p304 = por %p302, %p303
      %s306 = sadd.s32 %s305, 1
      %p309 = scmp.eq.s32.totalorder %s42, 1
      %p310 = scmp.ne.s32.totalorder %s305, %s307
      %p311 = scmp.eq.s32.totalorder %s42, 0
      %p312 = por %p310, %p311
      %p313 = scmp.ne.s32.totalorder %s305, %s307
      %p314 = scmp.eq.s32.totalorder %s47, 1
      %p315 = por %p313, %p314
      %p316 = scmp.ne.s32.totalorder %s307, %s308
      %p317 = scmp.eq.s32.totalorder %s47, 0
      %p318 = por %p316, %p317
      %p319 = scmp.ne.s32.totalorder %s307, %s308
      %p320 = scmp.eq.s32.totalorder %s48, 1
      %p321 = por %p319, %p320
      %p323 = scmp.ne.s32.totalorder %s308, %s322
      %p324 = scmp.eq.s32.totalorder %s48, 0
      %p325 = por %p323, %p324
      %s327 = sadd.s32 %s326, 1
      %p330 = scmp.eq.s32.totalorder %s42, 1
      %p331 = scmp.ne.s32.totalorder %s326, %s328
      %p332 = scmp.eq.s32.totalorder %s42, 0
      %p333 = por %p331, %p332
      %p334 = scmp.ne.s32.totalorder %s326, %s328
      %p335 = scmp.eq.s32.totalorder %s47, 1
      %p336 = por %p334, %p335
      %p337 = scmp.ne.s32.totalorder %s328, %s329
      %p338 = scmp.eq.s32.totalorder %s47, 0
      %p339 = por %p337, %p338
      %p340 = scmp.ne.s32.totalorder %s328, %s329
      %p341 = scmp.eq.s32.totalorder %s48, 1
      %p342 = por %p340, %p341
      %p344 = scmp.ne.s32.totalorder %s329, %s343
      %p345 = scmp.eq.s32.totalorder %s48, 0
      %p346 = por %p344, %p345
      %s348 = sadd.s32 %s347, 1
      %p351 = scmp.eq.s32.totalorder %s42, 1
      %p352 = scmp.ne.s32.totalorder %s347, %s349
      %p353 = scmp.eq.s32.totalorder %s42, 0
      %p354 = por %p352, %p353
      %p355 = scmp.ne.s32.totalorder %s347, %s349
      %p356 = scmp.eq.s32.totalorder %s47, 1
      %p357 = por %p355, %p356
      %p358 = scmp.ne.s32.totalorder %s349, %s350
      %p359 = scmp.eq.s32.totalorder %s47, 0
      %p360 = por %p358, %p359
      %p361 = scmp.ne.s32.totalorder %s349, %s350
      %p362 = scmp.eq.s32.totalorder %s48, 1
      %p363 = por %p361, %p362
      %p365 = scmp.ne.s32.totalorder %s350, %s364
      %p366 = scmp.eq.s32.totalorder %s48, 0
      %p367 = por %p365, %p366
      %s369 = sadd.s32 %s368, 1
      %p372 = scmp.eq.s32.totalorder %s42, 1
      %p373 = scmp.ne.s32.totalorder %s368, %s370
      %p374 = scmp.eq.s32.totalorder %s42, 0
      %p375 = por %p373, %p374
      %p376 = scmp.ne.s32.totalorder %s368, %s370
      %p377 = scmp.eq.s32.totalorder %s47, 1
      %p378 = por %p376, %p377
      %p379 = scmp.ne.s32.totalorder %s370, %s371
      %p380 = scmp.eq.s32.totalorder %s47, 0
      %p381 = por %p379, %p380
      %p382 = scmp.ne.s32.totalorder %s370, %s371
      %p383 = scmp.eq.s32.totalorder %s48, 1
      %p384 = por %p382, %p383
      %p386 = scmp.ne.s32.totalorder %s371, %s385
      %p387 = scmp.eq.s32.totalorder %s48, 0
      %p388 = por %p386, %p387
      %s390 = sadd.s32 %s389, 1
      %p393 = scmp.eq.s32.totalorder %s42, 1
      %p394 = scmp.ne.s32.totalorder %s389, %s391
      %p395 = scmp.eq.s32.totalorder %s42, 0
      %p396 = por %p394, %p395
      %p397 = scmp.ne.s32.totalorder %s389, %s391
      %p398 = scmp.eq.s32.totalorder %s47, 1
      %p399 = por %p397, %p398
      %p400 = scmp.ne.s32.totalorder %s391, %s392
      %p401 = scmp.eq.s32.totalorder %s47, 0
      %p402 = por %p400, %p401
      %p403 = scmp.ne.s32.totalorder %s391, %s392
      %p404 = scmp.eq.s32.totalorder %s48, 1
      %p405 = por %p403, %p404
      %p407 = scmp.ne.s32.totalorder %s392, %s406
      %p408 = scmp.eq.s32.totalorder %s48, 0
      %p409 = por %p407, %p408
      %s411 = sadd.s32 %s410, 1
      %p414 = scmp.eq.s32.totalorder %s42, 1
      %p415 = scmp.ne.s32.totalorder %s410, %s412
      %p416 = scmp.eq.s32.totalorder %s42, 0
      %p417 = por %p415, %p416
      %p418 = scmp.ne.s32.totalorder %s410, %s412
      %p419 = scmp.eq.s32.totalorder %s47, 1
      %p420 = por %p418, %p419
      %p421 = scmp.ne.s32.totalorder %s412, %s413
      %p422 = scmp.eq.s32.totalorder %s47, 0
      %p423 = por %p421, %p422
      %p424 = scmp.ne.s32.totalorder %s412, %s413
      %p425 = scmp.eq.s32.totalorder %s48, 1
      %p426 = por %p424, %p425
      %p428 = scmp.ne.s32.totalorder %s413, %s427
      %p429 = scmp.eq.s32.totalorder %s48, 0
      %p430 = por %p428, %p429
      %s432 = sadd.s32 %s431, 1
      %p435 = scmp.eq.s32.totalorder %s42, 1
      %p436 = scmp.ne.s32.totalorder %s431, %s433
      %p437 = scmp.eq.s32.totalorder %s42, 0
      %p438 = por %p436, %p437
      %p439 = scmp.ne.s32.totalorder %s431, %s433
      %p440 = scmp.eq.s32.totalorder %s47, 1
      %p441 = por %p439, %p440
      %p442 = scmp.ne.s32.totalorder %s433, %s434
      %p443 = scmp.eq.s32.totalorder %s47, 0
      %p444 = por %p442, %p443
      %p445 = scmp.ne.s32.totalorder %s433, %s434
      %p446 = scmp.eq.s32.totalorder %s48, 1
      %p447 = por %p445, %p446
      %p449 = scmp.ne.s32.totalorder %s434, %s448
      %p450 = scmp.eq.s32.totalorder %s48, 0
      %p451 = por %p449, %p450
      %s452 = sadd.s32 %s49, %s50
      %s453 = sadd.s32 %s61, %s57
      %s454 = ssub.s32 %s452, %s453
      %p455 = scmp.eq.s32.totalorder %s454, 0
      %s457 = sadd.s32 %s456, 1
      %s458 = scalar_select %p455, %s456, %s457
      %p461 = pneg %p455
      %p462 = scmp.eq.s32.totalorder %s42, 1
      %p463 = por %p461, %p462
      %p464 = scmp.ne.s32.totalorder %s456, %s459
      %p465 = scmp.eq.s32.totalorder %s42, 0
      %p466 = por %p464, %p465
      %p467 = scmp.ne.s32.totalorder %s456, %s459
      %p468 = scmp.eq.s32.totalorder %s47, 1
      %p469 = por %p467, %p468
      %p470 = scmp.ne.s32.totalorder %s459, %s460
      %p471 = scmp.eq.s32.totalorder %s47, 0
      %p472 = por %p470, %p471
      %p473 = scmp.ne.s32.totalorder %s459, %s460
      %p474 = scmp.eq.s32.totalorder %s48, 1
      %p475 = por %p473, %p474
      %p477 = scmp.ne.s32.totalorder %s460, %s476
      %p478 = scmp.eq.s32.totalorder %s48, 0
      %p479 = por %p477, %p478
      %p480 = scmp.le.s32.totalorder 1, %s42
      %p481 = scmp.lt.s32.totalorder %s42, 3
      %p482 = pnand %p480, %p481
      %p483 = pneg %p482
      // Predicated region
      $region9: #{balanced_cross_transformer.2} parent=5 // pred_check
        _
      $region10: #{balanced_cross_transformer.2} parent=5 // pred_check_branch
        %485 = sbr.rel (%p482) target = $region12
      $region11: #{balanced_cross_transformer.2} parent=5 // pred_region
        %s486 = ssub.s32 %s42, 1
        // Predicated region
        $region13: #{balanced_cross_transformer.2} parent=11 // pred_check
          %p487 = pneg %p129
        $region14: #{balanced_cross_transformer.2} parent=11 // pred_check_branch
          %489 = sbr.rel (%p487) target = $region16
        $region15: #{balanced_cross_transformer.2} parent=11 // pred_region
          %s491 = ssub.s32 1024, 1024
          %492 = vsyncadd [#allocation7], %s491
          %s493 = sshll.u32 [#allocation8], 4
          %s494 = int_to_ptr.vmem [resolvable:$true] %s493
          %499 = dma.hbm_to_vmem [thread:$0]  %s2, 1024, %s494, [#allocation7], 256, 256, 16
        $region16: #{balanced_cross_transformer.2} parent=11 // pred_fallthru
          _
        // Predicated region
        $region17: #{balanced_cross_transformer.2} parent=11 // pred_check
          %p500 = pneg %p150
        $region18: #{balanced_cross_transformer.2} parent=11 // pred_check_branch
          %502 = sbr.rel (%p500) target = $region20
        $region19: #{balanced_cross_transformer.2} parent=11 // pred_region
          %s504 = ssub.s32 64, 64
          %505 = vsyncadd [#allocation10], %s504
          %s507 = sshll.u32 [#allocation9], 4
          %s508 = int_to_ptr.vmem [resolvable:$true] %s507
          %510 = dma.hbm_to_vmem [thread:$0]  %s3, 64, %s508, [#allocation10]
        $region20: #{balanced_cross_transformer.2} parent=11 // pred_fallthru
          _
        // Predicated region
        $region21: #{balanced_cross_transformer.2} parent=11 // pred_check
          %p511 = pneg %p171
        $region22: #{balanced_cross_transformer.2} parent=11 // pred_check_branch
          %513 = sbr.rel (%p511) target = $region24
        $region23: #{balanced_cross_transformer.2} parent=11 // pred_region
          %s515 = ssub.s32 2048, 2048
          %516 = vsyncadd [#allocation10], %s515
          %s517 = sshll.u32 [#allocation11], 4
          %s518 = int_to_ptr.vmem [resolvable:$true] %s517
          %523 = dma.hbm_to_vmem [thread:$0]  %s4, 2048, %s518, [#allocation10], 512, 512, 32
        $region24: #{balanced_cross_transformer.2} parent=11 // pred_fallthru
          _
        // Predicated region
        $region25: #{balanced_cross_transformer.2} parent=11 // pred_check
          %p524 = pneg %p192
        $region26: #{balanced_cross_transformer.2} parent=11 // pred_check_branch
          %526 = sbr.rel (%p524) target = $region28
        $region27: #{balanced_cross_transformer.2} parent=11 // pred_region
          %s528 = ssub.s32 128, 128
          %529 = vsyncadd [#allocation13], %s528
          %s531 = sshll.u32 [#allocation12], 4
          %s532 = int_to_ptr.vmem [resolvable:$true] %s531
          %534 = dma.hbm_to_vmem [thread:$0]  %s5, 128, %s532, [#allocation13]
        $region28: #{balanced_cross_transformer.2} parent=11 // pred_fallthru
          _
        // Predicated region
        $region29: #{balanced_cross_transformer.2} parent=11 // pred_check
          %p535 = pneg %p213
        $region30: #{balanced_cross_transformer.2} parent=11 // pred_check_branch
          %537 = sbr.rel (%p535) target = $region32
        $region31: #{balanced_cross_transformer.2} parent=11 // pred_region
          %s539 = ssub.s32 4096, 4096
          %540 = vsyncadd [#allocation13], %s539
          %s541 = sshll.u32 [#allocation14], 4
          %s542 = int_to_ptr.vmem [resolvable:$true] %s541
          %547 = dma.hbm_to_vmem [thread:$0]  %s6, 4096, %s542, [#allocation13], 64, 64, 4
        $region32: #{balanced_cross_transformer.2} parent=11 // pred_fallthru
          _
        // Predicated region
        $region33: #{balanced_cross_transformer.2} parent=11 // pred_check
          %p548 = pneg %p234
        $region34: #{balanced_cross_transformer.2} parent=11 // pred_check_branch
          %550 = sbr.rel (%p548) target = $region36
        $region35: #{balanced_cross_transformer.2} parent=11 // pred_region
          %s552 = ssub.s32 16, 16
          %553 = vsyncadd [#allocation16], %s552
          %s555 = sshll.u32 [#allocation15], 4
          %s556 = int_to_ptr.vmem [resolvable:$true] %s555
          %558 = dma.hbm_to_vmem [thread:$0]  %s7, 16, %s556, [#allocation16]
        $region36: #{balanced_cross_transformer.2} parent=11 // pred_fallthru
          _
        // Predicated region
        $region37: #{balanced_cross_transformer.2} parent=11 // pred_check
          %p559 = pneg %p255
        $region38: #{balanced_cross_transformer.2} parent=11 // pred_check_branch
          %561 = sbr.rel (%p559) target = $region40
        $region39: #{balanced_cross_transformer.2} parent=11 // pred_region
          %s563 = ssub.s32 16, 16
          %564 = vsyncadd [#allocation16], %s563
          %s566 = sshll.u32 [#allocation17], 4
          %s567 = int_to_ptr.vmem [resolvable:$true] %s566
          %569 = dma.hbm_to_vmem [thread:$0]  %s8, 16, %s567, [#allocation16]
        $region40: #{balanced_cross_transformer.2} parent=11 // pred_fallthru
          _
        // Predicated region
        $region41: #{balanced_cross_transformer.2} parent=11 // pred_check
          %p570 = pneg %p276
        $region42: #{balanced_cross_transformer.2} parent=11 // pred_check_branch
          %572 = sbr.rel (%p570) target = $region44
        $region43: #{balanced_cross_transformer.2} parent=11 // pred_region
          %s574 = ssub.s32 16, 16
          %575 = vsyncadd [#allocation19], %s574
          %s577 = sshll.u32 [#allocation18], 4
          %s578 = int_to_ptr.vmem [resolvable:$true] %s577
          %580 = dma.hbm_to_vmem [thread:$0]  %s9, 16, %s578, [#allocation19]
        $region44: #{balanced_cross_transformer.2} parent=11 // pred_fallthru
          _
        // Predicated region
        $region45: #{balanced_cross_transformer.2} parent=11 // pred_check
          %p581 = pneg %p297
        $region46: #{balanced_cross_transformer.2} parent=11 // pred_check_branch
          %583 = sbr.rel (%p581) target = $region48
        $region47: #{balanced_cross_transformer.2} parent=11 // pred_region
          %s585 = ssub.s32 256, 256
          %586 = vsyncadd [#allocation19], %s585
          %s587 = sshll.u32 [#allocation20], 4
          %s588 = int_to_ptr.vmem [resolvable:$true] %s587
          %593 = dma.hbm_to_vmem [thread:$0]  %s10, 256, %s588, [#allocation19], 64, 64, 4
        $region48: #{balanced_cross_transformer.2} parent=11 // pred_fallthru
          _
        // Predicated region
        $region49: #{balanced_cross_transformer.2} parent=11 // pred_check
          %p594 = pneg %p318
        $region50: #{balanced_cross_transformer.2} parent=11 // pred_check_branch
          %596 = sbr.rel (%p594) target = $region52
        $region51: #{balanced_cross_transformer.2} parent=11 // pred_region
          %s598 = ssub.s32 16, 16
          %599 = vsyncadd [#allocation22], %s598
          %s601 = sshll.u32 [#allocation21], 4
          %s602 = int_to_ptr.vmem [resolvable:$true] %s601
          %604 = dma.hbm_to_vmem [thread:$0]  %s11, 16, %s602, [#allocation22]
        $region52: #{balanced_cross_transformer.2} parent=11 // pred_fallthru
          _
        // Predicated region
        $region53: #{balanced_cross_transformer.2} parent=11 // pred_check
          %p605 = pneg %p339
        $region54: #{balanced_cross_transformer.2} parent=11 // pred_check_branch
          %607 = sbr.rel (%p605) target = $region56
        $region55: #{balanced_cross_transformer.2} parent=11 // pred_region
          %s609 = ssub.s32 1024, 1024
          %610 = vsyncadd [#allocation22], %s609
          %s611 = sshll.u32 [#allocation23], 4
          %s612 = int_to_ptr.vmem [resolvable:$true] %s611
          %617 = dma.hbm_to_vmem [thread:$0]  %s12, 1024, %s612, [#allocation22], 64, 64, 4
        $region56: #{balanced_cross_transformer.2} parent=11 // pred_fallthru
          _
        // Predicated region
        $region57: #{balanced_cross_transformer.2} parent=11 // pred_check
          %p618 = pneg %p360
        $region58: #{balanced_cross_transformer.2} parent=11 // pred_check_branch
          %620 = sbr.rel (%p618) target = $region60
        $region59: #{balanced_cross_transformer.2} parent=11 // pred_region
          %s622 = ssub.s32 16, 16
          %623 = vsyncadd [#allocation25], %s622
          %s625 = sshll.u32 [#allocation24], 4
          %s626 = int_to_ptr.vmem [resolvable:$true] %s625
          %628 = dma.hbm_to_vmem [thread:$0]  %s13, 16, %s626, [#allocation25]
        $region60: #{balanced_cross_transformer.2} parent=11 // pred_fallthru
          _
        // Predicated region
        $region61: #{balanced_cross_transformer.2} parent=11 // pred_check
          %p629 = pneg %p381
        $region62: #{balanced_cross_transformer.2} parent=11 // pred_check_branch
          %631 = sbr.rel (%p629) target = $region64
        $region63: #{balanced_cross_transformer.2} parent=11 // pred_region
          %s633 = ssub.s32 16, 16
          %634 = vsyncadd [#allocation25], %s633
          %s636 = sshll.u32 [#allocation26], 4
          %s637 = int_to_ptr.vmem [resolvable:$true] %s636
          %639 = dma.hbm_to_vmem [thread:$0]  %s14, 16, %s637, [#allocation25]
        $region64: #{balanced_cross_transformer.2} parent=11 // pred_fallthru
          _
        // Predicated region
        $region65: #{balanced_cross_transformer.2} parent=11 // pred_check
          %p640 = pneg %p402
        $region66: #{balanced_cross_transformer.2} parent=11 // pred_check_branch
          %642 = sbr.rel (%p640) target = $region68
        $region67: #{balanced_cross_transformer.2} parent=11 // pred_region
          %s644 = ssub.s32 16, 16
          %645 = vsyncadd [#allocation28], %s644
          %s647 = sshll.u32 [#allocation27], 4
          %s648 = int_to_ptr.vmem [resolvable:$true] %s647
          %650 = dma.hbm_to_vmem [thread:$0]  %s15, 16, %s648, [#allocation28]
        $region68: #{balanced_cross_transformer.2} parent=11 // pred_fallthru
          _
        // Predicated region
        $region69: #{balanced_cross_transformer.2} parent=11 // pred_check
          %p651 = pneg %p423
        $region70: #{balanced_cross_transformer.2} parent=11 // pred_check_branch
          %653 = sbr.rel (%p651) target = $region72
        $region71: #{balanced_cross_transformer.2} parent=11 // pred_region
          %s655 = ssub.s32 256, 256
          %656 = vsyncadd [#allocation28], %s655
          %s657 = sshll.u32 [#allocation29], 4
          %s658 = int_to_ptr.vmem [resolvable:$true] %s657
          %663 = dma.hbm_to_vmem [thread:$0]  %s16, 256, %s658, [#allocation28], 64, 64, 4
        $region72: #{balanced_cross_transformer.2} parent=11 // pred_fallthru
          _
        // Predicated region
        $region73: #{balanced_cross_transformer.2} parent=11 // pred_check
          %p664 = pneg %p444
        $region74: #{balanced_cross_transformer.2} parent=11 // pred_check_branch
          %666 = sbr.rel (%p664) target = $region76
        $region75: #{balanced_cross_transformer.2} parent=11 // pred_region
          _
        $region76: #{balanced_cross_transformer.2} parent=11 // pred_fallthru
          _
      $region12: #{balanced_cross_transformer.2} parent=5 // pred_fallthru
        _
      %p667 = scmp.lt.s32.totalorder %s42, 2
      // Predicated region
      $region77: #{balanced_cross_transformer.2} parent=5 // pred_check
        %p668 = pneg %p667
      $region78: #{balanced_cross_transformer.2} parent=5 // pred_check_branch
        %670 = sbr.rel (%p668) target = $region80
      $region79: #{balanced_cross_transformer.2} parent=5 // pred_region
        // Predicated region
        $region81: #{balanced_cross_transformer.2} parent=79 // pred_check
          %p671 = pneg %p76
        $region82: #{balanced_cross_transformer.2} parent=79 // pred_check_branch
          %673 = sbr.rel (%p671) target = $region84
        $region83: #{balanced_cross_transformer.2} parent=79 // pred_region
          %s674 = sand.u32 %s66, 1
          %s675 = scalar_lea.sflag [#allocation4], %s674
          %s676 = sand.u32 %s66, 1
          %s677 = smul.addr %s676, 8
          %s678 = scalar_lea.vmem [#allocation3], %s677
          %s679 = sadd.s32 %s49, %s50
          %s681 = ssub.s32 128, 128
          %682 = vsyncadd %s675, %s681
          %s683 = smul.addr %s679, 128
          %s684 = scalar_lea.hbm %s0, %s683
          %s686 = sshll.u32 %s678, 4
          %s687 = int_to_ptr.vmem [resolvable:$true] %s686
          %689 = dma.hbm_to_vmem [thread:$0]  %s684, 128, %s687, %s675
        $region84: #{balanced_cross_transformer.2} parent=79 // pred_fallthru
          _
        // Predicated region
        $region85: #{balanced_cross_transformer.2} parent=79 // pred_check
          %p690 = pneg %p102
        $region86: #{balanced_cross_transformer.2} parent=79 // pred_check_branch
          %692 = sbr.rel (%p690) target = $region88
        $region87: #{balanced_cross_transformer.2} parent=79 // pred_region
          %s693 = sand.u32 %s42, 1
          %s694 = scalar_lea.sflag [#allocation7], %s693
          %s695 = sand.u32 %s92, 1
          %s696 = smul.addr %s695, 8
          %s697 = scalar_lea.vmem [#allocation6], %s696
          %s699 = ssub.s32 128, 128
          %700 = vsyncadd %s694, %s699
          %s701 = smul.addr %s49, 128
          %s702 = scalar_lea.hbm %s1, %s701
          %s704 = sshll.u32 %s697, 4
          %s705 = int_to_ptr.vmem [resolvable:$true] %s704
          %707 = dma.hbm_to_vmem [thread:$0]  %s702, 128, %s705, %s694
        $region88: #{balanced_cross_transformer.2} parent=79 // pred_fallthru
          _
      $region80: #{balanced_cross_transformer.2} parent=5 // pred_fallthru
        _
      %p708 = scmp.le.s32.totalorder 1, %s42
      %p709 = scmp.lt.s32.totalorder %s42, 3
      %p710 = pnand %p708, %p709
      %p711 = pneg %p710
      // Predicated region
      $region89: #{balanced_cross_transformer.2} parent=5 // pred_check
        _
      $region90: #{balanced_cross_transformer.2} parent=5 // pred_check_branch
        %713 = sbr.rel (%p710) target = $region92
      $region91: #{balanced_cross_transformer.2} parent=5 // pred_region
        %s714 = ssub.s32 %s42, 1
        %s715 = sand.u32 %s69, 1
        %s716 = scalar_lea.sflag [#allocation4], %s715
        %s717 = sand.u32 %s69, 1
        %s718 = smul.addr %s717, 8
        %s719 = scalar_lea.vmem [#allocation3], %s718
        // Predicated region
        $region93: #{balanced_cross_transformer.2} parent=91 // pred_check
          %p720 = pneg %p82
        $region94: #{balanced_cross_transformer.2} parent=91 // pred_check_branch
          %722 = sbr.rel (%p720) target = $region96
        $region95: #{balanced_cross_transformer.2} parent=91 // pred_region
          %723 = dma.done %s716, 128
        $region96: #{balanced_cross_transformer.2} parent=91 // pred_fallthru
          _
        %s724 = sand.u32 %s47, 1
        %s725 = scalar_lea.sflag [#allocation7], %s724
        %s726 = sand.u32 %s95, 1
        %s727 = smul.addr %s726, 8
        %s728 = scalar_lea.vmem [#allocation6], %s727
        // Predicated region
        $region97: #{balanced_cross_transformer.2} parent=91 // pred_check
          %p729 = pneg %p108
        $region98: #{balanced_cross_transformer.2} parent=91 // pred_check_branch
          %731 = sbr.rel (%p729) target = $region100
        $region99: #{balanced_cross_transformer.2} parent=91 // pred_region
          %732 = dma.done %s725, 128
        $region100: #{balanced_cross_transformer.2} parent=91 // pred_fallthru
          _
        // Predicated region
        $region101: #{balanced_cross_transformer.2} parent=91 // pred_check
          %p733 = pneg %p129
        $region102: #{balanced_cross_transformer.2} parent=91 // pred_check_branch
          %735 = sbr.rel (%p733) target = $region104
        $region103: #{balanced_cross_transformer.2} parent=91 // pred_region
          %736 = dma.done [#allocation7], 1024
        $region104: #{balanced_cross_transformer.2} parent=91 // pred_fallthru
          _
        // Predicated region
        $region105: #{balanced_cross_transformer.2} parent=91 // pred_check
          %p737 = pneg %p150
        $region106: #{balanced_cross_transformer.2} parent=91 // pred_check_branch
          %739 = sbr.rel (%p737) target = $region108
        $region107: #{balanced_cross_transformer.2} parent=91 // pred_region
          %740 = dma.done [#allocation10], 64
        $region108: #{balanced_cross_transformer.2} parent=91 // pred_fallthru
          _
        // Predicated region
        $region109: #{balanced_cross_transformer.2} parent=91 // pred_check
          %p741 = pneg %p171
        $region110: #{balanced_cross_transformer.2} parent=91 // pred_check_branch
          %743 = sbr.rel (%p741) target = $region112
        $region111: #{balanced_cross_transformer.2} parent=91 // pred_region
          %744 = dma.done [#allocation10], 2048
        $region112: #{balanced_cross_transformer.2} parent=91 // pred_fallthru
          _
        // Predicated region
        $region113: #{balanced_cross_transformer.2} parent=91 // pred_check
          %p745 = pneg %p192
        $region114: #{balanced_cross_transformer.2} parent=91 // pred_check_branch
          %747 = sbr.rel (%p745) target = $region116
        $region115: #{balanced_cross_transformer.2} parent=91 // pred_region
          %748 = dma.done [#allocation13], 128
        $region116: #{balanced_cross_transformer.2} parent=91 // pred_fallthru
          _
        // Predicated region
        $region117: #{balanced_cross_transformer.2} parent=91 // pred_check
          %p749 = pneg %p213
        $region118: #{balanced_cross_transformer.2} parent=91 // pred_check_branch
          %751 = sbr.rel (%p749) target = $region120
        $region119: #{balanced_cross_transformer.2} parent=91 // pred_region
          %752 = dma.done [#allocation13], 4096
        $region120: #{balanced_cross_transformer.2} parent=91 // pred_fallthru
          _
        // Predicated region
        $region121: #{balanced_cross_transformer.2} parent=91 // pred_check
          %p753 = pneg %p234
        $region122: #{balanced_cross_transformer.2} parent=91 // pred_check_branch
          %755 = sbr.rel (%p753) target = $region124
        $region123: #{balanced_cross_transformer.2} parent=91 // pred_region
          %756 = dma.done [#allocation16], 16
        $region124: #{balanced_cross_transformer.2} parent=91 // pred_fallthru
          _
        // Predicated region
        $region125: #{balanced_cross_transformer.2} parent=91 // pred_check
          %p757 = pneg %p255
        $region126: #{balanced_cross_transformer.2} parent=91 // pred_check_branch
          %759 = sbr.rel (%p757) target = $region128
        $region127: #{balanced_cross_transformer.2} parent=91 // pred_region
          %760 = dma.done [#allocation16], 16
        $region128: #{balanced_cross_transformer.2} parent=91 // pred_fallthru
          _
        // Predicated region
        $region129: #{balanced_cross_transformer.2} parent=91 // pred_check
          %p761 = pneg %p276
        $region130: #{balanced_cross_transformer.2} parent=91 // pred_check_branch
          %763 = sbr.rel (%p761) target = $region132
        $region131: #{balanced_cross_transformer.2} parent=91 // pred_region
          %764 = dma.done [#allocation19], 16
        $region132: #{balanced_cross_transformer.2} parent=91 // pred_fallthru
          _
        // Predicated region
        $region133: #{balanced_cross_transformer.2} parent=91 // pred_check
          %p765 = pneg %p297
        $region134: #{balanced_cross_transformer.2} parent=91 // pred_check_branch
          %767 = sbr.rel (%p765) target = $region136
        $region135: #{balanced_cross_transformer.2} parent=91 // pred_region
          %768 = dma.done [#allocation19], 256
        $region136: #{balanced_cross_transformer.2} parent=91 // pred_fallthru
          _
        // Predicated region
        $region137: #{balanced_cross_transformer.2} parent=91 // pred_check
          %p769 = pneg %p318
        $region138: #{balanced_cross_transformer.2} parent=91 // pred_check_branch
          %771 = sbr.rel (%p769) target = $region140
        $region139: #{balanced_cross_transformer.2} parent=91 // pred_region
          %772 = dma.done [#allocation22], 16
        $region140: #{balanced_cross_transformer.2} parent=91 // pred_fallthru
          _
        // Predicated region
        $region141: #{balanced_cross_transformer.2} parent=91 // pred_check
          %p773 = pneg %p339
        $region142: #{balanced_cross_transformer.2} parent=91 // pred_check_branch
          %775 = sbr.rel (%p773) target = $region144
        $region143: #{balanced_cross_transformer.2} parent=91 // pred_region
          %776 = dma.done [#allocation22], 1024
        $region144: #{balanced_cross_transformer.2} parent=91 // pred_fallthru
          _
        // Predicated region
        $region145: #{balanced_cross_transformer.2} parent=91 // pred_check
          %p777 = pneg %p360
        $region146: #{balanced_cross_transformer.2} parent=91 // pred_check_branch
          %779 = sbr.rel (%p777) target = $region148
        $region147: #{balanced_cross_transformer.2} parent=91 // pred_region
          %780 = dma.done [#allocation25], 16
        $region148: #{balanced_cross_transformer.2} parent=91 // pred_fallthru
          _
        // Predicated region
        $region149: #{balanced_cross_transformer.2} parent=91 // pred_check
          %p781 = pneg %p381
        $region150: #{balanced_cross_transformer.2} parent=91 // pred_check_branch
          %783 = sbr.rel (%p781) target = $region152
        $region151: #{balanced_cross_transformer.2} parent=91 // pred_region
          %784 = dma.done [#allocation25], 16
        $region152: #{balanced_cross_transformer.2} parent=91 // pred_fallthru
          _
        // Predicated region
        $region153: #{balanced_cross_transformer.2} parent=91 // pred_check
          %p785 = pneg %p402
        $region154: #{balanced_cross_transformer.2} parent=91 // pred_check_branch
          %787 = sbr.rel (%p785) target = $region156
        $region155: #{balanced_cross_transformer.2} parent=91 // pred_region
          %788 = dma.done [#allocation28], 16
        $region156: #{balanced_cross_transformer.2} parent=91 // pred_fallthru
          _
        // Predicated region
        $region157: #{balanced_cross_transformer.2} parent=91 // pred_check
          %p789 = pneg %p423
        $region158: #{balanced_cross_transformer.2} parent=91 // pred_check_branch
          %791 = sbr.rel (%p789) target = $region160
        $region159: #{balanced_cross_transformer.2} parent=91 // pred_region
          %792 = dma.done [#allocation28], 256
        $region160: #{balanced_cross_transformer.2} parent=91 // pred_fallthru
          _
        %s793 = sand.u32 %s69, 1
        %s794 = scalar_lea.sflag [#allocation4], %s793
        %s795 = sand.u32 %s69, 1
        %s796 = smul.addr %s795, 8
        %s797 = scalar_lea.vmem [#allocation3], %s796
        %p798 = pneg %p82
        %p799 = pneg %p79
        %s800 = sand.u32 %s47, 1
        %s801 = scalar_lea.sflag [#allocation7], %s800
        %s802 = sand.u32 %s95, 1
        %s803 = smul.addr %s802, 8
        %s804 = scalar_lea.vmem [#allocation6], %s803
        %p805 = pneg %p108
        %p806 = pneg %p105
        %p807 = pneg %p129
        %p808 = pneg %p126
        %p809 = pneg %p150
        %p810 = pneg %p147
        %p811 = pneg %p171
        %p812 = pneg %p168
        %p813 = pneg %p192
        %p814 = pneg %p189
        %p815 = pneg %p213
        %p816 = pneg %p210
        %p817 = pneg %p234
        %p818 = pneg %p231
        %p819 = pneg %p255
        %p820 = pneg %p252
        %p821 = pneg %p276
        %p822 = pneg %p273
        %p823 = pneg %p297
        %p824 = pneg %p294
        %p825 = pneg %p318
        %p826 = pneg %p315
        %p827 = pneg %p339
        %p828 = pneg %p336
        %p829 = pneg %p360
        %p830 = pneg %p357
        %p831 = pneg %p381
        %p832 = pneg %p378
        %p833 = pneg %p402
        %p834 = pneg %p399
        %p835 = pneg %p423
        %p836 = pneg %p420
        %p837 = pneg %p444
        %p838 = pneg %p441
        %p839 = pneg %p472
        %p840 = pneg %p469
        %s841 = sand.u32 %s459, 1
        %s842 = scalar_lea.sflag [#allocation5], %s841
        %s843 = sand.u32 %s459, 1
        %s844 = smul.addr %s843, 8
        %s845 = scalar_lea.vmem [#allocation30], %s844
        %s846 = sadd.s32 %s51, %s52
        %s847 = sadd.s32 %s51, %s52
        %v849 = vld [vmem:[%s719] sm:$0xff]
        %v850 = vld [vmem:[%s728] sm:$0xff]
        %v851 = vld [vmem:[#allocation29] sm:$0xf]
        %v852 = vld [vmem:[#allocation29 + $0x4] sm:$0xf]
        %v853 = vld [vmem:[#allocation29 + $0x8] sm:$0xf]
        %v854 = vld [vmem:[#allocation29 + $0xc] sm:$0xf]
        %v855 = vpack.c.bf16 %v850, %v850
        %v856 = vld [vmem:[#allocation2] sm:$0x1]
        %v857 = vunpack.c.l.bf16 %v856
        %v858 = vlaneseq
        %v859 = vshrl.u32 %v858, 7
        %v860 = vsub.s32 0, %v859
        %v861 = vrot.slane %v857, %v860
        %v866 = vunpack.c.l.b16 %v851
        %v867 = vunpack.c.l.b16 %v852
        %v868 = vunpack.c.l.b16 %v853
        %v869 = vunpack.c.l.b16 %v854
        %v870 = vpack.c.b16 %v867, %v866
        %v871 = vpack.c.b16 %v869, %v868
        %vm874 = vcmask 261120
        %v876 = vsel %vm874, %v855, 0
        %878 = vmatprep.subr.bf16.mxu0 0
        %879 = vmatpush1.bf16.msra.mxu0 %v870
        %880 = vmatprep.subr.bf16.mxu0 0
        %881 = vmatpush1.bf16.msra.mxu0 %v871
        %882 = vmatprep.subr.bf16.mxu0 0
        %883 = vmatpush1.bf16.msra.mxu0 0
        %884 = vmatprep.subr.bf16.mxu0 0
        %885 = vmatpush1.bf16.msra.mxu0 0
        %886 = vmatprep.subr.bf16.mxu0 0
        %887 = vmatpush1.bf16.msra.mxu0 0
        %888 = vmatprep.subr.bf16.mxu0 0
        %889 = vmatpush1.bf16.msra.mxu0 0
        %890 = vmatprep.subr.bf16.mxu0 0
        %891 = vmatpush1.bf16.msra.mxu0 0
        %892 = vmatprep.subr.bf16.mxu0 0
        %893 = vmatpush1.bf16.msra.mxu0 0
        %894 = vmatprep.subr.bf16.mxu0 0
        %895 = vmatpush1.bf16.msra.mxu0 0
        %896 = vmatprep.subr.bf16.mxu0 0
        %897 = vmatpush1.bf16.msra.mxu0 0
        %898 = vmatprep.subr.bf16.mxu0 0
        %899 = vmatpush1.bf16.msra.mxu0 0
        %900 = vmatprep.subr.bf16.mxu0 0
        %901 = vmatpush1.bf16.msra.mxu0 0
        %902 = vmatprep.subr.bf16.mxu0 0
        %903 = vmatpush1.bf16.msra.mxu0 0
        %904 = vmatprep.subr.bf16.mxu0 0
        %905 = vmatpush1.bf16.msra.mxu0 0
        %906 = vmatprep.subr.bf16.mxu0 0
        %907 = vmatpush1.bf16.msra.mxu0 0
        %908 = vmatprep.subr.bf16.mxu0 0
        %909 = vmatpush1.bf16.msra.mxu0 0
        %910 = vmatprep.mubr.bf16.mxu0 0
        %911 = vmatmul.mubr.bf16.gmra.mrb[0].mxu0 %v876
        %v912 = vpop.f32.mrb[0].mxu0
        %v913 = vadd.f32 %v861, %v912
        %v914 = vpop.f32.mrb[0].mxu0
        %v915 = vpop.f32.mrb[0].mxu0
        %v916 = vpop.f32.mrb[0].mxu0
        %917 = vdwg.mxu0
        %v918 = vxor.u32 %v913, 2147483648
        %v919 = vmul.f32 %v918, 1.442695
        %v920 = vpow.pop %v919
        %v921 = vadd.f32 %v920, 1.0
        %v922 = vrcp.pop %v921
        %v923 = vmul.f32 1.0, %v922
        %925 = vset.pattern.permute.xlu0 0
        %926 = vperm.xlu0 %925, %v923
        %v927 = vpop.permute.xlu0 %926
        %v929 = vmul.f32 %v927, %v850
        %v930 = vld [vmem:[#allocation8] sm:$0xff]
        %v931 = vld [vmem:[#allocation8 + $0x8] sm:$0xff]
        %v932 = vld [vmem:[#allocation8 + $0x10] sm:$0xff]
        %v933 = vld [vmem:[#allocation8 + $0x18] sm:$0xff]
        %v934 = vld [vmem:[#allocation8 + $0x20] sm:$0xff]
        %v935 = vld [vmem:[#allocation8 + $0x28] sm:$0xff]
        %v936 = vld [vmem:[#allocation8 + $0x30] sm:$0xff]
        %v937 = vld [vmem:[#allocation8 + $0x38] sm:$0xff]
        %v938 = vpack.c.bf16 %v849, %v849
        %v939 = vld [vmem:[#allocation9] sm:$0xf]
        %v940 = vunpack.c.l.bf16 %v939
        %v942 = vlaneseq
        %v943 = vshrl.u32 %v942, 7
        %v944 = vsub.s32 0, %v943
        %v945 = vrot.slane %v940, %v944
        %v946 = vlaneseq
        %v947 = vshrl.u32 %v946, 7
        %v948 = vsub.s32 2, %v947
        %v949 = vrot.slane %v940, %v948
        %v950 = vlaneseq
        %v951 = vshrl.u32 %v950, 7
        %v952 = vsub.s32 4, %v951
        %v953 = vrot.slane %v940, %v952
        %v954 = vlaneseq
        %v955 = vshrl.u32 %v954, 7
        %v956 = vsub.s32 6, %v955
        %v957 = vrot.slane %v940, %v956
        %v962 = vlaneseq
        %v963 = vshrl.u32 %v962, 7
        %v964 = vsub.s32 0, %v963
        %v965 = vrot.slane %v945, %v964
        %v966 = vlaneseq
        %v967 = vshrl.u32 %v966, 7
        %v968 = vsub.s32 0, %v967
        %v969 = vrot.slane %v949, %v968
        %v970 = vlaneseq
        %v971 = vshrl.u32 %v970, 7
        %v972 = vsub.s32 0, %v971
        %v973 = vrot.slane %v953, %v972
        %v974 = vlaneseq
        %v975 = vshrl.u32 %v974, 7
        %v976 = vsub.s32 0, %v975
        %v977 = vrot.slane %v957, %v976
        %v986 = vunpack.c.l.b16 %v930
        %v987 = vunpack.c.h.b16 %v930
        %v988 = vunpack.c.l.b16 %v931
        %v989 = vunpack.c.h.b16 %v931
        %v990 = vunpack.c.l.b16 %v932
        %v991 = vunpack.c.h.b16 %v932
        %v992 = vunpack.c.l.b16 %v933
        %v993 = vunpack.c.h.b16 %v933
        %v994 = vunpack.c.l.b16 %v934
        %v995 = vunpack.c.h.b16 %v934
        %v996 = vunpack.c.l.b16 %v935
        %v997 = vunpack.c.h.b16 %v935
        %v998 = vunpack.c.l.b16 %v936
        %v999 = vunpack.c.h.b16 %v936
        %v1000 = vunpack.c.l.b16 %v937
        %v1001 = vunpack.c.h.b16 %v937
        %v1002 = vpack.c.b16 %v990, %v986
        %v1003 = vpack.c.b16 %v991, %v987
        %v1004 = vpack.c.b16 %v992, %v988
        %v1005 = vpack.c.b16 %v993, %v989
        %v1006 = vpack.c.b16 %v998, %v994
        %v1007 = vpack.c.b16 %v999, %v995
        %v1008 = vpack.c.b16 %v1000, %v996
        %v1009 = vpack.c.b16 %v1001, %v997
        %v1019 = vsel %vm874, %v938, 0
        %1021 = vmatprep.subr.bf16.mxu0 %v1003
        %1022 = vmatpush1.bf16.msra.mxu0 %v1002
        %1023 = vmatprep.subr.bf16.mxu0 %v1007
        %1024 = vmatpush1.bf16.msra.mxu0 %v1006
        %1025 = vmatprep.subr.bf16.mxu0 0
        %1026 = vmatpush1.bf16.msra.mxu0 0
        %1027 = vmatprep.subr.bf16.mxu0 0
        %1028 = vmatpush1.bf16.msra.mxu0 0
        %1029 = vmatprep.subr.bf16.mxu0 0
        %1030 = vmatpush1.bf16.msra.mxu0 0
        %1031 = vmatprep.subr.bf16.mxu0 0
        %1032 = vmatpush1.bf16.msra.mxu0 0
        %1033 = vmatprep.subr.bf16.mxu0 0
        %1034 = vmatpush1.bf16.msra.mxu0 0
        %1035 = vmatprep.subr.bf16.mxu0 0
        %1036 = vmatpush1.bf16.msra.mxu0 0
        %1037 = vmatprep.subr.bf16.mxu0 0
        %1038 = vmatpush1.bf16.msra.mxu0 0
        %1039 = vmatprep.subr.bf16.mxu0 0
        %1040 = vmatpush1.bf16.msra.mxu0 0
        %1041 = vmatprep.subr.bf16.mxu0 0
        %1042 = vmatpush1.bf16.msra.mxu0 0
        %1043 = vmatprep.subr.bf16.mxu0 0
        %1044 = vmatpush1.bf16.msra.mxu0 0
        %1045 = vmatprep.subr.bf16.mxu0 0
        %1046 = vmatpush1.bf16.msra.mxu0 0
        %1047 = vmatprep.subr.bf16.mxu0 0
        %1048 = vmatpush1.bf16.msra.mxu0 0
        %1049 = vmatprep.subr.bf16.mxu0 0
        %1050 = vmatpush1.bf16.msra.mxu0 0
        %1051 = vmatprep.subr.bf16.mxu0 0
        %1052 = vmatpush1.bf16.msra.mxu0 0
        %1053 = vmatprep.mubr.bf16.mxu0 0
        %1054 = vmatmul.mubr.bf16.gmra.mrb[0].mxu0 %v1019
        %v1055 = vpop.f32.mrb[0].mxu0
        %v1056 = vadd.f32 %v965, %v1055
        %v1057 = vpop.f32.mrb[0].mxu0
        %v1058 = vadd.f32 %v969, %v1057
        %v1059 = vpop.f32.mrb[0].mxu0
        %v1060 = vpop.f32.mrb[0].mxu0
        %1061 = vdwg.mxu0
        %1062 = vmatprep.subr.bf16.mxu0 %v1005
        %1063 = vmatpush1.bf16.msra.mxu0 %v1004
        %1064 = vmatprep.subr.bf16.mxu0 %v1009
        %1065 = vmatpush1.bf16.msra.mxu0 %v1008
        %1066 = vmatprep.subr.bf16.mxu0 0
        %1067 = vmatpush1.bf16.msra.mxu0 0
        %1068 = vmatprep.subr.bf16.mxu0 0
        %1069 = vmatpush1.bf16.msra.mxu0 0
        %1070 = vmatprep.subr.bf16.mxu0 0
        %1071 = vmatpush1.bf16.msra.mxu0 0
        %1072 = vmatprep.subr.bf16.mxu0 0
        %1073 = vmatpush1.bf16.msra.mxu0 0
        %1074 = vmatprep.subr.bf16.mxu0 0
        %1075 = vmatpush1.bf16.msra.mxu0 0
        %1076 = vmatprep.subr.bf16.mxu0 0
        %1077 = vmatpush1.bf16.msra.mxu0 0
        %1078 = vmatprep.subr.bf16.mxu0 0
        %1079 = vmatpush1.bf16.msra.mxu0 0
        %1080 = vmatprep.subr.bf16.mxu0 0
        %1081 = vmatpush1.bf16.msra.mxu0 0
        %1082 = vmatprep.subr.bf16.mxu0 0
        %1083 = vmatpush1.bf16.msra.mxu0 0
        %1084 = vmatprep.subr.bf16.mxu0 0
        %1085 = vmatpush1.bf16.msra.mxu0 0
        %1086 = vmatprep.subr.bf16.mxu0 0
        %1087 = vmatpush1.bf16.msra.mxu0 0
        %1088 = vmatprep.subr.bf16.mxu0 0
        %1089 = vmatpush1.bf16.msra.mxu0 0
        %1090 = vmatprep.subr.bf16.mxu0 0
        %1091 = vmatpush1.bf16.msra.mxu0 0
        %1092 = vmatprep.subr.bf16.mxu0 0
        %1093 = vmatpush1.bf16.msra.mxu0 0
        %1094 = vmatprep.mubr.bf16.mxu0 0
        %1095 = vmatmul.mubr.bf16.gmra.mrb[0].mxu0 %v1019
        %v1096 = vpop.f32.mrb[0].mxu0
        %v1097 = vadd.f32 %v973, %v1096
        %v1098 = vpop.f32.mrb[0].mxu0
        %v1099 = vadd.f32 %v977, %v1098
        %v1100 = vpop.f32.mrb[0].mxu0
        %v1101 = vpop.f32.mrb[0].mxu0
        %1102 = vdwg.mxu0
        %v1103 = vld [vmem:[#allocation11] sm:$0xff]
        %v1104 = vld [vmem:[#allocation11 + $0x8] sm:$0xff]
        %v1105 = vld [vmem:[#allocation11 + $0x10] sm:$0xff]
        %v1106 = vld [vmem:[#allocation11 + $0x18] sm:$0xff]
        %v1107 = vld [vmem:[#allocation11 + $0x20] sm:$0xff]
        %v1108 = vld [vmem:[#allocation11 + $0x28] sm:$0xff]
        %v1109 = vld [vmem:[#allocation11 + $0x30] sm:$0xff]
        %v1110 = vld [vmem:[#allocation11 + $0x38] sm:$0xff]
        %v1111 = vld [vmem:[#allocation11 + $0x40] sm:$0xff]
        %v1112 = vld [vmem:[#allocation11 + $0x48] sm:$0xff]
        %v1113 = vld [vmem:[#allocation11 + $0x50] sm:$0xff]
        %v1114 = vld [vmem:[#allocation11 + $0x58] sm:$0xff]
        %v1115 = vld [vmem:[#allocation11 + $0x60] sm:$0xff]
        %v1116 = vld [vmem:[#allocation11 + $0x68] sm:$0xff]
        %v1117 = vld [vmem:[#allocation11 + $0x70] sm:$0xff]
        %v1118 = vld [vmem:[#allocation11 + $0x78] sm:$0xff]
        %v1119 = vpack.c.bf16 %v929, %v929
        %v1120 = vld [vmem:[#allocation12] sm:$0xff]
        %v1121 = vunpack.c.l.bf16 %v1120
        %v1122 = vunpack.c.h.bf16 %v1120
        %v1125 = vlaneseq
        %v1126 = vshrl.u32 %v1125, 7
        %v1127 = vsub.s32 0, %v1126
        %v1128 = vrot.slane %v1121, %v1127
        %v1129 = vlaneseq
        %v1130 = vshrl.u32 %v1129, 7
        %v1131 = vsub.s32 2, %v1130
        %v1132 = vrot.slane %v1121, %v1131
        %v1133 = vlaneseq
        %v1134 = vshrl.u32 %v1133, 7
        %v1135 = vsub.s32 4, %v1134
        %v1136 = vrot.slane %v1121, %v1135
        %v1137 = vlaneseq
        %v1138 = vshrl.u32 %v1137, 7
        %v1139 = vsub.s32 6, %v1138
        %v1140 = vrot.slane %v1121, %v1139
        %v1141 = vlaneseq
        %v1142 = vshrl.u32 %v1141, 7
        %v1143 = vsub.s32 0, %v1142
        %v1144 = vrot.slane %v1122, %v1143
        %v1145 = vlaneseq
        %v1146 = vshrl.u32 %v1145, 7
        %v1147 = vsub.s32 2, %v1146
        %v1148 = vrot.slane %v1122, %v1147
        %v1149 = vlaneseq
        %v1150 = vshrl.u32 %v1149, 7
        %v1151 = vsub.s32 4, %v1150
        %v1152 = vrot.slane %v1122, %v1151
        %v1153 = vlaneseq
        %v1154 = vshrl.u32 %v1153, 7
        %v1155 = vsub.s32 6, %v1154
        %v1156 = vrot.slane %v1122, %v1155
        %v1165 = vlaneseq
        %v1166 = vshrl.u32 %v1165, 7
        %v1167 = vsub.s32 0, %v1166
        %v1168 = vrot.slane %v1128, %v1167
        %v1169 = vlaneseq
        %v1170 = vshrl.u32 %v1169, 7
        %v1171 = vsub.s32 0, %v1170
        %v1172 = vrot.slane %v1132, %v1171
        %v1173 = vlaneseq
        %v1174 = vshrl.u32 %v1173, 7
        %v1175 = vsub.s32 0, %v1174
        %v1176 = vrot.slane %v1136, %v1175
        %v1177 = vlaneseq
        %v1178 = vshrl.u32 %v1177, 7
        %v1179 = vsub.s32 0, %v1178
        %v1180 = vrot.slane %v1140, %v1179
        %v1181 = vlaneseq
        %v1182 = vshrl.u32 %v1181, 7
        %v1183 = vsub.s32 0, %v1182
        %v1184 = vrot.slane %v1144, %v1183
        %v1185 = vlaneseq
        %v1186 = vshrl.u32 %v1185, 7
        %v1187 = vsub.s32 0, %v1186
        %v1188 = vrot.slane %v1148, %v1187
        %v1189 = vlaneseq
        %v1190 = vshrl.u32 %v1189, 7
        %v1191 = vsub.s32 0, %v1190
        %v1192 = vrot.slane %v1152, %v1191
        %v1193 = vlaneseq
        %v1194 = vshrl.u32 %v1193, 7
        %v1195 = vsub.s32 0, %v1194
        %v1196 = vrot.slane %v1156, %v1195
        %v1213 = vunpack.c.l.b16 %v1103
        %v1214 = vunpack.c.h.b16 %v1103
        %v1215 = vunpack.c.l.b16 %v1104
        %v1216 = vunpack.c.h.b16 %v1104
        %v1217 = vunpack.c.l.b16 %v1105
        %v1218 = vunpack.c.h.b16 %v1105
        %v1219 = vunpack.c.l.b16 %v1106
        %v1220 = vunpack.c.h.b16 %v1106
        %v1221 = vunpack.c.l.b16 %v1107
        %v1222 = vunpack.c.h.b16 %v1107
        %v1223 = vunpack.c.l.b16 %v1108
        %v1224 = vunpack.c.h.b16 %v1108
        %v1225 = vunpack.c.l.b16 %v1109
        %v1226 = vunpack.c.h.b16 %v1109
        %v1227 = vunpack.c.l.b16 %v1110
        %v1228 = vunpack.c.h.b16 %v1110
        %v1229 = vunpack.c.l.b16 %v1111
        %v1230 = vunpack.c.h.b16 %v1111
        %v1231 = vunpack.c.l.b16 %v1112
        %v1232 = vunpack.c.h.b16 %v1112
        %v1233 = vunpack.c.l.b16 %v1113
        %v1234 = vunpack.c.h.b16 %v1113
        %v1235 = vunpack.c.l.b16 %v1114
        %v1236 = vunpack.c.h.b16 %v1114
        %v1237 = vunpack.c.l.b16 %v1115
        %v1238 = vunpack.c.h.b16 %v1115
        %v1239 = vunpack.c.l.b16 %v1116
        %v1240 = vunpack.c.h.b16 %v1116
        %v1241 = vunpack.c.l.b16 %v1117
        %v1242 = vunpack.c.h.b16 %v1117
        %v1243 = vunpack.c.l.b16 %v1118
        %v1244 = vunpack.c.h.b16 %v1118
        %v1245 = vpack.c.b16 %v1221, %v1213
        %v1246 = vpack.c.b16 %v1222, %v1214
        %v1247 = vpack.c.b16 %v1223, %v1215
        %v1248 = vpack.c.b16 %v1224, %v1216
        %v1249 = vpack.c.b16 %v1225, %v1217
        %v1250 = vpack.c.b16 %v1226, %v1218
        %v1251 = vpack.c.b16 %v1227, %v1219
        %v1252 = vpack.c.b16 %v1228, %v1220
        %v1253 = vpack.c.b16 %v1237, %v1229
        %v1254 = vpack.c.b16 %v1238, %v1230
        %v1255 = vpack.c.b16 %v1239, %v1231
        %v1256 = vpack.c.b16 %v1240, %v1232
        %v1257 = vpack.c.b16 %v1241, %v1233
        %v1258 = vpack.c.b16 %v1242, %v1234
        %v1259 = vpack.c.b16 %v1243, %v1235
        %v1260 = vpack.c.b16 %v1244, %v1236
        %v1278 = vsel %vm874, %v1119, 0
        %1280 = vmatprep.subr.bf16.mxu0 %v1246
        %1281 = vmatpush1.bf16.msra.mxu0 %v1245
        %1282 = vmatprep.subr.bf16.mxu0 %v1254
        %1283 = vmatpush1.bf16.msra.mxu0 %v1253
        %1284 = vmatprep.subr.bf16.mxu0 0
        %1285 = vmatpush1.bf16.msra.mxu0 0
        %1286 = vmatprep.subr.bf16.mxu0 0
        %1287 = vmatpush1.bf16.msra.mxu0 0
        %1288 = vmatprep.subr.bf16.mxu0 0
        %1289 = vmatpush1.bf16.msra.mxu0 0
        %1290 = vmatprep.subr.bf16.mxu0 0
        %1291 = vmatpush1.bf16.msra.mxu0 0
        %1292 = vmatprep.subr.bf16.mxu0 0
        %1293 = vmatpush1.bf16.msra.mxu0 0
        %1294 = vmatprep.subr.bf16.mxu0 0
        %1295 = vmatpush1.bf16.msra.mxu0 0
        %1296 = vmatprep.subr.bf16.mxu0 0
        %1297 = vmatpush1.bf16.msra.mxu0 0
        %1298 = vmatprep.subr.bf16.mxu0 0
        %1299 = vmatpush1.bf16.msra.mxu0 0
        %1300 = vmatprep.subr.bf16.mxu0 0
        %1301 = vmatpush1.bf16.msra.mxu0 0
        %1302 = vmatprep.subr.bf16.mxu0 0
        %1303 = vmatpush1.bf16.msra.mxu0 0
        %1304 = vmatprep.subr.bf16.mxu0 0
        %1305 = vmatpush1.bf16.msra.mxu0 0
        %1306 = vmatprep.subr.bf16.mxu0 0
        %1307 = vmatpush1.bf16.msra.mxu0 0
        %1308 = vmatprep.subr.bf16.mxu0 0
        %1309 = vmatpush1.bf16.msra.mxu0 0
        %1310 = vmatprep.subr.bf16.mxu0 0
        %1311 = vmatpush1.bf16.msra.mxu0 0
        %1312 = vmatprep.mubr.bf16.mxu0 0
        %1313 = vmatmul.mubr.bf16.gmra.mrb[0].mxu0 %v1278
        %v1314 = vpop.f32.mrb[0].mxu0
        %v1315 = vadd.f32 %v1168, %v1314
        %v1316 = vpop.f32.mrb[0].mxu0
        %v1317 = vadd.f32 %v1172, %v1316
        %v1318 = vpop.f32.mrb[0].mxu0
        %v1319 = vpop.f32.mrb[0].mxu0
        %1320 = vdwg.mxu0
        %1321 = vmatprep.subr.bf16.mxu0 %v1248
        %1322 = vmatpush1.bf16.msra.mxu0 %v1247
        %1323 = vmatprep.subr.bf16.mxu0 %v1256
        %1324 = vmatpush1.bf16.msra.mxu0 %v1255
        %1325 = vmatprep.subr.bf16.mxu0 0
        %1326 = vmatpush1.bf16.msra.mxu0 0
        %1327 = vmatprep.subr.bf16.mxu0 0
        %1328 = vmatpush1.bf16.msra.mxu0 0
        %1329 = vmatprep.subr.bf16.mxu0 0
        %1330 = vmatpush1.bf16.msra.mxu0 0
        %1331 = vmatprep.subr.bf16.mxu0 0
        %1332 = vmatpush1.bf16.msra.mxu0 0
        %1333 = vmatprep.subr.bf16.mxu0 0
        %1334 = vmatpush1.bf16.msra.mxu0 0
        %1335 = vmatprep.subr.bf16.mxu0 0
        %1336 = vmatpush1.bf16.msra.mxu0 0
        %1337 = vmatprep.subr.bf16.mxu0 0
        %1338 = vmatpush1.bf16.msra.mxu0 0
        %1339 = vmatprep.subr.bf16.mxu0 0
        %1340 = vmatpush1.bf16.msra.mxu0 0
        %1341 = vmatprep.subr.bf16.mxu0 0
        %1342 = vmatpush1.bf16.msra.mxu0 0
        %1343 = vmatprep.subr.bf16.mxu0 0
        %1344 = vmatpush1.bf16.msra.mxu0 0
        %1345 = vmatprep.subr.bf16.mxu0 0
        %1346 = vmatpush1.bf16.msra.mxu0 0
        %1347 = vmatprep.subr.bf16.mxu0 0
        %1348 = vmatpush1.bf16.msra.mxu0 0
        %1349 = vmatprep.subr.bf16.mxu0 0
        %1350 = vmatpush1.bf16.msra.mxu0 0
        %1351 = vmatprep.subr.bf16.mxu0 0
        %1352 = vmatpush1.bf16.msra.mxu0 0
        %1353 = vmatprep.mubr.bf16.mxu0 0
        %1354 = vmatmul.mubr.bf16.gmra.mrb[0].mxu0 %v1278
        %v1355 = vpop.f32.mrb[0].mxu0
        %v1356 = vadd.f32 %v1176, %v1355
        %v1357 = vpop.f32.mrb[0].mxu0
        %v1358 = vadd.f32 %v1180, %v1357
        %v1359 = vpop.f32.mrb[0].mxu0
        %v1360 = vpop.f32.mrb[0].mxu0
        %1361 = vdwg.mxu0
        %1362 = vmatprep.subr.bf16.mxu0 %v1250
        %1363 = vmatpush1.bf16.msra.mxu0 %v1249
        %1364 = vmatprep.subr.bf16.mxu0 %v1258
        %1365 = vmatpush1.bf16.msra.mxu0 %v1257
        %1366 = vmatprep.subr.bf16.mxu0 0
        %1367 = vmatpush1.bf16.msra.mxu0 0
        %1368 = vmatprep.subr.bf16.mxu0 0
        %1369 = vmatpush1.bf16.msra.mxu0 0
        %1370 = vmatprep.subr.bf16.mxu0 0
        %1371 = vmatpush1.bf16.msra.mxu0 0
        %1372 = vmatprep.subr.bf16.mxu0 0
        %1373 = vmatpush1.bf16.msra.mxu0 0
        %1374 = vmatprep.subr.bf16.mxu0 0
        %1375 = vmatpush1.bf16.msra.mxu0 0
        %1376 = vmatprep.subr.bf16.mxu0 0
        %1377 = vmatpush1.bf16.msra.mxu0 0
        %1378 = vmatprep.subr.bf16.mxu0 0
        %1379 = vmatpush1.bf16.msra.mxu0 0
        %1380 = vmatprep.subr.bf16.mxu0 0
        %1381 = vmatpush1.bf16.msra.mxu0 0
        %1382 = vmatprep.subr.bf16.mxu0 0
        %1383 = vmatpush1.bf16.msra.mxu0 0
        %1384 = vmatprep.subr.bf16.mxu0 0
        %1385 = vmatpush1.bf16.msra.mxu0 0
        %1386 = vmatprep.subr.bf16.mxu0 0
        %1387 = vmatpush1.bf16.msra.mxu0 0
        %1388 = vmatprep.subr.bf16.mxu0 0
        %1389 = vmatpush1.bf16.msra.mxu0 0
        %1390 = vmatprep.subr.bf16.mxu0 0
        %1391 = vmatpush1.bf16.msra.mxu0 0
        %1392 = vmatprep.subr.bf16.mxu0 0
        %1393 = vmatpush1.bf16.msra.mxu0 0
        %1394 = vmatprep.mubr.bf16.mxu0 0
        %1395 = vmatmul.mubr.bf16.gmra.mrb[0].mxu0 %v1278
        %v1396 = vpop.f32.mrb[0].mxu0
        %v1397 = vadd.f32 %v1184, %v1396
        %v1398 = vpop.f32.mrb[0].mxu0
        %v1399 = vadd.f32 %v1188, %v1398
        %v1400 = vpop.f32.mrb[0].mxu0
        %v1401 = vpop.f32.mrb[0].mxu0
        %1402 = vdwg.mxu0
        %1403 = vmatprep.subr.bf16.mxu0 %v1252
        %1404 = vmatpush1.bf16.msra.mxu0 %v1251
        %1405 = vmatprep.subr.bf16.mxu0 %v1260
        %1406 = vmatpush1.bf16.msra.mxu0 %v1259
        %1407 = vmatprep.subr.bf16.mxu0 0
        %1408 = vmatpush1.bf16.msra.mxu0 0
        %1409 = vmatprep.subr.bf16.mxu0 0
        %1410 = vmatpush1.bf16.msra.mxu0 0
        %1411 = vmatprep.subr.bf16.mxu0 0
        %1412 = vmatpush1.bf16.msra.mxu0 0
        %1413 = vmatprep.subr.bf16.mxu0 0
        %1414 = vmatpush1.bf16.msra.mxu0 0
        %1415 = vmatprep.subr.bf16.mxu0 0
        %1416 = vmatpush1.bf16.msra.mxu0 0
        %1417 = vmatprep.subr.bf16.mxu0 0
        %1418 = vmatpush1.bf16.msra.mxu0 0
        %1419 = vmatprep.subr.bf16.mxu0 0
        %1420 = vmatpush1.bf16.msra.mxu0 0
        %1421 = vmatprep.subr.bf16.mxu0 0
        %1422 = vmatpush1.bf16.msra.mxu0 0
        %1423 = vmatprep.subr.bf16.mxu0 0
        %1424 = vmatpush1.bf16.msra.mxu0 0
        %1425 = vmatprep.subr.bf16.mxu0 0
        %1426 = vmatpush1.bf16.msra.mxu0 0
        %1427 = vmatprep.subr.bf16.mxu0 0
        %1428 = vmatpush1.bf16.msra.mxu0 0
        %1429 = vmatprep.subr.bf16.mxu0 0
        %1430 = vmatpush1.bf16.msra.mxu0 0
        %1431 = vmatprep.subr.bf16.mxu0 0
        %1432 = vmatpush1.bf16.msra.mxu0 0
        %1433 = vmatprep.subr.bf16.mxu0 0
        %1434 = vmatpush1.bf16.msra.mxu0 0
        %1435 = vmatprep.mubr.bf16.mxu0 0
        %1436 = vmatmul.mubr.bf16.gmra.mrb[0].mxu0 %v1278
        %v1437 = vpop.f32.mrb[0].mxu0
        %v1438 = vadd.f32 %v1192, %v1437
        %v1439 = vpop.f32.mrb[0].mxu0
        %v1440 = vadd.f32 %v1196, %v1439
        %v1441 = vpop.f32.mrb[0].mxu0
        %v1442 = vpop.f32.mrb[0].mxu0
        %1443 = vdwg.mxu0
        %v1444 = vpack.c.bf16 %v1056, %v1056
        %v1445 = vpack.c.bf16 %v1315, %v1315
        %1446 = vmatprep.subr.bf16.mxu0 0
        %1447 = vmatpush1.bf16.xpose.msra.mxu0 %v1445
        %1448 = vmatprep.subr.bf16.mxu0 0
        %1449 = vmatpush1.bf16.xpose.msra.mxu0 0
        %1450 = vmatprep.subr.bf16.mxu0 0
        %1451 = vmatpush1.bf16.xpose.msra.mxu0 0
        %1452 = vmatprep.subr.bf16.mxu0 0
        %1453 = vmatpush1.bf16.xpose.msra.mxu0 0
        %1454 = vmatprep.subr.bf16.mxu0 0
        %1455 = vmatpush1.bf16.xpose.msra.mxu0 0
        %1456 = vmatprep.subr.bf16.mxu0 0
        %1457 = vmatpush1.bf16.xpose.msra.mxu0 0
        %1458 = vmatprep.subr.bf16.mxu0 0
        %1459 = vmatpush1.bf16.xpose.msra.mxu0 0
        %1460 = vmatprep.subr.bf16.mxu0 0
        %1461 = vmatpush1.bf16.xpose.msra.mxu0 0
        %1462 = vmatprep.subr.bf16.mxu0 0
        %1463 = vmatpush1.bf16.xpose.msra.mxu0 0
        %1464 = vmatprep.subr.bf16.mxu0 0
        %1465 = vmatpush1.bf16.xpose.msra.mxu0 0
        %1466 = vmatprep.subr.bf16.mxu0 0
        %1467 = vmatpush1.bf16.xpose.msra.mxu0 0
        %1468 = vmatprep.subr.bf16.mxu0 0
        %1469 = vmatpush1.bf16.xpose.msra.mxu0 0
        %1470 = vmatprep.subr.bf16.mxu0 0
        %1471 = vmatpush1.bf16.xpose.msra.mxu0 0
        %1472 = vmatprep.subr.bf16.mxu0 0
        %1473 = vmatpush1.bf16.xpose.msra.mxu0 0
        %1474 = vmatprep.subr.bf16.mxu0 0
        %1475 = vmatpush1.bf16.xpose.msra.mxu0 0
        %1476 = vmatprep.subr.bf16.mxu0 0
        %1477 = vmatpush1.bf16.xpose.msra.mxu0 0
        %1478 = vmatprep.mubr.bf16.mxu0 0
        %1479 = vmatmul.mubr.bf16.gmra.mrb[0].mxu0 %v1444
        %v1480 = vpop.f32.mrb[0].mxu0
        %v1481 = vadd.f32 0.0, %v1480
        %v1482 = vpop.f32.mrb[0].mxu0
        %v1483 = vpop.f32.mrb[0].mxu0
        %v1484 = vpop.f32.mrb[0].mxu0
        %1485 = vdwg.mxu0
        %v1486 = vmul.f32 %v1481, 0.35355338
        %vm1487 = vcmask 64512
        %v1488 = vsel %vm1487, %v1486, -inf
        %1489 = vmax.xlane.f32.xlu0 %v1488
        %v1490 = vpop.xlane.xlu0 %1489
        %v1491 = vsub.f32 %v1486, %v1490
        %v1492 = vmul.f32 %v1491, 1.442695
        %v1493 = vpow.pop %v1492
        %v1494 = vsel %vm1487, %v1493, 0.0
        %1495 = vadd.xlane.f32.xlu0 %v1494
        %v1496 = vpop.xlane.xlu0 %1495
        %v1497 = vrcp.pop %v1496
        %v1498 = vmul.f32 %v1496, %v1497
        %v1499 = vsub.f32 2.0, %v1498
        %v1500 = vmul.f32 %v1497, %v1499
        %v1501 = vmul.f32 %v1493, %v1500
        %v1502 = vpack.c.bf16 %v1501, %v1501
        %v1503 = vpack.c.bf16 %v1397, %v1397
        %v1505 = vsel %vm1487, %v1502, 0
        %vm1507 = vcmask 1043456
        %v1509 = vsel %vm1507, %v1503, 0
        %1511 = vmatprep.subr.bf16.mxu0 0
        %1512 = vmatpush1.bf16.msra.mxu0 %v1509
        %1513 = vmatprep.subr.bf16.mxu0 0
        %1514 = vmatpush1.bf16.msra.mxu0 0
        %1515 = vmatprep.subr.bf16.mxu0 0
        %1516 = vmatpush1.bf16.msra.mxu0 0
        %1517 = vmatprep.subr.bf16.mxu0 0
        %1518 = vmatpush1.bf16.msra.mxu0 0
        %1519 = vmatprep.subr.bf16.mxu0 0
        %1520 = vmatpush1.bf16.msra.mxu0 0
        %1521 = vmatprep.subr.bf16.mxu0 0
        %1522 = vmatpush1.bf16.msra.mxu0 0
        %1523 = vmatprep.subr.bf16.mxu0 0
        %1524 = vmatpush1.bf16.msra.mxu0 0
        %1525 = vmatprep.subr.bf16.mxu0 0
        %1526 = vmatpush1.bf16.msra.mxu0 0
        %1527 = vmatprep.subr.bf16.mxu0 0
        %1528 = vmatpush1.bf16.msra.mxu0 0
        %1529 = vmatprep.subr.bf16.mxu0 0
        %1530 = vmatpush1.bf16.msra.mxu0 0
        %1531 = vmatprep.subr.bf16.mxu0 0
        %1532 = vmatpush1.bf16.msra.mxu0 0
        %1533 = vmatprep.subr.bf16.mxu0 0
        %1534 = vmatpush1.bf16.msra.mxu0 0
        %1535 = vmatprep.subr.bf16.mxu0 0
        %1536 = vmatpush1.bf16.msra.mxu0 0
        %1537 = vmatprep.subr.bf16.mxu0 0
        %1538 = vmatpush1.bf16.msra.mxu0 0
        %1539 = vmatprep.subr.bf16.mxu0 0
        %1540 = vmatpush1.bf16.msra.mxu0 0
        %1541 = vmatprep.subr.bf16.mxu0 0
        %1542 = vmatpush1.bf16.msra.mxu0 0
        %1543 = vmatprep.mubr.bf16.mxu0 0
        %1544 = vmatmul.mubr.bf16.gmra.mrb[0].mxu0 %v1505
        %v1545 = vpop.f32.mrb[0].mxu0
        %v1546 = vadd.f32 0.0, %v1545
        %v1547 = vpop.f32.mrb[0].mxu0
        %v1548 = vpop.f32.mrb[0].mxu0
        %v1549 = vpop.f32.mrb[0].mxu0
        %1550 = vdwg.mxu0
        %v1551 = vpack.c.bf16 %v1058, %v1058
        %v1552 = vpack.c.bf16 %v1317, %v1317
        %1553 = vmatprep.subr.bf16.mxu0 0
        %1554 = vmatpush1.bf16.xpose.msra.mxu0 %v1552
        %1555 = vmatprep.subr.bf16.mxu0 0
        %1556 = vmatpush1.bf16.xpose.msra.mxu0 0
        %1557 = vmatprep.subr.bf16.mxu0 0
        %1558 = vmatpush1.bf16.xpose.msra.mxu0 0
        %1559 = vmatprep.subr.bf16.mxu0 0
        %1560 = vmatpush1.bf16.xpose.msra.mxu0 0
        %1561 = vmatprep.subr.bf16.mxu0 0
        %1562 = vmatpush1.bf16.xpose.msra.mxu0 0
        %1563 = vmatprep.subr.bf16.mxu0 0
        %1564 = vmatpush1.bf16.xpose.msra.mxu0 0
        %1565 = vmatprep.subr.bf16.mxu0 0
        %1566 = vmatpush1.bf16.xpose.msra.mxu0 0
        %1567 = vmatprep.subr.bf16.mxu0 0
        %1568 = vmatpush1.bf16.xpose.msra.mxu0 0
        %1569 = vmatprep.subr.bf16.mxu0 0
        %1570 = vmatpush1.bf16.xpose.msra.mxu0 0
        %1571 = vmatprep.subr.bf16.mxu0 0
        %1572 = vmatpush1.bf16.xpose.msra.mxu0 0
        %1573 = vmatprep.subr.bf16.mxu0 0
        %1574 = vmatpush1.bf16.xpose.msra.mxu0 0
        %1575 = vmatprep.subr.bf16.mxu0 0
        %1576 = vmatpush1.bf16.xpose.msra.mxu0 0
        %1577 = vmatprep.subr.bf16.mxu0 0
        %1578 = vmatpush1.bf16.xpose.msra.mxu0 0
        %1579 = vmatprep.subr.bf16.mxu0 0
        %1580 = vmatpush1.bf16.xpose.msra.mxu0 0
        %1581 = vmatprep.subr.bf16.mxu0 0
        %1582 = vmatpush1.bf16.xpose.msra.mxu0 0
        %1583 = vmatprep.subr.bf16.mxu0 0
        %1584 = vmatpush1.bf16.xpose.msra.mxu0 0
        %1585 = vmatprep.mubr.bf16.mxu0 0
        %1586 = vmatmul.mubr.bf16.gmra.mrb[0].mxu0 %v1551
        %v1587 = vpop.f32.mrb[0].mxu0
        %v1588 = vadd.f32 0.0, %v1587
        %v1589 = vpop.f32.mrb[0].mxu0
        %v1590 = vpop.f32.mrb[0].mxu0
        %v1591 = vpop.f32.mrb[0].mxu0
        %1592 = vdwg.mxu0
        %v1593 = vmul.f32 %v1588, 0.35355338
        %v1594 = vsel %vm1487, %v1593, -inf
        %1595 = vmax.xlane.f32.xlu0 %v1594
        %v1596 = vpop.xlane.xlu0 %1595
        %v1597 = vsub.f32 %v1593, %v1596
        %v1598 = vmul.f32 %v1597, 1.442695
        %v1599 = vpow.pop %v1598
        %v1600 = vsel %vm1487, %v1599, 0.0
        %1601 = vadd.xlane.f32.xlu0 %v1600
        %v1602 = vpop.xlane.xlu0 %1601
        %v1603 = vrcp.pop %v1602
        %v1604 = vmul.f32 %v1602, %v1603
        %v1605 = vsub.f32 2.0, %v1604
        %v1606 = vmul.f32 %v1603, %v1605
        %v1607 = vmul.f32 %v1599, %v1606
        %v1608 = vpack.c.bf16 %v1607, %v1607
        %v1609 = vpack.c.bf16 %v1399, %v1399
        %v1611 = vsel %vm1487, %v1608, 0
        %v1614 = vsel %vm1507, %v1609, 0
        %1616 = vmatprep.subr.bf16.mxu0 0
        %1617 = vmatpush1.bf16.msra.mxu0 %v1614
        %1618 = vmatprep.subr.bf16.mxu0 0
        %1619 = vmatpush1.bf16.msra.mxu0 0
        %1620 = vmatprep.subr.bf16.mxu0 0
        %1621 = vmatpush1.bf16.msra.mxu0 0
        %1622 = vmatprep.subr.bf16.mxu0 0
        %1623 = vmatpush1.bf16.msra.mxu0 0
        %1624 = vmatprep.subr.bf16.mxu0 0
        %1625 = vmatpush1.bf16.msra.mxu0 0
        %1626 = vmatprep.subr.bf16.mxu0 0
        %1627 = vmatpush1.bf16.msra.mxu0 0
        %1628 = vmatprep.subr.bf16.mxu0 0
        %1629 = vmatpush1.bf16.msra.mxu0 0
        %1630 = vmatprep.subr.bf16.mxu0 0
        %1631 = vmatpush1.bf16.msra.mxu0 0
        %1632 = vmatprep.subr.bf16.mxu0 0
        %1633 = vmatpush1.bf16.msra.mxu0 0
        %1634 = vmatprep.subr.bf16.mxu0 0
        %1635 = vmatpush1.bf16.msra.mxu0 0
        %1636 = vmatprep.subr.bf16.mxu0 0
        %1637 = vmatpush1.bf16.msra.mxu0 0
        %1638 = vmatprep.subr.bf16.mxu0 0
        %1639 = vmatpush1.bf16.msra.mxu0 0
        %1640 = vmatprep.subr.bf16.mxu0 0
        %1641 = vmatpush1.bf16.msra.mxu0 0
        %1642 = vmatprep.subr.bf16.mxu0 0
        %1643 = vmatpush1.bf16.msra.mxu0 0
        %1644 = vmatprep.subr.bf16.mxu0 0
        %1645 = vmatpush1.bf16.msra.mxu0 0
        %1646 = vmatprep.subr.bf16.mxu0 0
        %1647 = vmatpush1.bf16.msra.mxu0 0
        %1648 = vmatprep.mubr.bf16.mxu0 0
        %1649 = vmatmul.mubr.bf16.gmra.mrb[0].mxu0 %v1611
        %v1650 = vpop.f32.mrb[0].mxu0
        %v1651 = vadd.f32 0.0, %v1650
        %v1652 = vpop.f32.mrb[0].mxu0
        %v1653 = vpop.f32.mrb[0].mxu0
        %v1654 = vpop.f32.mrb[0].mxu0
        %1655 = vdwg.mxu0
        %v1656 = vpack.c.bf16 %v1097, %v1097
        %v1657 = vpack.c.bf16 %v1356, %v1356
        %1658 = vmatprep.subr.bf16.mxu0 0
        %1659 = vmatpush1.bf16.xpose.msra.mxu0 %v1657
        %1660 = vmatprep.subr.bf16.mxu0 0
        %1661 = vmatpush1.bf16.xpose.msra.mxu0 0
        %1662 = vmatprep.subr.bf16.mxu0 0
        %1663 = vmatpush1.bf16.xpose.msra.mxu0 0
        %1664 = vmatprep.subr.bf16.mxu0 0
        %1665 = vmatpush1.bf16.xpose.msra.mxu0 0
        %1666 = vmatprep.subr.bf16.mxu0 0
        %1667 = vmatpush1.bf16.xpose.msra.mxu0 0
        %1668 = vmatprep.subr.bf16.mxu0 0
        %1669 = vmatpush1.bf16.xpose.msra.mxu0 0
        %1670 = vmatprep.subr.bf16.mxu0 0
        %1671 = vmatpush1.bf16.xpose.msra.mxu0 0
        %1672 = vmatprep.subr.bf16.mxu0 0
        %1673 = vmatpush1.bf16.xpose.msra.mxu0 0
        %1674 = vmatprep.subr.bf16.mxu0 0
        %1675 = vmatpush1.bf16.xpose.msra.mxu0 0
        %1676 = vmatprep.subr.bf16.mxu0 0
        %1677 = vmatpush1.bf16.xpose.msra.mxu0 0
        %1678 = vmatprep.subr.bf16.mxu0 0
        %1679 = vmatpush1.bf16.xpose.msra.mxu0 0
        %1680 = vmatprep.subr.bf16.mxu0 0
        %1681 = vmatpush1.bf16.xpose.msra.mxu0 0
        %1682 = vmatprep.subr.bf16.mxu0 0
        %1683 = vmatpush1.bf16.xpose.msra.mxu0 0
        %1684 = vmatprep.subr.bf16.mxu0 0
        %1685 = vmatpush1.bf16.xpose.msra.mxu0 0
        %1686 = vmatprep.subr.bf16.mxu0 0
        %1687 = vmatpush1.bf16.xpose.msra.mxu0 0
        %1688 = vmatprep.subr.bf16.mxu0 0
        %1689 = vmatpush1.bf16.xpose.msra.mxu0 0
        %1690 = vmatprep.mubr.bf16.mxu0 0
        %1691 = vmatmul.mubr.bf16.gmra.mrb[0].mxu0 %v1656
        %v1692 = vpop.f32.mrb[0].mxu0
        %v1693 = vadd.f32 0.0, %v1692
        %v1694 = vpop.f32.mrb[0].mxu0
        %v1695 = vpop.f32.mrb[0].mxu0
        %v1696 = vpop.f32.mrb[0].mxu0
        %1697 = vdwg.mxu0
        %v1698 = vmul.f32 %v1693, 0.35355338
        %v1699 = vsel %vm1487, %v1698, -inf
        %1700 = vmax.xlane.f32.xlu0 %v1699
        %v1701 = vpop.xlane.xlu0 %1700
        %v1702 = vsub.f32 %v1698, %v1701
        %v1703 = vmul.f32 %v1702, 1.442695
        %v1704 = vpow.pop %v1703
        %v1705 = vsel %vm1487, %v1704, 0.0
        %1706 = vadd.xlane.f32.xlu0 %v1705
        %v1707 = vpop.xlane.xlu0 %1706
        %v1708 = vrcp.pop %v1707
        %v1709 = vmul.f32 %v1707, %v1708
        %v1710 = vsub.f32 2.0, %v1709
        %v1711 = vmul.f32 %v1708, %v1710
        %v1712 = vmul.f32 %v1704, %v1711
        %v1713 = vpack.c.bf16 %v1712, %v1712
        %v1714 = vpack.c.bf16 %v1438, %v1438
        %v1716 = vsel %vm1487, %v1713, 0
        %v1719 = vsel %vm1507, %v1714, 0
        %1721 = vmatprep.subr.bf16.mxu0 0
        %1722 = vmatpush1.bf16.msra.mxu0 %v1719
        %1723 = vmatprep.subr.bf16.mxu0 0
        %1724 = vmatpush1.bf16.msra.mxu0 0
        %1725 = vmatprep.subr.bf16.mxu0 0
        %1726 = vmatpush1.bf16.msra.mxu0 0
        %1727 = vmatprep.subr.bf16.mxu0 0
        %1728 = vmatpush1.bf16.msra.mxu0 0
        %1729 = vmatprep.subr.bf16.mxu0 0
        %1730 = vmatpush1.bf16.msra.mxu0 0
        %1731 = vmatprep.subr.bf16.mxu0 0
        %1732 = vmatpush1.bf16.msra.mxu0 0
        %1733 = vmatprep.subr.bf16.mxu0 0
        %1734 = vmatpush1.bf16.msra.mxu0 0
        %1735 = vmatprep.subr.bf16.mxu0 0
        %1736 = vmatpush1.bf16.msra.mxu0 0
        %1737 = vmatprep.subr.bf16.mxu0 0
        %1738 = vmatpush1.bf16.msra.mxu0 0
        %1739 = vmatprep.subr.bf16.mxu0 0
        %1740 = vmatpush1.bf16.msra.mxu0 0
        %1741 = vmatprep.subr.bf16.mxu0 0
        %1742 = vmatpush1.bf16.msra.mxu0 0
        %1743 = vmatprep.subr.bf16.mxu0 0
        %1744 = vmatpush1.bf16.msra.mxu0 0
        %1745 = vmatprep.subr.bf16.mxu0 0
        %1746 = vmatpush1.bf16.msra.mxu0 0
        %1747 = vmatprep.subr.bf16.mxu0 0
        %1748 = vmatpush1.bf16.msra.mxu0 0
        %1749 = vmatprep.subr.bf16.mxu0 0
        %1750 = vmatpush1.bf16.msra.mxu0 0
        %1751 = vmatprep.subr.bf16.mxu0 0
        %1752 = vmatpush1.bf16.msra.mxu0 0
        %1753 = vmatprep.mubr.bf16.mxu0 0
        %1754 = vmatmul.mubr.bf16.gmra.mrb[0].mxu0 %v1716
        %v1755 = vpop.f32.mrb[0].mxu0
        %v1756 = vadd.f32 0.0, %v1755
        %v1757 = vpop.f32.mrb[0].mxu0
        %v1758 = vpop.f32.mrb[0].mxu0
        %v1759 = vpop.f32.mrb[0].mxu0
        %1760 = vdwg.mxu0
        %v1761 = vpack.c.bf16 %v1099, %v1099
        %v1762 = vpack.c.bf16 %v1358, %v1358
        %1763 = vmatprep.subr.bf16.mxu0 0
        %1764 = vmatpush1.bf16.xpose.msra.mxu0 %v1762
        %1765 = vmatprep.subr.bf16.mxu0 0
        %1766 = vmatpush1.bf16.xpose.msra.mxu0 0
        %1767 = vmatprep.subr.bf16.mxu0 0
        %1768 = vmatpush1.bf16.xpose.msra.mxu0 0
        %1769 = vmatprep.subr.bf16.mxu0 0
        %1770 = vmatpush1.bf16.xpose.msra.mxu0 0
        %1771 = vmatprep.subr.bf16.mxu0 0
        %1772 = vmatpush1.bf16.xpose.msra.mxu0 0
        %1773 = vmatprep.subr.bf16.mxu0 0
        %1774 = vmatpush1.bf16.xpose.msra.mxu0 0
        %1775 = vmatprep.subr.bf16.mxu0 0
        %1776 = vmatpush1.bf16.xpose.msra.mxu0 0
        %1777 = vmatprep.subr.bf16.mxu0 0
        %1778 = vmatpush1.bf16.xpose.msra.mxu0 0
        %1779 = vmatprep.subr.bf16.mxu0 0
        %1780 = vmatpush1.bf16.xpose.msra.mxu0 0
        %1781 = vmatprep.subr.bf16.mxu0 0
        %1782 = vmatpush1.bf16.xpose.msra.mxu0 0
        %1783 = vmatprep.subr.bf16.mxu0 0
        %1784 = vmatpush1.bf16.xpose.msra.mxu0 0
        %1785 = vmatprep.subr.bf16.mxu0 0
        %1786 = vmatpush1.bf16.xpose.msra.mxu0 0
        %1787 = vmatprep.subr.bf16.mxu0 0
        %1788 = vmatpush1.bf16.xpose.msra.mxu0 0
        %1789 = vmatprep.subr.bf16.mxu0 0
        %1790 = vmatpush1.bf16.xpose.msra.mxu0 0
        %1791 = vmatprep.subr.bf16.mxu0 0
        %1792 = vmatpush1.bf16.xpose.msra.mxu0 0
        %1793 = vmatprep.subr.bf16.mxu0 0
        %1794 = vmatpush1.bf16.xpose.msra.mxu0 0
        %1795 = vmatprep.mubr.bf16.mxu0 0
        %1796 = vmatmul.mubr.bf16.gmra.mrb[0].mxu0 %v1761
        %v1797 = vpop.f32.mrb[0].mxu0
        %v1798 = vadd.f32 0.0, %v1797
        %v1799 = vpop.f32.mrb[0].mxu0
        %v1800 = vpop.f32.mrb[0].mxu0
        %v1801 = vpop.f32.mrb[0].mxu0
        %1802 = vdwg.mxu0
        %v1803 = vmul.f32 %v1798, 0.35355338
        %v1804 = vsel %vm1487, %v1803, -inf
        %1805 = vmax.xlane.f32.xlu0 %v1804
        %v1806 = vpop.xlane.xlu0 %1805
        %v1807 = vsub.f32 %v1803, %v1806
        %v1808 = vmul.f32 %v1807, 1.442695
        %v1809 = vpow.pop %v1808
        %v1810 = vsel %vm1487, %v1809, 0.0
        %1811 = vadd.xlane.f32.xlu0 %v1810
        %v1812 = vpop.xlane.xlu0 %1811
        %v1813 = vrcp.pop %v1812
        %v1814 = vmul.f32 %v1812, %v1813
        %v1815 = vsub.f32 2.0, %v1814
        %v1816 = vmul.f32 %v1813, %v1815
        %v1817 = vmul.f32 %v1809, %v1816
        %v1818 = vpack.c.bf16 %v1817, %v1817
        %v1819 = vpack.c.bf16 %v1440, %v1440
        %v1821 = vsel %vm1487, %v1818, 0
        %v1824 = vsel %vm1507, %v1819, 0
        %1826 = vmatprep.subr.bf16.mxu0 0
        %1827 = vmatpush1.bf16.msra.mxu0 %v1824
        %1828 = vmatprep.subr.bf16.mxu0 0
        %1829 = vmatpush1.bf16.msra.mxu0 0
        %1830 = vmatprep.subr.bf16.mxu0 0
        %1831 = vmatpush1.bf16.msra.mxu0 0
        %1832 = vmatprep.subr.bf16.mxu0 0
        %1833 = vmatpush1.bf16.msra.mxu0 0
        %1834 = vmatprep.subr.bf16.mxu0 0
        %1835 = vmatpush1.bf16.msra.mxu0 0
        %1836 = vmatprep.subr.bf16.mxu0 0
        %1837 = vmatpush1.bf16.msra.mxu0 0
        %1838 = vmatprep.subr.bf16.mxu0 0
        %1839 = vmatpush1.bf16.msra.mxu0 0
        %1840 = vmatprep.subr.bf16.mxu0 0
        %1841 = vmatpush1.bf16.msra.mxu0 0
        %1842 = vmatprep.subr.bf16.mxu0 0
        %1843 = vmatpush1.bf16.msra.mxu0 0
        %1844 = vmatprep.subr.bf16.mxu0 0
        %1845 = vmatpush1.bf16.msra.mxu0 0
        %1846 = vmatprep.subr.bf16.mxu0 0
        %1847 = vmatpush1.bf16.msra.mxu0 0
        %1848 = vmatprep.subr.bf16.mxu0 0
        %1849 = vmatpush1.bf16.msra.mxu0 0
        %1850 = vmatprep.subr.bf16.mxu0 0
        %1851 = vmatpush1.bf16.msra.mxu0 0
        %1852 = vmatprep.subr.bf16.mxu0 0
        %1853 = vmatpush1.bf16.msra.mxu0 0
        %1854 = vmatprep.subr.bf16.mxu0 0
        %1855 = vmatpush1.bf16.msra.mxu0 0
        %1856 = vmatprep.subr.bf16.mxu0 0
        %1857 = vmatpush1.bf16.msra.mxu0 0
        %1858 = vmatprep.mubr.bf16.mxu0 0
        %1859 = vmatmul.mubr.bf16.gmra.mrb[0].mxu0 %v1821
        %v1860 = vpop.f32.mrb[0].mxu0
        %v1861 = vadd.f32 0.0, %v1860
        %v1862 = vpop.f32.mrb[0].mxu0
        %v1863 = vpop.f32.mrb[0].mxu0
        %v1864 = vpop.f32.mrb[0].mxu0
        %1865 = vdwg.mxu0
        %v1866 = vld [vmem:[#allocation14] sm:$0xf]
        %v1867 = vld [vmem:[#allocation14 + $0x4] sm:$0xf]
        %v1868 = vld [vmem:[#allocation14 + $0x8] sm:$0xf]
        %v1869 = vld [vmem:[#allocation14 + $0xc] sm:$0xf]
        %v1870 = vld [vmem:[#allocation14 + $0x10] sm:$0xf]
        %v1871 = vld [vmem:[#allocation14 + $0x14] sm:$0xf]
        %v1872 = vld [vmem:[#allocation14 + $0x18] sm:$0xf]
        %v1873 = vld [vmem:[#allocation14 + $0x1c] sm:$0xf]
        %v1874 = vld [vmem:[#allocation14 + $0x20] sm:$0xf]
        %v1875 = vld [vmem:[#allocation14 + $0x24] sm:$0xf]
        %v1876 = vld [vmem:[#allocation14 + $0x28] sm:$0xf]
        %v1877 = vld [vmem:[#allocation14 + $0x2c] sm:$0xf]
        %v1878 = vld [vmem:[#allocation14 + $0x30] sm:$0xf]
        %v1879 = vld [vmem:[#allocation14 + $0x34] sm:$0xf]
        %v1880 = vld [vmem:[#allocation14 + $0x38] sm:$0xf]
        %v1881 = vld [vmem:[#allocation14 + $0x3c] sm:$0xf]
        %v1882 = vld [vmem:[#allocation14 + $0x40] sm:$0xf]
        %v1883 = vld [vmem:[#allocation14 + $0x44] sm:$0xf]
        %v1884 = vld [vmem:[#allocation14 + $0x48] sm:$0xf]
        %v1885 = vld [vmem:[#allocation14 + $0x4c] sm:$0xf]
        %v1886 = vld [vmem:[#allocation14 + $0x50] sm:$0xf]
        %v1887 = vld [vmem:[#allocation14 + $0x54] sm:$0xf]
        %v1888 = vld [vmem:[#allocation14 + $0x58] sm:$0xf]
        %v1889 = vld [vmem:[#allocation14 + $0x5c] sm:$0xf]
        %v1890 = vld [vmem:[#allocation14 + $0x60] sm:$0xf]
        %v1891 = vld [vmem:[#allocation14 + $0x64] sm:$0xf]
        %v1892 = vld [vmem:[#allocation14 + $0x68] sm:$0xf]
        %v1893 = vld [vmem:[#allocation14 + $0x6c] sm:$0xf]
        %v1894 = vld [vmem:[#allocation14 + $0x70] sm:$0xf]
        %v1895 = vld [vmem:[#allocation14 + $0x74] sm:$0xf]
        %v1896 = vld [vmem:[#allocation14 + $0x78] sm:$0xf]
        %v1897 = vld [vmem:[#allocation14 + $0x7c] sm:$0xf]
        %v1898 = vld [vmem:[#allocation14 + $0x80] sm:$0xf]
        %v1899 = vld [vmem:[#allocation14 + $0x84] sm:$0xf]
        %v1900 = vld [vmem:[#allocation14 + $0x88] sm:$0xf]
        %v1901 = vld [vmem:[#allocation14 + $0x8c] sm:$0xf]
        %v1902 = vld [vmem:[#allocation14 + $0x90] sm:$0xf]
        %v1903 = vld [vmem:[#allocation14 + $0x94] sm:$0xf]
        %v1904 = vld [vmem:[#allocation14 + $0x98] sm:$0xf]
        %v1905 = vld [vmem:[#allocation14 + $0x9c] sm:$0xf]
        %v1906 = vld [vmem:[#allocation14 + $0xa0] sm:$0xf]
        %v1907 = vld [vmem:[#allocation14 + $0xa4] sm:$0xf]
        %v1908 = vld [vmem:[#allocation14 + $0xa8] sm:$0xf]
        %v1909 = vld [vmem:[#allocation14 + $0xac] sm:$0xf]
        %v1910 = vld [vmem:[#allocation14 + $0xb0] sm:$0xf]
        %v1911 = vld [vmem:[#allocation14 + $0xb4] sm:$0xf]
        %v1912 = vld [vmem:[#allocation14 + $0xb8] sm:$0xf]
        %v1913 = vld [vmem:[#allocation14 + $0xbc] sm:$0xf]
        %v1914 = vld [vmem:[#allocation14 + $0xc0] sm:$0xf]
        %v1915 = vld [vmem:[#allocation14 + $0xc4] sm:$0xf]
        %v1916 = vld [vmem:[#allocation14 + $0xc8] sm:$0xf]
        %v1917 = vld [vmem:[#allocation14 + $0xcc] sm:$0xf]
        %v1918 = vld [vmem:[#allocation14 + $0xd0] sm:$0xf]
        %v1919 = vld [vmem:[#allocation14 + $0xd4] sm:$0xf]
        %v1920 = vld [vmem:[#allocation14 + $0xd8] sm:$0xf]
        %v1921 = vld [vmem:[#allocation14 + $0xdc] sm:$0xf]
        %v1922 = vld [vmem:[#allocation14 + $0xe0] sm:$0xf]
        %v1923 = vld [vmem:[#allocation14 + $0xe4] sm:$0xf]
        %v1924 = vld [vmem:[#allocation14 + $0xe8] sm:$0xf]
        %v1925 = vld [vmem:[#allocation14 + $0xec] sm:$0xf]
        %v1926 = vld [vmem:[#allocation14 + $0xf0] sm:$0xf]
        %v1927 = vld [vmem:[#allocation14 + $0xf4] sm:$0xf]
        %v1928 = vld [vmem:[#allocation14 + $0xf8] sm:$0xf]
        %v1929 = vld [vmem:[#allocation14 + $0xfc] sm:$0xf]
        %v1930 = vpack.c.bf16 %v1546, %v1546
        %v1931 = vpack.c.bf16 %v1651, %v1651
        %v1932 = vpack.c.bf16 %v1756, %v1756
        %v1933 = vpack.c.bf16 %v1861, %v1861
        %v1934 = vld [vmem:[#allocation15] sm:$0x1]
        %v1935 = vunpack.c.l.bf16 %v1934
        %v1936 = vlaneseq
        %v1937 = vshrl.u32 %v1936, 7
        %v1938 = vsub.s32 0, %v1937
        %v1939 = vrot.slane %v1935, %v1938
        %v2004 = vunpack.c.l.b16 %v1866
        %v2005 = vunpack.c.l.b16 %v1867
        %v2006 = vunpack.c.l.b16 %v1868
        %v2007 = vunpack.c.l.b16 %v1869
        %v2008 = vunpack.c.l.b16 %v1870
        %v2009 = vunpack.c.l.b16 %v1871
        %v2010 = vunpack.c.l.b16 %v1872
        %v2011 = vunpack.c.l.b16 %v1873
        %v2012 = vunpack.c.l.b16 %v1874
        %v2013 = vunpack.c.l.b16 %v1875
        %v2014 = vunpack.c.l.b16 %v1876
        %v2015 = vunpack.c.l.b16 %v1877
        %v2016 = vunpack.c.l.b16 %v1878
        %v2017 = vunpack.c.l.b16 %v1879
        %v2018 = vunpack.c.l.b16 %v1880
        %v2019 = vunpack.c.l.b16 %v1881
        %v2020 = vunpack.c.l.b16 %v1882
        %v2021 = vunpack.c.l.b16 %v1883
        %v2022 = vunpack.c.l.b16 %v1884
        %v2023 = vunpack.c.l.b16 %v1885
        %v2024 = vunpack.c.l.b16 %v1886
        %v2025 = vunpack.c.l.b16 %v1887
        %v2026 = vunpack.c.l.b16 %v1888
        %v2027 = vunpack.c.l.b16 %v1889
        %v2028 = vunpack.c.l.b16 %v1890
        %v2029 = vunpack.c.l.b16 %v1891
        %v2030 = vunpack.c.l.b16 %v1892
        %v2031 = vunpack.c.l.b16 %v1893
        %v2032 = vunpack.c.l.b16 %v1894
        %v2033 = vunpack.c.l.b16 %v1895
        %v2034 = vunpack.c.l.b16 %v1896
        %v2035 = vunpack.c.l.b16 %v1897
        %v2036 = vunpack.c.l.b16 %v1898
        %v2037 = vunpack.c.l.b16 %v1899
        %v2038 = vunpack.c.l.b16 %v1900
        %v2039 = vunpack.c.l.b16 %v1901
        %v2040 = vunpack.c.l.b16 %v1902
        %v2041 = vunpack.c.l.b16 %v1903
        %v2042 = vunpack.c.l.b16 %v1904
        %v2043 = vunpack.c.l.b16 %v1905
        %v2044 = vunpack.c.l.b16 %v1906
        %v2045 = vunpack.c.l.b16 %v1907
        %v2046 = vunpack.c.l.b16 %v1908
        %v2047 = vunpack.c.l.b16 %v1909
        %v2048 = vunpack.c.l.b16 %v1910
        %v2049 = vunpack.c.l.b16 %v1911
        %v2050 = vunpack.c.l.b16 %v1912
        %v2051 = vunpack.c.l.b16 %v1913
        %v2052 = vunpack.c.l.b16 %v1914
        %v2053 = vunpack.c.l.b16 %v1915
        %v2054 = vunpack.c.l.b16 %v1916
        %v2055 = vunpack.c.l.b16 %v1917
        %v2056 = vunpack.c.l.b16 %v1918
        %v2057 = vunpack.c.l.b16 %v1919
        %v2058 = vunpack.c.l.b16 %v1920
        %v2059 = vunpack.c.l.b16 %v1921
        %v2060 = vunpack.c.l.b16 %v1922
        %v2061 = vunpack.c.l.b16 %v1923
        %v2062 = vunpack.c.l.b16 %v1924
        %v2063 = vunpack.c.l.b16 %v1925
        %v2064 = vunpack.c.l.b16 %v1926
        %v2065 = vunpack.c.l.b16 %v1927
        %v2066 = vunpack.c.l.b16 %v1928
        %v2067 = vunpack.c.l.b16 %v1929
        %v2068 = vpack.c.b16 %v2005, %v2004
        %v2069 = vpack.c.b16 %v2007, %v2006
        %v2070 = vpack.c.b16 %v2009, %v2008
        %v2071 = vpack.c.b16 %v2011, %v2010
        %v2072 = vpack.c.b16 %v2013, %v2012
        %v2073 = vpack.c.b16 %v2015, %v2014
        %v2074 = vpack.c.b16 %v2017, %v2016
        %v2075 = vpack.c.b16 %v2019, %v2018
        %v2076 = vpack.c.b16 %v2021, %v2020
        %v2077 = vpack.c.b16 %v2023, %v2022
        %v2078 = vpack.c.b16 %v2025, %v2024
        %v2079 = vpack.c.b16 %v2027, %v2026
        %v2080 = vpack.c.b16 %v2029, %v2028
        %v2081 = vpack.c.b16 %v2031, %v2030
        %v2082 = vpack.c.b16 %v2033, %v2032
        %v2083 = vpack.c.b16 %v2035, %v2034
        %v2084 = vpack.c.b16 %v2037, %v2036
        %v2085 = vpack.c.b16 %v2039, %v2038
        %v2086 = vpack.c.b16 %v2041, %v2040
        %v2087 = vpack.c.b16 %v2043, %v2042
        %v2088 = vpack.c.b16 %v2045, %v2044
        %v2089 = vpack.c.b16 %v2047, %v2046
        %v2090 = vpack.c.b16 %v2049, %v2048
        %v2091 = vpack.c.b16 %v2051, %v2050
        %v2092 = vpack.c.b16 %v2053, %v2052
        %v2093 = vpack.c.b16 %v2055, %v2054
        %v2094 = vpack.c.b16 %v2057, %v2056
        %v2095 = vpack.c.b16 %v2059, %v2058
        %v2096 = vpack.c.b16 %v2061, %v2060
        %v2097 = vpack.c.b16 %v2063, %v2062
        %v2098 = vpack.c.b16 %v2065, %v2064
        %v2099 = vpack.c.b16 %v2067, %v2066
        %2132 = vmatprep.subr.bf16.mxu0 0
        %2133 = vmatpush1.bf16.msra.mxu0 %v2068
        %2134 = vmatprep.subr.bf16.mxu0 0
        %2135 = vmatpush1.bf16.msra.mxu0 %v2069
        %2136 = vmatprep.subr.bf16.mxu0 0
        %2137 = vmatpush1.bf16.msra.mxu0 %v2070
        %2138 = vmatprep.subr.bf16.mxu0 0
        %2139 = vmatpush1.bf16.msra.mxu0 %v2071
        %2140 = vmatprep.subr.bf16.mxu0 0
        %2141 = vmatpush1.bf16.msra.mxu0 %v2072
        %2142 = vmatprep.subr.bf16.mxu0 0
        %2143 = vmatpush1.bf16.msra.mxu0 %v2073
        %2144 = vmatprep.subr.bf16.mxu0 0
        %2145 = vmatpush1.bf16.msra.mxu0 %v2074
        %2146 = vmatprep.subr.bf16.mxu0 0
        %2147 = vmatpush1.bf16.msra.mxu0 %v2075
        %2148 = vmatprep.subr.bf16.mxu0 0
        %2149 = vmatpush1.bf16.msra.mxu0 %v2076
        %2150 = vmatprep.subr.bf16.mxu0 0
        %2151 = vmatpush1.bf16.msra.mxu0 %v2077
        %2152 = vmatprep.subr.bf16.mxu0 0
        %2153 = vmatpush1.bf16.msra.mxu0 %v2078
        %2154 = vmatprep.subr.bf16.mxu0 0
        %2155 = vmatpush1.bf16.msra.mxu0 %v2079
        %2156 = vmatprep.subr.bf16.mxu0 0
        %2157 = vmatpush1.bf16.msra.mxu0 %v2080
        %2158 = vmatprep.subr.bf16.mxu0 0
        %2159 = vmatpush1.bf16.msra.mxu0 %v2081
        %2160 = vmatprep.subr.bf16.mxu0 0
        %2161 = vmatpush1.bf16.msra.mxu0 %v2082
        %2162 = vmatprep.subr.bf16.mxu0 0
        %2163 = vmatpush1.bf16.msra.mxu0 %v2083
        %2164 = vmatprep.mubr.bf16.mxu0 %v1931
        %2165 = vmatmul.mubr.bf16.gmra.mrb[0].mxu0 %v1930
        %v2166 = vpop.f32.mrb[0].mxu0
        %v2167 = vadd.f32 %v1939, %v2166
        %v2168 = vpop.f32.mrb[0].mxu0
        %v2169 = vpop.f32.mrb[0].mxu0
        %v2170 = vpop.f32.mrb[0].mxu0
        %2171 = vdwg.mxu0
        %2172 = vmatprep.subr.bf16.mxu0 0
        %2173 = vmatpush1.bf16.msra.mxu0 %v2084
        %2174 = vmatprep.subr.bf16.mxu0 0
        %2175 = vmatpush1.bf16.msra.mxu0 %v2085
        %2176 = vmatprep.subr.bf16.mxu0 0
        %2177 = vmatpush1.bf16.msra.mxu0 %v2086
        %2178 = vmatprep.subr.bf16.mxu0 0
        %2179 = vmatpush1.bf16.msra.mxu0 %v2087
        %2180 = vmatprep.subr.bf16.mxu0 0
        %2181 = vmatpush1.bf16.msra.mxu0 %v2088
        %2182 = vmatprep.subr.bf16.mxu0 0
        %2183 = vmatpush1.bf16.msra.mxu0 %v2089
        %2184 = vmatprep.subr.bf16.mxu0 0
        %2185 = vmatpush1.bf16.msra.mxu0 %v2090
        %2186 = vmatprep.subr.bf16.mxu0 0
        %2187 = vmatpush1.bf16.msra.mxu0 %v2091
        %2188 = vmatprep.subr.bf16.mxu0 0
        %2189 = vmatpush1.bf16.msra.mxu0 %v2092
        %2190 = vmatprep.subr.bf16.mxu0 0
        %2191 = vmatpush1.bf16.msra.mxu0 %v2093
        %2192 = vmatprep.subr.bf16.mxu0 0
        %2193 = vmatpush1.bf16.msra.mxu0 %v2094
        %2194 = vmatprep.subr.bf16.mxu0 0
        %2195 = vmatpush1.bf16.msra.mxu0 %v2095
        %2196 = vmatprep.subr.bf16.mxu0 0
        %2197 = vmatpush1.bf16.msra.mxu0 %v2096
        %2198 = vmatprep.subr.bf16.mxu0 0
        %2199 = vmatpush1.bf16.msra.mxu0 %v2097
        %2200 = vmatprep.subr.bf16.mxu0 0
        %2201 = vmatpush1.bf16.msra.mxu0 %v2098
        %2202 = vmatprep.subr.bf16.mxu0 0
        %2203 = vmatpush1.bf16.msra.mxu0 %v2099
        %2204 = vmatprep.mubr.bf16.mxu0 %v1933
        %2205 = vmatmul.mubr.bf16.gmra.mrb[0].mxu0 %v1932
        %v2206 = vpop.f32.mrb[0].mxu0
        %v2207 = vadd.f32 %v2167, %v2206
        %v2208 = vpop.f32.mrb[0].mxu0
        %v2209 = vpop.f32.mrb[0].mxu0
        %v2210 = vpop.f32.mrb[0].mxu0
        %2211 = vdwg.mxu0
        %v2212 = vadd.f32 %v849, %v2207
        %v2213 = vld [vmem:[#allocation17] sm:$0x1]
        %v2214 = vld [vmem:[#allocation18] sm:$0x1]
        %v2215 = vsel %vm874, %v2212, 0.0
        %2216 = vadd.xlane.f32.xlu0 %v2215
        %v2217 = vpop.xlane.xlu0 %2216
        %v2218 = vrcp.pop 32.0
        %v2219 = vmul.f32 %v2217, %v2218
        %v2220 = vsub.f32 %v2212, %v2219
        %v2221 = vmul.f32 %v2220, %v2220
        %v2222 = vsel %vm874, %v2221, 0.0
        %2223 = vadd.xlane.f32.xlu0 %v2222
        %v2224 = vpop.xlane.xlu0 %2223
        %v2225 = vmul.f32 %v2224, %v2218
        %v2226 = vadd.f32 %v2225, 1e-05
        %v2227 = vrsqrt.pop %v2226
        %v2228 = vmul.f32 %v2220, %v2227
        %v2229 = vunpack.c.l.bf16 %v2213
        %v2230 = vlaneseq
        %v2231 = vshrl.u32 %v2230, 7
        %v2232 = vsub.s32 0, %v2231
        %v2233 = vrot.slane %v2229, %v2232
        %v2234 = vmul.f32 %v2228, %v2233
        %v2235 = vunpack.c.l.bf16 %v2214
        %v2236 = vlaneseq
        %v2237 = vshrl.u32 %v2236, 7
        %v2238 = vsub.s32 0, %v2237
        %v2239 = vrot.slane %v2235, %v2238
        %v2240 = vadd.f32 %v2234, %v2239
        %v2241 = vld [vmem:[#allocation20] sm:$0xf]
        %v2242 = vld [vmem:[#allocation20 + $0x4] sm:$0xf]
        %v2243 = vld [vmem:[#allocation20 + $0x8] sm:$0xf]
        %v2244 = vld [vmem:[#allocation20 + $0xc] sm:$0xf]
        %v2245 = vpack.c.bf16 %v2240, %v2240
        %v2246 = vld [vmem:[#allocation21] sm:$0x1]
        %v2247 = vunpack.c.l.bf16 %v2246
        %v2248 = vlaneseq
        %v2249 = vshrl.u32 %v2248, 7
        %v2250 = vsub.s32 0, %v2249
        %v2251 = vrot.slane %v2247, %v2250
        %v2256 = vunpack.c.l.b16 %v2241
        %v2257 = vunpack.c.l.b16 %v2242
        %v2258 = vunpack.c.l.b16 %v2243
        %v2259 = vunpack.c.l.b16 %v2244
        %v2260 = vpack.c.b16 %v2257, %v2256
        %v2261 = vpack.c.b16 %v2259, %v2258
        %v2265 = vsel %vm874, %v2245, 0
        %2267 = vmatprep.subr.bf16.mxu0 0
        %2268 = vmatpush1.bf16.msra.mxu0 %v2260
        %2269 = vmatprep.subr.bf16.mxu0 0
        %2270 = vmatpush1.bf16.msra.mxu0 %v2261
        %2271 = vmatprep.subr.bf16.mxu0 0
        %2272 = vmatpush1.bf16.msra.mxu0 0
        %2273 = vmatprep.subr.bf16.mxu0 0
        %2274 = vmatpush1.bf16.msra.mxu0 0
        %2275 = vmatprep.subr.bf16.mxu0 0
        %2276 = vmatpush1.bf16.msra.mxu0 0
        %2277 = vmatprep.subr.bf16.mxu0 0
        %2278 = vmatpush1.bf16.msra.mxu0 0
        %2279 = vmatprep.subr.bf16.mxu0 0
        %2280 = vmatpush1.bf16.msra.mxu0 0
        %2281 = vmatprep.subr.bf16.mxu0 0
        %2282 = vmatpush1.bf16.msra.mxu0 0
        %2283 = vmatprep.subr.bf16.mxu0 0
        %2284 = vmatpush1.bf16.msra.mxu0 0
        %2285 = vmatprep.subr.bf16.mxu0 0
        %2286 = vmatpush1.bf16.msra.mxu0 0
        %2287 = vmatprep.subr.bf16.mxu0 0
        %2288 = vmatpush1.bf16.msra.mxu0 0
        %2289 = vmatprep.subr.bf16.mxu0 0
        %2290 = vmatpush1.bf16.msra.mxu0 0
        %2291 = vmatprep.subr.bf16.mxu0 0
        %2292 = vmatpush1.bf16.msra.mxu0 0
        %2293 = vmatprep.subr.bf16.mxu0 0
        %2294 = vmatpush1.bf16.msra.mxu0 0
        %2295 = vmatprep.subr.bf16.mxu0 0
        %2296 = vmatpush1.bf16.msra.mxu0 0
        %2297 = vmatprep.subr.bf16.mxu0 0
        %2298 = vmatpush1.bf16.msra.mxu0 0
        %2299 = vmatprep.mubr.bf16.mxu0 0
        %2300 = vmatmul.mubr.bf16.gmra.mrb[0].mxu0 %v2265
        %v2301 = vpop.f32.mrb[0].mxu0
        %v2302 = vadd.f32 %v2251, %v2301
        %v2303 = vpop.f32.mrb[0].mxu0
        %v2304 = vpop.f32.mrb[0].mxu0
        %v2305 = vpop.f32.mrb[0].mxu0
        %2306 = vdwg.mxu0
        %v2307 = vmul.f32 %v2302, 0.5
        %v2308 = vmul.f32 %v2302, 0.70710677
        %v2309 = verf.f32.pop %v2308
        %v2310 = vadd.f32 %v2309, 1.0
        %v2311 = vmul.f32 %v2307, %v2310
        %v2312 = vld [vmem:[#allocation23] sm:$0xf]
        %v2313 = vld [vmem:[#allocation23 + $0x4] sm:$0xf]
        %v2314 = vld [vmem:[#allocation23 + $0x8] sm:$0xf]
        %v2315 = vld [vmem:[#allocation23 + $0xc] sm:$0xf]
        %v2316 = vld [vmem:[#allocation23 + $0x10] sm:$0xf]
        %v2317 = vld [vmem:[#allocation23 + $0x14] sm:$0xf]
        %v2318 = vld [vmem:[#allocation23 + $0x18] sm:$0xf]
        %v2319 = vld [vmem:[#allocation23 + $0x1c] sm:$0xf]
        %v2320 = vld [vmem:[#allocation23 + $0x20] sm:$0xf]
        %v2321 = vld [vmem:[#allocation23 + $0x24] sm:$0xf]
        %v2322 = vld [vmem:[#allocation23 + $0x28] sm:$0xf]
        %v2323 = vld [vmem:[#allocation23 + $0x2c] sm:$0xf]
        %v2324 = vld [vmem:[#allocation23 + $0x30] sm:$0xf]
        %v2325 = vld [vmem:[#allocation23 + $0x34] sm:$0xf]
        %v2326 = vld [vmem:[#allocation23 + $0x38] sm:$0xf]
        %v2327 = vld [vmem:[#allocation23 + $0x3c] sm:$0xf]
        %v2328 = vpack.c.bf16 %v2311, %v2311
        %v2329 = vld [vmem:[#allocation24] sm:$0x1]
        %v2330 = vunpack.c.l.bf16 %v2329
        %v2331 = vlaneseq
        %v2332 = vshrl.u32 %v2331, 7
        %v2333 = vsub.s32 0, %v2332
        %v2334 = vrot.slane %v2330, %v2333
        %v2351 = vunpack.c.l.b16 %v2312
        %v2352 = vunpack.c.l.b16 %v2313
        %v2353 = vunpack.c.l.b16 %v2314
        %v2354 = vunpack.c.l.b16 %v2315
        %v2355 = vunpack.c.l.b16 %v2316
        %v2356 = vunpack.c.l.b16 %v2317
        %v2357 = vunpack.c.l.b16 %v2318
        %v2358 = vunpack.c.l.b16 %v2319
        %v2359 = vunpack.c.l.b16 %v2320
        %v2360 = vunpack.c.l.b16 %v2321
        %v2361 = vunpack.c.l.b16 %v2322
        %v2362 = vunpack.c.l.b16 %v2323
        %v2363 = vunpack.c.l.b16 %v2324
        %v2364 = vunpack.c.l.b16 %v2325
        %v2365 = vunpack.c.l.b16 %v2326
        %v2366 = vunpack.c.l.b16 %v2327
        %v2367 = vpack.c.b16 %v2352, %v2351
        %v2368 = vpack.c.b16 %v2354, %v2353
        %v2369 = vpack.c.b16 %v2356, %v2355
        %v2370 = vpack.c.b16 %v2358, %v2357
        %v2371 = vpack.c.b16 %v2360, %v2359
        %v2372 = vpack.c.b16 %v2362, %v2361
        %v2373 = vpack.c.b16 %v2364, %v2363
        %v2374 = vpack.c.b16 %v2366, %v2365
        %2383 = vmatprep.subr.bf16.mxu0 0
        %2384 = vmatpush1.bf16.msra.mxu0 %v2367
        %2385 = vmatprep.subr.bf16.mxu0 0
        %2386 = vmatpush1.bf16.msra.mxu0 %v2368
        %2387 = vmatprep.subr.bf16.mxu0 0
        %2388 = vmatpush1.bf16.msra.mxu0 %v2369
        %2389 = vmatprep.subr.bf16.mxu0 0
        %2390 = vmatpush1.bf16.msra.mxu0 %v2370
        %2391 = vmatprep.subr.bf16.mxu0 0
        %2392 = vmatpush1.bf16.msra.mxu0 %v2371
        %2393 = vmatprep.subr.bf16.mxu0 0
        %2394 = vmatpush1.bf16.msra.mxu0 %v2372
        %2395 = vmatprep.subr.bf16.mxu0 0
        %2396 = vmatpush1.bf16.msra.mxu0 %v2373
        %2397 = vmatprep.subr.bf16.mxu0 0
        %2398 = vmatpush1.bf16.msra.mxu0 %v2374
        %2399 = vmatprep.subr.bf16.mxu0 0
        %2400 = vmatpush1.bf16.msra.mxu0 0
        %2401 = vmatprep.subr.bf16.mxu0 0
        %2402 = vmatpush1.bf16.msra.mxu0 0
        %2403 = vmatprep.subr.bf16.mxu0 0
        %2404 = vmatpush1.bf16.msra.mxu0 0
        %2405 = vmatprep.subr.bf16.mxu0 0
        %2406 = vmatpush1.bf16.msra.mxu0 0
        %2407 = vmatprep.subr.bf16.mxu0 0
        %2408 = vmatpush1.bf16.msra.mxu0 0
        %2409 = vmatprep.subr.bf16.mxu0 0
        %2410 = vmatpush1.bf16.msra.mxu0 0
        %2411 = vmatprep.subr.bf16.mxu0 0
        %2412 = vmatpush1.bf16.msra.mxu0 0
        %2413 = vmatprep.subr.bf16.mxu0 0
        %2414 = vmatpush1.bf16.msra.mxu0 0
        %2415 = vmatprep.mubr.bf16.mxu0 0
        %2416 = vmatmul.mubr.bf16.gmra.mrb[0].mxu0 %v2328
        %v2417 = vpop.f32.mrb[0].mxu0
        %v2418 = vadd.f32 %v2334, %v2417
        %v2419 = vpop.f32.mrb[0].mxu0
        %v2420 = vpop.f32.mrb[0].mxu0
        %v2421 = vpop.f32.mrb[0].mxu0
        %2422 = vdwg.mxu0
        %v2423 = vadd.f32 %v2240, %v2418
        %v2424 = vadd.f32 %v2423, %v849
        %v2425 = vld [vmem:[#allocation26] sm:$0x1]
        %v2426 = vld [vmem:[#allocation27] sm:$0x1]
        %v2427 = vsel %vm874, %v2424, 0.0
        %2428 = vadd.xlane.f32.xlu0 %v2427
        %v2429 = vpop.xlane.xlu0 %2428
        %v2430 = vmul.f32 %v2429, %v2218
        %v2431 = vsub.f32 %v2424, %v2430
        %v2432 = vmul.f32 %v2431, %v2431
        %v2433 = vsel %vm874, %v2432, 0.0
        %2434 = vadd.xlane.f32.xlu0 %v2433
        %v2435 = vpop.xlane.xlu0 %2434
        %v2436 = vmul.f32 %v2435, %v2218
        %v2437 = vadd.f32 %v2436, 1e-05
        %v2438 = vrsqrt.pop %v2437
        %v2439 = vmul.f32 %v2431, %v2438
        %v2440 = vunpack.c.l.bf16 %v2425
        %v2441 = vlaneseq
        %v2442 = vshrl.u32 %v2441, 7
        %v2443 = vsub.s32 0, %v2442
        %v2444 = vrot.slane %v2440, %v2443
        %v2445 = vmul.f32 %v2439, %v2444
        %v2446 = vunpack.c.l.bf16 %v2426
        %v2447 = vlaneseq
        %v2448 = vshrl.u32 %v2447, 7
        %v2449 = vsub.s32 0, %v2448
        %v2450 = vrot.slane %v2446, %v2449
        %v2451 = vadd.f32 %v2445, %v2450
        %2452 = vst.msk [vmem:[%s845] sm:$0xff] %vm874, %v2451
        %s2453 = sand.u32 %s459, 1
        %s2454 = scalar_lea.sflag [#allocation5], %s2453
        %s2455 = sand.u32 %s459, 1
        %s2456 = smul.addr %s2455, 8
        %s2457 = scalar_lea.vmem [#allocation30], %s2456
        // Predicated region
        $region161: #{balanced_cross_transformer.2} parent=91 // pred_check
          %p2458 = pneg %p469
        $region162: #{balanced_cross_transformer.2} parent=91 // pred_check_branch
          %2460 = sbr.rel (%p2458) target = $region164
        $region163: #{balanced_cross_transformer.2} parent=91 // pred_region
          %s2461 = sadd.s32 %s51, %s52
          %s2463 = ssub.s32 128, 128
          %2464 = vsyncadd %s2454, %s2463
          %s2465 = smul.addr %s2461, 128
          %s2466 = scalar_lea.hbm %s18, %s2465
          %s2468 = sshll.u32 %s2457, 4
          %s2469 = int_to_ptr.vmem [resolvable:$true] %s2468
          %2471 = dma.vmem_to_hbm [thread:$0]  %s2469, 128, %s2466, %s2454
        $region164: #{balanced_cross_transformer.2} parent=91 // pred_fallthru
          _
      $region92: #{balanced_cross_transformer.2} parent=5 // pred_fallthru
        _
      %p2472 = scmp.le.s32.totalorder 2, %s42
      // Predicated region
      $region165: #{balanced_cross_transformer.2} parent=5 // pred_check
        %p2473 = pneg %p2472
      $region166: #{balanced_cross_transformer.2} parent=5 // pred_check_branch
        %2475 = sbr.rel (%p2473) target = $region168
      $region167: #{balanced_cross_transformer.2} parent=5 // pred_region
        %s2476 = ssub.s32 %s42, 2
        // Predicated region
        $region169: #{balanced_cross_transformer.2} parent=167 // pred_check
          %p2477 = pneg %p475
        $region170: #{balanced_cross_transformer.2} parent=167 // pred_check_branch
          %2479 = sbr.rel (%p2477) target = $region172
        $region171: #{balanced_cross_transformer.2} parent=167 // pred_region
          %s2480 = sand.u32 %s460, 1
          %s2481 = scalar_lea.sflag [#allocation5], %s2480
          %s2482 = sand.u32 %s460, 1
          %s2483 = smul.addr %s2482, 8
          %s2484 = scalar_lea.vmem [#allocation30], %s2483
          %2485 = dma.done %s2481, 128
        $region172: #{balanced_cross_transformer.2} parent=167 // pred_fallthru
          _
      $region168: #{balanced_cross_transformer.2} parent=5 // pred_fallthru
        _
    $region6: #{balanced_cross_transformer.2} parent=1 // loop_footer
      %s46 = sadd.s32 1, %s42
    $region7: #{balanced_cross_transformer.2} parent=1 // loop_footer_branch
      %41 = sbr.rel target = $region3
    $region8: #{balanced_cross_transformer.2} parent=1 // loop_exit
      _
    %2486 = vsyncpa [#allocation4], 1
    %s2487 = scalar_lea.sflag [#allocation4], 1
    %2488 = vsyncpa %s2487, 1
    %2489 = vsyncpa [#allocation7], 1
    %s2490 = scalar_lea.sflag [#allocation7], 1
    %2491 = vsyncpa %s2490, 1
    %2492 = vsyncpa [#allocation10], 1
    %2493 = vsyncpa [#allocation13], 1
    %2494 = vsyncpa [#allocation16], 1
    %2495 = vsyncpa [#allocation19], 1
    %2496 = vsyncpa [#allocation22], 1
    %2497 = vsyncpa [#allocation25], 1
    %2498 = vsyncpa [#allocation28], 1
    %2499 = vsyncpa [#allocation5], 1
    %s2500 = scalar_lea.sflag [#allocation5], 1
    %2501 = vsyncpa %s2500, 1

// kernel: balanced_cross_transformer.3
$region0: #{balanced_cross_transformer.3}
  #allocation0 [shape = 'u32[]', space=smem, size = 0x4, offset = 0x4, fixed_abs, tag = 'smem constant byte address 0x4 - core index']
  #allocation1 [shape = 'u32[144,128]{1,0:T(1,128)}', space=vmem, size = 0x12000, scoped, tag = 'internal scratch']
  #allocation2 [shape = 'bf16[1,1]{1,0:T(2,128)S(1)}', space=vmem, size = 0x200, scoped, tag = 'scoped memory for balanced_cross_transformer.3']
  %s0 = inlined_call_operand.hbm [shape: f32[16,32], index: 0, kind: input, shape index: {}]
  %s1 = inlined_call_operand.hbm [shape: f32[16,32], index: 1, kind: input, shape index: {}]
  %s2 = inlined_call_operand.hbm [shape: bf16[32,512], index: 2, kind: input, shape index: {}]
  %s3 = inlined_call_operand.hbm [shape: bf16[1,512], index: 3, kind: input, shape index: {}]
  %s4 = inlined_call_operand.hbm [shape: bf16[32,1024], index: 4, kind: input, shape index: {}]
  %s5 = inlined_call_operand.hbm [shape: bf16[1,1024], index: 5, kind: input, shape index: {}]
  %s6 = inlined_call_operand.hbm [shape: bf16[512,32], index: 6, kind: input, shape index: {}]
  %s7 = inlined_call_operand.hbm [shape: bf16[1,32], index: 7, kind: input, shape index: {}]
  %s8 = inlined_call_operand.hbm [shape: bf16[1,32], index: 8, kind: input, shape index: {}]
  %s9 = inlined_call_operand.hbm [shape: bf16[1,32], index: 9, kind: input, shape index: {}]
  %s10 = inlined_call_operand.hbm [shape: bf16[32,128], index: 10, kind: input, shape index: {}]
  %s11 = inlined_call_operand.hbm [shape: bf16[1,128], index: 11, kind: input, shape index: {}]
  %s12 = inlined_call_operand.hbm [shape: bf16[128,32], index: 12, kind: input, shape index: {}]
  %s13 = inlined_call_operand.hbm [shape: bf16[1,32], index: 13, kind: input, shape index: {}]
  %s14 = inlined_call_operand.hbm [shape: bf16[1,32], index: 14, kind: input, shape index: {}]
  %s15 = inlined_call_operand.hbm [shape: bf16[1,32], index: 15, kind: input, shape index: {}]
  %s16 = inlined_call_operand.hbm [shape: bf16[32,1], index: 16, kind: input, shape index: {}]
  %s17 = inlined_call_operand.<no memory space> [shape: bf16[1,1], index: 17, kind: input, shape index: {}]
  %s18 = inlined_call_operand.hbm [shape: bf16[32,32], index: 18, kind: input, shape index: {}]
  %s19 = inlined_call_operand.hbm [shape: bf16[32,32], index: 19, kind: input, shape index: {}]
  %s20 = inlined_call_operand.hbm [shape: bf16[1,32], index: 20, kind: input, shape index: {}]
  %s21 = inlined_call_operand.hbm [shape: bf16[32,32], index: 21, kind: input, shape index: {}]
  %s22 = inlined_call_operand.hbm [shape: bf16[1,32], index: 22, kind: input, shape index: {}]
  %s23 = inlined_call_operand.hbm [shape: f32[16,32], index: 23, kind: output, shape index: {}]
  %s24 = sld [smem:[#allocation0]]
  $region213: #{balanced_cross_transformer.3} parent=0
    _
  %s26 = ssub.s32 1, %s24
  %s27 = scalar_select 0, %s26, %s24
  %v28 = vstv %s17
  %29 = vst [vmem:[#allocation2] sm:$0x1] %v28
  $region1: #{balanced_cross_transformer.3} parent=0
    #allocation3 [shape = 'u8[8192]{0}', space=vmem, size = 0x2000, scoped, tag = 'input window, operand 0']
    #allocation4 [shape = 's32[2]{0}', space=sflag, size = 0x8, scoped, tag = 'scoped memory for balanced_cross_transformer.3']
    #allocation5 [shape = 's32[2]{0}', space=sflag, size = 0x8, scoped, tag = 'scoped memory for balanced_cross_transformer.3']
    #allocation6 [shape = 'u8[8192]{0}', space=vmem, size = 0x2000, scoped, tag = 'input window, operand 1']
    #allocation7 [shape = 's32[2]{0}', space=sflag, size = 0x8, scoped, tag = 'scoped memory for balanced_cross_transformer.3']
    #allocation8 [shape = 'u8[32768]{0}', space=vmem, size = 0x8000, scoped, tag = 'input window, operand 2, single buffered']
    #allocation9 [shape = 'u8[2048]{0}', space=vmem, size = 0x800, scoped, tag = 'input window, operand 3, single buffered']
    #allocation10 [shape = 's32[1]{0}', space=sflag, size = 0x4, scoped, tag = 'scoped memory for balanced_cross_transformer.3']
    #allocation11 [shape = 'u8[65536]{0}', space=vmem, size = 0x10000, scoped, tag = 'input window, operand 4, single buffered']
    #allocation12 [shape = 'u8[4096]{0}', space=vmem, size = 0x1000, scoped, tag = 'input window, operand 5, single buffered']
    #allocation13 [shape = 's32[1]{0}', space=sflag, size = 0x4, scoped, tag = 'scoped memory for balanced_cross_transformer.3']
    #allocation14 [shape = 'u8[131072]{0}', space=vmem, size = 0x20000, scoped, tag = 'input window, operand 6, single buffered']
    #allocation15 [shape = 'u8[512]{0}', space=vmem, size = 0x400, scoped, tag = 'input window, operand 7, single buffered']
    #allocation16 [shape = 's32[1]{0}', space=sflag, size = 0x4, scoped, tag = 'scoped memory for balanced_cross_transformer.3']
    #allocation17 [shape = 'u8[512]{0}', space=vmem, size = 0x400, scoped, tag = 'input window, operand 8, single buffered']
    #allocation18 [shape = 'u8[512]{0}', space=vmem, size = 0x400, scoped, tag = 'input window, operand 9, single buffered']
    #allocation19 [shape = 's32[1]{0}', space=sflag, size = 0x4, scoped, tag = 'scoped memory for balanced_cross_transformer.3']
    #allocation20 [shape = 'u8[8192]{0}', space=vmem, size = 0x2000, scoped, tag = 'input window, operand 10, single buffered']
    #allocation21 [shape = 'u8[512]{0}', space=vmem, size = 0x400, scoped, tag = 'input window, operand 11, single buffered']
    #allocation22 [shape = 's32[1]{0}', space=sflag, size = 0x4, scoped, tag = 'scoped memory for balanced_cross_transformer.3']
    #allocation23 [shape = 'u8[32768]{0}', space=vmem, size = 0x8000, scoped, tag = 'input window, operand 12, single buffered']
    #allocation24 [shape = 'u8[512]{0}', space=vmem, size = 0x400, scoped, tag = 'input window, operand 13, single buffered']
    #allocation25 [shape = 's32[1]{0}', space=sflag, size = 0x4, scoped, tag = 'scoped memory for balanced_cross_transformer.3']
    #allocation26 [shape = 'u8[512]{0}', space=vmem, size = 0x400, scoped, tag = 'input window, operand 14, single buffered']
    #allocation27 [shape = 'u8[512]{0}', space=vmem, size = 0x400, scoped, tag = 'input window, operand 15, single buffered']
    #allocation28 [shape = 's32[1]{0}', space=sflag, size = 0x4, scoped, tag = 'scoped memory for balanced_cross_transformer.3']
    #allocation29 [shape = 'u8[8192]{0}', space=vmem, size = 0x2000, scoped, tag = 'input window, operand 16, single buffered']
    #allocation30 [shape = 'u8[8192]{0}', space=vmem, size = 0x2000, scoped, tag = 'input window, operand 18, single buffered']
    #allocation31 [shape = 's32[1]{0}', space=sflag, size = 0x4, scoped, tag = 'scoped memory for balanced_cross_transformer.3']
    #allocation32 [shape = 'u8[8192]{0}', space=vmem, size = 0x2000, scoped, tag = 'input window, operand 19, single buffered']
    #allocation33 [shape = 'u8[512]{0}', space=vmem, size = 0x400, scoped, tag = 'input window, operand 20, single buffered']
    #allocation34 [shape = 's32[1]{0}', space=sflag, size = 0x4, scoped, tag = 'scoped memory for balanced_cross_transformer.3']
    #allocation35 [shape = 'u8[8192]{0}', space=vmem, size = 0x2000, scoped, tag = 'input window, operand 21, single buffered']
    #allocation36 [shape = 'u8[512]{0}', space=vmem, size = 0x400, scoped, tag = 'input window, operand 22, single buffered']
    #allocation37 [shape = 's32[1]{0}', space=sflag, size = 0x4, scoped, tag = 'scoped memory for balanced_cross_transformer.3']
    #allocation38 [shape = 'u8[8192]{0}', space=vmem, size = 0x2000, scoped, tag = 'output window, operand 0']
    %30 = vsyncpa [#allocation4], 0
    %s31 = scalar_lea.sflag [#allocation4], 1
    %32 = vsyncpa %s31, 0
    %33 = vsyncpa [#allocation7], 0
    %s34 = scalar_lea.sflag [#allocation7], 1
    %35 = vsyncpa %s34, 0
    %36 = vsyncpa [#allocation10], 0
    %37 = vsyncpa [#allocation13], 0
    %38 = vsyncpa [#allocation16], 0
    %39 = vsyncpa [#allocation19], 0
    %40 = vsyncpa [#allocation22], 0
    %41 = vsyncpa [#allocation25], 0
    %42 = vsyncpa [#allocation28], 0
    %43 = vsyncpa [#allocation31], 0
    %44 = vsyncpa [#allocation34], 0
    %45 = vsyncpa [#allocation37], 0
    %46 = vsyncpa [#allocation5], 0
    %s47 = scalar_lea.sflag [#allocation5], 1
    %48 = vsyncpa %s47, 0
    loop: start=0, step=1, limit=4
    $region2: #{balanced_cross_transformer.3} parent=1 // loop_pre_header
      _
    $region3: #{balanced_cross_transformer.3} parent=1 // loop_header
      %s50 = sphi 0, %s54
      %p51 = scmp.ge.s32.totalorder %s50, 4
      %s57 = sphi 0, %s69
      %s58 = sphi 0, %s65
      %s59 = sphi 0, %s57
      %s60 = sphi 0, %s58
      %s61 = sphi 0, %s59
      %s62 = sphi 0, %s60
      %s74 = sphi 0, %s76
      %s77 = sphi 0, %s74
      %s78 = sphi 0, %s77
      %s94 = sphi 0, %s78
      %s100 = sphi 0, %s102
      %s103 = sphi 0, %s100
      %s104 = sphi 0, %s103
      %s120 = sphi 0, %s104
      %s124 = sphi 0, %s124
      %s126 = sphi 0, %s124
      %s127 = sphi 0, %s126
      %s141 = sphi 0, %s127
      %s145 = sphi 0, %s145
      %s147 = sphi 0, %s145
      %s148 = sphi 0, %s147
      %s162 = sphi 0, %s148
      %s166 = sphi 0, %s166
      %s168 = sphi 0, %s166
      %s169 = sphi 0, %s168
      %s183 = sphi 0, %s169
      %s187 = sphi 0, %s187
      %s189 = sphi 0, %s187
      %s190 = sphi 0, %s189
      %s204 = sphi 0, %s190
      %s208 = sphi 0, %s208
      %s210 = sphi 0, %s208
      %s211 = sphi 0, %s210
      %s225 = sphi 0, %s211
      %s229 = sphi 0, %s229
      %s231 = sphi 0, %s229
      %s232 = sphi 0, %s231
      %s246 = sphi 0, %s232
      %s250 = sphi 0, %s250
      %s252 = sphi 0, %s250
      %s253 = sphi 0, %s252
      %s267 = sphi 0, %s253
      %s271 = sphi 0, %s271
      %s273 = sphi 0, %s271
      %s274 = sphi 0, %s273
      %s288 = sphi 0, %s274
      %s292 = sphi 0, %s292
      %s294 = sphi 0, %s292
      %s295 = sphi 0, %s294
      %s309 = sphi 0, %s295
      %s313 = sphi 0, %s313
      %s315 = sphi 0, %s313
      %s316 = sphi 0, %s315
      %s330 = sphi 0, %s316
      %s334 = sphi 0, %s334
      %s336 = sphi 0, %s334
      %s337 = sphi 0, %s336
      %s351 = sphi 0, %s337
      %s355 = sphi 0, %s355
      %s357 = sphi 0, %s355
      %s358 = sphi 0, %s357
      %s372 = sphi 0, %s358
      %s376 = sphi 0, %s376
      %s378 = sphi 0, %s376
      %s379 = sphi 0, %s378
      %s393 = sphi 0, %s379
      %s397 = sphi 0, %s397
      %s399 = sphi 0, %s397
      %s400 = sphi 0, %s399
      %s414 = sphi 0, %s400
      %s418 = sphi 0, %s418
      %s420 = sphi 0, %s418
      %s421 = sphi 0, %s420
      %s435 = sphi 0, %s421
      %s439 = sphi 0, %s439
      %s441 = sphi 0, %s439
      %s442 = sphi 0, %s441
      %s456 = sphi 0, %s442
      %s460 = sphi 0, %s460
      %s462 = sphi 0, %s460
      %s463 = sphi 0, %s462
      %s477 = sphi 0, %s463
      %s481 = sphi 0, %s481
      %s483 = sphi 0, %s481
      %s484 = sphi 0, %s483
      %s498 = sphi 0, %s484
      %s502 = sphi 0, %s502
      %s504 = sphi 0, %s502
      %s505 = sphi 0, %s504
      %s519 = sphi 0, %s505
      %s523 = sphi 0, %s523
      %s525 = sphi 0, %s523
      %s526 = sphi 0, %s525
      %s540 = sphi 0, %s526
      %s544 = sphi 0, %s544
      %s546 = sphi 0, %s544
      %s547 = sphi 0, %s546
      %s561 = sphi 0, %s547
      %s569 = sphi 0, %s571
      %s572 = sphi 0, %s569
      %s573 = sphi 0, %s572
      %s589 = sphi 0, %s573
    $region4: #{balanced_cross_transformer.3} parent=1 // loop_header_branch
      %53 = sbr.rel (%p51) target = $region8
    $region5: #{balanced_cross_transformer.3} parent=1 // loop_body
      %s55 = ssub.s32 %s50, 1
      %s56 = ssub.s32 %s50, 2
      %s63 = sadd.s32 1, %s58
      %p64 = scmp.ge.s32.totalorder %s63, 1
      %s65 = scalar_select %p64, 0, %s63
      %s66 = sadd.s32 1, %s57
      %s67 = scalar_select %p64, %s66, %s57
      %p68 = scmp.ge.s32.totalorder %s67, 2
      %s69 = scalar_select %p68, 0, %s67
      %s70 = sadd.s32 %s57, %s58
      %s71 = sadd.s32 %s69, %s65
      %s72 = ssub.s32 %s70, %s71
      %p73 = scmp.eq.s32.totalorder %s72, 0
      %s75 = sadd.s32 %s74, 1
      %s76 = scalar_select %p73, %s74, %s75
      %p79 = pneg %p73
      %p80 = scmp.eq.s32.totalorder %s50, 1
      %p81 = por %p79, %p80
      %p82 = scmp.ne.s32.totalorder %s74, %s77
      %p83 = scmp.eq.s32.totalorder %s50, 0
      %p84 = por %p82, %p83
      %p85 = scmp.ne.s32.totalorder %s74, %s77
      %p86 = scmp.eq.s32.totalorder %s55, 1
      %p87 = por %p85, %p86
      %p88 = scmp.ne.s32.totalorder %s77, %s78
      %p89 = scmp.eq.s32.totalorder %s55, 0
      %p90 = por %p88, %p89
      %p91 = scmp.ne.s32.totalorder %s77, %s78
      %p92 = scmp.eq.s32.totalorder %s56, 1
      %p93 = por %p91, %p92
      %p95 = scmp.ne.s32.totalorder %s78, %s94
      %p96 = scmp.eq.s32.totalorder %s56, 0
      %p97 = por %p95, %p96
      %s98 = ssub.s32 %s57, %s69
      %p99 = scmp.eq.s32.totalorder %s98, 0
      %s101 = sadd.s32 %s100, 1
      %s102 = scalar_select %p99, %s100, %s101
      %p105 = pneg %p99
      %p106 = scmp.eq.s32.totalorder %s50, 1
      %p107 = por %p105, %p106
      %p108 = scmp.ne.s32.totalorder %s100, %s103
      %p109 = scmp.eq.s32.totalorder %s50, 0
      %p110 = por %p108, %p109
      %p111 = scmp.ne.s32.totalorder %s100, %s103
      %p112 = scmp.eq.s32.totalorder %s55, 1
      %p113 = por %p111, %p112
      %p114 = scmp.ne.s32.totalorder %s103, %s104
      %p115 = scmp.eq.s32.totalorder %s55, 0
      %p116 = por %p114, %p115
      %p117 = scmp.ne.s32.totalorder %s103, %s104
      %p118 = scmp.eq.s32.totalorder %s56, 1
      %p119 = por %p117, %p118
      %p121 = scmp.ne.s32.totalorder %s104, %s120
      %p122 = scmp.eq.s32.totalorder %s56, 0
      %p123 = por %p121, %p122
      %s125 = sadd.s32 %s124, 1
      %p128 = scmp.eq.s32.totalorder %s50, 1
      %p129 = scmp.ne.s32.totalorder %s124, %s126
      %p130 = scmp.eq.s32.totalorder %s50, 0
      %p131 = por %p129, %p130
      %p132 = scmp.ne.s32.totalorder %s124, %s126
      %p133 = scmp.eq.s32.totalorder %s55, 1
      %p134 = por %p132, %p133
      %p135 = scmp.ne.s32.totalorder %s126, %s127
      %p136 = scmp.eq.s32.totalorder %s55, 0
      %p137 = por %p135, %p136
      %p138 = scmp.ne.s32.totalorder %s126, %s127
      %p139 = scmp.eq.s32.totalorder %s56, 1
      %p140 = por %p138, %p139
      %p142 = scmp.ne.s32.totalorder %s127, %s141
      %p143 = scmp.eq.s32.totalorder %s56, 0
      %p144 = por %p142, %p143
      %s146 = sadd.s32 %s145, 1
      %p149 = scmp.eq.s32.totalorder %s50, 1
      %p150 = scmp.ne.s32.totalorder %s145, %s147
      %p151 = scmp.eq.s32.totalorder %s50, 0
      %p152 = por %p150, %p151
      %p153 = scmp.ne.s32.totalorder %s145, %s147
      %p154 = scmp.eq.s32.totalorder %s55, 1
      %p155 = por %p153, %p154
      %p156 = scmp.ne.s32.totalorder %s147, %s148
      %p157 = scmp.eq.s32.totalorder %s55, 0
      %p158 = por %p156, %p157
      %p159 = scmp.ne.s32.totalorder %s147, %s148
      %p160 = scmp.eq.s32.totalorder %s56, 1
      %p161 = por %p159, %p160
      %p163 = scmp.ne.s32.totalorder %s148, %s162
      %p164 = scmp.eq.s32.totalorder %s56, 0
      %p165 = por %p163, %p164
      %s167 = sadd.s32 %s166, 1
      %p170 = scmp.eq.s32.totalorder %s50, 1
      %p171 = scmp.ne.s32.totalorder %s166, %s168
      %p172 = scmp.eq.s32.totalorder %s50, 0
      %p173 = por %p171, %p172
      %p174 = scmp.ne.s32.totalorder %s166, %s168
      %p175 = scmp.eq.s32.totalorder %s55, 1
      %p176 = por %p174, %p175
      %p177 = scmp.ne.s32.totalorder %s168, %s169
      %p178 = scmp.eq.s32.totalorder %s55, 0
      %p179 = por %p177, %p178
      %p180 = scmp.ne.s32.totalorder %s168, %s169
      %p181 = scmp.eq.s32.totalorder %s56, 1
      %p182 = por %p180, %p181
      %p184 = scmp.ne.s32.totalorder %s169, %s183
      %p185 = scmp.eq.s32.totalorder %s56, 0
      %p186 = por %p184, %p185
      %s188 = sadd.s32 %s187, 1
      %p191 = scmp.eq.s32.totalorder %s50, 1
      %p192 = scmp.ne.s32.totalorder %s187, %s189
      %p193 = scmp.eq.s32.totalorder %s50, 0
      %p194 = por %p192, %p193
      %p195 = scmp.ne.s32.totalorder %s187, %s189
      %p196 = scmp.eq.s32.totalorder %s55, 1
      %p197 = por %p195, %p196
      %p198 = scmp.ne.s32.totalorder %s189, %s190
      %p199 = scmp.eq.s32.totalorder %s55, 0
      %p200 = por %p198, %p199
      %p201 = scmp.ne.s32.totalorder %s189, %s190
      %p202 = scmp.eq.s32.totalorder %s56, 1
      %p203 = por %p201, %p202
      %p205 = scmp.ne.s32.totalorder %s190, %s204
      %p206 = scmp.eq.s32.totalorder %s56, 0
      %p207 = por %p205, %p206
      %s209 = sadd.s32 %s208, 1
      %p212 = scmp.eq.s32.totalorder %s50, 1
      %p213 = scmp.ne.s32.totalorder %s208, %s210
      %p214 = scmp.eq.s32.totalorder %s50, 0
      %p215 = por %p213, %p214
      %p216 = scmp.ne.s32.totalorder %s208, %s210
      %p217 = scmp.eq.s32.totalorder %s55, 1
      %p218 = por %p216, %p217
      %p219 = scmp.ne.s32.totalorder %s210, %s211
      %p220 = scmp.eq.s32.totalorder %s55, 0
      %p221 = por %p219, %p220
      %p222 = scmp.ne.s32.totalorder %s210, %s211
      %p223 = scmp.eq.s32.totalorder %s56, 1
      %p224 = por %p222, %p223
      %p226 = scmp.ne.s32.totalorder %s211, %s225
      %p227 = scmp.eq.s32.totalorder %s56, 0
      %p228 = por %p226, %p227
      %s230 = sadd.s32 %s229, 1
      %p233 = scmp.eq.s32.totalorder %s50, 1
      %p234 = scmp.ne.s32.totalorder %s229, %s231
      %p235 = scmp.eq.s32.totalorder %s50, 0
      %p236 = por %p234, %p235
      %p237 = scmp.ne.s32.totalorder %s229, %s231
      %p238 = scmp.eq.s32.totalorder %s55, 1
      %p239 = por %p237, %p238
      %p240 = scmp.ne.s32.totalorder %s231, %s232
      %p241 = scmp.eq.s32.totalorder %s55, 0
      %p242 = por %p240, %p241
      %p243 = scmp.ne.s32.totalorder %s231, %s232
      %p244 = scmp.eq.s32.totalorder %s56, 1
      %p245 = por %p243, %p244
      %p247 = scmp.ne.s32.totalorder %s232, %s246
      %p248 = scmp.eq.s32.totalorder %s56, 0
      %p249 = por %p247, %p248
      %s251 = sadd.s32 %s250, 1
      %p254 = scmp.eq.s32.totalorder %s50, 1
      %p255 = scmp.ne.s32.totalorder %s250, %s252
      %p256 = scmp.eq.s32.totalorder %s50, 0
      %p257 = por %p255, %p256
      %p258 = scmp.ne.s32.totalorder %s250, %s252
      %p259 = scmp.eq.s32.totalorder %s55, 1
      %p260 = por %p258, %p259
      %p261 = scmp.ne.s32.totalorder %s252, %s253
      %p262 = scmp.eq.s32.totalorder %s55, 0
      %p263 = por %p261, %p262
      %p264 = scmp.ne.s32.totalorder %s252, %s253
      %p265 = scmp.eq.s32.totalorder %s56, 1
      %p266 = por %p264, %p265
      %p268 = scmp.ne.s32.totalorder %s253, %s267
      %p269 = scmp.eq.s32.totalorder %s56, 0
      %p270 = por %p268, %p269
      %s272 = sadd.s32 %s271, 1
      %p275 = scmp.eq.s32.totalorder %s50, 1
      %p276 = scmp.ne.s32.totalorder %s271, %s273
      %p277 = scmp.eq.s32.totalorder %s50, 0
      %p278 = por %p276, %p277
      %p279 = scmp.ne.s32.totalorder %s271, %s273
      %p280 = scmp.eq.s32.totalorder %s55, 1
      %p281 = por %p279, %p280
      %p282 = scmp.ne.s32.totalorder %s273, %s274
      %p283 = scmp.eq.s32.totalorder %s55, 0
      %p284 = por %p282, %p283
      %p285 = scmp.ne.s32.totalorder %s273, %s274
      %p286 = scmp.eq.s32.totalorder %s56, 1
      %p287 = por %p285, %p286
      %p289 = scmp.ne.s32.totalorder %s274, %s288
      %p290 = scmp.eq.s32.totalorder %s56, 0
      %p291 = por %p289, %p290
      %s293 = sadd.s32 %s292, 1
      %p296 = scmp.eq.s32.totalorder %s50, 1
      %p297 = scmp.ne.s32.totalorder %s292, %s294
      %p298 = scmp.eq.s32.totalorder %s50, 0
      %p299 = por %p297, %p298
      %p300 = scmp.ne.s32.totalorder %s292, %s294
      %p301 = scmp.eq.s32.totalorder %s55, 1
      %p302 = por %p300, %p301
      %p303 = scmp.ne.s32.totalorder %s294, %s295
      %p304 = scmp.eq.s32.totalorder %s55, 0
      %p305 = por %p303, %p304
      %p306 = scmp.ne.s32.totalorder %s294, %s295
      %p307 = scmp.eq.s32.totalorder %s56, 1
      %p308 = por %p306, %p307
      %p310 = scmp.ne.s32.totalorder %s295, %s309
      %p311 = scmp.eq.s32.totalorder %s56, 0
      %p312 = por %p310, %p311
      %s314 = sadd.s32 %s313, 1
      %p317 = scmp.eq.s32.totalorder %s50, 1
      %p318 = scmp.ne.s32.totalorder %s313, %s315
      %p319 = scmp.eq.s32.totalorder %s50, 0
      %p320 = por %p318, %p319
      %p321 = scmp.ne.s32.totalorder %s313, %s315
      %p322 = scmp.eq.s32.totalorder %s55, 1
      %p323 = por %p321, %p322
      %p324 = scmp.ne.s32.totalorder %s315, %s316
      %p325 = scmp.eq.s32.totalorder %s55, 0
      %p326 = por %p324, %p325
      %p327 = scmp.ne.s32.totalorder %s315, %s316
      %p328 = scmp.eq.s32.totalorder %s56, 1
      %p329 = por %p327, %p328
      %p331 = scmp.ne.s32.totalorder %s316, %s330
      %p332 = scmp.eq.s32.totalorder %s56, 0
      %p333 = por %p331, %p332
      %s335 = sadd.s32 %s334, 1
      %p338 = scmp.eq.s32.totalorder %s50, 1
      %p339 = scmp.ne.s32.totalorder %s334, %s336
      %p340 = scmp.eq.s32.totalorder %s50, 0
      %p341 = por %p339, %p340
      %p342 = scmp.ne.s32.totalorder %s334, %s336
      %p343 = scmp.eq.s32.totalorder %s55, 1
      %p344 = por %p342, %p343
      %p345 = scmp.ne.s32.totalorder %s336, %s337
      %p346 = scmp.eq.s32.totalorder %s55, 0
      %p347 = por %p345, %p346
      %p348 = scmp.ne.s32.totalorder %s336, %s337
      %p349 = scmp.eq.s32.totalorder %s56, 1
      %p350 = por %p348, %p349
      %p352 = scmp.ne.s32.totalorder %s337, %s351
      %p353 = scmp.eq.s32.totalorder %s56, 0
      %p354 = por %p352, %p353
      %s356 = sadd.s32 %s355, 1
      %p359 = scmp.eq.s32.totalorder %s50, 1
      %p360 = scmp.ne.s32.totalorder %s355, %s357
      %p361 = scmp.eq.s32.totalorder %s50, 0
      %p362 = por %p360, %p361
      %p363 = scmp.ne.s32.totalorder %s355, %s357
      %p364 = scmp.eq.s32.totalorder %s55, 1
      %p365 = por %p363, %p364
      %p366 = scmp.ne.s32.totalorder %s357, %s358
      %p367 = scmp.eq.s32.totalorder %s55, 0
      %p368 = por %p366, %p367
      %p369 = scmp.ne.s32.totalorder %s357, %s358
      %p370 = scmp.eq.s32.totalorder %s56, 1
      %p371 = por %p369, %p370
      %p373 = scmp.ne.s32.totalorder %s358, %s372
      %p374 = scmp.eq.s32.totalorder %s56, 0
      %p375 = por %p373, %p374
      %s377 = sadd.s32 %s376, 1
      %p380 = scmp.eq.s32.totalorder %s50, 1
      %p381 = scmp.ne.s32.totalorder %s376, %s378
      %p382 = scmp.eq.s32.totalorder %s50, 0
      %p383 = por %p381, %p382
      %p384 = scmp.ne.s32.totalorder %s376, %s378
      %p385 = scmp.eq.s32.totalorder %s55, 1
      %p386 = por %p384, %p385
      %p387 = scmp.ne.s32.totalorder %s378, %s379
      %p388 = scmp.eq.s32.totalorder %s55, 0
      %p389 = por %p387, %p388
      %p390 = scmp.ne.s32.totalorder %s378, %s379
      %p391 = scmp.eq.s32.totalorder %s56, 1
      %p392 = por %p390, %p391
      %p394 = scmp.ne.s32.totalorder %s379, %s393
      %p395 = scmp.eq.s32.totalorder %s56, 0
      %p396 = por %p394, %p395
      %s398 = sadd.s32 %s397, 1
      %p401 = scmp.eq.s32.totalorder %s50, 1
      %p402 = scmp.ne.s32.totalorder %s397, %s399
      %p403 = scmp.eq.s32.totalorder %s50, 0
      %p404 = por %p402, %p403
      %p405 = scmp.ne.s32.totalorder %s397, %s399
      %p406 = scmp.eq.s32.totalorder %s55, 1
      %p407 = por %p405, %p406
      %p408 = scmp.ne.s32.totalorder %s399, %s400
      %p409 = scmp.eq.s32.totalorder %s55, 0
      %p410 = por %p408, %p409
      %p411 = scmp.ne.s32.totalorder %s399, %s400
      %p412 = scmp.eq.s32.totalorder %s56, 1
      %p413 = por %p411, %p412
      %p415 = scmp.ne.s32.totalorder %s400, %s414
      %p416 = scmp.eq.s32.totalorder %s56, 0
      %p417 = por %p415, %p416
      %s419 = sadd.s32 %s418, 1
      %p422 = scmp.eq.s32.totalorder %s50, 1
      %p423 = scmp.ne.s32.totalorder %s418, %s420
      %p424 = scmp.eq.s32.totalorder %s50, 0
      %p425 = por %p423, %p424
      %p426 = scmp.ne.s32.totalorder %s418, %s420
      %p427 = scmp.eq.s32.totalorder %s55, 1
      %p428 = por %p426, %p427
      %p429 = scmp.ne.s32.totalorder %s420, %s421
      %p430 = scmp.eq.s32.totalorder %s55, 0
      %p431 = por %p429, %p430
      %p432 = scmp.ne.s32.totalorder %s420, %s421
      %p433 = scmp.eq.s32.totalorder %s56, 1
      %p434 = por %p432, %p433
      %p436 = scmp.ne.s32.totalorder %s421, %s435
      %p437 = scmp.eq.s32.totalorder %s56, 0
      %p438 = por %p436, %p437
      %s440 = sadd.s32 %s439, 1
      %p443 = scmp.eq.s32.totalorder %s50, 1
      %p444 = scmp.ne.s32.totalorder %s439, %s441
      %p445 = scmp.eq.s32.totalorder %s50, 0
      %p446 = por %p444, %p445
      %p447 = scmp.ne.s32.totalorder %s439, %s441
      %p448 = scmp.eq.s32.totalorder %s55, 1
      %p449 = por %p447, %p448
      %p450 = scmp.ne.s32.totalorder %s441, %s442
      %p451 = scmp.eq.s32.totalorder %s55, 0
      %p452 = por %p450, %p451
      %p453 = scmp.ne.s32.totalorder %s441, %s442
      %p454 = scmp.eq.s32.totalorder %s56, 1
      %p455 = por %p453, %p454
      %p457 = scmp.ne.s32.totalorder %s442, %s456
      %p458 = scmp.eq.s32.totalorder %s56, 0
      %p459 = por %p457, %p458
      %s461 = sadd.s32 %s460, 1
      %p464 = scmp.eq.s32.totalorder %s50, 1
      %p465 = scmp.ne.s32.totalorder %s460, %s462
      %p466 = scmp.eq.s32.totalorder %s50, 0
      %p467 = por %p465, %p466
      %p468 = scmp.ne.s32.totalorder %s460, %s462
      %p469 = scmp.eq.s32.totalorder %s55, 1
      %p470 = por %p468, %p469
      %p471 = scmp.ne.s32.totalorder %s462, %s463
      %p472 = scmp.eq.s32.totalorder %s55, 0
      %p473 = por %p471, %p472
      %p474 = scmp.ne.s32.totalorder %s462, %s463
      %p475 = scmp.eq.s32.totalorder %s56, 1
      %p476 = por %p474, %p475
      %p478 = scmp.ne.s32.totalorder %s463, %s477
      %p479 = scmp.eq.s32.totalorder %s56, 0
      %p480 = por %p478, %p479
      %s482 = sadd.s32 %s481, 1
      %p485 = scmp.eq.s32.totalorder %s50, 1
      %p486 = scmp.ne.s32.totalorder %s481, %s483
      %p487 = scmp.eq.s32.totalorder %s50, 0
      %p488 = por %p486, %p487
      %p489 = scmp.ne.s32.totalorder %s481, %s483
      %p490 = scmp.eq.s32.totalorder %s55, 1
      %p491 = por %p489, %p490
      %p492 = scmp.ne.s32.totalorder %s483, %s484
      %p493 = scmp.eq.s32.totalorder %s55, 0
      %p494 = por %p492, %p493
      %p495 = scmp.ne.s32.totalorder %s483, %s484
      %p496 = scmp.eq.s32.totalorder %s56, 1
      %p497 = por %p495, %p496
      %p499 = scmp.ne.s32.totalorder %s484, %s498
      %p500 = scmp.eq.s32.totalorder %s56, 0
      %p501 = por %p499, %p500
      %s503 = sadd.s32 %s502, 1
      %p506 = scmp.eq.s32.totalorder %s50, 1
      %p507 = scmp.ne.s32.totalorder %s502, %s504
      %p508 = scmp.eq.s32.totalorder %s50, 0
      %p509 = por %p507, %p508
      %p510 = scmp.ne.s32.totalorder %s502, %s504
      %p511 = scmp.eq.s32.totalorder %s55, 1
      %p512 = por %p510, %p511
      %p513 = scmp.ne.s32.totalorder %s504, %s505
      %p514 = scmp.eq.s32.totalorder %s55, 0
      %p515 = por %p513, %p514
      %p516 = scmp.ne.s32.totalorder %s504, %s505
      %p517 = scmp.eq.s32.totalorder %s56, 1
      %p518 = por %p516, %p517
      %p520 = scmp.ne.s32.totalorder %s505, %s519
      %p521 = scmp.eq.s32.totalorder %s56, 0
      %p522 = por %p520, %p521
      %s524 = sadd.s32 %s523, 1
      %p527 = scmp.eq.s32.totalorder %s50, 1
      %p528 = scmp.ne.s32.totalorder %s523, %s525
      %p529 = scmp.eq.s32.totalorder %s50, 0
      %p530 = por %p528, %p529
      %p531 = scmp.ne.s32.totalorder %s523, %s525
      %p532 = scmp.eq.s32.totalorder %s55, 1
      %p533 = por %p531, %p532
      %p534 = scmp.ne.s32.totalorder %s525, %s526
      %p535 = scmp.eq.s32.totalorder %s55, 0
      %p536 = por %p534, %p535
      %p537 = scmp.ne.s32.totalorder %s525, %s526
      %p538 = scmp.eq.s32.totalorder %s56, 1
      %p539 = por %p537, %p538
      %p541 = scmp.ne.s32.totalorder %s526, %s540
      %p542 = scmp.eq.s32.totalorder %s56, 0
      %p543 = por %p541, %p542
      %s545 = sadd.s32 %s544, 1
      %p548 = scmp.eq.s32.totalorder %s50, 1
      %p549 = scmp.ne.s32.totalorder %s544, %s546
      %p550 = scmp.eq.s32.totalorder %s50, 0
      %p551 = por %p549, %p550
      %p552 = scmp.ne.s32.totalorder %s544, %s546
      %p553 = scmp.eq.s32.totalorder %s55, 1
      %p554 = por %p552, %p553
      %p555 = scmp.ne.s32.totalorder %s546, %s547
      %p556 = scmp.eq.s32.totalorder %s55, 0
      %p557 = por %p555, %p556
      %p558 = scmp.ne.s32.totalorder %s546, %s547
      %p559 = scmp.eq.s32.totalorder %s56, 1
      %p560 = por %p558, %p559
      %p562 = scmp.ne.s32.totalorder %s547, %s561
      %p563 = scmp.eq.s32.totalorder %s56, 0
      %p564 = por %p562, %p563
      %s565 = sadd.s32 %s57, %s58
      %s566 = sadd.s32 %s69, %s65
      %s567 = ssub.s32 %s565, %s566
      %p568 = scmp.eq.s32.totalorder %s567, 0
      %s570 = sadd.s32 %s569, 1
      %s571 = scalar_select %p568, %s569, %s570
      %p574 = pneg %p568
      %p575 = scmp.eq.s32.totalorder %s50, 1
      %p576 = por %p574, %p575
      %p577 = scmp.ne.s32.totalorder %s569, %s572
      %p578 = scmp.eq.s32.totalorder %s50, 0
      %p579 = por %p577, %p578
      %p580 = scmp.ne.s32.totalorder %s569, %s572
      %p581 = scmp.eq.s32.totalorder %s55, 1
      %p582 = por %p580, %p581
      %p583 = scmp.ne.s32.totalorder %s572, %s573
      %p584 = scmp.eq.s32.totalorder %s55, 0
      %p585 = por %p583, %p584
      %p586 = scmp.ne.s32.totalorder %s572, %s573
      %p587 = scmp.eq.s32.totalorder %s56, 1
      %p588 = por %p586, %p587
      %p590 = scmp.ne.s32.totalorder %s573, %s589
      %p591 = scmp.eq.s32.totalorder %s56, 0
      %p592 = por %p590, %p591
      %p593 = scmp.le.s32.totalorder 1, %s50
      %p594 = scmp.lt.s32.totalorder %s50, 3
      %p595 = pnand %p593, %p594
      %p596 = pneg %p595
      // Predicated region
      $region9: #{balanced_cross_transformer.3} parent=5 // pred_check
        _
      $region10: #{balanced_cross_transformer.3} parent=5 // pred_check_branch
        %598 = sbr.rel (%p595) target = $region12
      $region11: #{balanced_cross_transformer.3} parent=5 // pred_region
        %s599 = ssub.s32 %s50, 1
        // Predicated region
        $region13: #{balanced_cross_transformer.3} parent=11 // pred_check
          %p600 = pneg %p137
        $region14: #{balanced_cross_transformer.3} parent=11 // pred_check_branch
          %602 = sbr.rel (%p600) target = $region16
        $region15: #{balanced_cross_transformer.3} parent=11 // pred_region
          %s604 = ssub.s32 1024, 1024
          %605 = vsyncadd [#allocation7], %s604
          %s606 = sshll.u32 [#allocation8], 4
          %s607 = int_to_ptr.vmem [resolvable:$true] %s606
          %612 = dma.hbm_to_vmem [thread:$0]  %s2, 1024, %s607, [#allocation7], 256, 256, 16
        $region16: #{balanced_cross_transformer.3} parent=11 // pred_fallthru
          _
        // Predicated region
        $region17: #{balanced_cross_transformer.3} parent=11 // pred_check
          %p613 = pneg %p158
        $region18: #{balanced_cross_transformer.3} parent=11 // pred_check_branch
          %615 = sbr.rel (%p613) target = $region20
        $region19: #{balanced_cross_transformer.3} parent=11 // pred_region
          %s617 = ssub.s32 64, 64
          %618 = vsyncadd [#allocation10], %s617
          %s620 = sshll.u32 [#allocation9], 4
          %s621 = int_to_ptr.vmem [resolvable:$true] %s620
          %623 = dma.hbm_to_vmem [thread:$0]  %s3, 64, %s621, [#allocation10]
        $region20: #{balanced_cross_transformer.3} parent=11 // pred_fallthru
          _
        // Predicated region
        $region21: #{balanced_cross_transformer.3} parent=11 // pred_check
          %p624 = pneg %p179
        $region22: #{balanced_cross_transformer.3} parent=11 // pred_check_branch
          %626 = sbr.rel (%p624) target = $region24
        $region23: #{balanced_cross_transformer.3} parent=11 // pred_region
          %s628 = ssub.s32 2048, 2048
          %629 = vsyncadd [#allocation10], %s628
          %s630 = sshll.u32 [#allocation11], 4
          %s631 = int_to_ptr.vmem [resolvable:$true] %s630
          %636 = dma.hbm_to_vmem [thread:$0]  %s4, 2048, %s631, [#allocation10], 512, 512, 32
        $region24: #{balanced_cross_transformer.3} parent=11 // pred_fallthru
          _
        // Predicated region
        $region25: #{balanced_cross_transformer.3} parent=11 // pred_check
          %p637 = pneg %p200
        $region26: #{balanced_cross_transformer.3} parent=11 // pred_check_branch
          %639 = sbr.rel (%p637) target = $region28
        $region27: #{balanced_cross_transformer.3} parent=11 // pred_region
          %s641 = ssub.s32 128, 128
          %642 = vsyncadd [#allocation13], %s641
          %s644 = sshll.u32 [#allocation12], 4
          %s645 = int_to_ptr.vmem [resolvable:$true] %s644
          %647 = dma.hbm_to_vmem [thread:$0]  %s5, 128, %s645, [#allocation13]
        $region28: #{balanced_cross_transformer.3} parent=11 // pred_fallthru
          _
        // Predicated region
        $region29: #{balanced_cross_transformer.3} parent=11 // pred_check
          %p648 = pneg %p221
        $region30: #{balanced_cross_transformer.3} parent=11 // pred_check_branch
          %650 = sbr.rel (%p648) target = $region32
        $region31: #{balanced_cross_transformer.3} parent=11 // pred_region
          %s652 = ssub.s32 4096, 4096
          %653 = vsyncadd [#allocation13], %s652
          %s654 = sshll.u32 [#allocation14], 4
          %s655 = int_to_ptr.vmem [resolvable:$true] %s654
          %660 = dma.hbm_to_vmem [thread:$0]  %s6, 4096, %s655, [#allocation13], 64, 64, 4
        $region32: #{balanced_cross_transformer.3} parent=11 // pred_fallthru
          _
        // Predicated region
        $region33: #{balanced_cross_transformer.3} parent=11 // pred_check
          %p661 = pneg %p242
        $region34: #{balanced_cross_transformer.3} parent=11 // pred_check_branch
          %663 = sbr.rel (%p661) target = $region36
        $region35: #{balanced_cross_transformer.3} parent=11 // pred_region
          %s665 = ssub.s32 16, 16
          %666 = vsyncadd [#allocation16], %s665
          %s668 = sshll.u32 [#allocation15], 4
          %s669 = int_to_ptr.vmem [resolvable:$true] %s668
          %671 = dma.hbm_to_vmem [thread:$0]  %s7, 16, %s669, [#allocation16]
        $region36: #{balanced_cross_transformer.3} parent=11 // pred_fallthru
          _
        // Predicated region
        $region37: #{balanced_cross_transformer.3} parent=11 // pred_check
          %p672 = pneg %p263
        $region38: #{balanced_cross_transformer.3} parent=11 // pred_check_branch
          %674 = sbr.rel (%p672) target = $region40
        $region39: #{balanced_cross_transformer.3} parent=11 // pred_region
          %s676 = ssub.s32 16, 16
          %677 = vsyncadd [#allocation16], %s676
          %s679 = sshll.u32 [#allocation17], 4
          %s680 = int_to_ptr.vmem [resolvable:$true] %s679
          %682 = dma.hbm_to_vmem [thread:$0]  %s8, 16, %s680, [#allocation16]
        $region40: #{balanced_cross_transformer.3} parent=11 // pred_fallthru
          _
        // Predicated region
        $region41: #{balanced_cross_transformer.3} parent=11 // pred_check
          %p683 = pneg %p284
        $region42: #{balanced_cross_transformer.3} parent=11 // pred_check_branch
          %685 = sbr.rel (%p683) target = $region44
        $region43: #{balanced_cross_transformer.3} parent=11 // pred_region
          %s687 = ssub.s32 16, 16
          %688 = vsyncadd [#allocation19], %s687
          %s690 = sshll.u32 [#allocation18], 4
          %s691 = int_to_ptr.vmem [resolvable:$true] %s690
          %693 = dma.hbm_to_vmem [thread:$0]  %s9, 16, %s691, [#allocation19]
        $region44: #{balanced_cross_transformer.3} parent=11 // pred_fallthru
          _
        // Predicated region
        $region45: #{balanced_cross_transformer.3} parent=11 // pred_check
          %p694 = pneg %p305
        $region46: #{balanced_cross_transformer.3} parent=11 // pred_check_branch
          %696 = sbr.rel (%p694) target = $region48
        $region47: #{balanced_cross_transformer.3} parent=11 // pred_region
          %s698 = ssub.s32 256, 256
          %699 = vsyncadd [#allocation19], %s698
          %s700 = sshll.u32 [#allocation20], 4
          %s701 = int_to_ptr.vmem [resolvable:$true] %s700
          %706 = dma.hbm_to_vmem [thread:$0]  %s10, 256, %s701, [#allocation19], 64, 64, 4
        $region48: #{balanced_cross_transformer.3} parent=11 // pred_fallthru
          _
        // Predicated region
        $region49: #{balanced_cross_transformer.3} parent=11 // pred_check
          %p707 = pneg %p326
        $region50: #{balanced_cross_transformer.3} parent=11 // pred_check_branch
          %709 = sbr.rel (%p707) target = $region52
        $region51: #{balanced_cross_transformer.3} parent=11 // pred_region
          %s711 = ssub.s32 16, 16
          %712 = vsyncadd [#allocation22], %s711
          %s714 = sshll.u32 [#allocation21], 4
          %s715 = int_to_ptr.vmem [resolvable:$true] %s714
          %717 = dma.hbm_to_vmem [thread:$0]  %s11, 16, %s715, [#allocation22]
        $region52: #{balanced_cross_transformer.3} parent=11 // pred_fallthru
          _
        // Predicated region
        $region53: #{balanced_cross_transformer.3} parent=11 // pred_check
          %p718 = pneg %p347
        $region54: #{balanced_cross_transformer.3} parent=11 // pred_check_branch
          %720 = sbr.rel (%p718) target = $region56
        $region55: #{balanced_cross_transformer.3} parent=11 // pred_region
          %s722 = ssub.s32 1024, 1024
          %723 = vsyncadd [#allocation22], %s722
          %s724 = sshll.u32 [#allocation23], 4
          %s725 = int_to_ptr.vmem [resolvable:$true] %s724
          %730 = dma.hbm_to_vmem [thread:$0]  %s12, 1024, %s725, [#allocation22], 64, 64, 4
        $region56: #{balanced_cross_transformer.3} parent=11 // pred_fallthru
          _
        // Predicated region
        $region57: #{balanced_cross_transformer.3} parent=11 // pred_check
          %p731 = pneg %p368
        $region58: #{balanced_cross_transformer.3} parent=11 // pred_check_branch
          %733 = sbr.rel (%p731) target = $region60
        $region59: #{balanced_cross_transformer.3} parent=11 // pred_region
          %s735 = ssub.s32 16, 16
          %736 = vsyncadd [#allocation25], %s735
          %s738 = sshll.u32 [#allocation24], 4
          %s739 = int_to_ptr.vmem [resolvable:$true] %s738
          %741 = dma.hbm_to_vmem [thread:$0]  %s13, 16, %s739, [#allocation25]
        $region60: #{balanced_cross_transformer.3} parent=11 // pred_fallthru
          _
        // Predicated region
        $region61: #{balanced_cross_transformer.3} parent=11 // pred_check
          %p742 = pneg %p389
        $region62: #{balanced_cross_transformer.3} parent=11 // pred_check_branch
          %744 = sbr.rel (%p742) target = $region64
        $region63: #{balanced_cross_transformer.3} parent=11 // pred_region
          %s746 = ssub.s32 16, 16
          %747 = vsyncadd [#allocation25], %s746
          %s749 = sshll.u32 [#allocation26], 4
          %s750 = int_to_ptr.vmem [resolvable:$true] %s749
          %752 = dma.hbm_to_vmem [thread:$0]  %s14, 16, %s750, [#allocation25]
        $region64: #{balanced_cross_transformer.3} parent=11 // pred_fallthru
          _
        // Predicated region
        $region65: #{balanced_cross_transformer.3} parent=11 // pred_check
          %p753 = pneg %p410
        $region66: #{balanced_cross_transformer.3} parent=11 // pred_check_branch
          %755 = sbr.rel (%p753) target = $region68
        $region67: #{balanced_cross_transformer.3} parent=11 // pred_region
          %s757 = ssub.s32 16, 16
          %758 = vsyncadd [#allocation28], %s757
          %s760 = sshll.u32 [#allocation27], 4
          %s761 = int_to_ptr.vmem [resolvable:$true] %s760
          %763 = dma.hbm_to_vmem [thread:$0]  %s15, 16, %s761, [#allocation28]
        $region68: #{balanced_cross_transformer.3} parent=11 // pred_fallthru
          _
        // Predicated region
        $region69: #{balanced_cross_transformer.3} parent=11 // pred_check
          %p764 = pneg %p431
        $region70: #{balanced_cross_transformer.3} parent=11 // pred_check_branch
          %766 = sbr.rel (%p764) target = $region72
        $region71: #{balanced_cross_transformer.3} parent=11 // pred_region
          %s768 = ssub.s32 256, 256
          %769 = vsyncadd [#allocation28], %s768
          %s770 = sshll.u32 [#allocation29], 4
          %s771 = int_to_ptr.vmem [resolvable:$true] %s770
          %776 = dma.hbm_to_vmem [thread:$0]  %s16, 256, %s771, [#allocation28], 64, 64, 4
        $region72: #{balanced_cross_transformer.3} parent=11 // pred_fallthru
          _
        // Predicated region
        $region73: #{balanced_cross_transformer.3} parent=11 // pred_check
          %p777 = pneg %p452
        $region74: #{balanced_cross_transformer.3} parent=11 // pred_check_branch
          %779 = sbr.rel (%p777) target = $region76
        $region75: #{balanced_cross_transformer.3} parent=11 // pred_region
          _
        $region76: #{balanced_cross_transformer.3} parent=11 // pred_fallthru
          _
        // Predicated region
        $region77: #{balanced_cross_transformer.3} parent=11 // pred_check
          %p780 = pneg %p473
        $region78: #{balanced_cross_transformer.3} parent=11 // pred_check_branch
          %782 = sbr.rel (%p780) target = $region80
        $region79: #{balanced_cross_transformer.3} parent=11 // pred_region
          %s784 = ssub.s32 256, 256
          %785 = vsyncadd [#allocation31], %s784
          %s786 = sshll.u32 [#allocation30], 4
          %s787 = int_to_ptr.vmem [resolvable:$true] %s786
          %792 = dma.hbm_to_vmem [thread:$0]  %s18, 256, %s787, [#allocation31], 64, 64, 4
        $region80: #{balanced_cross_transformer.3} parent=11 // pred_fallthru
          _
        // Predicated region
        $region81: #{balanced_cross_transformer.3} parent=11 // pred_check
          %p793 = pneg %p494
        $region82: #{balanced_cross_transformer.3} parent=11 // pred_check_branch
          %795 = sbr.rel (%p793) target = $region84
        $region83: #{balanced_cross_transformer.3} parent=11 // pred_region
          %s797 = ssub.s32 256, 256
          %798 = vsyncadd [#allocation31], %s797
          %s799 = sshll.u32 [#allocation32], 4
          %s800 = int_to_ptr.vmem [resolvable:$true] %s799
          %805 = dma.hbm_to_vmem [thread:$0]  %s19, 256, %s800, [#allocation31], 64, 64, 4
        $region84: #{balanced_cross_transformer.3} parent=11 // pred_fallthru
          _
        // Predicated region
        $region85: #{balanced_cross_transformer.3} parent=11 // pred_check
          %p806 = pneg %p515
        $region86: #{balanced_cross_transformer.3} parent=11 // pred_check_branch
          %808 = sbr.rel (%p806) target = $region88
        $region87: #{balanced_cross_transformer.3} parent=11 // pred_region
          %s810 = ssub.s32 16, 16
          %811 = vsyncadd [#allocation34], %s810
          %s813 = sshll.u32 [#allocation33], 4
          %s814 = int_to_ptr.vmem [resolvable:$true] %s813
          %816 = dma.hbm_to_vmem [thread:$0]  %s20, 16, %s814, [#allocation34]
        $region88: #{balanced_cross_transformer.3} parent=11 // pred_fallthru
          _
        // Predicated region
        $region89: #{balanced_cross_transformer.3} parent=11 // pred_check
          %p817 = pneg %p536
        $region90: #{balanced_cross_transformer.3} parent=11 // pred_check_branch
          %819 = sbr.rel (%p817) target = $region92
        $region91: #{balanced_cross_transformer.3} parent=11 // pred_region
          %s821 = ssub.s32 256, 256
          %822 = vsyncadd [#allocation34], %s821
          %s823 = sshll.u32 [#allocation35], 4
          %s824 = int_to_ptr.vmem [resolvable:$true] %s823
          %829 = dma.hbm_to_vmem [thread:$0]  %s21, 256, %s824, [#allocation34], 64, 64, 4
        $region92: #{balanced_cross_transformer.3} parent=11 // pred_fallthru
          _
        // Predicated region
        $region93: #{balanced_cross_transformer.3} parent=11 // pred_check
          %p830 = pneg %p557
        $region94: #{balanced_cross_transformer.3} parent=11 // pred_check_branch
          %832 = sbr.rel (%p830) target = $region96
        $region95: #{balanced_cross_transformer.3} parent=11 // pred_region
          %s834 = ssub.s32 16, 16
          %835 = vsyncadd [#allocation37], %s834
          %s837 = sshll.u32 [#allocation36], 4
          %s838 = int_to_ptr.vmem [resolvable:$true] %s837
          %840 = dma.hbm_to_vmem [thread:$0]  %s22, 16, %s838, [#allocation37]
        $region96: #{balanced_cross_transformer.3} parent=11 // pred_fallthru
          _
      $region12: #{balanced_cross_transformer.3} parent=5 // pred_fallthru
        _
      %p841 = scmp.lt.s32.totalorder %s50, 2
      // Predicated region
      $region97: #{balanced_cross_transformer.3} parent=5 // pred_check
        %p842 = pneg %p841
      $region98: #{balanced_cross_transformer.3} parent=5 // pred_check_branch
        %844 = sbr.rel (%p842) target = $region100
      $region99: #{balanced_cross_transformer.3} parent=5 // pred_region
        // Predicated region
        $region101: #{balanced_cross_transformer.3} parent=99 // pred_check
          %p845 = pneg %p84
        $region102: #{balanced_cross_transformer.3} parent=99 // pred_check_branch
          %847 = sbr.rel (%p845) target = $region104
        $region103: #{balanced_cross_transformer.3} parent=99 // pred_region
          %s848 = sand.u32 %s74, 1
          %s849 = scalar_lea.sflag [#allocation4], %s848
          %s850 = sand.u32 %s74, 1
          %s851 = smul.addr %s850, 8
          %s852 = scalar_lea.vmem [#allocation3], %s851
          %s853 = sadd.s32 %s57, %s58
          %s855 = ssub.s32 128, 128
          %856 = vsyncadd %s849, %s855
          %s857 = smul.addr %s853, 128
          %s858 = scalar_lea.hbm %s0, %s857
          %s860 = sshll.u32 %s852, 4
          %s861 = int_to_ptr.vmem [resolvable:$true] %s860
          %863 = dma.hbm_to_vmem [thread:$0]  %s858, 128, %s861, %s849
        $region104: #{balanced_cross_transformer.3} parent=99 // pred_fallthru
          _
        // Predicated region
        $region105: #{balanced_cross_transformer.3} parent=99 // pred_check
          %p864 = pneg %p110
        $region106: #{balanced_cross_transformer.3} parent=99 // pred_check_branch
          %866 = sbr.rel (%p864) target = $region108
        $region107: #{balanced_cross_transformer.3} parent=99 // pred_region
          %s867 = sand.u32 %s50, 1
          %s868 = scalar_lea.sflag [#allocation7], %s867
          %s869 = sand.u32 %s100, 1
          %s870 = smul.addr %s869, 8
          %s871 = scalar_lea.vmem [#allocation6], %s870
          %s873 = ssub.s32 128, 128
          %874 = vsyncadd %s868, %s873
          %s875 = smul.addr %s57, 128
          %s876 = scalar_lea.hbm %s1, %s875
          %s878 = sshll.u32 %s871, 4
          %s879 = int_to_ptr.vmem [resolvable:$true] %s878
          %881 = dma.hbm_to_vmem [thread:$0]  %s876, 128, %s879, %s868
        $region108: #{balanced_cross_transformer.3} parent=99 // pred_fallthru
          _
      $region100: #{balanced_cross_transformer.3} parent=5 // pred_fallthru
        _
      %p882 = scmp.le.s32.totalorder 1, %s50
      %p883 = scmp.lt.s32.totalorder %s50, 3
      %p884 = pnand %p882, %p883
      %p885 = pneg %p884
      // Predicated region
      $region109: #{balanced_cross_transformer.3} parent=5 // pred_check
        _
      $region110: #{balanced_cross_transformer.3} parent=5 // pred_check_branch
        %887 = sbr.rel (%p884) target = $region112
      $region111: #{balanced_cross_transformer.3} parent=5 // pred_region
        %s888 = ssub.s32 %s50, 1
        %s889 = sand.u32 %s77, 1
        %s890 = scalar_lea.sflag [#allocation4], %s889
        %s891 = sand.u32 %s77, 1
        %s892 = smul.addr %s891, 8
        %s893 = scalar_lea.vmem [#allocation3], %s892
        // Predicated region
        $region113: #{balanced_cross_transformer.3} parent=111 // pred_check
          %p894 = pneg %p90
        $region114: #{balanced_cross_transformer.3} parent=111 // pred_check_branch
          %896 = sbr.rel (%p894) target = $region116
        $region115: #{balanced_cross_transformer.3} parent=111 // pred_region
          %897 = dma.done %s890, 128
        $region116: #{balanced_cross_transformer.3} parent=111 // pred_fallthru
          _
        %s898 = sand.u32 %s55, 1
        %s899 = scalar_lea.sflag [#allocation7], %s898
        %s900 = sand.u32 %s103, 1
        %s901 = smul.addr %s900, 8
        %s902 = scalar_lea.vmem [#allocation6], %s901
        // Predicated region
        $region117: #{balanced_cross_transformer.3} parent=111 // pred_check
          %p903 = pneg %p116
        $region118: #{balanced_cross_transformer.3} parent=111 // pred_check_branch
          %905 = sbr.rel (%p903) target = $region120
        $region119: #{balanced_cross_transformer.3} parent=111 // pred_region
          %906 = dma.done %s899, 128
        $region120: #{balanced_cross_transformer.3} parent=111 // pred_fallthru
          _
        // Predicated region
        $region121: #{balanced_cross_transformer.3} parent=111 // pred_check
          %p907 = pneg %p137
        $region122: #{balanced_cross_transformer.3} parent=111 // pred_check_branch
          %909 = sbr.rel (%p907) target = $region124
        $region123: #{balanced_cross_transformer.3} parent=111 // pred_region
          %910 = dma.done [#allocation7], 1024
        $region124: #{balanced_cross_transformer.3} parent=111 // pred_fallthru
          _
        // Predicated region
        $region125: #{balanced_cross_transformer.3} parent=111 // pred_check
          %p911 = pneg %p158
        $region126: #{balanced_cross_transformer.3} parent=111 // pred_check_branch
          %913 = sbr.rel (%p911) target = $region128
        $region127: #{balanced_cross_transformer.3} parent=111 // pred_region
          %914 = dma.done [#allocation10], 64
        $region128: #{balanced_cross_transformer.3} parent=111 // pred_fallthru
          _
        // Predicated region
        $region129: #{balanced_cross_transformer.3} parent=111 // pred_check
          %p915 = pneg %p179
        $region130: #{balanced_cross_transformer.3} parent=111 // pred_check_branch
          %917 = sbr.rel (%p915) target = $region132
        $region131: #{balanced_cross_transformer.3} parent=111 // pred_region
          %918 = dma.done [#allocation10], 2048
        $region132: #{balanced_cross_transformer.3} parent=111 // pred_fallthru
          _
        // Predicated region
        $region133: #{balanced_cross_transformer.3} parent=111 // pred_check
          %p919 = pneg %p200
        $region134: #{balanced_cross_transformer.3} parent=111 // pred_check_branch
          %921 = sbr.rel (%p919) target = $region136
        $region135: #{balanced_cross_transformer.3} parent=111 // pred_region
          %922 = dma.done [#allocation13], 128
        $region136: #{balanced_cross_transformer.3} parent=111 // pred_fallthru
          _
        // Predicated region
        $region137: #{balanced_cross_transformer.3} parent=111 // pred_check
          %p923 = pneg %p221
        $region138: #{balanced_cross_transformer.3} parent=111 // pred_check_branch
          %925 = sbr.rel (%p923) target = $region140
        $region139: #{balanced_cross_transformer.3} parent=111 // pred_region
          %926 = dma.done [#allocation13], 4096
        $region140: #{balanced_cross_transformer.3} parent=111 // pred_fallthru
          _
        // Predicated region
        $region141: #{balanced_cross_transformer.3} parent=111 // pred_check
          %p927 = pneg %p242
        $region142: #{balanced_cross_transformer.3} parent=111 // pred_check_branch
          %929 = sbr.rel (%p927) target = $region144
        $region143: #{balanced_cross_transformer.3} parent=111 // pred_region
          %930 = dma.done [#allocation16], 16
        $region144: #{balanced_cross_transformer.3} parent=111 // pred_fallthru
          _
        // Predicated region
        $region145: #{balanced_cross_transformer.3} parent=111 // pred_check
          %p931 = pneg %p263
        $region146: #{balanced_cross_transformer.3} parent=111 // pred_check_branch
          %933 = sbr.rel (%p931) target = $region148
        $region147: #{balanced_cross_transformer.3} parent=111 // pred_region
          %934 = dma.done [#allocation16], 16
        $region148: #{balanced_cross_transformer.3} parent=111 // pred_fallthru
          _
        // Predicated region
        $region149: #{balanced_cross_transformer.3} parent=111 // pred_check
          %p935 = pneg %p284
        $region150: #{balanced_cross_transformer.3} parent=111 // pred_check_branch
          %937 = sbr.rel (%p935) target = $region152
        $region151: #{balanced_cross_transformer.3} parent=111 // pred_region
          %938 = dma.done [#allocation19], 16
        $region152: #{balanced_cross_transformer.3} parent=111 // pred_fallthru
          _
        // Predicated region
        $region153: #{balanced_cross_transformer.3} parent=111 // pred_check
          %p939 = pneg %p305
        $region154: #{balanced_cross_transformer.3} parent=111 // pred_check_branch
          %941 = sbr.rel (%p939) target = $region156
        $region155: #{balanced_cross_transformer.3} parent=111 // pred_region
          %942 = dma.done [#allocation19], 256
        $region156: #{balanced_cross_transformer.3} parent=111 // pred_fallthru
          _
        // Predicated region
        $region157: #{balanced_cross_transformer.3} parent=111 // pred_check
          %p943 = pneg %p326
        $region158: #{balanced_cross_transformer.3} parent=111 // pred_check_branch
          %945 = sbr.rel (%p943) target = $region160
        $region159: #{balanced_cross_transformer.3} parent=111 // pred_region
          %946 = dma.done [#allocation22], 16
        $region160: #{balanced_cross_transformer.3} parent=111 // pred_fallthru
          _
        // Predicated region
        $region161: #{balanced_cross_transformer.3} parent=111 // pred_check
          %p947 = pneg %p347
        $region162: #{balanced_cross_transformer.3} parent=111 // pred_check_branch
          %949 = sbr.rel (%p947) target = $region164
        $region163: #{balanced_cross_transformer.3} parent=111 // pred_region
          %950 = dma.done [#allocation22], 1024
        $region164: #{balanced_cross_transformer.3} parent=111 // pred_fallthru
          _
        // Predicated region
        $region165: #{balanced_cross_transformer.3} parent=111 // pred_check
          %p951 = pneg %p368
        $region166: #{balanced_cross_transformer.3} parent=111 // pred_check_branch
          %953 = sbr.rel (%p951) target = $region168
        $region167: #{balanced_cross_transformer.3} parent=111 // pred_region
          %954 = dma.done [#allocation25], 16
        $region168: #{balanced_cross_transformer.3} parent=111 // pred_fallthru
          _
        // Predicated region
        $region169: #{balanced_cross_transformer.3} parent=111 // pred_check
          %p955 = pneg %p389
        $region170: #{balanced_cross_transformer.3} parent=111 // pred_check_branch
          %957 = sbr.rel (%p955) target = $region172
        $region171: #{balanced_cross_transformer.3} parent=111 // pred_region
          %958 = dma.done [#allocation25], 16
        $region172: #{balanced_cross_transformer.3} parent=111 // pred_fallthru
          _
        // Predicated region
        $region173: #{balanced_cross_transformer.3} parent=111 // pred_check
          %p959 = pneg %p410
        $region174: #{balanced_cross_transformer.3} parent=111 // pred_check_branch
          %961 = sbr.rel (%p959) target = $region176
        $region175: #{balanced_cross_transformer.3} parent=111 // pred_region
          %962 = dma.done [#allocation28], 16
        $region176: #{balanced_cross_transformer.3} parent=111 // pred_fallthru
          _
        // Predicated region
        $region177: #{balanced_cross_transformer.3} parent=111 // pred_check
          %p963 = pneg %p431
        $region178: #{balanced_cross_transformer.3} parent=111 // pred_check_branch
          %965 = sbr.rel (%p963) target = $region180
        $region179: #{balanced_cross_transformer.3} parent=111 // pred_region
          %966 = dma.done [#allocation28], 256
        $region180: #{balanced_cross_transformer.3} parent=111 // pred_fallthru
          _
        // Predicated region
        $region181: #{balanced_cross_transformer.3} parent=111 // pred_check
          %p967 = pneg %p473
        $region182: #{balanced_cross_transformer.3} parent=111 // pred_check_branch
          %969 = sbr.rel (%p967) target = $region184
        $region183: #{balanced_cross_transformer.3} parent=111 // pred_region
          %970 = dma.done [#allocation31], 256
        $region184: #{balanced_cross_transformer.3} parent=111 // pred_fallthru
          _
        // Predicated region
        $region185: #{balanced_cross_transformer.3} parent=111 // pred_check
          %p971 = pneg %p494
        $region186: #{balanced_cross_transformer.3} parent=111 // pred_check_branch
          %973 = sbr.rel (%p971) target = $region188
        $region187: #{balanced_cross_transformer.3} parent=111 // pred_region
          %974 = dma.done [#allocation31], 256
        $region188: #{balanced_cross_transformer.3} parent=111 // pred_fallthru
          _
        // Predicated region
        $region189: #{balanced_cross_transformer.3} parent=111 // pred_check
          %p975 = pneg %p515
        $region190: #{balanced_cross_transformer.3} parent=111 // pred_check_branch
          %977 = sbr.rel (%p975) target = $region192
        $region191: #{balanced_cross_transformer.3} parent=111 // pred_region
          %978 = dma.done [#allocation34], 16
        $region192: #{balanced_cross_transformer.3} parent=111 // pred_fallthru
          _
        // Predicated region
        $region193: #{balanced_cross_transformer.3} parent=111 // pred_check
          %p979 = pneg %p536
        $region194: #{balanced_cross_transformer.3} parent=111 // pred_check_branch
          %981 = sbr.rel (%p979) target = $region196
        $region195: #{balanced_cross_transformer.3} parent=111 // pred_region
          %982 = dma.done [#allocation34], 256
        $region196: #{balanced_cross_transformer.3} parent=111 // pred_fallthru
          _
        // Predicated region
        $region197: #{balanced_cross_transformer.3} parent=111 // pred_check
          %p983 = pneg %p557
        $region198: #{balanced_cross_transformer.3} parent=111 // pred_check_branch
          %985 = sbr.rel (%p983) target = $region200
        $region199: #{balanced_cross_transformer.3} parent=111 // pred_region
          %986 = dma.done [#allocation37], 16
        $region200: #{balanced_cross_transformer.3} parent=111 // pred_fallthru
          _
        %s987 = sand.u32 %s77, 1
        %s988 = scalar_lea.sflag [#allocation4], %s987
        %s989 = sand.u32 %s77, 1
        %s990 = smul.addr %s989, 8
        %s991 = scalar_lea.vmem [#allocation3], %s990
        %p992 = pneg %p90
        %p993 = pneg %p87
        %s994 = sand.u32 %s55, 1
        %s995 = scalar_lea.sflag [#allocation7], %s994
        %s996 = sand.u32 %s103, 1
        %s997 = smul.addr %s996, 8
        %s998 = scalar_lea.vmem [#allocation6], %s997
        %p999 = pneg %p116
        %p1000 = pneg %p113
        %p1001 = pneg %p137
        %p1002 = pneg %p134
        %p1003 = pneg %p158
        %p1004 = pneg %p155
        %p1005 = pneg %p179
        %p1006 = pneg %p176
        %p1007 = pneg %p200
        %p1008 = pneg %p197
        %p1009 = pneg %p221
        %p1010 = pneg %p218
        %p1011 = pneg %p242
        %p1012 = pneg %p239
        %p1013 = pneg %p263
        %p1014 = pneg %p260
        %p1015 = pneg %p284
        %p1016 = pneg %p281
        %p1017 = pneg %p305
        %p1018 = pneg %p302
        %p1019 = pneg %p326
        %p1020 = pneg %p323
        %p1021 = pneg %p347
        %p1022 = pneg %p344
        %p1023 = pneg %p368
        %p1024 = pneg %p365
        %p1025 = pneg %p389
        %p1026 = pneg %p386
        %p1027 = pneg %p410
        %p1028 = pneg %p407
        %p1029 = pneg %p431
        %p1030 = pneg %p428
        %p1031 = pneg %p452
        %p1032 = pneg %p449
        %p1033 = pneg %p473
        %p1034 = pneg %p470
        %p1035 = pneg %p494
        %p1036 = pneg %p491
        %p1037 = pneg %p515
        %p1038 = pneg %p512
        %p1039 = pneg %p536
        %p1040 = pneg %p533
        %p1041 = pneg %p557
        %p1042 = pneg %p554
        %p1043 = pneg %p585
        %p1044 = pneg %p582
        %s1045 = sand.u32 %s572, 1
        %s1046 = scalar_lea.sflag [#allocation5], %s1045
        %s1047 = sand.u32 %s572, 1
        %s1048 = smul.addr %s1047, 8
        %s1049 = scalar_lea.vmem [#allocation38], %s1048
        %s1050 = sadd.s32 %s59, %s60
        %s1051 = sadd.s32 %s59, %s60
        %v1053 = vld [vmem:[%s893] sm:$0xff]
        %v1054 = vld [vmem:[%s902] sm:$0xff]
        %v1055 = vld [vmem:[#allocation29] sm:$0xf]
        %v1056 = vld [vmem:[#allocation29 + $0x4] sm:$0xf]
        %v1057 = vld [vmem:[#allocation29 + $0x8] sm:$0xf]
        %v1058 = vld [vmem:[#allocation29 + $0xc] sm:$0xf]
        %v1059 = vpack.c.bf16 %v1053, %v1053
        %v1060 = vld [vmem:[#allocation2] sm:$0x1]
        %v1061 = vunpack.c.l.bf16 %v1060
        %v1062 = vlaneseq
        %v1063 = vshrl.u32 %v1062, 7
        %v1064 = vsub.s32 0, %v1063
        %v1065 = vrot.slane %v1061, %v1064
        %v1070 = vunpack.c.l.b16 %v1055
        %v1071 = vunpack.c.l.b16 %v1056
        %v1072 = vunpack.c.l.b16 %v1057
        %v1073 = vunpack.c.l.b16 %v1058
        %v1074 = vpack.c.b16 %v1071, %v1070
        %v1075 = vpack.c.b16 %v1073, %v1072
        %vm1078 = vcmask 261120
        %v1080 = vsel %vm1078, %v1059, 0
        %1082 = vmatprep.subr.bf16.mxu0 0
        %1083 = vmatpush1.bf16.msra.mxu0 %v1074
        %1084 = vmatprep.subr.bf16.mxu0 0
        %1085 = vmatpush1.bf16.msra.mxu0 %v1075
        %1086 = vmatprep.subr.bf16.mxu0 0
        %1087 = vmatpush1.bf16.msra.mxu0 0
        %1088 = vmatprep.subr.bf16.mxu0 0
        %1089 = vmatpush1.bf16.msra.mxu0 0
        %1090 = vmatprep.subr.bf16.mxu0 0
        %1091 = vmatpush1.bf16.msra.mxu0 0
        %1092 = vmatprep.subr.bf16.mxu0 0
        %1093 = vmatpush1.bf16.msra.mxu0 0
        %1094 = vmatprep.subr.bf16.mxu0 0
        %1095 = vmatpush1.bf16.msra.mxu0 0
        %1096 = vmatprep.subr.bf16.mxu0 0
        %1097 = vmatpush1.bf16.msra.mxu0 0
        %1098 = vmatprep.subr.bf16.mxu0 0
        %1099 = vmatpush1.bf16.msra.mxu0 0
        %1100 = vmatprep.subr.bf16.mxu0 0
        %1101 = vmatpush1.bf16.msra.mxu0 0
        %1102 = vmatprep.subr.bf16.mxu0 0
        %1103 = vmatpush1.bf16.msra.mxu0 0
        %1104 = vmatprep.subr.bf16.mxu0 0
        %1105 = vmatpush1.bf16.msra.mxu0 0
        %1106 = vmatprep.subr.bf16.mxu0 0
        %1107 = vmatpush1.bf16.msra.mxu0 0
        %1108 = vmatprep.subr.bf16.mxu0 0
        %1109 = vmatpush1.bf16.msra.mxu0 0
        %1110 = vmatprep.subr.bf16.mxu0 0
        %1111 = vmatpush1.bf16.msra.mxu0 0
        %1112 = vmatprep.subr.bf16.mxu0 0
        %1113 = vmatpush1.bf16.msra.mxu0 0
        %1114 = vmatprep.mubr.bf16.mxu0 0
        %1115 = vmatmul.mubr.bf16.gmra.mrb[0].mxu0 %v1080
        %v1116 = vpop.f32.mrb[0].mxu0
        %v1117 = vadd.f32 %v1065, %v1116
        %v1118 = vpop.f32.mrb[0].mxu0
        %v1119 = vpop.f32.mrb[0].mxu0
        %v1120 = vpop.f32.mrb[0].mxu0
        %1121 = vdwg.mxu0
        %v1122 = vxor.u32 %v1117, 2147483648
        %v1123 = vmul.f32 %v1122, 1.442695
        %v1124 = vpow.pop %v1123
        %v1125 = vadd.f32 %v1124, 1.0
        %v1126 = vrcp.pop %v1125
        %v1127 = vmul.f32 1.0, %v1126
        %1129 = vset.pattern.permute.xlu0 0
        %1130 = vperm.xlu0 %1129, %v1127
        %v1131 = vpop.permute.xlu0 %1130
        %v1133 = vmul.f32 %v1131, %v1053
        %v1134 = vld [vmem:[#allocation8] sm:$0xff]
        %v1135 = vld [vmem:[#allocation8 + $0x8] sm:$0xff]
        %v1136 = vld [vmem:[#allocation8 + $0x10] sm:$0xff]
        %v1137 = vld [vmem:[#allocation8 + $0x18] sm:$0xff]
        %v1138 = vld [vmem:[#allocation8 + $0x20] sm:$0xff]
        %v1139 = vld [vmem:[#allocation8 + $0x28] sm:$0xff]
        %v1140 = vld [vmem:[#allocation8 + $0x30] sm:$0xff]
        %v1141 = vld [vmem:[#allocation8 + $0x38] sm:$0xff]
        %v1142 = vpack.c.bf16 %v1133, %v1133
        %v1143 = vld [vmem:[#allocation9] sm:$0xf]
        %v1144 = vunpack.c.l.bf16 %v1143
        %v1146 = vlaneseq
        %v1147 = vshrl.u32 %v1146, 7
        %v1148 = vsub.s32 0, %v1147
        %v1149 = vrot.slane %v1144, %v1148
        %v1150 = vlaneseq
        %v1151 = vshrl.u32 %v1150, 7
        %v1152 = vsub.s32 2, %v1151
        %v1153 = vrot.slane %v1144, %v1152
        %v1154 = vlaneseq
        %v1155 = vshrl.u32 %v1154, 7
        %v1156 = vsub.s32 4, %v1155
        %v1157 = vrot.slane %v1144, %v1156
        %v1158 = vlaneseq
        %v1159 = vshrl.u32 %v1158, 7
        %v1160 = vsub.s32 6, %v1159
        %v1161 = vrot.slane %v1144, %v1160
        %v1166 = vlaneseq
        %v1167 = vshrl.u32 %v1166, 7
        %v1168 = vsub.s32 0, %v1167
        %v1169 = vrot.slane %v1149, %v1168
        %v1170 = vlaneseq
        %v1171 = vshrl.u32 %v1170, 7
        %v1172 = vsub.s32 0, %v1171
        %v1173 = vrot.slane %v1153, %v1172
        %v1174 = vlaneseq
        %v1175 = vshrl.u32 %v1174, 7
        %v1176 = vsub.s32 0, %v1175
        %v1177 = vrot.slane %v1157, %v1176
        %v1178 = vlaneseq
        %v1179 = vshrl.u32 %v1178, 7
        %v1180 = vsub.s32 0, %v1179
        %v1181 = vrot.slane %v1161, %v1180
        %v1190 = vunpack.c.l.b16 %v1134
        %v1191 = vunpack.c.h.b16 %v1134
        %v1192 = vunpack.c.l.b16 %v1135
        %v1193 = vunpack.c.h.b16 %v1135
        %v1194 = vunpack.c.l.b16 %v1136
        %v1195 = vunpack.c.h.b16 %v1136
        %v1196 = vunpack.c.l.b16 %v1137
        %v1197 = vunpack.c.h.b16 %v1137
        %v1198 = vunpack.c.l.b16 %v1138
        %v1199 = vunpack.c.h.b16 %v1138
        %v1200 = vunpack.c.l.b16 %v1139
        %v1201 = vunpack.c.h.b16 %v1139
        %v1202 = vunpack.c.l.b16 %v1140
        %v1203 = vunpack.c.h.b16 %v1140
        %v1204 = vunpack.c.l.b16 %v1141
        %v1205 = vunpack.c.h.b16 %v1141
        %v1206 = vpack.c.b16 %v1194, %v1190
        %v1207 = vpack.c.b16 %v1195, %v1191
        %v1208 = vpack.c.b16 %v1196, %v1192
        %v1209 = vpack.c.b16 %v1197, %v1193
        %v1210 = vpack.c.b16 %v1202, %v1198
        %v1211 = vpack.c.b16 %v1203, %v1199
        %v1212 = vpack.c.b16 %v1204, %v1200
        %v1213 = vpack.c.b16 %v1205, %v1201
        %v1223 = vsel %vm1078, %v1142, 0
        %1225 = vmatprep.subr.bf16.mxu0 %v1207
        %1226 = vmatpush1.bf16.msra.mxu0 %v1206
        %1227 = vmatprep.subr.bf16.mxu0 %v1211
        %1228 = vmatpush1.bf16.msra.mxu0 %v1210
        %1229 = vmatprep.subr.bf16.mxu0 0
        %1230 = vmatpush1.bf16.msra.mxu0 0
        %1231 = vmatprep.subr.bf16.mxu0 0
        %1232 = vmatpush1.bf16.msra.mxu0 0
        %1233 = vmatprep.subr.bf16.mxu0 0
        %1234 = vmatpush1.bf16.msra.mxu0 0
        %1235 = vmatprep.subr.bf16.mxu0 0
        %1236 = vmatpush1.bf16.msra.mxu0 0
        %1237 = vmatprep.subr.bf16.mxu0 0
        %1238 = vmatpush1.bf16.msra.mxu0 0
        %1239 = vmatprep.subr.bf16.mxu0 0
        %1240 = vmatpush1.bf16.msra.mxu0 0
        %1241 = vmatprep.subr.bf16.mxu0 0
        %1242 = vmatpush1.bf16.msra.mxu0 0
        %1243 = vmatprep.subr.bf16.mxu0 0
        %1244 = vmatpush1.bf16.msra.mxu0 0
        %1245 = vmatprep.subr.bf16.mxu0 0
        %1246 = vmatpush1.bf16.msra.mxu0 0
        %1247 = vmatprep.subr.bf16.mxu0 0
        %1248 = vmatpush1.bf16.msra.mxu0 0
        %1249 = vmatprep.subr.bf16.mxu0 0
        %1250 = vmatpush1.bf16.msra.mxu0 0
        %1251 = vmatprep.subr.bf16.mxu0 0
        %1252 = vmatpush1.bf16.msra.mxu0 0
        %1253 = vmatprep.subr.bf16.mxu0 0
        %1254 = vmatpush1.bf16.msra.mxu0 0
        %1255 = vmatprep.subr.bf16.mxu0 0
        %1256 = vmatpush1.bf16.msra.mxu0 0
        %1257 = vmatprep.mubr.bf16.mxu0 0
        %1258 = vmatmul.mubr.bf16.gmra.mrb[0].mxu0 %v1223
        %v1259 = vpop.f32.mrb[0].mxu0
        %v1260 = vadd.f32 %v1169, %v1259
        %v1261 = vpop.f32.mrb[0].mxu0
        %v1262 = vadd.f32 %v1173, %v1261
        %v1263 = vpop.f32.mrb[0].mxu0
        %v1264 = vpop.f32.mrb[0].mxu0
        %1265 = vdwg.mxu0
        %1266 = vmatprep.subr.bf16.mxu0 %v1209
        %1267 = vmatpush1.bf16.msra.mxu0 %v1208
        %1268 = vmatprep.subr.bf16.mxu0 %v1213
        %1269 = vmatpush1.bf16.msra.mxu0 %v1212
        %1270 = vmatprep.subr.bf16.mxu0 0
        %1271 = vmatpush1.bf16.msra.mxu0 0
        %1272 = vmatprep.subr.bf16.mxu0 0
        %1273 = vmatpush1.bf16.msra.mxu0 0
        %1274 = vmatprep.subr.bf16.mxu0 0
        %1275 = vmatpush1.bf16.msra.mxu0 0
        %1276 = vmatprep.subr.bf16.mxu0 0
        %1277 = vmatpush1.bf16.msra.mxu0 0
        %1278 = vmatprep.subr.bf16.mxu0 0
        %1279 = vmatpush1.bf16.msra.mxu0 0
        %1280 = vmatprep.subr.bf16.mxu0 0
        %1281 = vmatpush1.bf16.msra.mxu0 0
        %1282 = vmatprep.subr.bf16.mxu0 0
        %1283 = vmatpush1.bf16.msra.mxu0 0
        %1284 = vmatprep.subr.bf16.mxu0 0
        %1285 = vmatpush1.bf16.msra.mxu0 0
        %1286 = vmatprep.subr.bf16.mxu0 0
        %1287 = vmatpush1.bf16.msra.mxu0 0
        %1288 = vmatprep.subr.bf16.mxu0 0
        %1289 = vmatpush1.bf16.msra.mxu0 0
        %1290 = vmatprep.subr.bf16.mxu0 0
        %1291 = vmatpush1.bf16.msra.mxu0 0
        %1292 = vmatprep.subr.bf16.mxu0 0
        %1293 = vmatpush1.bf16.msra.mxu0 0
        %1294 = vmatprep.subr.bf16.mxu0 0
        %1295 = vmatpush1.bf16.msra.mxu0 0
        %1296 = vmatprep.subr.bf16.mxu0 0
        %1297 = vmatpush1.bf16.msra.mxu0 0
        %1298 = vmatprep.mubr.bf16.mxu0 0
        %1299 = vmatmul.mubr.bf16.gmra.mrb[0].mxu0 %v1223
        %v1300 = vpop.f32.mrb[0].mxu0
        %v1301 = vadd.f32 %v1177, %v1300
        %v1302 = vpop.f32.mrb[0].mxu0
        %v1303 = vadd.f32 %v1181, %v1302
        %v1304 = vpop.f32.mrb[0].mxu0
        %v1305 = vpop.f32.mrb[0].mxu0
        %1306 = vdwg.mxu0
        %v1307 = vld [vmem:[#allocation11] sm:$0xff]
        %v1308 = vld [vmem:[#allocation11 + $0x8] sm:$0xff]
        %v1309 = vld [vmem:[#allocation11 + $0x10] sm:$0xff]
        %v1310 = vld [vmem:[#allocation11 + $0x18] sm:$0xff]
        %v1311 = vld [vmem:[#allocation11 + $0x20] sm:$0xff]
        %v1312 = vld [vmem:[#allocation11 + $0x28] sm:$0xff]
        %v1313 = vld [vmem:[#allocation11 + $0x30] sm:$0xff]
        %v1314 = vld [vmem:[#allocation11 + $0x38] sm:$0xff]
        %v1315 = vld [vmem:[#allocation11 + $0x40] sm:$0xff]
        %v1316 = vld [vmem:[#allocation11 + $0x48] sm:$0xff]
        %v1317 = vld [vmem:[#allocation11 + $0x50] sm:$0xff]
        %v1318 = vld [vmem:[#allocation11 + $0x58] sm:$0xff]
        %v1319 = vld [vmem:[#allocation11 + $0x60] sm:$0xff]
        %v1320 = vld [vmem:[#allocation11 + $0x68] sm:$0xff]
        %v1321 = vld [vmem:[#allocation11 + $0x70] sm:$0xff]
        %v1322 = vld [vmem:[#allocation11 + $0x78] sm:$0xff]
        %v1323 = vpack.c.bf16 %v1054, %v1054
        %v1324 = vld [vmem:[#allocation12] sm:$0xff]
        %v1325 = vunpack.c.l.bf16 %v1324
        %v1326 = vunpack.c.h.bf16 %v1324
        %v1329 = vlaneseq
        %v1330 = vshrl.u32 %v1329, 7
        %v1331 = vsub.s32 0, %v1330
        %v1332 = vrot.slane %v1325, %v1331
        %v1333 = vlaneseq
        %v1334 = vshrl.u32 %v1333, 7
        %v1335 = vsub.s32 2, %v1334
        %v1336 = vrot.slane %v1325, %v1335
        %v1337 = vlaneseq
        %v1338 = vshrl.u32 %v1337, 7
        %v1339 = vsub.s32 4, %v1338
        %v1340 = vrot.slane %v1325, %v1339
        %v1341 = vlaneseq
        %v1342 = vshrl.u32 %v1341, 7
        %v1343 = vsub.s32 6, %v1342
        %v1344 = vrot.slane %v1325, %v1343
        %v1345 = vlaneseq
        %v1346 = vshrl.u32 %v1345, 7
        %v1347 = vsub.s32 0, %v1346
        %v1348 = vrot.slane %v1326, %v1347
        %v1349 = vlaneseq
        %v1350 = vshrl.u32 %v1349, 7
        %v1351 = vsub.s32 2, %v1350
        %v1352 = vrot.slane %v1326, %v1351
        %v1353 = vlaneseq
        %v1354 = vshrl.u32 %v1353, 7
        %v1355 = vsub.s32 4, %v1354
        %v1356 = vrot.slane %v1326, %v1355
        %v1357 = vlaneseq
        %v1358 = vshrl.u32 %v1357, 7
        %v1359 = vsub.s32 6, %v1358
        %v1360 = vrot.slane %v1326, %v1359
        %v1369 = vlaneseq
        %v1370 = vshrl.u32 %v1369, 7
        %v1371 = vsub.s32 0, %v1370
        %v1372 = vrot.slane %v1332, %v1371
        %v1373 = vlaneseq
        %v1374 = vshrl.u32 %v1373, 7
        %v1375 = vsub.s32 0, %v1374
        %v1376 = vrot.slane %v1336, %v1375
        %v1377 = vlaneseq
        %v1378 = vshrl.u32 %v1377, 7
        %v1379 = vsub.s32 0, %v1378
        %v1380 = vrot.slane %v1340, %v1379
        %v1381 = vlaneseq
        %v1382 = vshrl.u32 %v1381, 7
        %v1383 = vsub.s32 0, %v1382
        %v1384 = vrot.slane %v1344, %v1383
        %v1385 = vlaneseq
        %v1386 = vshrl.u32 %v1385, 7
        %v1387 = vsub.s32 0, %v1386
        %v1388 = vrot.slane %v1348, %v1387
        %v1389 = vlaneseq
        %v1390 = vshrl.u32 %v1389, 7
        %v1391 = vsub.s32 0, %v1390
        %v1392 = vrot.slane %v1352, %v1391
        %v1393 = vlaneseq
        %v1394 = vshrl.u32 %v1393, 7
        %v1395 = vsub.s32 0, %v1394
        %v1396 = vrot.slane %v1356, %v1395
        %v1397 = vlaneseq
        %v1398 = vshrl.u32 %v1397, 7
        %v1399 = vsub.s32 0, %v1398
        %v1400 = vrot.slane %v1360, %v1399
        %v1417 = vunpack.c.l.b16 %v1307
        %v1418 = vunpack.c.h.b16 %v1307
        %v1419 = vunpack.c.l.b16 %v1308
        %v1420 = vunpack.c.h.b16 %v1308
        %v1421 = vunpack.c.l.b16 %v1309
        %v1422 = vunpack.c.h.b16 %v1309
        %v1423 = vunpack.c.l.b16 %v1310
        %v1424 = vunpack.c.h.b16 %v1310
        %v1425 = vunpack.c.l.b16 %v1311
        %v1426 = vunpack.c.h.b16 %v1311
        %v1427 = vunpack.c.l.b16 %v1312
        %v1428 = vunpack.c.h.b16 %v1312
        %v1429 = vunpack.c.l.b16 %v1313
        %v1430 = vunpack.c.h.b16 %v1313
        %v1431 = vunpack.c.l.b16 %v1314
        %v1432 = vunpack.c.h.b16 %v1314
        %v1433 = vunpack.c.l.b16 %v1315
        %v1434 = vunpack.c.h.b16 %v1315
        %v1435 = vunpack.c.l.b16 %v1316
        %v1436 = vunpack.c.h.b16 %v1316
        %v1437 = vunpack.c.l.b16 %v1317
        %v1438 = vunpack.c.h.b16 %v1317
        %v1439 = vunpack.c.l.b16 %v1318
        %v1440 = vunpack.c.h.b16 %v1318
        %v1441 = vunpack.c.l.b16 %v1319
        %v1442 = vunpack.c.h.b16 %v1319
        %v1443 = vunpack.c.l.b16 %v1320
        %v1444 = vunpack.c.h.b16 %v1320
        %v1445 = vunpack.c.l.b16 %v1321
        %v1446 = vunpack.c.h.b16 %v1321
        %v1447 = vunpack.c.l.b16 %v1322
        %v1448 = vunpack.c.h.b16 %v1322
        %v1449 = vpack.c.b16 %v1425, %v1417
        %v1450 = vpack.c.b16 %v1426, %v1418
        %v1451 = vpack.c.b16 %v1427, %v1419
        %v1452 = vpack.c.b16 %v1428, %v1420
        %v1453 = vpack.c.b16 %v1429, %v1421
        %v1454 = vpack.c.b16 %v1430, %v1422
        %v1455 = vpack.c.b16 %v1431, %v1423
        %v1456 = vpack.c.b16 %v1432, %v1424
        %v1457 = vpack.c.b16 %v1441, %v1433
        %v1458 = vpack.c.b16 %v1442, %v1434
        %v1459 = vpack.c.b16 %v1443, %v1435
        %v1460 = vpack.c.b16 %v1444, %v1436
        %v1461 = vpack.c.b16 %v1445, %v1437
        %v1462 = vpack.c.b16 %v1446, %v1438
        %v1463 = vpack.c.b16 %v1447, %v1439
        %v1464 = vpack.c.b16 %v1448, %v1440
        %v1482 = vsel %vm1078, %v1323, 0
        %1484 = vmatprep.subr.bf16.mxu0 %v1450
        %1485 = vmatpush1.bf16.msra.mxu0 %v1449
        %1486 = vmatprep.subr.bf16.mxu0 %v1458
        %1487 = vmatpush1.bf16.msra.mxu0 %v1457
        %1488 = vmatprep.subr.bf16.mxu0 0
        %1489 = vmatpush1.bf16.msra.mxu0 0
        %1490 = vmatprep.subr.bf16.mxu0 0
        %1491 = vmatpush1.bf16.msra.mxu0 0
        %1492 = vmatprep.subr.bf16.mxu0 0
        %1493 = vmatpush1.bf16.msra.mxu0 0
        %1494 = vmatprep.subr.bf16.mxu0 0
        %1495 = vmatpush1.bf16.msra.mxu0 0
        %1496 = vmatprep.subr.bf16.mxu0 0
        %1497 = vmatpush1.bf16.msra.mxu0 0
        %1498 = vmatprep.subr.bf16.mxu0 0
        %1499 = vmatpush1.bf16.msra.mxu0 0
        %1500 = vmatprep.subr.bf16.mxu0 0
        %1501 = vmatpush1.bf16.msra.mxu0 0
        %1502 = vmatprep.subr.bf16.mxu0 0
        %1503 = vmatpush1.bf16.msra.mxu0 0
        %1504 = vmatprep.subr.bf16.mxu0 0
        %1505 = vmatpush1.bf16.msra.mxu0 0
        %1506 = vmatprep.subr.bf16.mxu0 0
        %1507 = vmatpush1.bf16.msra.mxu0 0
        %1508 = vmatprep.subr.bf16.mxu0 0
        %1509 = vmatpush1.bf16.msra.mxu0 0
        %1510 = vmatprep.subr.bf16.mxu0 0
        %1511 = vmatpush1.bf16.msra.mxu0 0
        %1512 = vmatprep.subr.bf16.mxu0 0
        %1513 = vmatpush1.bf16.msra.mxu0 0
        %1514 = vmatprep.subr.bf16.mxu0 0
        %1515 = vmatpush1.bf16.msra.mxu0 0
        %1516 = vmatprep.mubr.bf16.mxu0 0
        %1517 = vmatmul.mubr.bf16.gmra.mrb[0].mxu0 %v1482
        %v1518 = vpop.f32.mrb[0].mxu0
        %v1519 = vadd.f32 %v1372, %v1518
        %v1520 = vpop.f32.mrb[0].mxu0
        %v1521 = vadd.f32 %v1376, %v1520
        %v1522 = vpop.f32.mrb[0].mxu0
        %v1523 = vpop.f32.mrb[0].mxu0
        %1524 = vdwg.mxu0
        %1525 = vmatprep.subr.bf16.mxu0 %v1452
        %1526 = vmatpush1.bf16.msra.mxu0 %v1451
        %1527 = vmatprep.subr.bf16.mxu0 %v1460
        %1528 = vmatpush1.bf16.msra.mxu0 %v1459
        %1529 = vmatprep.subr.bf16.mxu0 0
        %1530 = vmatpush1.bf16.msra.mxu0 0
        %1531 = vmatprep.subr.bf16.mxu0 0
        %1532 = vmatpush1.bf16.msra.mxu0 0
        %1533 = vmatprep.subr.bf16.mxu0 0
        %1534 = vmatpush1.bf16.msra.mxu0 0
        %1535 = vmatprep.subr.bf16.mxu0 0
        %1536 = vmatpush1.bf16.msra.mxu0 0
        %1537 = vmatprep.subr.bf16.mxu0 0
        %1538 = vmatpush1.bf16.msra.mxu0 0
        %1539 = vmatprep.subr.bf16.mxu0 0
        %1540 = vmatpush1.bf16.msra.mxu0 0
        %1541 = vmatprep.subr.bf16.mxu0 0
        %1542 = vmatpush1.bf16.msra.mxu0 0
        %1543 = vmatprep.subr.bf16.mxu0 0
        %1544 = vmatpush1.bf16.msra.mxu0 0
        %1545 = vmatprep.subr.bf16.mxu0 0
        %1546 = vmatpush1.bf16.msra.mxu0 0
        %1547 = vmatprep.subr.bf16.mxu0 0
        %1548 = vmatpush1.bf16.msra.mxu0 0
        %1549 = vmatprep.subr.bf16.mxu0 0
        %1550 = vmatpush1.bf16.msra.mxu0 0
        %1551 = vmatprep.subr.bf16.mxu0 0
        %1552 = vmatpush1.bf16.msra.mxu0 0
        %1553 = vmatprep.subr.bf16.mxu0 0
        %1554 = vmatpush1.bf16.msra.mxu0 0
        %1555 = vmatprep.subr.bf16.mxu0 0
        %1556 = vmatpush1.bf16.msra.mxu0 0
        %1557 = vmatprep.mubr.bf16.mxu0 0
        %1558 = vmatmul.mubr.bf16.gmra.mrb[0].mxu0 %v1482
        %v1559 = vpop.f32.mrb[0].mxu0
        %v1560 = vadd.f32 %v1380, %v1559
        %v1561 = vpop.f32.mrb[0].mxu0
        %v1562 = vadd.f32 %v1384, %v1561
        %v1563 = vpop.f32.mrb[0].mxu0
        %v1564 = vpop.f32.mrb[0].mxu0
        %1565 = vdwg.mxu0
        %1566 = vmatprep.subr.bf16.mxu0 %v1454
        %1567 = vmatpush1.bf16.msra.mxu0 %v1453
        %1568 = vmatprep.subr.bf16.mxu0 %v1462
        %1569 = vmatpush1.bf16.msra.mxu0 %v1461
        %1570 = vmatprep.subr.bf16.mxu0 0
        %1571 = vmatpush1.bf16.msra.mxu0 0
        %1572 = vmatprep.subr.bf16.mxu0 0
        %1573 = vmatpush1.bf16.msra.mxu0 0
        %1574 = vmatprep.subr.bf16.mxu0 0
        %1575 = vmatpush1.bf16.msra.mxu0 0
        %1576 = vmatprep.subr.bf16.mxu0 0
        %1577 = vmatpush1.bf16.msra.mxu0 0
        %1578 = vmatprep.subr.bf16.mxu0 0
        %1579 = vmatpush1.bf16.msra.mxu0 0
        %1580 = vmatprep.subr.bf16.mxu0 0
        %1581 = vmatpush1.bf16.msra.mxu0 0
        %1582 = vmatprep.subr.bf16.mxu0 0
        %1583 = vmatpush1.bf16.msra.mxu0 0
        %1584 = vmatprep.subr.bf16.mxu0 0
        %1585 = vmatpush1.bf16.msra.mxu0 0
        %1586 = vmatprep.subr.bf16.mxu0 0
        %1587 = vmatpush1.bf16.msra.mxu0 0
        %1588 = vmatprep.subr.bf16.mxu0 0
        %1589 = vmatpush1.bf16.msra.mxu0 0
        %1590 = vmatprep.subr.bf16.mxu0 0
        %1591 = vmatpush1.bf16.msra.mxu0 0
        %1592 = vmatprep.subr.bf16.mxu0 0
        %1593 = vmatpush1.bf16.msra.mxu0 0
        %1594 = vmatprep.subr.bf16.mxu0 0
        %1595 = vmatpush1.bf16.msra.mxu0 0
        %1596 = vmatprep.subr.bf16.mxu0 0
        %1597 = vmatpush1.bf16.msra.mxu0 0
        %1598 = vmatprep.mubr.bf16.mxu0 0
        %1599 = vmatmul.mubr.bf16.gmra.mrb[0].mxu0 %v1482
        %v1600 = vpop.f32.mrb[0].mxu0
        %v1601 = vadd.f32 %v1388, %v1600
        %v1602 = vpop.f32.mrb[0].mxu0
        %v1603 = vadd.f32 %v1392, %v1602
        %v1604 = vpop.f32.mrb[0].mxu0
        %v1605 = vpop.f32.mrb[0].mxu0
        %1606 = vdwg.mxu0
        %1607 = vmatprep.subr.bf16.mxu0 %v1456
        %1608 = vmatpush1.bf16.msra.mxu0 %v1455
        %1609 = vmatprep.subr.bf16.mxu0 %v1464
        %1610 = vmatpush1.bf16.msra.mxu0 %v1463
        %1611 = vmatprep.subr.bf16.mxu0 0
        %1612 = vmatpush1.bf16.msra.mxu0 0
        %1613 = vmatprep.subr.bf16.mxu0 0
        %1614 = vmatpush1.bf16.msra.mxu0 0
        %1615 = vmatprep.subr.bf16.mxu0 0
        %1616 = vmatpush1.bf16.msra.mxu0 0
        %1617 = vmatprep.subr.bf16.mxu0 0
        %1618 = vmatpush1.bf16.msra.mxu0 0
        %1619 = vmatprep.subr.bf16.mxu0 0
        %1620 = vmatpush1.bf16.msra.mxu0 0
        %1621 = vmatprep.subr.bf16.mxu0 0
        %1622 = vmatpush1.bf16.msra.mxu0 0
        %1623 = vmatprep.subr.bf16.mxu0 0
        %1624 = vmatpush1.bf16.msra.mxu0 0
        %1625 = vmatprep.subr.bf16.mxu0 0
        %1626 = vmatpush1.bf16.msra.mxu0 0
        %1627 = vmatprep.subr.bf16.mxu0 0
        %1628 = vmatpush1.bf16.msra.mxu0 0
        %1629 = vmatprep.subr.bf16.mxu0 0
        %1630 = vmatpush1.bf16.msra.mxu0 0
        %1631 = vmatprep.subr.bf16.mxu0 0
        %1632 = vmatpush1.bf16.msra.mxu0 0
        %1633 = vmatprep.subr.bf16.mxu0 0
        %1634 = vmatpush1.bf16.msra.mxu0 0
        %1635 = vmatprep.subr.bf16.mxu0 0
        %1636 = vmatpush1.bf16.msra.mxu0 0
        %1637 = vmatprep.subr.bf16.mxu0 0
        %1638 = vmatpush1.bf16.msra.mxu0 0
        %1639 = vmatprep.mubr.bf16.mxu0 0
        %1640 = vmatmul.mubr.bf16.gmra.mrb[0].mxu0 %v1482
        %v1641 = vpop.f32.mrb[0].mxu0
        %v1642 = vadd.f32 %v1396, %v1641
        %v1643 = vpop.f32.mrb[0].mxu0
        %v1644 = vadd.f32 %v1400, %v1643
        %v1645 = vpop.f32.mrb[0].mxu0
        %v1646 = vpop.f32.mrb[0].mxu0
        %1647 = vdwg.mxu0
        %v1648 = vpack.c.bf16 %v1260, %v1260
        %v1649 = vpack.c.bf16 %v1519, %v1519
        %1650 = vmatprep.subr.bf16.mxu0 0
        %1651 = vmatpush1.bf16.xpose.msra.mxu0 %v1649
        %1652 = vmatprep.subr.bf16.mxu0 0
        %1653 = vmatpush1.bf16.xpose.msra.mxu0 0
        %1654 = vmatprep.subr.bf16.mxu0 0
        %1655 = vmatpush1.bf16.xpose.msra.mxu0 0
        %1656 = vmatprep.subr.bf16.mxu0 0
        %1657 = vmatpush1.bf16.xpose.msra.mxu0 0
        %1658 = vmatprep.subr.bf16.mxu0 0
        %1659 = vmatpush1.bf16.xpose.msra.mxu0 0
        %1660 = vmatprep.subr.bf16.mxu0 0
        %1661 = vmatpush1.bf16.xpose.msra.mxu0 0
        %1662 = vmatprep.subr.bf16.mxu0 0
        %1663 = vmatpush1.bf16.xpose.msra.mxu0 0
        %1664 = vmatprep.subr.bf16.mxu0 0
        %1665 = vmatpush1.bf16.xpose.msra.mxu0 0
        %1666 = vmatprep.subr.bf16.mxu0 0
        %1667 = vmatpush1.bf16.xpose.msra.mxu0 0
        %1668 = vmatprep.subr.bf16.mxu0 0
        %1669 = vmatpush1.bf16.xpose.msra.mxu0 0
        %1670 = vmatprep.subr.bf16.mxu0 0
        %1671 = vmatpush1.bf16.xpose.msra.mxu0 0
        %1672 = vmatprep.subr.bf16.mxu0 0
        %1673 = vmatpush1.bf16.xpose.msra.mxu0 0
        %1674 = vmatprep.subr.bf16.mxu0 0
        %1675 = vmatpush1.bf16.xpose.msra.mxu0 0
        %1676 = vmatprep.subr.bf16.mxu0 0
        %1677 = vmatpush1.bf16.xpose.msra.mxu0 0
        %1678 = vmatprep.subr.bf16.mxu0 0
        %1679 = vmatpush1.bf16.xpose.msra.mxu0 0
        %1680 = vmatprep.subr.bf16.mxu0 0
        %1681 = vmatpush1.bf16.xpose.msra.mxu0 0
        %1682 = vmatprep.mubr.bf16.mxu0 0
        %1683 = vmatmul.mubr.bf16.gmra.mrb[0].mxu0 %v1648
        %v1684 = vpop.f32.mrb[0].mxu0
        %v1685 = vadd.f32 0.0, %v1684
        %v1686 = vpop.f32.mrb[0].mxu0
        %v1687 = vpop.f32.mrb[0].mxu0
        %v1688 = vpop.f32.mrb[0].mxu0
        %1689 = vdwg.mxu0
        %v1690 = vmul.f32 %v1685, 0.35355338
        %vm1691 = vcmask 64512
        %v1692 = vsel %vm1691, %v1690, -inf
        %1693 = vmax.xlane.f32.xlu0 %v1692
        %v1694 = vpop.xlane.xlu0 %1693
        %v1695 = vsub.f32 %v1690, %v1694
        %v1696 = vmul.f32 %v1695, 1.442695
        %v1697 = vpow.pop %v1696
        %v1698 = vsel %vm1691, %v1697, 0.0
        %1699 = vadd.xlane.f32.xlu0 %v1698
        %v1700 = vpop.xlane.xlu0 %1699
        %v1701 = vrcp.pop %v1700
        %v1702 = vmul.f32 %v1700, %v1701
        %v1703 = vsub.f32 2.0, %v1702
        %v1704 = vmul.f32 %v1701, %v1703
        %v1705 = vmul.f32 %v1697, %v1704
        %v1706 = vpack.c.bf16 %v1705, %v1705
        %v1707 = vpack.c.bf16 %v1601, %v1601
        %v1709 = vsel %vm1691, %v1706, 0
        %vm1711 = vcmask 1043456
        %v1713 = vsel %vm1711, %v1707, 0
        %1715 = vmatprep.subr.bf16.mxu0 0
        %1716 = vmatpush1.bf16.msra.mxu0 %v1713
        %1717 = vmatprep.subr.bf16.mxu0 0
        %1718 = vmatpush1.bf16.msra.mxu0 0
        %1719 = vmatprep.subr.bf16.mxu0 0
        %1720 = vmatpush1.bf16.msra.mxu0 0
        %1721 = vmatprep.subr.bf16.mxu0 0
        %1722 = vmatpush1.bf16.msra.mxu0 0
        %1723 = vmatprep.subr.bf16.mxu0 0
        %1724 = vmatpush1.bf16.msra.mxu0 0
        %1725 = vmatprep.subr.bf16.mxu0 0
        %1726 = vmatpush1.bf16.msra.mxu0 0
        %1727 = vmatprep.subr.bf16.mxu0 0
        %1728 = vmatpush1.bf16.msra.mxu0 0
        %1729 = vmatprep.subr.bf16.mxu0 0
        %1730 = vmatpush1.bf16.msra.mxu0 0
        %1731 = vmatprep.subr.bf16.mxu0 0
        %1732 = vmatpush1.bf16.msra.mxu0 0
        %1733 = vmatprep.subr.bf16.mxu0 0
        %1734 = vmatpush1.bf16.msra.mxu0 0
        %1735 = vmatprep.subr.bf16.mxu0 0
        %1736 = vmatpush1.bf16.msra.mxu0 0
        %1737 = vmatprep.subr.bf16.mxu0 0
        %1738 = vmatpush1.bf16.msra.mxu0 0
        %1739 = vmatprep.subr.bf16.mxu0 0
        %1740 = vmatpush1.bf16.msra.mxu0 0
        %1741 = vmatprep.subr.bf16.mxu0 0
        %1742 = vmatpush1.bf16.msra.mxu0 0
        %1743 = vmatprep.subr.bf16.mxu0 0
        %1744 = vmatpush1.bf16.msra.mxu0 0
        %1745 = vmatprep.subr.bf16.mxu0 0
        %1746 = vmatpush1.bf16.msra.mxu0 0
        %1747 = vmatprep.mubr.bf16.mxu0 0
        %1748 = vmatmul.mubr.bf16.gmra.mrb[0].mxu0 %v1709
        %v1749 = vpop.f32.mrb[0].mxu0
        %v1750 = vadd.f32 0.0, %v1749
        %v1751 = vpop.f32.mrb[0].mxu0
        %v1752 = vpop.f32.mrb[0].mxu0
        %v1753 = vpop.f32.mrb[0].mxu0
        %1754 = vdwg.mxu0
        %v1755 = vpack.c.bf16 %v1262, %v1262
        %v1756 = vpack.c.bf16 %v1521, %v1521
        %1757 = vmatprep.subr.bf16.mxu0 0
        %1758 = vmatpush1.bf16.xpose.msra.mxu0 %v1756
        %1759 = vmatprep.subr.bf16.mxu0 0
        %1760 = vmatpush1.bf16.xpose.msra.mxu0 0
        %1761 = vmatprep.subr.bf16.mxu0 0
        %1762 = vmatpush1.bf16.xpose.msra.mxu0 0
        %1763 = vmatprep.subr.bf16.mxu0 0
        %1764 = vmatpush1.bf16.xpose.msra.mxu0 0
        %1765 = vmatprep.subr.bf16.mxu0 0
        %1766 = vmatpush1.bf16.xpose.msra.mxu0 0
        %1767 = vmatprep.subr.bf16.mxu0 0
        %1768 = vmatpush1.bf16.xpose.msra.mxu0 0
        %1769 = vmatprep.subr.bf16.mxu0 0
        %1770 = vmatpush1.bf16.xpose.msra.mxu0 0
        %1771 = vmatprep.subr.bf16.mxu0 0
        %1772 = vmatpush1.bf16.xpose.msra.mxu0 0
        %1773 = vmatprep.subr.bf16.mxu0 0
        %1774 = vmatpush1.bf16.xpose.msra.mxu0 0
        %1775 = vmatprep.subr.bf16.mxu0 0
        %1776 = vmatpush1.bf16.xpose.msra.mxu0 0
        %1777 = vmatprep.subr.bf16.mxu0 0
        %1778 = vmatpush1.bf16.xpose.msra.mxu0 0
        %1779 = vmatprep.subr.bf16.mxu0 0
        %1780 = vmatpush1.bf16.xpose.msra.mxu0 0
        %1781 = vmatprep.subr.bf16.mxu0 0
        %1782 = vmatpush1.bf16.xpose.msra.mxu0 0
        %1783 = vmatprep.subr.bf16.mxu0 0
        %1784 = vmatpush1.bf16.xpose.msra.mxu0 0
        %1785 = vmatprep.subr.bf16.mxu0 0
        %1786 = vmatpush1.bf16.xpose.msra.mxu0 0
        %1787 = vmatprep.subr.bf16.mxu0 0
        %1788 = vmatpush1.bf16.xpose.msra.mxu0 0
        %1789 = vmatprep.mubr.bf16.mxu0 0
        %1790 = vmatmul.mubr.bf16.gmra.mrb[0].mxu0 %v1755
        %v1791 = vpop.f32.mrb[0].mxu0
        %v1792 = vadd.f32 0.0, %v1791
        %v1793 = vpop.f32.mrb[0].mxu0
        %v1794 = vpop.f32.mrb[0].mxu0
        %v1795 = vpop.f32.mrb[0].mxu0
        %1796 = vdwg.mxu0
        %v1797 = vmul.f32 %v1792, 0.35355338
        %v1798 = vsel %vm1691, %v1797, -inf
        %1799 = vmax.xlane.f32.xlu0 %v1798
        %v1800 = vpop.xlane.xlu0 %1799
        %v1801 = vsub.f32 %v1797, %v1800
        %v1802 = vmul.f32 %v1801, 1.442695
        %v1803 = vpow.pop %v1802
        %v1804 = vsel %vm1691, %v1803, 0.0
        %1805 = vadd.xlane.f32.xlu0 %v1804
        %v1806 = vpop.xlane.xlu0 %1805
        %v1807 = vrcp.pop %v1806
        %v1808 = vmul.f32 %v1806, %v1807
        %v1809 = vsub.f32 2.0, %v1808
        %v1810 = vmul.f32 %v1807, %v1809
        %v1811 = vmul.f32 %v1803, %v1810
        %v1812 = vpack.c.bf16 %v1811, %v1811
        %v1813 = vpack.c.bf16 %v1603, %v1603
        %v1815 = vsel %vm1691, %v1812, 0
        %v1818 = vsel %vm1711, %v1813, 0
        %1820 = vmatprep.subr.bf16.mxu0 0
        %1821 = vmatpush1.bf16.msra.mxu0 %v1818
        %1822 = vmatprep.subr.bf16.mxu0 0
        %1823 = vmatpush1.bf16.msra.mxu0 0
        %1824 = vmatprep.subr.bf16.mxu0 0
        %1825 = vmatpush1.bf16.msra.mxu0 0
        %1826 = vmatprep.subr.bf16.mxu0 0
        %1827 = vmatpush1.bf16.msra.mxu0 0
        %1828 = vmatprep.subr.bf16.mxu0 0
        %1829 = vmatpush1.bf16.msra.mxu0 0
        %1830 = vmatprep.subr.bf16.mxu0 0
        %1831 = vmatpush1.bf16.msra.mxu0 0
        %1832 = vmatprep.subr.bf16.mxu0 0
        %1833 = vmatpush1.bf16.msra.mxu0 0
        %1834 = vmatprep.subr.bf16.mxu0 0
        %1835 = vmatpush1.bf16.msra.mxu0 0
        %1836 = vmatprep.subr.bf16.mxu0 0
        %1837 = vmatpush1.bf16.msra.mxu0 0
        %1838 = vmatprep.subr.bf16.mxu0 0
        %1839 = vmatpush1.bf16.msra.mxu0 0
        %1840 = vmatprep.subr.bf16.mxu0 0
        %1841 = vmatpush1.bf16.msra.mxu0 0
        %1842 = vmatprep.subr.bf16.mxu0 0
        %1843 = vmatpush1.bf16.msra.mxu0 0
        %1844 = vmatprep.subr.bf16.mxu0 0
        %1845 = vmatpush1.bf16.msra.mxu0 0
        %1846 = vmatprep.subr.bf16.mxu0 0
        %1847 = vmatpush1.bf16.msra.mxu0 0
        %1848 = vmatprep.subr.bf16.mxu0 0
        %1849 = vmatpush1.bf16.msra.mxu0 0
        %1850 = vmatprep.subr.bf16.mxu0 0
        %1851 = vmatpush1.bf16.msra.mxu0 0
        %1852 = vmatprep.mubr.bf16.mxu0 0
        %1853 = vmatmul.mubr.bf16.gmra.mrb[0].mxu0 %v1815
        %v1854 = vpop.f32.mrb[0].mxu0
        %v1855 = vadd.f32 0.0, %v1854
        %v1856 = vpop.f32.mrb[0].mxu0
        %v1857 = vpop.f32.mrb[0].mxu0
        %v1858 = vpop.f32.mrb[0].mxu0
        %1859 = vdwg.mxu0
        %v1860 = vpack.c.bf16 %v1301, %v1301
        %v1861 = vpack.c.bf16 %v1560, %v1560
        %1862 = vmatprep.subr.bf16.mxu0 0
        %1863 = vmatpush1.bf16.xpose.msra.mxu0 %v1861
        %1864 = vmatprep.subr.bf16.mxu0 0
        %1865 = vmatpush1.bf16.xpose.msra.mxu0 0
        %1866 = vmatprep.subr.bf16.mxu0 0
        %1867 = vmatpush1.bf16.xpose.msra.mxu0 0
        %1868 = vmatprep.subr.bf16.mxu0 0
        %1869 = vmatpush1.bf16.xpose.msra.mxu0 0
        %1870 = vmatprep.subr.bf16.mxu0 0
        %1871 = vmatpush1.bf16.xpose.msra.mxu0 0
        %1872 = vmatprep.subr.bf16.mxu0 0
        %1873 = vmatpush1.bf16.xpose.msra.mxu0 0
        %1874 = vmatprep.subr.bf16.mxu0 0
        %1875 = vmatpush1.bf16.xpose.msra.mxu0 0
        %1876 = vmatprep.subr.bf16.mxu0 0
        %1877 = vmatpush1.bf16.xpose.msra.mxu0 0
        %1878 = vmatprep.subr.bf16.mxu0 0
        %1879 = vmatpush1.bf16.xpose.msra.mxu0 0
        %1880 = vmatprep.subr.bf16.mxu0 0
        %1881 = vmatpush1.bf16.xpose.msra.mxu0 0
        %1882 = vmatprep.subr.bf16.mxu0 0
        %1883 = vmatpush1.bf16.xpose.msra.mxu0 0
        %1884 = vmatprep.subr.bf16.mxu0 0
        %1885 = vmatpush1.bf16.xpose.msra.mxu0 0
        %1886 = vmatprep.subr.bf16.mxu0 0
        %1887 = vmatpush1.bf16.xpose.msra.mxu0 0
        %1888 = vmatprep.subr.bf16.mxu0 0
        %1889 = vmatpush1.bf16.xpose.msra.mxu0 0
        %1890 = vmatprep.subr.bf16.mxu0 0
        %1891 = vmatpush1.bf16.xpose.msra.mxu0 0
        %1892 = vmatprep.subr.bf16.mxu0 0
        %1893 = vmatpush1.bf16.xpose.msra.mxu0 0
        %1894 = vmatprep.mubr.bf16.mxu0 0
        %1895 = vmatmul.mubr.bf16.gmra.mrb[0].mxu0 %v1860
        %v1896 = vpop.f32.mrb[0].mxu0
        %v1897 = vadd.f32 0.0, %v1896
        %v1898 = vpop.f32.mrb[0].mxu0
        %v1899 = vpop.f32.mrb[0].mxu0
        %v1900 = vpop.f32.mrb[0].mxu0
        %1901 = vdwg.mxu0
        %v1902 = vmul.f32 %v1897, 0.35355338
        %v1903 = vsel %vm1691, %v1902, -inf
        %1904 = vmax.xlane.f32.xlu0 %v1903
        %v1905 = vpop.xlane.xlu0 %1904
        %v1906 = vsub.f32 %v1902, %v1905
        %v1907 = vmul.f32 %v1906, 1.442695
        %v1908 = vpow.pop %v1907
        %v1909 = vsel %vm1691, %v1908, 0.0
        %1910 = vadd.xlane.f32.xlu0 %v1909
        %v1911 = vpop.xlane.xlu0 %1910
        %v1912 = vrcp.pop %v1911
        %v1913 = vmul.f32 %v1911, %v1912
        %v1914 = vsub.f32 2.0, %v1913
        %v1915 = vmul.f32 %v1912, %v1914
        %v1916 = vmul.f32 %v1908, %v1915
        %v1917 = vpack.c.bf16 %v1916, %v1916
        %v1918 = vpack.c.bf16 %v1642, %v1642
        %v1920 = vsel %vm1691, %v1917, 0
        %v1923 = vsel %vm1711, %v1918, 0
        %1925 = vmatprep.subr.bf16.mxu0 0
        %1926 = vmatpush1.bf16.msra.mxu0 %v1923
        %1927 = vmatprep.subr.bf16.mxu0 0
        %1928 = vmatpush1.bf16.msra.mxu0 0
        %1929 = vmatprep.subr.bf16.mxu0 0
        %1930 = vmatpush1.bf16.msra.mxu0 0
        %1931 = vmatprep.subr.bf16.mxu0 0
        %1932 = vmatpush1.bf16.msra.mxu0 0
        %1933 = vmatprep.subr.bf16.mxu0 0
        %1934 = vmatpush1.bf16.msra.mxu0 0
        %1935 = vmatprep.subr.bf16.mxu0 0
        %1936 = vmatpush1.bf16.msra.mxu0 0
        %1937 = vmatprep.subr.bf16.mxu0 0
        %1938 = vmatpush1.bf16.msra.mxu0 0
        %1939 = vmatprep.subr.bf16.mxu0 0
        %1940 = vmatpush1.bf16.msra.mxu0 0
        %1941 = vmatprep.subr.bf16.mxu0 0
        %1942 = vmatpush1.bf16.msra.mxu0 0
        %1943 = vmatprep.subr.bf16.mxu0 0
        %1944 = vmatpush1.bf16.msra.mxu0 0
        %1945 = vmatprep.subr.bf16.mxu0 0
        %1946 = vmatpush1.bf16.msra.mxu0 0
        %1947 = vmatprep.subr.bf16.mxu0 0
        %1948 = vmatpush1.bf16.msra.mxu0 0
        %1949 = vmatprep.subr.bf16.mxu0 0
        %1950 = vmatpush1.bf16.msra.mxu0 0
        %1951 = vmatprep.subr.bf16.mxu0 0
        %1952 = vmatpush1.bf16.msra.mxu0 0
        %1953 = vmatprep.subr.bf16.mxu0 0
        %1954 = vmatpush1.bf16.msra.mxu0 0
        %1955 = vmatprep.subr.bf16.mxu0 0
        %1956 = vmatpush1.bf16.msra.mxu0 0
        %1957 = vmatprep.mubr.bf16.mxu0 0
        %1958 = vmatmul.mubr.bf16.gmra.mrb[0].mxu0 %v1920
        %v1959 = vpop.f32.mrb[0].mxu0
        %v1960 = vadd.f32 0.0, %v1959
        %v1961 = vpop.f32.mrb[0].mxu0
        %v1962 = vpop.f32.mrb[0].mxu0
        %v1963 = vpop.f32.mrb[0].mxu0
        %1964 = vdwg.mxu0
        %v1965 = vpack.c.bf16 %v1303, %v1303
        %v1966 = vpack.c.bf16 %v1562, %v1562
        %1967 = vmatprep.subr.bf16.mxu0 0
        %1968 = vmatpush1.bf16.xpose.msra.mxu0 %v1966
        %1969 = vmatprep.subr.bf16.mxu0 0
        %1970 = vmatpush1.bf16.xpose.msra.mxu0 0
        %1971 = vmatprep.subr.bf16.mxu0 0
        %1972 = vmatpush1.bf16.xpose.msra.mxu0 0
        %1973 = vmatprep.subr.bf16.mxu0 0
        %1974 = vmatpush1.bf16.xpose.msra.mxu0 0
        %1975 = vmatprep.subr.bf16.mxu0 0
        %1976 = vmatpush1.bf16.xpose.msra.mxu0 0
        %1977 = vmatprep.subr.bf16.mxu0 0
        %1978 = vmatpush1.bf16.xpose.msra.mxu0 0
        %1979 = vmatprep.subr.bf16.mxu0 0
        %1980 = vmatpush1.bf16.xpose.msra.mxu0 0
        %1981 = vmatprep.subr.bf16.mxu0 0
        %1982 = vmatpush1.bf16.xpose.msra.mxu0 0
        %1983 = vmatprep.subr.bf16.mxu0 0
        %1984 = vmatpush1.bf16.xpose.msra.mxu0 0
        %1985 = vmatprep.subr.bf16.mxu0 0
        %1986 = vmatpush1.bf16.xpose.msra.mxu0 0
        %1987 = vmatprep.subr.bf16.mxu0 0
        %1988 = vmatpush1.bf16.xpose.msra.mxu0 0
        %1989 = vmatprep.subr.bf16.mxu0 0
        %1990 = vmatpush1.bf16.xpose.msra.mxu0 0
        %1991 = vmatprep.subr.bf16.mxu0 0
        %1992 = vmatpush1.bf16.xpose.msra.mxu0 0
        %1993 = vmatprep.subr.bf16.mxu0 0
        %1994 = vmatpush1.bf16.xpose.msra.mxu0 0
        %1995 = vmatprep.subr.bf16.mxu0 0
        %1996 = vmatpush1.bf16.xpose.msra.mxu0 0
        %1997 = vmatprep.subr.bf16.mxu0 0
        %1998 = vmatpush1.bf16.xpose.msra.mxu0 0
        %1999 = vmatprep.mubr.bf16.mxu0 0
        %2000 = vmatmul.mubr.bf16.gmra.mrb[0].mxu0 %v1965
        %v2001 = vpop.f32.mrb[0].mxu0
        %v2002 = vadd.f32 0.0, %v2001
        %v2003 = vpop.f32.mrb[0].mxu0
        %v2004 = vpop.f32.mrb[0].mxu0
        %v2005 = vpop.f32.mrb[0].mxu0
        %2006 = vdwg.mxu0
        %v2007 = vmul.f32 %v2002, 0.35355338
        %v2008 = vsel %vm1691, %v2007, -inf
        %2009 = vmax.xlane.f32.xlu0 %v2008
        %v2010 = vpop.xlane.xlu0 %2009
        %v2011 = vsub.f32 %v2007, %v2010
        %v2012 = vmul.f32 %v2011, 1.442695
        %v2013 = vpow.pop %v2012
        %v2014 = vsel %vm1691, %v2013, 0.0
        %2015 = vadd.xlane.f32.xlu0 %v2014
        %v2016 = vpop.xlane.xlu0 %2015
        %v2017 = vrcp.pop %v2016
        %v2018 = vmul.f32 %v2016, %v2017
        %v2019 = vsub.f32 2.0, %v2018
        %v2020 = vmul.f32 %v2017, %v2019
        %v2021 = vmul.f32 %v2013, %v2020
        %v2022 = vpack.c.bf16 %v2021, %v2021
        %v2023 = vpack.c.bf16 %v1644, %v1644
        %v2025 = vsel %vm1691, %v2022, 0
        %v2028 = vsel %vm1711, %v2023, 0
        %2030 = vmatprep.subr.bf16.mxu0 0
        %2031 = vmatpush1.bf16.msra.mxu0 %v2028
        %2032 = vmatprep.subr.bf16.mxu0 0
        %2033 = vmatpush1.bf16.msra.mxu0 0
        %2034 = vmatprep.subr.bf16.mxu0 0
        %2035 = vmatpush1.bf16.msra.mxu0 0
        %2036 = vmatprep.subr.bf16.mxu0 0
        %2037 = vmatpush1.bf16.msra.mxu0 0
        %2038 = vmatprep.subr.bf16.mxu0 0
        %2039 = vmatpush1.bf16.msra.mxu0 0
        %2040 = vmatprep.subr.bf16.mxu0 0
        %2041 = vmatpush1.bf16.msra.mxu0 0
        %2042 = vmatprep.subr.bf16.mxu0 0
        %2043 = vmatpush1.bf16.msra.mxu0 0
        %2044 = vmatprep.subr.bf16.mxu0 0
        %2045 = vmatpush1.bf16.msra.mxu0 0
        %2046 = vmatprep.subr.bf16.mxu0 0
        %2047 = vmatpush1.bf16.msra.mxu0 0
        %2048 = vmatprep.subr.bf16.mxu0 0
        %2049 = vmatpush1.bf16.msra.mxu0 0
        %2050 = vmatprep.subr.bf16.mxu0 0
        %2051 = vmatpush1.bf16.msra.mxu0 0
        %2052 = vmatprep.subr.bf16.mxu0 0
        %2053 = vmatpush1.bf16.msra.mxu0 0
        %2054 = vmatprep.subr.bf16.mxu0 0
        %2055 = vmatpush1.bf16.msra.mxu0 0
        %2056 = vmatprep.subr.bf16.mxu0 0
        %2057 = vmatpush1.bf16.msra.mxu0 0
        %2058 = vmatprep.subr.bf16.mxu0 0
        %2059 = vmatpush1.bf16.msra.mxu0 0
        %2060 = vmatprep.subr.bf16.mxu0 0
        %2061 = vmatpush1.bf16.msra.mxu0 0
        %2062 = vmatprep.mubr.bf16.mxu0 0
        %2063 = vmatmul.mubr.bf16.gmra.mrb[0].mxu0 %v2025
        %v2064 = vpop.f32.mrb[0].mxu0
        %v2065 = vadd.f32 0.0, %v2064
        %v2066 = vpop.f32.mrb[0].mxu0
        %v2067 = vpop.f32.mrb[0].mxu0
        %v2068 = vpop.f32.mrb[0].mxu0
        %2069 = vdwg.mxu0
        %v2070 = vld [vmem:[#allocation14] sm:$0xf]
        %v2071 = vld [vmem:[#allocation14 + $0x4] sm:$0xf]
        %v2072 = vld [vmem:[#allocation14 + $0x8] sm:$0xf]
        %v2073 = vld [vmem:[#allocation14 + $0xc] sm:$0xf]
        %v2074 = vld [vmem:[#allocation14 + $0x10] sm:$0xf]
        %v2075 = vld [vmem:[#allocation14 + $0x14] sm:$0xf]
        %v2076 = vld [vmem:[#allocation14 + $0x18] sm:$0xf]
        %v2077 = vld [vmem:[#allocation14 + $0x1c] sm:$0xf]
        %v2078 = vld [vmem:[#allocation14 + $0x20] sm:$0xf]
        %v2079 = vld [vmem:[#allocation14 + $0x24] sm:$0xf]
        %v2080 = vld [vmem:[#allocation14 + $0x28] sm:$0xf]
        %v2081 = vld [vmem:[#allocation14 + $0x2c] sm:$0xf]
        %v2082 = vld [vmem:[#allocation14 + $0x30] sm:$0xf]
        %v2083 = vld [vmem:[#allocation14 + $0x34] sm:$0xf]
        %v2084 = vld [vmem:[#allocation14 + $0x38] sm:$0xf]
        %v2085 = vld [vmem:[#allocation14 + $0x3c] sm:$0xf]
        %v2086 = vld [vmem:[#allocation14 + $0x40] sm:$0xf]
        %v2087 = vld [vmem:[#allocation14 + $0x44] sm:$0xf]
        %v2088 = vld [vmem:[#allocation14 + $0x48] sm:$0xf]
        %v2089 = vld [vmem:[#allocation14 + $0x4c] sm:$0xf]
        %v2090 = vld [vmem:[#allocation14 + $0x50] sm:$0xf]
        %v2091 = vld [vmem:[#allocation14 + $0x54] sm:$0xf]
        %v2092 = vld [vmem:[#allocation14 + $0x58] sm:$0xf]
        %v2093 = vld [vmem:[#allocation14 + $0x5c] sm:$0xf]
        %v2094 = vld [vmem:[#allocation14 + $0x60] sm:$0xf]
        %v2095 = vld [vmem:[#allocation14 + $0x64] sm:$0xf]
        %v2096 = vld [vmem:[#allocation14 + $0x68] sm:$0xf]
        %v2097 = vld [vmem:[#allocation14 + $0x6c] sm:$0xf]
        %v2098 = vld [vmem:[#allocation14 + $0x70] sm:$0xf]
        %v2099 = vld [vmem:[#allocation14 + $0x74] sm:$0xf]
        %v2100 = vld [vmem:[#allocation14 + $0x78] sm:$0xf]
        %v2101 = vld [vmem:[#allocation14 + $0x7c] sm:$0xf]
        %v2102 = vld [vmem:[#allocation14 + $0x80] sm:$0xf]
        %v2103 = vld [vmem:[#allocation14 + $0x84] sm:$0xf]
        %v2104 = vld [vmem:[#allocation14 + $0x88] sm:$0xf]
        %v2105 = vld [vmem:[#allocation14 + $0x8c] sm:$0xf]
        %v2106 = vld [vmem:[#allocation14 + $0x90] sm:$0xf]
        %v2107 = vld [vmem:[#allocation14 + $0x94] sm:$0xf]
        %v2108 = vld [vmem:[#allocation14 + $0x98] sm:$0xf]
        %v2109 = vld [vmem:[#allocation14 + $0x9c] sm:$0xf]
        %v2110 = vld [vmem:[#allocation14 + $0xa0] sm:$0xf]
        %v2111 = vld [vmem:[#allocation14 + $0xa4] sm:$0xf]
        %v2112 = vld [vmem:[#allocation14 + $0xa8] sm:$0xf]
        %v2113 = vld [vmem:[#allocation14 + $0xac] sm:$0xf]
        %v2114 = vld [vmem:[#allocation14 + $0xb0] sm:$0xf]
        %v2115 = vld [vmem:[#allocation14 + $0xb4] sm:$0xf]
        %v2116 = vld [vmem:[#allocation14 + $0xb8] sm:$0xf]
        %v2117 = vld [vmem:[#allocation14 + $0xbc] sm:$0xf]
        %v2118 = vld [vmem:[#allocation14 + $0xc0] sm:$0xf]
        %v2119 = vld [vmem:[#allocation14 + $0xc4] sm:$0xf]
        %v2120 = vld [vmem:[#allocation14 + $0xc8] sm:$0xf]
        %v2121 = vld [vmem:[#allocation14 + $0xcc] sm:$0xf]
        %v2122 = vld [vmem:[#allocation14 + $0xd0] sm:$0xf]
        %v2123 = vld [vmem:[#allocation14 + $0xd4] sm:$0xf]
        %v2124 = vld [vmem:[#allocation14 + $0xd8] sm:$0xf]
        %v2125 = vld [vmem:[#allocation14 + $0xdc] sm:$0xf]
        %v2126 = vld [vmem:[#allocation14 + $0xe0] sm:$0xf]
        %v2127 = vld [vmem:[#allocation14 + $0xe4] sm:$0xf]
        %v2128 = vld [vmem:[#allocation14 + $0xe8] sm:$0xf]
        %v2129 = vld [vmem:[#allocation14 + $0xec] sm:$0xf]
        %v2130 = vld [vmem:[#allocation14 + $0xf0] sm:$0xf]
        %v2131 = vld [vmem:[#allocation14 + $0xf4] sm:$0xf]
        %v2132 = vld [vmem:[#allocation14 + $0xf8] sm:$0xf]
        %v2133 = vld [vmem:[#allocation14 + $0xfc] sm:$0xf]
        %v2134 = vpack.c.bf16 %v1750, %v1750
        %v2135 = vpack.c.bf16 %v1855, %v1855
        %v2136 = vpack.c.bf16 %v1960, %v1960
        %v2137 = vpack.c.bf16 %v2065, %v2065
        %v2138 = vld [vmem:[#allocation15] sm:$0x1]
        %v2139 = vunpack.c.l.bf16 %v2138
        %v2140 = vlaneseq
        %v2141 = vshrl.u32 %v2140, 7
        %v2142 = vsub.s32 0, %v2141
        %v2143 = vrot.slane %v2139, %v2142
        %v2208 = vunpack.c.l.b16 %v2070
        %v2209 = vunpack.c.l.b16 %v2071
        %v2210 = vunpack.c.l.b16 %v2072
        %v2211 = vunpack.c.l.b16 %v2073
        %v2212 = vunpack.c.l.b16 %v2074
        %v2213 = vunpack.c.l.b16 %v2075
        %v2214 = vunpack.c.l.b16 %v2076
        %v2215 = vunpack.c.l.b16 %v2077
        %v2216 = vunpack.c.l.b16 %v2078
        %v2217 = vunpack.c.l.b16 %v2079
        %v2218 = vunpack.c.l.b16 %v2080
        %v2219 = vunpack.c.l.b16 %v2081
        %v2220 = vunpack.c.l.b16 %v2082
        %v2221 = vunpack.c.l.b16 %v2083
        %v2222 = vunpack.c.l.b16 %v2084
        %v2223 = vunpack.c.l.b16 %v2085
        %v2224 = vunpack.c.l.b16 %v2086
        %v2225 = vunpack.c.l.b16 %v2087
        %v2226 = vunpack.c.l.b16 %v2088
        %v2227 = vunpack.c.l.b16 %v2089
        %v2228 = vunpack.c.l.b16 %v2090
        %v2229 = vunpack.c.l.b16 %v2091
        %v2230 = vunpack.c.l.b16 %v2092
        %v2231 = vunpack.c.l.b16 %v2093
        %v2232 = vunpack.c.l.b16 %v2094
        %v2233 = vunpack.c.l.b16 %v2095
        %v2234 = vunpack.c.l.b16 %v2096
        %v2235 = vunpack.c.l.b16 %v2097
        %v2236 = vunpack.c.l.b16 %v2098
        %v2237 = vunpack.c.l.b16 %v2099
        %v2238 = vunpack.c.l.b16 %v2100
        %v2239 = vunpack.c.l.b16 %v2101
        %v2240 = vunpack.c.l.b16 %v2102
        %v2241 = vunpack.c.l.b16 %v2103
        %v2242 = vunpack.c.l.b16 %v2104
        %v2243 = vunpack.c.l.b16 %v2105
        %v2244 = vunpack.c.l.b16 %v2106
        %v2245 = vunpack.c.l.b16 %v2107
        %v2246 = vunpack.c.l.b16 %v2108
        %v2247 = vunpack.c.l.b16 %v2109
        %v2248 = vunpack.c.l.b16 %v2110
        %v2249 = vunpack.c.l.b16 %v2111
        %v2250 = vunpack.c.l.b16 %v2112
        %v2251 = vunpack.c.l.b16 %v2113
        %v2252 = vunpack.c.l.b16 %v2114
        %v2253 = vunpack.c.l.b16 %v2115
        %v2254 = vunpack.c.l.b16 %v2116
        %v2255 = vunpack.c.l.b16 %v2117
        %v2256 = vunpack.c.l.b16 %v2118
        %v2257 = vunpack.c.l.b16 %v2119
        %v2258 = vunpack.c.l.b16 %v2120
        %v2259 = vunpack.c.l.b16 %v2121
        %v2260 = vunpack.c.l.b16 %v2122
        %v2261 = vunpack.c.l.b16 %v2123
        %v2262 = vunpack.c.l.b16 %v2124
        %v2263 = vunpack.c.l.b16 %v2125
        %v2264 = vunpack.c.l.b16 %v2126
        %v2265 = vunpack.c.l.b16 %v2127
        %v2266 = vunpack.c.l.b16 %v2128
        %v2267 = vunpack.c.l.b16 %v2129
        %v2268 = vunpack.c.l.b16 %v2130
        %v2269 = vunpack.c.l.b16 %v2131
        %v2270 = vunpack.c.l.b16 %v2132
        %v2271 = vunpack.c.l.b16 %v2133
        %v2272 = vpack.c.b16 %v2209, %v2208
        %v2273 = vpack.c.b16 %v2211, %v2210
        %v2274 = vpack.c.b16 %v2213, %v2212
        %v2275 = vpack.c.b16 %v2215, %v2214
        %v2276 = vpack.c.b16 %v2217, %v2216
        %v2277 = vpack.c.b16 %v2219, %v2218
        %v2278 = vpack.c.b16 %v2221, %v2220
        %v2279 = vpack.c.b16 %v2223, %v2222
        %v2280 = vpack.c.b16 %v2225, %v2224
        %v2281 = vpack.c.b16 %v2227, %v2226
        %v2282 = vpack.c.b16 %v2229, %v2228
        %v2283 = vpack.c.b16 %v2231, %v2230
        %v2284 = vpack.c.b16 %v2233, %v2232
        %v2285 = vpack.c.b16 %v2235, %v2234
        %v2286 = vpack.c.b16 %v2237, %v2236
        %v2287 = vpack.c.b16 %v2239, %v2238
        %v2288 = vpack.c.b16 %v2241, %v2240
        %v2289 = vpack.c.b16 %v2243, %v2242
        %v2290 = vpack.c.b16 %v2245, %v2244
        %v2291 = vpack.c.b16 %v2247, %v2246
        %v2292 = vpack.c.b16 %v2249, %v2248
        %v2293 = vpack.c.b16 %v2251, %v2250
        %v2294 = vpack.c.b16 %v2253, %v2252
        %v2295 = vpack.c.b16 %v2255, %v2254
        %v2296 = vpack.c.b16 %v2257, %v2256
        %v2297 = vpack.c.b16 %v2259, %v2258
        %v2298 = vpack.c.b16 %v2261, %v2260
        %v2299 = vpack.c.b16 %v2263, %v2262
        %v2300 = vpack.c.b16 %v2265, %v2264
        %v2301 = vpack.c.b16 %v2267, %v2266
        %v2302 = vpack.c.b16 %v2269, %v2268
        %v2303 = vpack.c.b16 %v2271, %v2270
        %2336 = vmatprep.subr.bf16.mxu0 0
        %2337 = vmatpush1.bf16.msra.mxu0 %v2272
        %2338 = vmatprep.subr.bf16.mxu0 0
        %2339 = vmatpush1.bf16.msra.mxu0 %v2273
        %2340 = vmatprep.subr.bf16.mxu0 0
        %2341 = vmatpush1.bf16.msra.mxu0 %v2274
        %2342 = vmatprep.subr.bf16.mxu0 0
        %2343 = vmatpush1.bf16.msra.mxu0 %v2275
        %2344 = vmatprep.subr.bf16.mxu0 0
        %2345 = vmatpush1.bf16.msra.mxu0 %v2276
        %2346 = vmatprep.subr.bf16.mxu0 0
        %2347 = vmatpush1.bf16.msra.mxu0 %v2277
        %2348 = vmatprep.subr.bf16.mxu0 0
        %2349 = vmatpush1.bf16.msra.mxu0 %v2278
        %2350 = vmatprep.subr.bf16.mxu0 0
        %2351 = vmatpush1.bf16.msra.mxu0 %v2279
        %2352 = vmatprep.subr.bf16.mxu0 0
        %2353 = vmatpush1.bf16.msra.mxu0 %v2280
        %2354 = vmatprep.subr.bf16.mxu0 0
        %2355 = vmatpush1.bf16.msra.mxu0 %v2281
        %2356 = vmatprep.subr.bf16.mxu0 0
        %2357 = vmatpush1.bf16.msra.mxu0 %v2282
        %2358 = vmatprep.subr.bf16.mxu0 0
        %2359 = vmatpush1.bf16.msra.mxu0 %v2283
        %2360 = vmatprep.subr.bf16.mxu0 0
        %2361 = vmatpush1.bf16.msra.mxu0 %v2284
        %2362 = vmatprep.subr.bf16.mxu0 0
        %2363 = vmatpush1.bf16.msra.mxu0 %v2285
        %2364 = vmatprep.subr.bf16.mxu0 0
        %2365 = vmatpush1.bf16.msra.mxu0 %v2286
        %2366 = vmatprep.subr.bf16.mxu0 0
        %2367 = vmatpush1.bf16.msra.mxu0 %v2287
        %2368 = vmatprep.mubr.bf16.mxu0 %v2135
        %2369 = vmatmul.mubr.bf16.gmra.mrb[0].mxu0 %v2134
        %v2370 = vpop.f32.mrb[0].mxu0
        %v2371 = vadd.f32 %v2143, %v2370
        %v2372 = vpop.f32.mrb[0].mxu0
        %v2373 = vpop.f32.mrb[0].mxu0
        %v2374 = vpop.f32.mrb[0].mxu0
        %2375 = vdwg.mxu0
        %2376 = vmatprep.subr.bf16.mxu0 0
        %2377 = vmatpush1.bf16.msra.mxu0 %v2288
        %2378 = vmatprep.subr.bf16.mxu0 0
        %2379 = vmatpush1.bf16.msra.mxu0 %v2289
        %2380 = vmatprep.subr.bf16.mxu0 0
        %2381 = vmatpush1.bf16.msra.mxu0 %v2290
        %2382 = vmatprep.subr.bf16.mxu0 0
        %2383 = vmatpush1.bf16.msra.mxu0 %v2291
        %2384 = vmatprep.subr.bf16.mxu0 0
        %2385 = vmatpush1.bf16.msra.mxu0 %v2292
        %2386 = vmatprep.subr.bf16.mxu0 0
        %2387 = vmatpush1.bf16.msra.mxu0 %v2293
        %2388 = vmatprep.subr.bf16.mxu0 0
        %2389 = vmatpush1.bf16.msra.mxu0 %v2294
        %2390 = vmatprep.subr.bf16.mxu0 0
        %2391 = vmatpush1.bf16.msra.mxu0 %v2295
        %2392 = vmatprep.subr.bf16.mxu0 0
        %2393 = vmatpush1.bf16.msra.mxu0 %v2296
        %2394 = vmatprep.subr.bf16.mxu0 0
        %2395 = vmatpush1.bf16.msra.mxu0 %v2297
        %2396 = vmatprep.subr.bf16.mxu0 0
        %2397 = vmatpush1.bf16.msra.mxu0 %v2298
        %2398 = vmatprep.subr.bf16.mxu0 0
        %2399 = vmatpush1.bf16.msra.mxu0 %v2299
        %2400 = vmatprep.subr.bf16.mxu0 0
        %2401 = vmatpush1.bf16.msra.mxu0 %v2300
        %2402 = vmatprep.subr.bf16.mxu0 0
        %2403 = vmatpush1.bf16.msra.mxu0 %v2301
        %2404 = vmatprep.subr.bf16.mxu0 0
        %2405 = vmatpush1.bf16.msra.mxu0 %v2302
        %2406 = vmatprep.subr.bf16.mxu0 0
        %2407 = vmatpush1.bf16.msra.mxu0 %v2303
        %2408 = vmatprep.mubr.bf16.mxu0 %v2137
        %2409 = vmatmul.mubr.bf16.gmra.mrb[0].mxu0 %v2136
        %v2410 = vpop.f32.mrb[0].mxu0
        %v2411 = vadd.f32 %v2371, %v2410
        %v2412 = vpop.f32.mrb[0].mxu0
        %v2413 = vpop.f32.mrb[0].mxu0
        %v2414 = vpop.f32.mrb[0].mxu0
        %2415 = vdwg.mxu0
        %v2416 = vadd.f32 %v1133, %v2411
        %v2417 = vld [vmem:[#allocation17] sm:$0x1]
        %v2418 = vld [vmem:[#allocation18] sm:$0x1]
        %v2419 = vsel %vm1078, %v2416, 0.0
        %2420 = vadd.xlane.f32.xlu0 %v2419
        %v2421 = vpop.xlane.xlu0 %2420
        %v2422 = vrcp.pop 32.0
        %v2423 = vmul.f32 %v2421, %v2422
        %v2424 = vsub.f32 %v2416, %v2423
        %v2425 = vmul.f32 %v2424, %v2424
        %v2426 = vsel %vm1078, %v2425, 0.0
        %2427 = vadd.xlane.f32.xlu0 %v2426
        %v2428 = vpop.xlane.xlu0 %2427
        %v2429 = vmul.f32 %v2428, %v2422
        %v2430 = vadd.f32 %v2429, 1e-05
        %v2431 = vrsqrt.pop %v2430
        %v2432 = vmul.f32 %v2424, %v2431
        %v2433 = vunpack.c.l.bf16 %v2417
        %v2434 = vlaneseq
        %v2435 = vshrl.u32 %v2434, 7
        %v2436 = vsub.s32 0, %v2435
        %v2437 = vrot.slane %v2433, %v2436
        %v2438 = vmul.f32 %v2432, %v2437
        %v2439 = vunpack.c.l.bf16 %v2418
        %v2440 = vlaneseq
        %v2441 = vshrl.u32 %v2440, 7
        %v2442 = vsub.s32 0, %v2441
        %v2443 = vrot.slane %v2439, %v2442
        %v2444 = vadd.f32 %v2438, %v2443
        %v2445 = vld [vmem:[#allocation20] sm:$0xf]
        %v2446 = vld [vmem:[#allocation20 + $0x4] sm:$0xf]
        %v2447 = vld [vmem:[#allocation20 + $0x8] sm:$0xf]
        %v2448 = vld [vmem:[#allocation20 + $0xc] sm:$0xf]
        %v2449 = vpack.c.bf16 %v2444, %v2444
        %v2450 = vld [vmem:[#allocation21] sm:$0x1]
        %v2451 = vunpack.c.l.bf16 %v2450
        %v2452 = vlaneseq
        %v2453 = vshrl.u32 %v2452, 7
        %v2454 = vsub.s32 0, %v2453
        %v2455 = vrot.slane %v2451, %v2454
        %v2460 = vunpack.c.l.b16 %v2445
        %v2461 = vunpack.c.l.b16 %v2446
        %v2462 = vunpack.c.l.b16 %v2447
        %v2463 = vunpack.c.l.b16 %v2448
        %v2464 = vpack.c.b16 %v2461, %v2460
        %v2465 = vpack.c.b16 %v2463, %v2462
        %v2469 = vsel %vm1078, %v2449, 0
        %2471 = vmatprep.subr.bf16.mxu0 0
        %2472 = vmatpush1.bf16.msra.mxu0 %v2464
        %2473 = vmatprep.subr.bf16.mxu0 0
        %2474 = vmatpush1.bf16.msra.mxu0 %v2465
        %2475 = vmatprep.subr.bf16.mxu0 0
        %2476 = vmatpush1.bf16.msra.mxu0 0
        %2477 = vmatprep.subr.bf16.mxu0 0
        %2478 = vmatpush1.bf16.msra.mxu0 0
        %2479 = vmatprep.subr.bf16.mxu0 0
        %2480 = vmatpush1.bf16.msra.mxu0 0
        %2481 = vmatprep.subr.bf16.mxu0 0
        %2482 = vmatpush1.bf16.msra.mxu0 0
        %2483 = vmatprep.subr.bf16.mxu0 0
        %2484 = vmatpush1.bf16.msra.mxu0 0
        %2485 = vmatprep.subr.bf16.mxu0 0
        %2486 = vmatpush1.bf16.msra.mxu0 0
        %2487 = vmatprep.subr.bf16.mxu0 0
        %2488 = vmatpush1.bf16.msra.mxu0 0
        %2489 = vmatprep.subr.bf16.mxu0 0
        %2490 = vmatpush1.bf16.msra.mxu0 0
        %2491 = vmatprep.subr.bf16.mxu0 0
        %2492 = vmatpush1.bf16.msra.mxu0 0
        %2493 = vmatprep.subr.bf16.mxu0 0
        %2494 = vmatpush1.bf16.msra.mxu0 0
        %2495 = vmatprep.subr.bf16.mxu0 0
        %2496 = vmatpush1.bf16.msra.mxu0 0
        %2497 = vmatprep.subr.bf16.mxu0 0
        %2498 = vmatpush1.bf16.msra.mxu0 0
        %2499 = vmatprep.subr.bf16.mxu0 0
        %2500 = vmatpush1.bf16.msra.mxu0 0
        %2501 = vmatprep.subr.bf16.mxu0 0
        %2502 = vmatpush1.bf16.msra.mxu0 0
        %2503 = vmatprep.mubr.bf16.mxu0 0
        %2504 = vmatmul.mubr.bf16.gmra.mrb[0].mxu0 %v2469
        %v2505 = vpop.f32.mrb[0].mxu0
        %v2506 = vadd.f32 %v2455, %v2505
        %v2507 = vpop.f32.mrb[0].mxu0
        %v2508 = vpop.f32.mrb[0].mxu0
        %v2509 = vpop.f32.mrb[0].mxu0
        %2510 = vdwg.mxu0
        %v2511 = vmul.f32 %v2506, 0.5
        %v2512 = vmul.f32 %v2506, 0.70710677
        %v2513 = verf.f32.pop %v2512
        %v2514 = vadd.f32 %v2513, 1.0
        %v2515 = vmul.f32 %v2511, %v2514
        %v2516 = vld [vmem:[#allocation23] sm:$0xf]
        %v2517 = vld [vmem:[#allocation23 + $0x4] sm:$0xf]
        %v2518 = vld [vmem:[#allocation23 + $0x8] sm:$0xf]
        %v2519 = vld [vmem:[#allocation23 + $0xc] sm:$0xf]
        %v2520 = vld [vmem:[#allocation23 + $0x10] sm:$0xf]
        %v2521 = vld [vmem:[#allocation23 + $0x14] sm:$0xf]
        %v2522 = vld [vmem:[#allocation23 + $0x18] sm:$0xf]
        %v2523 = vld [vmem:[#allocation23 + $0x1c] sm:$0xf]
        %v2524 = vld [vmem:[#allocation23 + $0x20] sm:$0xf]
        %v2525 = vld [vmem:[#allocation23 + $0x24] sm:$0xf]
        %v2526 = vld [vmem:[#allocation23 + $0x28] sm:$0xf]
        %v2527 = vld [vmem:[#allocation23 + $0x2c] sm:$0xf]
        %v2528 = vld [vmem:[#allocation23 + $0x30] sm:$0xf]
        %v2529 = vld [vmem:[#allocation23 + $0x34] sm:$0xf]
        %v2530 = vld [vmem:[#allocation23 + $0x38] sm:$0xf]
        %v2531 = vld [vmem:[#allocation23 + $0x3c] sm:$0xf]
        %v2532 = vpack.c.bf16 %v2515, %v2515
        %v2533 = vld [vmem:[#allocation24] sm:$0x1]
        %v2534 = vunpack.c.l.bf16 %v2533
        %v2535 = vlaneseq
        %v2536 = vshrl.u32 %v2535, 7
        %v2537 = vsub.s32 0, %v2536
        %v2538 = vrot.slane %v2534, %v2537
        %v2555 = vunpack.c.l.b16 %v2516
        %v2556 = vunpack.c.l.b16 %v2517
        %v2557 = vunpack.c.l.b16 %v2518
        %v2558 = vunpack.c.l.b16 %v2519
        %v2559 = vunpack.c.l.b16 %v2520
        %v2560 = vunpack.c.l.b16 %v2521
        %v2561 = vunpack.c.l.b16 %v2522
        %v2562 = vunpack.c.l.b16 %v2523
        %v2563 = vunpack.c.l.b16 %v2524
        %v2564 = vunpack.c.l.b16 %v2525
        %v2565 = vunpack.c.l.b16 %v2526
        %v2566 = vunpack.c.l.b16 %v2527
        %v2567 = vunpack.c.l.b16 %v2528
        %v2568 = vunpack.c.l.b16 %v2529
        %v2569 = vunpack.c.l.b16 %v2530
        %v2570 = vunpack.c.l.b16 %v2531
        %v2571 = vpack.c.b16 %v2556, %v2555
        %v2572 = vpack.c.b16 %v2558, %v2557
        %v2573 = vpack.c.b16 %v2560, %v2559
        %v2574 = vpack.c.b16 %v2562, %v2561
        %v2575 = vpack.c.b16 %v2564, %v2563
        %v2576 = vpack.c.b16 %v2566, %v2565
        %v2577 = vpack.c.b16 %v2568, %v2567
        %v2578 = vpack.c.b16 %v2570, %v2569
        %2587 = vmatprep.subr.bf16.mxu0 0
        %2588 = vmatpush1.bf16.msra.mxu0 %v2571
        %2589 = vmatprep.subr.bf16.mxu0 0
        %2590 = vmatpush1.bf16.msra.mxu0 %v2572
        %2591 = vmatprep.subr.bf16.mxu0 0
        %2592 = vmatpush1.bf16.msra.mxu0 %v2573
        %2593 = vmatprep.subr.bf16.mxu0 0
        %2594 = vmatpush1.bf16.msra.mxu0 %v2574
        %2595 = vmatprep.subr.bf16.mxu0 0
        %2596 = vmatpush1.bf16.msra.mxu0 %v2575
        %2597 = vmatprep.subr.bf16.mxu0 0
        %2598 = vmatpush1.bf16.msra.mxu0 %v2576
        %2599 = vmatprep.subr.bf16.mxu0 0
        %2600 = vmatpush1.bf16.msra.mxu0 %v2577
        %2601 = vmatprep.subr.bf16.mxu0 0
        %2602 = vmatpush1.bf16.msra.mxu0 %v2578
        %2603 = vmatprep.subr.bf16.mxu0 0
        %2604 = vmatpush1.bf16.msra.mxu0 0
        %2605 = vmatprep.subr.bf16.mxu0 0
        %2606 = vmatpush1.bf16.msra.mxu0 0
        %2607 = vmatprep.subr.bf16.mxu0 0
        %2608 = vmatpush1.bf16.msra.mxu0 0
        %2609 = vmatprep.subr.bf16.mxu0 0
        %2610 = vmatpush1.bf16.msra.mxu0 0
        %2611 = vmatprep.subr.bf16.mxu0 0
        %2612 = vmatpush1.bf16.msra.mxu0 0
        %2613 = vmatprep.subr.bf16.mxu0 0
        %2614 = vmatpush1.bf16.msra.mxu0 0
        %2615 = vmatprep.subr.bf16.mxu0 0
        %2616 = vmatpush1.bf16.msra.mxu0 0
        %2617 = vmatprep.subr.bf16.mxu0 0
        %2618 = vmatpush1.bf16.msra.mxu0 0
        %2619 = vmatprep.mubr.bf16.mxu0 0
        %2620 = vmatmul.mubr.bf16.gmra.mrb[0].mxu0 %v2532
        %v2621 = vpop.f32.mrb[0].mxu0
        %v2622 = vadd.f32 %v2538, %v2621
        %v2623 = vpop.f32.mrb[0].mxu0
        %v2624 = vpop.f32.mrb[0].mxu0
        %v2625 = vpop.f32.mrb[0].mxu0
        %2626 = vdwg.mxu0
        %v2627 = vadd.f32 %v2444, %v2622
        %v2628 = vadd.f32 %v2627, %v1133
        %v2629 = vld [vmem:[#allocation26] sm:$0x1]
        %v2630 = vld [vmem:[#allocation27] sm:$0x1]
        %v2631 = vsel %vm1078, %v2628, 0.0
        %2632 = vadd.xlane.f32.xlu0 %v2631
        %v2633 = vpop.xlane.xlu0 %2632
        %v2634 = vmul.f32 %v2633, %v2422
        %v2635 = vsub.f32 %v2628, %v2634
        %v2636 = vmul.f32 %v2635, %v2635
        %v2637 = vsel %vm1078, %v2636, 0.0
        %2638 = vadd.xlane.f32.xlu0 %v2637
        %v2639 = vpop.xlane.xlu0 %2638
        %v2640 = vmul.f32 %v2639, %v2422
        %v2641 = vadd.f32 %v2640, 1e-05
        %v2642 = vrsqrt.pop %v2641
        %v2643 = vmul.f32 %v2635, %v2642
        %v2644 = vunpack.c.l.bf16 %v2629
        %v2645 = vlaneseq
        %v2646 = vshrl.u32 %v2645, 7
        %v2647 = vsub.s32 0, %v2646
        %v2648 = vrot.slane %v2644, %v2647
        %v2649 = vmul.f32 %v2643, %v2648
        %v2650 = vunpack.c.l.bf16 %v2630
        %v2651 = vlaneseq
        %v2652 = vshrl.u32 %v2651, 7
        %v2653 = vsub.s32 0, %v2652
        %v2654 = vrot.slane %v2650, %v2653
        %v2655 = vadd.f32 %v2649, %v2654
        %s2656 = smul.u32 %s60, 8
        %s2657 = scalar_lea.vmem %s902, %s2656 [#allocation6]
        %v2658 = vld [vmem:[%s2657] sm:$0xff]
        %v2659 = vld [vmem:[#allocation30] sm:$0xf]
        %v2660 = vld [vmem:[#allocation30 + $0x4] sm:$0xf]
        %v2661 = vld [vmem:[#allocation30 + $0x8] sm:$0xf]
        %v2662 = vld [vmem:[#allocation30 + $0xc] sm:$0xf]
        %v2663 = vpack.c.bf16 %v2658, %v2658
        %v2664 = vld [vmem:[#allocation32] sm:$0xf]
        %v2665 = vld [vmem:[#allocation32 + $0x4] sm:$0xf]
        %v2666 = vld [vmem:[#allocation32 + $0x8] sm:$0xf]
        %v2667 = vld [vmem:[#allocation32 + $0xc] sm:$0xf]
        %v2668 = vpack.c.bf16 %v2655, %v2655
        %v2673 = vunpack.c.l.b16 %v2664
        %v2674 = vunpack.c.l.b16 %v2665
        %v2675 = vunpack.c.l.b16 %v2666
        %v2676 = vunpack.c.l.b16 %v2667
        %v2677 = vpack.c.b16 %v2674, %v2673
        %v2678 = vpack.c.b16 %v2676, %v2675
        %v2682 = vsel %vm1078, %v2668, 0
        %2684 = vmatprep.subr.bf16.mxu0 0
        %2685 = vmatpush1.bf16.msra.mxu0 %v2677
        %2686 = vmatprep.subr.bf16.mxu0 0
        %2687 = vmatpush1.bf16.msra.mxu0 %v2678
        %2688 = vmatprep.subr.bf16.mxu0 0
        %2689 = vmatpush1.bf16.msra.mxu0 0
        %2690 = vmatprep.subr.bf16.mxu0 0
        %2691 = vmatpush1.bf16.msra.mxu0 0
        %2692 = vmatprep.subr.bf16.mxu0 0
        %2693 = vmatpush1.bf16.msra.mxu0 0
        %2694 = vmatprep.subr.bf16.mxu0 0
        %2695 = vmatpush1.bf16.msra.mxu0 0
        %2696 = vmatprep.subr.bf16.mxu0 0
        %2697 = vmatpush1.bf16.msra.mxu0 0
        %2698 = vmatprep.subr.bf16.mxu0 0
        %2699 = vmatpush1.bf16.msra.mxu0 0
        %2700 = vmatprep.subr.bf16.mxu0 0
        %2701 = vmatpush1.bf16.msra.mxu0 0
        %2702 = vmatprep.subr.bf16.mxu0 0
        %2703 = vmatpush1.bf16.msra.mxu0 0
        %2704 = vmatprep.subr.bf16.mxu0 0
        %2705 = vmatpush1.bf16.msra.mxu0 0
        %2706 = vmatprep.subr.bf16.mxu0 0
        %2707 = vmatpush1.bf16.msra.mxu0 0
        %2708 = vmatprep.subr.bf16.mxu0 0
        %2709 = vmatpush1.bf16.msra.mxu0 0
        %2710 = vmatprep.subr.bf16.mxu0 0
        %2711 = vmatpush1.bf16.msra.mxu0 0
        %2712 = vmatprep.subr.bf16.mxu0 0
        %2713 = vmatpush1.bf16.msra.mxu0 0
        %2714 = vmatprep.subr.bf16.mxu0 0
        %2715 = vmatpush1.bf16.msra.mxu0 0
        %2716 = vmatprep.mubr.bf16.mxu0 0
        %2717 = vmatmul.mubr.bf16.gmra.mrb[0].mxu0 %v2682
        %v2718 = vpop.f32.mrb[0].mxu0
        %v2719 = vadd.f32 0.0, %v2718
        %v2720 = vpop.f32.mrb[0].mxu0
        %v2721 = vpop.f32.mrb[0].mxu0
        %v2722 = vpop.f32.mrb[0].mxu0
        %2723 = vdwg.mxu0
        %v2728 = vunpack.c.l.b16 %v2659
        %v2729 = vunpack.c.l.b16 %v2660
        %v2730 = vunpack.c.l.b16 %v2661
        %v2731 = vunpack.c.l.b16 %v2662
        %v2732 = vpack.c.b16 %v2729, %v2728
        %v2733 = vpack.c.b16 %v2731, %v2730
        %v2737 = vsel %vm1078, %v2663, 0
        %2739 = vmatprep.subr.bf16.mxu0 0
        %2740 = vmatpush1.bf16.msra.mxu0 %v2732
        %2741 = vmatprep.subr.bf16.mxu0 0
        %2742 = vmatpush1.bf16.msra.mxu0 %v2733
        %2743 = vmatprep.subr.bf16.mxu0 0
        %2744 = vmatpush1.bf16.msra.mxu0 0
        %2745 = vmatprep.subr.bf16.mxu0 0
        %2746 = vmatpush1.bf16.msra.mxu0 0
        %2747 = vmatprep.subr.bf16.mxu0 0
        %2748 = vmatpush1.bf16.msra.mxu0 0
        %2749 = vmatprep.subr.bf16.mxu0 0
        %2750 = vmatpush1.bf16.msra.mxu0 0
        %2751 = vmatprep.subr.bf16.mxu0 0
        %2752 = vmatpush1.bf16.msra.mxu0 0
        %2753 = vmatprep.subr.bf16.mxu0 0
        %2754 = vmatpush1.bf16.msra.mxu0 0
        %2755 = vmatprep.subr.bf16.mxu0 0
        %2756 = vmatpush1.bf16.msra.mxu0 0
        %2757 = vmatprep.subr.bf16.mxu0 0
        %2758 = vmatpush1.bf16.msra.mxu0 0
        %2759 = vmatprep.subr.bf16.mxu0 0
        %2760 = vmatpush1.bf16.msra.mxu0 0
        %2761 = vmatprep.subr.bf16.mxu0 0
        %2762 = vmatpush1.bf16.msra.mxu0 0
        %2763 = vmatprep.subr.bf16.mxu0 0
        %2764 = vmatpush1.bf16.msra.mxu0 0
        %2765 = vmatprep.subr.bf16.mxu0 0
        %2766 = vmatpush1.bf16.msra.mxu0 0
        %2767 = vmatprep.subr.bf16.mxu0 0
        %2768 = vmatpush1.bf16.msra.mxu0 0
        %2769 = vmatprep.subr.bf16.mxu0 0
        %2770 = vmatpush1.bf16.msra.mxu0 0
        %2771 = vmatprep.mubr.bf16.mxu0 0
        %2772 = vmatmul.mubr.bf16.gmra.mrb[0].mxu0 %v2737
        %v2773 = vpop.f32.mrb[0].mxu0
        %v2774 = vadd.f32 %v2719, %v2773
        %v2775 = vpop.f32.mrb[0].mxu0
        %v2776 = vpop.f32.mrb[0].mxu0
        %v2777 = vpop.f32.mrb[0].mxu0
        %2778 = vdwg.mxu0
        %v2779 = vld [vmem:[#allocation33] sm:$0x1]
        %v2780 = vunpack.c.l.bf16 %v2779
        %v2781 = vlaneseq
        %v2782 = vshrl.u32 %v2781, 7
        %v2783 = vsub.s32 0, %v2782
        %v2784 = vrot.slane %v2780, %v2783
        %v2785 = vadd.f32 %v2774, %v2784
        %v2786 = vxor.u32 %v2785, 2147483648
        %v2787 = vmul.f32 %v2786, 1.442695
        %v2788 = vpow.pop %v2787
        %v2789 = vadd.f32 %v2788, 1.0
        %v2790 = vrcp.pop %v2789
        %v2791 = vmul.f32 1.0, %v2790
        %v2792 = vmul.f32 %v2791, %v2658
        %v2793 = vsub.f32 1.0, %v2791
        %v2794 = vmul.f32 %v2793, %v2655
        %v2795 = vadd.f32 %v2792, %v2794
        %v2796 = vld [vmem:[#allocation35] sm:$0xf]
        %v2797 = vld [vmem:[#allocation35 + $0x4] sm:$0xf]
        %v2798 = vld [vmem:[#allocation35 + $0x8] sm:$0xf]
        %v2799 = vld [vmem:[#allocation35 + $0xc] sm:$0xf]
        %v2800 = vpack.c.bf16 %v2795, %v2795
        %v2801 = vld [vmem:[#allocation36] sm:$0x1]
        %v2802 = vunpack.c.l.bf16 %v2801
        %v2803 = vlaneseq
        %v2804 = vshrl.u32 %v2803, 7
        %v2805 = vsub.s32 0, %v2804
        %v2806 = vrot.slane %v2802, %v2805
        %v2811 = vunpack.c.l.b16 %v2796
        %v2812 = vunpack.c.l.b16 %v2797
        %v2813 = vunpack.c.l.b16 %v2798
        %v2814 = vunpack.c.l.b16 %v2799
        %v2815 = vpack.c.b16 %v2812, %v2811
        %v2816 = vpack.c.b16 %v2814, %v2813
        %v2820 = vsel %vm1078, %v2800, 0
        %2822 = vmatprep.subr.bf16.mxu0 0
        %2823 = vmatpush1.bf16.msra.mxu0 %v2815
        %2824 = vmatprep.subr.bf16.mxu0 0
        %2825 = vmatpush1.bf16.msra.mxu0 %v2816
        %2826 = vmatprep.subr.bf16.mxu0 0
        %2827 = vmatpush1.bf16.msra.mxu0 0
        %2828 = vmatprep.subr.bf16.mxu0 0
        %2829 = vmatpush1.bf16.msra.mxu0 0
        %2830 = vmatprep.subr.bf16.mxu0 0
        %2831 = vmatpush1.bf16.msra.mxu0 0
        %2832 = vmatprep.subr.bf16.mxu0 0
        %2833 = vmatpush1.bf16.msra.mxu0 0
        %2834 = vmatprep.subr.bf16.mxu0 0
        %2835 = vmatpush1.bf16.msra.mxu0 0
        %2836 = vmatprep.subr.bf16.mxu0 0
        %2837 = vmatpush1.bf16.msra.mxu0 0
        %2838 = vmatprep.subr.bf16.mxu0 0
        %2839 = vmatpush1.bf16.msra.mxu0 0
        %2840 = vmatprep.subr.bf16.mxu0 0
        %2841 = vmatpush1.bf16.msra.mxu0 0
        %2842 = vmatprep.subr.bf16.mxu0 0
        %2843 = vmatpush1.bf16.msra.mxu0 0
        %2844 = vmatprep.subr.bf16.mxu0 0
        %2845 = vmatpush1.bf16.msra.mxu0 0
        %2846 = vmatprep.subr.bf16.mxu0 0
        %2847 = vmatpush1.bf16.msra.mxu0 0
        %2848 = vmatprep.subr.bf16.mxu0 0
        %2849 = vmatpush1.bf16.msra.mxu0 0
        %2850 = vmatprep.subr.bf16.mxu0 0
        %2851 = vmatpush1.bf16.msra.mxu0 0
        %2852 = vmatprep.subr.bf16.mxu0 0
        %2853 = vmatpush1.bf16.msra.mxu0 0
        %2854 = vmatprep.mubr.bf16.mxu0 0
        %2855 = vmatmul.mubr.bf16.gmra.mrb[0].mxu0 %v2820
        %v2856 = vpop.f32.mrb[0].mxu0
        %v2857 = vadd.f32 %v2806, %v2856
        %v2858 = vpop.f32.mrb[0].mxu0
        %v2859 = vpop.f32.mrb[0].mxu0
        %v2860 = vpop.f32.mrb[0].mxu0
        %2861 = vdwg.mxu0
        %2862 = vst.msk [vmem:[%s1049] sm:$0xff] %vm1078, %v2857
        %s2863 = sand.u32 %s572, 1
        %s2864 = scalar_lea.sflag [#allocation5], %s2863
        %s2865 = sand.u32 %s572, 1
        %s2866 = smul.addr %s2865, 8
        %s2867 = scalar_lea.vmem [#allocation38], %s2866
        // Predicated region
        $region201: #{balanced_cross_transformer.3} parent=111 // pred_check
          %p2868 = pneg %p582
        $region202: #{balanced_cross_transformer.3} parent=111 // pred_check_branch
          %2870 = sbr.rel (%p2868) target = $region204
        $region203: #{balanced_cross_transformer.3} parent=111 // pred_region
          %s2871 = sadd.s32 %s59, %s60
          %s2873 = ssub.s32 128, 128
          %2874 = vsyncadd %s2864, %s2873
          %s2875 = smul.addr %s2871, 128
          %s2876 = scalar_lea.hbm %s23, %s2875
          %s2878 = sshll.u32 %s2867, 4
          %s2879 = int_to_ptr.vmem [resolvable:$true] %s2878
          %2881 = dma.vmem_to_hbm [thread:$0]  %s2879, 128, %s2876, %s2864
        $region204: #{balanced_cross_transformer.3} parent=111 // pred_fallthru
          _
      $region112: #{balanced_cross_transformer.3} parent=5 // pred_fallthru
        _
      %p2882 = scmp.le.s32.totalorder 2, %s50
      // Predicated region
      $region205: #{balanced_cross_transformer.3} parent=5 // pred_check
        %p2883 = pneg %p2882
      $region206: #{balanced_cross_transformer.3} parent=5 // pred_check_branch
        %2885 = sbr.rel (%p2883) target = $region208
      $region207: #{balanced_cross_transformer.3} parent=5 // pred_region
        %s2886 = ssub.s32 %s50, 2
        // Predicated region
        $region209: #{balanced_cross_transformer.3} parent=207 // pred_check
          %p2887 = pneg %p588
        $region210: #{balanced_cross_transformer.3} parent=207 // pred_check_branch
          %2889 = sbr.rel (%p2887) target = $region212
        $region211: #{balanced_cross_transformer.3} parent=207 // pred_region
          %s2890 = sand.u32 %s573, 1
          %s2891 = scalar_lea.sflag [#allocation5], %s2890
          %s2892 = sand.u32 %s573, 1
          %s2893 = smul.addr %s2892, 8
          %s2894 = scalar_lea.vmem [#allocation38], %s2893
          %2895 = dma.done %s2891, 128
        $region212: #{balanced_cross_transformer.3} parent=207 // pred_fallthru
          _
      $region208: #{balanced_cross_transformer.3} parent=5 // pred_fallthru
        _
    $region6: #{balanced_cross_transformer.3} parent=1 // loop_footer
      %s54 = sadd.s32 1, %s50
    $region7: #{balanced_cross_transformer.3} parent=1 // loop_footer_branch
      %49 = sbr.rel target = $region3
    $region8: #{balanced_cross_transformer.3} parent=1 // loop_exit
      _
    %2896 = vsyncpa [#allocation4], 1
    %s2897 = scalar_lea.sflag [#allocation4], 1
    %2898 = vsyncpa %s2897, 1
    %2899 = vsyncpa [#allocation7], 1
    %s2900 = scalar_lea.sflag [#allocation7], 1
    %2901 = vsyncpa %s2900, 1
    %2902 = vsyncpa [#allocation10], 1
    %2903 = vsyncpa [#allocation13], 1
    %2904 = vsyncpa [#allocation16], 1
    %2905 = vsyncpa [#allocation19], 1
    %2906 = vsyncpa [#allocation22], 1
    %2907 = vsyncpa [#allocation25], 1
    %2908 = vsyncpa [#allocation28], 1
    %2909 = vsyncpa [#allocation31], 1
    %2910 = vsyncpa [#allocation34], 1
    %2911 = vsyncpa [#allocation37], 1
    %2912 = vsyncpa [#allocation5], 1
    %s2913 = scalar_lea.sflag [#allocation5], 1
    %2914 = vsyncpa %s2913, 1

</llo_original>
